<compile_context>
chip_gen: v5e
topology: v5e:2x2
jax: 0.10.0
libtpu: 0.0.40
codegen_flags: <defaults>
</compile_context>

<pallas_src>
import numpy as np
import jax
import jax.numpy as jnp
from jax.experimental import pallas as pl
from jax.experimental.pallas import tpu as pltpu

EPS = 1e-5        # nn.BatchNorm1d default eps
LANES = 128       # TPU lane width
CHUNK = 128       # layer-3 output-channel chunk (<=128 keeps chunk in vregs)
POINT_TILE = 512  # point-axis tile; safe on v5e/v6e/v7x (1024 viable on v6e)


# --------------------------------------------------------------------------
# Kernel
# --------------------------------------------------------------------------
def _stn3d_kernel(x_ref,
                  w1_ref, b1_ref, w2_ref, b2_ref, w3_ref, b3_ref,
                  w4_ref, b4_ref, w5_ref, b5_ref, w6_ref, b6_ref,
                  out_ref, acc_ref):
    """Fused STN3d forward for one (batch, point-tile) grid step.

    Grid: (B, NT); nt (inner, "arbitrary") tiles the point axis.
      x_ref   : (1, 3, T)      bf16 native (B, 3, N) slice, points on lanes
      w*_ref  : (Cout, Cin)    bf16 (BN folded in)
      b*_ref  : (Cout, 1)      f32  (BN folded; b6 also carries +I3)
      out_ref : (1, 9, 1)      f32
      acc_ref : (1024, LANES)  f32  running column-wise max accumulator
    """
    nt = pl.program_id(1)

    @pl.when(nt == 0)
    def _init():
        acc_ref[...] = jnp.full_like(acc_ref, -jnp.inf)

    # ---- per-point MLP 3 -> 64 -> 128 (points stay on lanes) --------------
    x = x_ref[0]                                                   # (3, T) bf16
    h1 = jnp.dot(w1_ref[...], x,
                 preferred_element_type=jnp.float32) + b1_ref[...]
    h1 = jnp.maximum(h1, 0.0).astype(jnp.bfloat16)                 # (64, T)
    h2 = jnp.dot(w2_ref[...], h1,
                 preferred_element_type=jnp.float32) + b2_ref[...]
    h2 = jnp.maximum(h2, 0.0).astype(jnp.bfloat16)                 # (128, T)

    # ---- layer 3 (128 -> 1024) with the point-max fused in ----------------
    # Channel-chunked so the full (1024, T) f32 result is never materialized:
    # each 128-row chunk is max-folded across its T point columns and merged
    # into the running accumulator immediately.  Layer-3 bias + ReLU are
    # deferred past the max pool (both monotonic; bias constant over points).
    t = h2.shape[1]
    n_fold = t // LANES
    for c in range(1024 // CHUNK):          # static; 8 chunks of 128 channels
        lo, hi = c * CHUNK, (c + 1) * CHUNK
        z = jnp.dot(w3_ref[lo:hi, :], h2,
                    preferred_element_type=jnp.float32)            # (CHUNK, T)
        m = z[:, :LANES]
        for i in range(1, n_fold):          # static, <= 3 extra folds
            m = jnp.maximum(m, z[:, i * LANES:(i + 1) * LANES])
        acc_ref[lo:hi, :] = jnp.maximum(acc_ref[lo:hi, :], m)

    # ---- last tile of this batch row: finish pooling + fused FC head ------
    @pl.when(nt == pl.num_programs(1) - 1)
    def _head():
        # torch.max(x, 2)[0] -> (1024, 1); deferred bn3 bias + ReLU.
        f = jnp.max(acc_ref[...], axis=1, keepdims=True) + b3_ref[...]
        f = jnp.maximum(f, 0.0).astype(jnp.bfloat16)               # (1024, 1)
        h4 = jnp.dot(w4_ref[...], f,
                     preferred_element_type=jnp.float32) + b4_ref[...]
        h4 = jnp.maximum(h4, 0.0).astype(jnp.bfloat16)             # (512, 1)
        h5 = jnp.dot(w5_ref[...], h4,
                     preferred_element_type=jnp.float32) + b5_ref[...]
        h5 = jnp.maximum(h5, 0.0).astype(jnp.bfloat16)             # (256, 1)
        y = jnp.dot(w6_ref[...], h5,
                    preferred_element_type=jnp.float32) + b6_ref[...]  # (9,1)
        # Output is tiny (9 floats / batch row); lane-sparsity is irrelevant.
        out_ref[...] = y.reshape(1, 9, 1)


# --------------------------------------------------------------------------
# Wrapper
# --------------------------------------------------------------------------
def _fold_bn(w, b, gamma, beta, mean, var):
    """Fold y = BN(x @ w + b) into y = x @ w' + b' (inference-mode BN)."""
    s = gamma / jnp.sqrt(var + EPS)
    return w * s[None, :], (b - mean) * s + beta


def stn3d_forward(x_b3n, params):
    """x_b3n: (B, 3, N) float32 (PyTorch layout).  Returns (B, 3, 3)."""
    B, C, N = x_b3n.shape
    assert C == 3

    # Pad the point axis by replicating the last point (duplicates never
    # change a max-pool):
    #   * N <= POINT_TILE : single tile of round_up(N, 128) points.
    #   * N >  POINT_TILE : pad to a multiple of the FULL tile so ragged N
    #                       never degrades to many small grid steps.
    n128 = ((N + LANES - 1) // LANES) * LANES
    if n128 <= POINT_TILE:
        T, Np = n128, n128
    else:
        T = POINT_TILE
        Np = ((N + T - 1) // T) * T
    x = x_b3n.astype(jnp.bfloat16)
    if Np != N:
        x = jnp.pad(x, ((0, 0), (0, 0), (0, Np - N)), mode="edge")
    NT = Np // T

    # Fold BN (inference) into the conv / fc weights; transpose to (Cout, Cin).
    w1, b1 = _fold_bn(params["w1"], params["b1"], *params["bn1"])
    w2, b2 = _fold_bn(params["w2"], params["b2"], *params["bn2"])
    w3, b3 = _fold_bn(params["w3"], params["b3"], *params["bn3"])
    w4, b4 = _fold_bn(params["w4"], params["b4"], *params["bn4"])
    w5, b5 = _fold_bn(params["w5"], params["b5"], *params["bn5"])
    w6, b6 = params["w6"], params["b6"]
    # Fold the "+ identity" of STN3d straight into fc3's bias.
    b6 = b6 + jnp.eye(3, dtype=jnp.float32).reshape(9)

    def wt(w):                           # (Cin, Cout) -> (Cout, Cin) bf16
        return jnp.transpose(w).astype(jnp.bfloat16)

    def bc(b):                           # (Cout,) -> (Cout, 1) f32 column
        return b.astype(jnp.float32)[:, None]

    w1t, w2t, w3t, w4t, w5t, w6t = wt(w1), wt(w2), wt(w3), wt(w4), wt(w5), wt(w6)
    b1c, b2c, b3c = bc(b1), bc(b2), bc(b3)
    b4c, b5c, b6c = bc(b4), bc(b5), bc(b6)

    def const(blk):                      # weight/bias blocks never move
        return pl.BlockSpec(blk, lambda b, nt: (0, 0))

    # Advisory cost estimate for XLA's scheduler.
    flops = int(2 * B * Np * (3 * 64 + 64 * 128 + 128 * 1024)
                + 2 * B * (1024 * 512 + 512 * 256 + 256 * 9))
    w_bytes = (64 * 3 + 128 * 64 + 1024 * 128
               + 512 * 1024 + 256 * 512 + 9 * 256) * 2            # bf16
    b_bytes = (64 + 128 + 1024 + 512 + 256 + 9) * 4               # f32
    bytes_accessed = int(B * 3 * Np * 2 + w_bytes + b_bytes + B * 9 * 4)

    out = pl.pallas_call(
        _stn3d_kernel,
        out_shape=jax.ShapeDtypeStruct((B, 9, 1), jnp.float32),
        grid_spec=pltpu.PrefetchScalarGridSpec(
            num_scalar_prefetch=0,
            grid=(B, NT),
            in_specs=[
                pl.BlockSpec((1, 3, T), lambda b, nt: (b, 0, nt)),
                const((64, 3)), const((64, 1)),
                const((128, 64)), const((128, 1)),
                const((1024, 128)), const((1024, 1)),
                const((512, 1024)), const((512, 1)),
                const((256, 512)), const((256, 1)),
                const((9, 256)), const((9, 1)),
            ],
            out_specs=pl.BlockSpec((1, 9, 1), lambda b, nt: (b, 0, 0)),
            scratch_shapes=[pltpu.VMEM((1024, LANES), jnp.float32)],
        ),
        compiler_params=pltpu.CompilerParams(
            dimension_semantics=("parallel", "arbitrary")),
        cost_estimate=pl.CostEstimate(flops=flops, transcendentals=0,
                                      bytes_accessed=bytes_accessed),
    )(x, w1t, b1c, w2t, b2c, w3t, b3c, w4t, b4c, w5t, b5c, w6t, b6c)

    return out.reshape(B, 3, 3)


# --------------------------------------------------------------------------
# Pure-JAX f32 reference (module semantics, inference-mode BN).
# --------------------------------------------------------------------------
def stn3d_reference(x_b3n, params):
    x = jnp.transpose(x_b3n, (0, 2, 1)).astype(jnp.float32)   # (B, N, 3)
    w1, b1 = _fold_bn(params["w1"], params["b1"], *params["bn1"])
    w2, b2 = _fold_bn(params["w2"], params["b2"], *params["bn2"])
    w3, b3 = _fold_bn(params["w3"], params["b3"], *params["bn3"])
    w4, b4 = _fold_bn(params["w4"], params["b4"], *params["bn4"])
    w5, b5 = _fold_bn(params["w5"], params["b5"], *params["bn5"])
    h = jnp.maximum(x @ w1 + b1, 0.0)
    h = jnp.maximum(h @ w2 + b2, 0.0)
    h = jnp.maximum(h @ w3 + b3, 0.0)
    f = jnp.max(h, axis=1)                                    # (B, 1024)
    h = jnp.maximum(f @ w4 + b4, 0.0)
    h = jnp.maximum(h @ w5 + b5, 0.0)
    y = h @ params["w6"] + params["b6"]
    y = y + jnp.eye(3, dtype=jnp.float32).reshape(1, 9)
    return y.reshape(-1, 3, 3)


# --------------------------------------------------------------------------
# Deterministic parameter construction (synthetic; shapes from __init__).
# --------------------------------------------------------------------------
def make_params(key):
    ks = jax.random.split(key, 32)
    kit = iter(ks)

    def lin(cin, cout, scale):
        w = jax.random.normal(next(kit), (cin, cout), jnp.float32) * scale
        b = jax.random.normal(next(kit), (cout,), jnp.float32) * 0.01
        return w, b

    def bn(c):
        gamma = 1.0 + 0.1 * jax.random.normal(next(kit), (c,), jnp.float32)
        beta = 0.05 * jax.random.normal(next(kit), (c,), jnp.float32)
        mean = 0.02 * jax.random.normal(next(kit), (c,), jnp.float32)
        var = 1.0 + 0.1 * jax.nn.sigmoid(
            jax.random.normal(next(kit), (c,), jnp.float32))
        return gamma, beta, mean, var

    p = {}
    p["w1"], p["b1"] = lin(3, 64, 0.3)       # conv1 (kernel=1) as (Cin, Cout)
    p["w2"], p["b2"] = lin(64, 128, 0.1)     # conv2
    p["w3"], p["b3"] = lin(128, 1024, 0.05)  # conv3
    p["w4"], p["b4"] = lin(1024, 512, 0.02)  # fc1
    p["w5"], p["b5"] = lin(512, 256, 0.03)   # fc2
    p["w6"], p["b6"] = lin(256, 9, 0.03)     # fc3
    p["bn1"], p["bn2"], p["bn3"] = bn(64), bn(128), bn(1024)
    p["bn4"], p["bn5"] = bn(512), bn(256)
    # TODO(synk): PyTorch BatchNorm1d in training mode uses batch statistics;
    # this kernel implements inference-mode BN with fixed running stats.
    return p


if __name__ == "__main__":
    root = jax.random.PRNGKey(0)
    kp, kx1, kx2, kx3 = jax.random.split(root, 4)
    params = make_params(kp)

    # Single-tile ragged N, single-tile mid-size N, and multi-tile ragged N.
    for kx, (B, N) in [(kx1, (2, 16)), (kx2, (2, 320)), (kx3, (2, 700))]:
        x = jax.random.normal(kx, (B, 3, N), jnp.float32)
        out = jax.block_until_ready(stn3d_forward(x, params))
        ref = stn3d_reference(x, params)
        assert out.shape == (B, 3, 3), out.shape
        # bf16 MXU inputs (f32 accumulation) -> loosened tolerance vs the
        # f32 reference.
        np.testing.assert_allclose(np.asarray(out), np.asarray(ref),
                                   rtol=3e-2, atol=3e-2)

    print("KERNEL_OK")
</pallas_src>

<mosaic_0001>
module attributes {stable_mosaic.version = 11 : i64} {
  func.func @_stn3d_kernel(%arg0: i32, %arg1: i32, %arg2: memref<1x3x128xbf16, #tpu.memory_space<vmem>>, %arg3: memref<64x3xbf16, #tpu.memory_space<vmem>>, %arg4: memref<64x1xf32, #tpu.memory_space<vmem>>, %arg5: memref<128x64xbf16, #tpu.memory_space<vmem>>, %arg6: memref<128x1xf32, #tpu.memory_space<vmem>>, %arg7: memref<1024x128xbf16, #tpu.memory_space<vmem>>, %arg8: memref<1024x1xf32, #tpu.memory_space<vmem>>, %arg9: memref<512x1024xbf16, #tpu.memory_space<vmem>>, %arg10: memref<512x1xf32, #tpu.memory_space<vmem>>, %arg11: memref<256x512xbf16, #tpu.memory_space<vmem>>, %arg12: memref<256x1xf32, #tpu.memory_space<vmem>>, %arg13: memref<9x256xbf16, #tpu.memory_space<vmem>>, %arg14: memref<9x1xf32, #tpu.memory_space<vmem>>, %arg15: memref<1x9x1xf32, #tpu.memory_space<vmem>>, %arg16: memref<1024x128xf32, #tpu.memory_space<vmem>>) attributes {dimension_semantics = [#tpu.dimension_semantics<parallel>, #tpu.dimension_semantics<arbitrary>], iteration_bounds = array<i64: 2, 1>, scalar_prefetch = 0 : i64, scratch_operands = 1 : i64, tpu.core_type = #tpu.core_type<tc>, window_params = [{transform_indices = @transform_0, window_bounds = array<i64: 1, 3, 128>}, {pipeline_mode = #tpu.pipeline_mode<synchronous>, transform_indices = @transform_1, window_bounds = array<i64: 64, 3>}, {pipeline_mode = #tpu.pipeline_mode<synchronous>, transform_indices = @transform_2, window_bounds = array<i64: 64, 1>}, {pipeline_mode = #tpu.pipeline_mode<synchronous>, transform_indices = @transform_3, window_bounds = array<i64: 128, 64>}, {pipeline_mode = #tpu.pipeline_mode<synchronous>, transform_indices = @transform_4, window_bounds = array<i64: 128, 1>}, {pipeline_mode = #tpu.pipeline_mode<synchronous>, transform_indices = @transform_5, window_bounds = array<i64: 1024, 128>}, {pipeline_mode = #tpu.pipeline_mode<synchronous>, transform_indices = @transform_6, window_bounds = array<i64: 1024, 1>}, {pipeline_mode = #tpu.pipeline_mode<synchronous>, transform_indices = @transform_7, window_bounds = array<i64: 512, 1024>}, {pipeline_mode = #tpu.pipeline_mode<synchronous>, transform_indices = @transform_8, window_bounds = array<i64: 512, 1>}, {pipeline_mode = #tpu.pipeline_mode<synchronous>, transform_indices = @transform_9, window_bounds = array<i64: 256, 512>}, {pipeline_mode = #tpu.pipeline_mode<synchronous>, transform_indices = @transform_10, window_bounds = array<i64: 256, 1>}, {pipeline_mode = #tpu.pipeline_mode<synchronous>, transform_indices = @transform_11, window_bounds = array<i64: 9, 256>}, {pipeline_mode = #tpu.pipeline_mode<synchronous>, transform_indices = @transform_12, window_bounds = array<i64: 9, 1>}, {transform_indices = @transform_13, window_bounds = array<i64: 1, 9, 1>}]} {
    %c0_i32 = arith.constant 0 : i32
    %0 = arith.cmpi eq, %arg1, %c0_i32 : i32
    %1 = arith.extui %0 : i1 to i32
    %c0_i32_0 = arith.constant 0 : i32
    %2 = arith.cmpi ne, %1, %c0_i32_0 : i32
    scf.if %2 {
      %cst_65 = arith.constant 0xFF800000 : f32
      %64 = vector.broadcast %cst_65 : f32 to vector<1024x128xf32>
      %c0_66 = arith.constant 0 : index
      %c0_67 = arith.constant 0 : index
      %65 = vector.load %arg16[%c0_66, %c0_67] : memref<1024x128xf32, #tpu.memory_space<vmem>>, vector<1024x128xf32>
      tpu.vector_store %arg16[%c0_66, %c0_67], %64 {strides = array<i32>} : memref<1024x128xf32, #tpu.memory_space<vmem>>, vector<1024x128xf32>,
    } else {
    }
    %c0 = arith.constant 0 : index
    %c0_1 = arith.constant 0 : index
    %c0_2 = arith.constant 0 : index
    %3 = vector.load %arg2[%c0, %c0_1, %c0_2] : memref<1x3x128xbf16, #tpu.memory_space<vmem>>, vector<1x3x128xbf16>
    %4 = vector.shape_cast %3 : vector<1x3x128xbf16> to vector<3x128xbf16>
    %c0_3 = arith.constant 0 : index
    %c0_4 = arith.constant 0 : index
    %5 = vector.load %arg3[%c0_3, %c0_4] : memref<64x3xbf16, #tpu.memory_space<vmem>>, vector<64x3xbf16>
    %cst = arith.constant dense<0.000000e+00> : vector<64x128xf32>
    %6 = tpu.matmul %5, %4, %cst {dimension_numbers = #tpu.dot_dimension_numbers<[1], [0], [0], [1], [0, 0, 1, 1], [], []>} : vector<64x3xbf16>, vector<3x128xbf16>, vector<64x128xf32> -> vector<64x128xf32>
    %c0_5 = arith.constant 0 : index
    %c0_6 = arith.constant 0 : index
    %7 = vector.load %arg4[%c0_5, %c0_6] : memref<64x1xf32, #tpu.memory_space<vmem>>, vector<64x1xf32>
    %8 = vector.broadcast %7 : vector<64x1xf32> to vector<64x128xf32>
    %9 = arith.addf %6, %8 : vector<64x128xf32>
    %cst_7 = arith.constant 0.000000e+00 : f32
    %10 = vector.broadcast %cst_7 : f32 to vector<64x128xf32>
    %11 = arith.maximumf %9, %10 : vector<64x128xf32>
    %12 = arith.truncf %11 : vector<64x128xf32> to vector<64x128xbf16>
    %c0_8 = arith.constant 0 : index
    %c0_9 = arith.constant 0 : index
    %13 = vector.load %arg5[%c0_8, %c0_9] : memref<128x64xbf16, #tpu.memory_space<vmem>>, vector<128x64xbf16>
    %cst_10 = arith.constant dense<0.000000e+00> : vector<128x128xf32>
    %14 = tpu.matmul %13, %12, %cst_10 {dimension_numbers = #tpu.dot_dimension_numbers<[1], [0], [0], [1], [0, 0, 1, 1], [], []>} : vector<128x64xbf16>, vector<64x128xbf16>, vector<128x128xf32> -> vector<128x128xf32>
    %c0_11 = arith.constant 0 : index
    %c0_12 = arith.constant 0 : index
    %15 = vector.load %arg6[%c0_11, %c0_12] : memref<128x1xf32, #tpu.memory_space<vmem>>, vector<128x1xf32>
    %16 = vector.broadcast %15 : vector<128x1xf32> to vector<128x128xf32>
    %17 = arith.addf %14, %16 : vector<128x128xf32>
    %cst_13 = arith.constant 0.000000e+00 : f32
    %18 = vector.broadcast %cst_13 : f32 to vector<128x128xf32>
    %19 = arith.maximumf %17, %18 : vector<128x128xf32>
    %20 = arith.truncf %19 : vector<128x128xf32> to vector<128x128xbf16>
    %c0_14 = arith.constant 0 : index
    %c0_15 = arith.constant 0 : index
    %21 = vector.load %arg7[%c0_14, %c0_15] : memref<1024x128xbf16, #tpu.memory_space<vmem>>, vector<128x128xbf16>
    %cst_16 = arith.constant dense<0.000000e+00> : vector<128x128xf32>
    %22 = tpu.matmul %21, %20, %cst_16 {dimension_numbers = #tpu.dot_dimension_numbers<[1], [0], [0], [1], [0, 0, 1, 1], [], []>} : vector<128x128xbf16>, vector<128x128xbf16>, vector<128x128xf32> -> vector<128x128xf32>
    %c0_17 = arith.constant 0 : index
    %c0_18 = arith.constant 0 : index
    %23 = vector.load %arg16[%c0_17, %c0_18] : memref<1024x128xf32, #tpu.memory_space<vmem>>, vector<128x128xf32>
    %24 = arith.maximumf %23, %22 : vector<128x128xf32>
    %c0_19 = arith.constant 0 : index
    %c0_20 = arith.constant 0 : index
    %25 = vector.load %arg16[%c0_19, %c0_20] : memref<1024x128xf32, #tpu.memory_space<vmem>>, vector<128x128xf32>
    tpu.vector_store %arg16[%c0_19, %c0_20], %24 {strides = array<i32>} : memref<1024x128xf32, #tpu.memory_space<vmem>>, vector<128x128xf32>,
    %c128 = arith.constant 128 : index
    %c0_21 = arith.constant 0 : index
    %26 = vector.load %arg7[%c128, %c0_21] : memref<1024x128xbf16, #tpu.memory_space<vmem>>, vector<128x128xbf16>
    %cst_22 = arith.constant dense<0.000000e+00> : vector<128x128xf32>
    %27 = tpu.matmul %26, %20, %cst_22 {dimension_numbers = #tpu.dot_dimension_numbers<[1], [0], [0], [1], [0, 0, 1, 1], [], []>} : vector<128x128xbf16>, vector<128x128xbf16>, vector<128x128xf32> -> vector<128x128xf32>
    %c128_23 = arith.constant 128 : index
    %c0_24 = arith.constant 0 : index
    %28 = vector.load %arg16[%c128_23, %c0_24] : memref<1024x128xf32, #tpu.memory_space<vmem>>, vector<128x128xf32>
    %29 = arith.maximumf %28, %27 : vector<128x128xf32>
    %c128_25 = arith.constant 128 : index
    %c0_26 = arith.constant 0 : index
    %30 = vector.load %arg16[%c128_25, %c0_26] : memref<1024x128xf32, #tpu.memory_space<vmem>>, vector<128x128xf32>
    tpu.vector_store %arg16[%c128_25, %c0_26], %29 {strides = array<i32>} : memref<1024x128xf32, #tpu.memory_space<vmem>>, vector<128x128xf32>,
    %c256 = arith.constant 256 : index
    %c0_27 = arith.constant 0 : index
    %31 = vector.load %arg7[%c256, %c0_27] : memref<1024x128xbf16, #tpu.memory_space<vmem>>, vector<128x128xbf16>
    %cst_28 = arith.constant dense<0.000000e+00> : vector<128x128xf32>
    %32 = tpu.matmul %31, %20, %cst_28 {dimension_numbers = #tpu.dot_dimension_numbers<[1], [0], [0], [1], [0, 0, 1, 1], [], []>} : vector<128x128xbf16>, vector<128x128xbf16>, vector<128x128xf32> -> vector<128x128xf32>
    %c256_29 = arith.constant 256 : index
    %c0_30 = arith.constant 0 : index
    %33 = vector.load %arg16[%c256_29, %c0_30] : memref<1024x128xf32, #tpu.memory_space<vmem>>, vector<128x128xf32>
    %34 = arith.maximumf %33, %32 : vector<128x128xf32>
    %c256_31 = arith.constant 256 : index
    %c0_32 = arith.constant 0 : index
    %35 = vector.load %arg16[%c256_31, %c0_32] : memref<1024x128xf32, #tpu.memory_space<vmem>>, vector<128x128xf32>
    tpu.vector_store %arg16[%c256_31, %c0_32], %34 {strides = array<i32>} : memref<1024x128xf32, #tpu.memory_space<vmem>>, vector<128x128xf32>,
    %c384 = arith.constant 384 : index
    %c0_33 = arith.constant 0 : index
    %36 = vector.load %arg7[%c384, %c0_33] : memref<1024x128xbf16, #tpu.memory_space<vmem>>, vector<128x128xbf16>
    %cst_34 = arith.constant dense<0.000000e+00> : vector<128x128xf32>
    %37 = tpu.matmul %36, %20, %cst_34 {dimension_numbers = #tpu.dot_dimension_numbers<[1], [0], [0], [1], [0, 0, 1, 1], [], []>} : vector<128x128xbf16>, vector<128x128xbf16>, vector<128x128xf32> -> vector<128x128xf32>
    %c384_35 = arith.constant 384 : index
    %c0_36 = arith.constant 0 : index
    %38 = vector.load %arg16[%c384_35, %c0_36] : memref<1024x128xf32, #tpu.memory_space<vmem>>, vector<128x128xf32>
    %39 = arith.maximumf %38, %37 : vector<128x128xf32>
    %c384_37 = arith.constant 384 : index
    %c0_38 = arith.constant 0 : index
    %40 = vector.load %arg16[%c384_37, %c0_38] : memref<1024x128xf32, #tpu.memory_space<vmem>>, vector<128x128xf32>
    tpu.vector_store %arg16[%c384_37, %c0_38], %39 {strides = array<i32>} : memref<1024x128xf32, #tpu.memory_space<vmem>>, vector<128x128xf32>,
    %c512 = arith.constant 512 : index
    %c0_39 = arith.constant 0 : index
    %41 = vector.load %arg7[%c512, %c0_39] : memref<1024x128xbf16, #tpu.memory_space<vmem>>, vector<128x128xbf16>
    %cst_40 = arith.constant dense<0.000000e+00> : vector<128x128xf32>
    %42 = tpu.matmul %41, %20, %cst_40 {dimension_numbers = #tpu.dot_dimension_numbers<[1], [0], [0], [1], [0, 0, 1, 1], [], []>} : vector<128x128xbf16>, vector<128x128xbf16>, vector<128x128xf32> -> vector<128x128xf32>
    %c512_41 = arith.constant 512 : index
    %c0_42 = arith.constant 0 : index
    %43 = vector.load %arg16[%c512_41, %c0_42] : memref<1024x128xf32, #tpu.memory_space<vmem>>, vector<128x128xf32>
    %44 = arith.maximumf %43, %42 : vector<128x128xf32>
    %c512_43 = arith.constant 512 : index
    %c0_44 = arith.constant 0 : index
    %45 = vector.load %arg16[%c512_43, %c0_44] : memref<1024x128xf32, #tpu.memory_space<vmem>>, vector<128x128xf32>
    tpu.vector_store %arg16[%c512_43, %c0_44], %44 {strides = array<i32>} : memref<1024x128xf32, #tpu.memory_space<vmem>>, vector<128x128xf32>,
    %c640 = arith.constant 640 : index
    %c0_45 = arith.constant 0 : index
    %46 = vector.load %arg7[%c640, %c0_45] : memref<1024x128xbf16, #tpu.memory_space<vmem>>, vector<128x128xbf16>
    %cst_46 = arith.constant dense<0.000000e+00> : vector<128x128xf32>
    %47 = tpu.matmul %46, %20, %cst_46 {dimension_numbers = #tpu.dot_dimension_numbers<[1], [0], [0], [1], [0, 0, 1, 1], [], []>} : vector<128x128xbf16>, vector<128x128xbf16>, vector<128x128xf32> -> vector<128x128xf32>
    %c640_47 = arith.constant 640 : index
    %c0_48 = arith.constant 0 : index
    %48 = vector.load %arg16[%c640_47, %c0_48] : memref<1024x128xf32, #tpu.memory_space<vmem>>, vector<128x128xf32>
    %49 = arith.maximumf %48, %47 : vector<128x128xf32>
    %c640_49 = arith.constant 640 : index
    %c0_50 = arith.constant 0 : index
    %50 = vector.load %arg16[%c640_49, %c0_50] : memref<1024x128xf32, #tpu.memory_space<vmem>>, vector<128x128xf32>
    tpu.vector_store %arg16[%c640_49, %c0_50], %49 {strides = array<i32>} : memref<1024x128xf32, #tpu.memory_space<vmem>>, vector<128x128xf32>,
    %c768 = arith.constant 768 : index
    %c0_51 = arith.constant 0 : index
    %51 = vector.load %arg7[%c768, %c0_51] : memref<1024x128xbf16, #tpu.memory_space<vmem>>, vector<128x128xbf16>
    %cst_52 = arith.constant dense<0.000000e+00> : vector<128x128xf32>
    %52 = tpu.matmul %51, %20, %cst_52 {dimension_numbers = #tpu.dot_dimension_numbers<[1], [0], [0], [1], [0, 0, 1, 1], [], []>} : vector<128x128xbf16>, vector<128x128xbf16>, vector<128x128xf32> -> vector<128x128xf32>
    %c768_53 = arith.constant 768 : index
    %c0_54 = arith.constant 0 : index
    %53 = vector.load %arg16[%c768_53, %c0_54] : memref<1024x128xf32, #tpu.memory_space<vmem>>, vector<128x128xf32>
    %54 = arith.maximumf %53, %52 : vector<128x128xf32>
    %c768_55 = arith.constant 768 : index
    %c0_56 = arith.constant 0 : index
    %55 = vector.load %arg16[%c768_55, %c0_56] : memref<1024x128xf32, #tpu.memory_space<vmem>>, vector<128x128xf32>
    tpu.vector_store %arg16[%c768_55, %c0_56], %54 {strides = array<i32>} : memref<1024x128xf32, #tpu.memory_space<vmem>>, vector<128x128xf32>,
    %c896 = arith.constant 896 : index
    %c0_57 = arith.constant 0 : index
    %56 = vector.load %arg7[%c896, %c0_57] : memref<1024x128xbf16, #tpu.memory_space<vmem>>, vector<128x128xbf16>
    %cst_58 = arith.constant dense<0.000000e+00> : vector<128x128xf32>
    %57 = tpu.matmul %56, %20, %cst_58 {dimension_numbers = #tpu.dot_dimension_numbers<[1], [0], [0], [1], [0, 0, 1, 1], [], []>} : vector<128x128xbf16>, vector<128x128xbf16>, vector<128x128xf32> -> vector<128x128xf32>
    %c896_59 = arith.constant 896 : index
    %c0_60 = arith.constant 0 : index
    %58 = vector.load %arg16[%c896_59, %c0_60] : memref<1024x128xf32, #tpu.memory_space<vmem>>, vector<128x128xf32>
    %59 = arith.maximumf %58, %57 : vector<128x128xf32>
    %c896_61 = arith.constant 896 : index
    %c0_62 = arith.constant 0 : index
    %60 = vector.load %arg16[%c896_61, %c0_62] : memref<1024x128xf32, #tpu.memory_space<vmem>>, vector<128x128xf32>
    tpu.vector_store %arg16[%c896_61, %c0_62], %59 {strides = array<i32>} : memref<1024x128xf32, #tpu.memory_space<vmem>>, vector<128x128xf32>,
    %c0_i32_63 = arith.constant 0 : i32
    %61 = arith.cmpi eq, %arg1, %c0_i32_63 : i32
    %62 = arith.extui %61 : i1 to i32
    %c0_i32_64 = arith.constant 0 : i32
    %63 = arith.cmpi ne, %62, %c0_i32_64 : i32
    scf.if %63 {
      %c0_65 = arith.constant 0 : index
      %c0_66 = arith.constant 0 : index
      %64 = vector.load %arg16[%c0_65, %c0_66] : memref<1024x128xf32, #tpu.memory_space<vmem>>, vector<1024x128xf32>
      %cst_67 = arith.constant dense<0xFF800000> : vector<1024xf32>
      %65 = vector.multi_reduction <maximumf>, %64, %cst_67 [1] : vector<1024x128xf32> to vector<1024xf32>
      %66 = vector.shape_cast %65 : vector<1024xf32> to vector<1024x1xf32>
      %c0_68 = arith.constant 0 : index
      %c0_69 = arith.constant 0 : index
      %67 = vector.load %arg8[%c0_68, %c0_69] : memref<1024x1xf32, #tpu.memory_space<vmem>>, vector<1024x1xf32>
      %68 = arith.addf %66, %67 : vector<1024x1xf32>
      %cst_70 = arith.constant 0.000000e+00 : f32
      %69 = vector.broadcast %cst_70 : f32 to vector<1024x1xf32>
      %70 = arith.maximumf %68, %69 : vector<1024x1xf32>
      %71 = arith.truncf %70 : vector<1024x1xf32> to vector<1024x1xbf16>
      %c0_71 = arith.constant 0 : index
      %c0_72 = arith.constant 0 : index
      %72 = vector.load %arg9[%c0_71, %c0_72] : memref<512x1024xbf16, #tpu.memory_space<vmem>>, vector<512x1024xbf16>
      %cst_73 = arith.constant dense<0.000000e+00> : vector<512x1xf32>
      %73 = tpu.matmul %72, %71, %cst_73 {dimension_numbers = #tpu.dot_dimension_numbers<[1], [0], [0], [1], [0, 0, 1, 1], [], []>} : vector<512x1024xbf16>, vector<1024x1xbf16>, vector<512x1xf32> -> vector<512x1xf32>
      %c0_74 = arith.constant 0 : index
      %c0_75 = arith.constant 0 : index
      %74 = vector.load %arg10[%c0_74, %c0_75] : memref<512x1xf32, #tpu.memory_space<vmem>>, vector<512x1xf32>
      %75 = arith.addf %73, %74 : vector<512x1xf32>
      %cst_76 = arith.constant 0.000000e+00 : f32
      %76 = vector.broadcast %cst_76 : f32 to vector<512x1xf32>
      %77 = arith.maximumf %75, %76 : vector<512x1xf32>
      %78 = arith.truncf %77 : vector<512x1xf32> to vector<512x1xbf16>
      %c0_77 = arith.constant 0 : index
      %c0_78 = arith.constant 0 : index
      %79 = vector.load %arg11[%c0_77, %c0_78] : memref<256x512xbf16, #tpu.memory_space<vmem>>, vector<256x512xbf16>
      %cst_79 = arith.constant dense<0.000000e+00> : vector<256x1xf32>
      %80 = tpu.matmul %79, %78, %cst_79 {dimension_numbers = #tpu.dot_dimension_numbers<[1], [0], [0], [1], [0, 0, 1, 1], [], []>} : vector<256x512xbf16>, vector<512x1xbf16>, vector<256x1xf32> -> vector<256x1xf32>
      %c0_80 = arith.constant 0 : index
      %c0_81 = arith.constant 0 : index
      %81 = vector.load %arg12[%c0_80, %c0_81] : memref<256x1xf32, #tpu.memory_space<vmem>>, vector<256x1xf32>
      %82 = arith.addf %80, %81 : vector<256x1xf32>
      %cst_82 = arith.constant 0.000000e+00 : f32
      %83 = vector.broadcast %cst_82 : f32 to vector<256x1xf32>
      %84 = arith.maximumf %82, %83 : vector<256x1xf32>
      %85 = arith.truncf %84 : vector<256x1xf32> to vector<256x1xbf16>
      %c0_83 = arith.constant 0 : index
      %c0_84 = arith.constant 0 : index
      %86 = vector.load %arg13[%c0_83, %c0_84] : memref<9x256xbf16, #tpu.memory_space<vmem>>, vector<9x256xbf16>
      %cst_85 = arith.constant dense<0.000000e+00> : vector<9x1xf32>
      %87 = tpu.matmul %86, %85, %cst_85 {dimension_numbers = #tpu.dot_dimension_numbers<[1], [0], [0], [1], [0, 0, 1, 1], [], []>} : vector<9x256xbf16>, vector<256x1xbf16>, vector<9x1xf32> -> vector<9x1xf32>
      %c0_86 = arith.constant 0 : index
      %c0_87 = arith.constant 0 : index
      %88 = vector.load %arg14[%c0_86, %c0_87] : memref<9x1xf32, #tpu.memory_space<vmem>>, vector<9x1xf32>
      %89 = arith.addf %87, %88 : vector<9x1xf32>
      %90 = vector.shape_cast %89 : vector<9x1xf32> to vector<1x9x1xf32>
      %c0_88 = arith.constant 0 : index
      %c0_89 = arith.constant 0 : index
      %c0_90 = arith.constant 0 : index
      %91 = vector.load %arg15[%c0_88, %c0_89, %c0_90] : memref<1x9x1xf32, #tpu.memory_space<vmem>>, vector<1x9x1xf32>
      tpu.vector_store %arg15[%c0_88, %c0_89, %c0_90], %90 {strides = array<i32>} : memref<1x9x1xf32, #tpu.memory_space<vmem>>, vector<1x9x1xf32>,
    } else {
    }
    return
  }
  func.func @transform_0(%arg0: i32, %arg1: i32) -> (i32, i32, i32) {
    %c0_i32 = arith.constant 0 : i32
    %c0_i32_0 = arith.constant 0 : i32
    return %arg0, %c0_i32, %arg1 : i32, i32, i32
  }
  func.func @transform_1(%arg0: i32, %arg1: i32) -> (i32, i32) {
    %c0_i32 = arith.constant 0 : i32
    %c0_i32_0 = arith.constant 0 : i32
    %c0_i32_1 = arith.constant 0 : i32
    return %c0_i32, %c0_i32_0 : i32, i32
  }
  func.func @transform_2(%arg0: i32, %arg1: i32) -> (i32, i32) {
    %c0_i32 = arith.constant 0 : i32
    %c0_i32_0 = arith.constant 0 : i32
    %c0_i32_1 = arith.constant 0 : i32
    return %c0_i32, %c0_i32_0 : i32, i32
  }
  func.func @transform_3(%arg0: i32, %arg1: i32) -> (i32, i32) {
    %c0_i32 = arith.constant 0 : i32
    %c0_i32_0 = arith.constant 0 : i32
    %c0_i32_1 = arith.constant 0 : i32
    return %c0_i32, %c0_i32_0 : i32, i32
  }
  func.func @transform_4(%arg0: i32, %arg1: i32) -> (i32, i32) {
    %c0_i32 = arith.constant 0 : i32
    %c0_i32_0 = arith.constant 0 : i32
    %c0_i32_1 = arith.constant 0 : i32
    return %c0_i32, %c0_i32_0 : i32, i32
  }
  func.func @transform_5(%arg0: i32, %arg1: i32) -> (i32, i32) {
    %c0_i32 = arith.constant 0 : i32
    %c0_i32_0 = arith.constant 0 : i32
    %c0_i32_1 = arith.constant 0 : i32
    return %c0_i32, %c0_i32_0 : i32, i32
  }
  func.func @transform_6(%arg0: i32, %arg1: i32) -> (i32, i32) {
    %c0_i32 = arith.constant 0 : i32
    %c0_i32_0 = arith.constant 0 : i32
    %c0_i32_1 = arith.constant 0 : i32
    return %c0_i32, %c0_i32_0 : i32, i32
  }
  func.func @transform_7(%arg0: i32, %arg1: i32) -> (i32, i32) {
    %c0_i32 = arith.constant 0 : i32
    %c0_i32_0 = arith.constant 0 : i32
    %c0_i32_1 = arith.constant 0 : i32
    return %c0_i32, %c0_i32_0 : i32, i32
  }
  func.func @transform_8(%arg0: i32, %arg1: i32) -> (i32, i32) {
    %c0_i32 = arith.constant 0 : i32
    %c0_i32_0 = arith.constant 0 : i32
    %c0_i32_1 = arith.constant 0 : i32
    return %c0_i32, %c0_i32_0 : i32, i32
  }
  func.func @transform_9(%arg0: i32, %arg1: i32) -> (i32, i32) {
    %c0_i32 = arith.constant 0 : i32
    %c0_i32_0 = arith.constant 0 : i32
    %c0_i32_1 = arith.constant 0 : i32
    return %c0_i32, %c0_i32_0 : i32, i32
  }
  func.func @transform_10(%arg0: i32, %arg1: i32) -> (i32, i32) {
    %c0_i32 = arith.constant 0 : i32
    %c0_i32_0 = arith.constant 0 : i32
    %c0_i32_1 = arith.constant 0 : i32
    return %c0_i32, %c0_i32_0 : i32, i32
  }
  func.func @transform_11(%arg0: i32, %arg1: i32) -> (i32, i32) {
    %c0_i32 = arith.constant 0 : i32
    %c0_i32_0 = arith.constant 0 : i32
    %c0_i32_1 = arith.constant 0 : i32
    return %c0_i32, %c0_i32_0 : i32, i32
  }
  func.func @transform_12(%arg0: i32, %arg1: i32) -> (i32, i32) {
    %c0_i32 = arith.constant 0 : i32
    %c0_i32_0 = arith.constant 0 : i32
    %c0_i32_1 = arith.constant 0 : i32
    return %c0_i32, %c0_i32_0 : i32, i32
  }
  func.func @transform_13(%arg0: i32, %arg1: i32) -> (i32, i32, i32) {
    %c0_i32 = arith.constant 0 : i32
    %c0_i32_0 = arith.constant 0 : i32
    %c0_i32_1 = arith.constant 0 : i32
    return %arg0, %c0_i32, %c0_i32_0 : i32, i32, i32
  }
}

</mosaic_0001>

<llo_original>
// kernel: tpu_custom_call.1
$region0: #{tpu_custom_call.1}
  #allocation0 [shape = 'u32[]', space=smem, size = 0x4, offset = 0x4, fixed_abs, tag = 'smem constant byte address 0x4 - core index']
  #allocation1 [shape = 'u32[72,128]{1,0:T(1,128)}', space=vmem, size = 0x9000, scoped, tag = 'internal scratch']
  #allocation2 [shape = 'f32[1024,128]{1,0:T(8,128)}', space=vmem, size = 0x80000, scoped, tag = 'scratch operand']
  %s0 = inlined_call_operand.vmem [shape: bf16[2,3,128], index: 0, kind: input, shape index: {}]
  %s1 = inlined_call_operand.vmem [shape: bf16[64,3], index: 1, kind: input, shape index: {}]
  %s2 = inlined_call_operand.vmem [shape: f32[64,1], index: 2, kind: input, shape index: {}]
  %s3 = inlined_call_operand.vmem [shape: bf16[128,64], index: 3, kind: input, shape index: {}]
  %s4 = inlined_call_operand.vmem [shape: f32[128,1], index: 4, kind: input, shape index: {}]
  %s5 = inlined_call_operand.hbm [shape: bf16[1024,128], index: 5, kind: input, shape index: {}]
  %s6 = inlined_call_operand.vmem [shape: f32[1024,1], index: 6, kind: input, shape index: {}]
  %s7 = inlined_call_operand.vmem [shape: bf16[512,1024], index: 7, kind: input, shape index: {}]
  %s8 = inlined_call_operand.vmem [shape: f32[512,1], index: 8, kind: input, shape index: {}]
  %s9 = inlined_call_operand.hbm [shape: bf16[256,512], index: 9, kind: input, shape index: {}]
  %s10 = inlined_call_operand.vmem [shape: f32[256,1], index: 10, kind: input, shape index: {}]
  %s11 = inlined_call_operand.vmem [shape: bf16[9,256], index: 11, kind: input, shape index: {}]
  %s12 = inlined_call_operand.vmem [shape: f32[9,1], index: 12, kind: input, shape index: {}]
  %s13 = inlined_call_operand.vmem [shape: f32[2,9,1], index: 13, kind: output, shape index: {}]
  %s14 = sld [smem:[#allocation0]]
  $region101: #{tpu_custom_call.1} parent=0
    _
  %s16 = ssub.s32 1, %s14
  %s17 = scalar_select 0, %s16, %s14
  $region1: #{tpu_custom_call.1} parent=0
    #allocation3 [shape = 'u8[262144]{0}', space=vmem, size = 0x40000, scoped, tag = 'input window, operand 5, single buffered']
    #allocation4 [shape = 's32[2]{0}', space=sflag, size = 0x8, scoped, tag = 'scoped memory for tpu_custom_call.1']
    #allocation5 [shape = 'u8[262144]{0}', space=vmem, size = 0x40000, scoped, tag = 'input window, operand 9, single buffered']
    #allocation6 [shape = 's32[1]{0}', space=sflag, size = 0x4, scoped, tag = 'scoped memory for tpu_custom_call.1']
    %18 = vsyncpa [#allocation4], 0
    %19 = vsyncpa [#allocation6], 0
    loop: start=0, step=1, limit=4
    $region2: #{tpu_custom_call.1} parent=1 // loop_pre_header
      _
    $region3: #{tpu_custom_call.1} parent=1 // loop_header
      %s21 = sphi 0, %s25
      %p22 = scmp.ge.s32.totalorder %s21, 4
      %s28 = sphi 0, %s40
      %s29 = sphi 0, %s36
      %s30 = sphi 0, %s28
      %s31 = sphi 0, %s29
      %s32 = sphi 0, %s30
      %s33 = sphi 0, %s31
      %s45 = sphi 0, %s47
      %s48 = sphi 0, %s45
      %s49 = sphi 0, %s48
      %s65 = sphi 0, %s49
      %s69 = sphi 0, %s69
      %s71 = sphi 0, %s69
      %s72 = sphi 0, %s71
      %s86 = sphi 0, %s72
      %s90 = sphi 0, %s90
      %s92 = sphi 0, %s90
      %s93 = sphi 0, %s92
      %s107 = sphi 0, %s93
      %s111 = sphi 0, %s111
      %s113 = sphi 0, %s111
      %s114 = sphi 0, %s113
      %s128 = sphi 0, %s114
      %s132 = sphi 0, %s132
      %s134 = sphi 0, %s132
      %s135 = sphi 0, %s134
      %s149 = sphi 0, %s135
      %s153 = sphi 0, %s153
      %s155 = sphi 0, %s153
      %s156 = sphi 0, %s155
      %s170 = sphi 0, %s156
      %s174 = sphi 0, %s174
      %s176 = sphi 0, %s174
      %s177 = sphi 0, %s176
      %s191 = sphi 0, %s177
      %s195 = sphi 0, %s195
      %s197 = sphi 0, %s195
      %s198 = sphi 0, %s197
      %s212 = sphi 0, %s198
      %s216 = sphi 0, %s216
      %s218 = sphi 0, %s216
      %s219 = sphi 0, %s218
      %s233 = sphi 0, %s219
      %s237 = sphi 0, %s237
      %s239 = sphi 0, %s237
      %s240 = sphi 0, %s239
      %s254 = sphi 0, %s240
      %s258 = sphi 0, %s258
      %s260 = sphi 0, %s258
      %s261 = sphi 0, %s260
      %s275 = sphi 0, %s261
      %s279 = sphi 0, %s279
      %s281 = sphi 0, %s279
      %s282 = sphi 0, %s281
      %s296 = sphi 0, %s282
      %s300 = sphi 0, %s300
      %s302 = sphi 0, %s300
      %s303 = sphi 0, %s302
      %s317 = sphi 0, %s303
      %s323 = sphi 0, %s325
      %s326 = sphi 0, %s323
      %s327 = sphi 0, %s326
      %s343 = sphi 0, %s327
    $region4: #{tpu_custom_call.1} parent=1 // loop_header_branch
      %24 = sbr.rel (%p22) target = $region8
    $region5: #{tpu_custom_call.1} parent=1 // loop_body
      %s26 = ssub.s32 %s21, 1
      %s27 = ssub.s32 %s21, 2
      %s34 = sadd.s32 1, %s29
      %p35 = scmp.ge.s32.totalorder %s34, 1
      %s36 = scalar_select %p35, 0, %s34
      %s37 = sadd.s32 1, %s28
      %s38 = scalar_select %p35, %s37, %s28
      %p39 = scmp.ge.s32.totalorder %s38, 2
      %s40 = scalar_select %p39, 0, %s38
      %s41 = ssub.s32 %s28, %s40
      %s42 = ssub.s32 %s29, %s36
      %s43 = sor.u32 %s41, %s42
      %p44 = scmp.eq.s32.totalorder %s43, 0
      %s46 = sadd.s32 %s45, 1
      %s47 = scalar_select %p44, %s45, %s46
      %p50 = pneg %p44
      %p51 = scmp.eq.s32.totalorder %s21, 1
      %p52 = por %p50, %p51
      %p53 = scmp.ne.s32.totalorder %s45, %s48
      %p54 = scmp.eq.s32.totalorder %s21, 0
      %p55 = por %p53, %p54
      %p56 = scmp.ne.s32.totalorder %s45, %s48
      %p57 = scmp.eq.s32.totalorder %s26, 1
      %p58 = por %p56, %p57
      %p59 = scmp.ne.s32.totalorder %s48, %s49
      %p60 = scmp.eq.s32.totalorder %s26, 0
      %p61 = por %p59, %p60
      %p62 = scmp.ne.s32.totalorder %s48, %s49
      %p63 = scmp.eq.s32.totalorder %s27, 1
      %p64 = por %p62, %p63
      %p66 = scmp.ne.s32.totalorder %s49, %s65
      %p67 = scmp.eq.s32.totalorder %s27, 0
      %p68 = por %p66, %p67
      %s70 = sadd.s32 %s69, 1
      %p73 = scmp.eq.s32.totalorder %s21, 1
      %p74 = scmp.ne.s32.totalorder %s69, %s71
      %p75 = scmp.eq.s32.totalorder %s21, 0
      %p76 = por %p74, %p75
      %p77 = scmp.ne.s32.totalorder %s69, %s71
      %p78 = scmp.eq.s32.totalorder %s26, 1
      %p79 = por %p77, %p78
      %p80 = scmp.ne.s32.totalorder %s71, %s72
      %p81 = scmp.eq.s32.totalorder %s26, 0
      %p82 = por %p80, %p81
      %p83 = scmp.ne.s32.totalorder %s71, %s72
      %p84 = scmp.eq.s32.totalorder %s27, 1
      %p85 = por %p83, %p84
      %p87 = scmp.ne.s32.totalorder %s72, %s86
      %p88 = scmp.eq.s32.totalorder %s27, 0
      %p89 = por %p87, %p88
      %s91 = sadd.s32 %s90, 1
      %p94 = scmp.eq.s32.totalorder %s21, 1
      %p95 = scmp.ne.s32.totalorder %s90, %s92
      %p96 = scmp.eq.s32.totalorder %s21, 0
      %p97 = por %p95, %p96
      %p98 = scmp.ne.s32.totalorder %s90, %s92
      %p99 = scmp.eq.s32.totalorder %s26, 1
      %p100 = por %p98, %p99
      %p101 = scmp.ne.s32.totalorder %s92, %s93
      %p102 = scmp.eq.s32.totalorder %s26, 0
      %p103 = por %p101, %p102
      %p104 = scmp.ne.s32.totalorder %s92, %s93
      %p105 = scmp.eq.s32.totalorder %s27, 1
      %p106 = por %p104, %p105
      %p108 = scmp.ne.s32.totalorder %s93, %s107
      %p109 = scmp.eq.s32.totalorder %s27, 0
      %p110 = por %p108, %p109
      %s112 = sadd.s32 %s111, 1
      %p115 = scmp.eq.s32.totalorder %s21, 1
      %p116 = scmp.ne.s32.totalorder %s111, %s113
      %p117 = scmp.eq.s32.totalorder %s21, 0
      %p118 = por %p116, %p117
      %p119 = scmp.ne.s32.totalorder %s111, %s113
      %p120 = scmp.eq.s32.totalorder %s26, 1
      %p121 = por %p119, %p120
      %p122 = scmp.ne.s32.totalorder %s113, %s114
      %p123 = scmp.eq.s32.totalorder %s26, 0
      %p124 = por %p122, %p123
      %p125 = scmp.ne.s32.totalorder %s113, %s114
      %p126 = scmp.eq.s32.totalorder %s27, 1
      %p127 = por %p125, %p126
      %p129 = scmp.ne.s32.totalorder %s114, %s128
      %p130 = scmp.eq.s32.totalorder %s27, 0
      %p131 = por %p129, %p130
      %s133 = sadd.s32 %s132, 1
      %p136 = scmp.eq.s32.totalorder %s21, 1
      %p137 = scmp.ne.s32.totalorder %s132, %s134
      %p138 = scmp.eq.s32.totalorder %s21, 0
      %p139 = por %p137, %p138
      %p140 = scmp.ne.s32.totalorder %s132, %s134
      %p141 = scmp.eq.s32.totalorder %s26, 1
      %p142 = por %p140, %p141
      %p143 = scmp.ne.s32.totalorder %s134, %s135
      %p144 = scmp.eq.s32.totalorder %s26, 0
      %p145 = por %p143, %p144
      %p146 = scmp.ne.s32.totalorder %s134, %s135
      %p147 = scmp.eq.s32.totalorder %s27, 1
      %p148 = por %p146, %p147
      %p150 = scmp.ne.s32.totalorder %s135, %s149
      %p151 = scmp.eq.s32.totalorder %s27, 0
      %p152 = por %p150, %p151
      %s154 = sadd.s32 %s153, 1
      %p157 = scmp.eq.s32.totalorder %s21, 1
      %p158 = scmp.ne.s32.totalorder %s153, %s155
      %p159 = scmp.eq.s32.totalorder %s21, 0
      %p160 = por %p158, %p159
      %p161 = scmp.ne.s32.totalorder %s153, %s155
      %p162 = scmp.eq.s32.totalorder %s26, 1
      %p163 = por %p161, %p162
      %p164 = scmp.ne.s32.totalorder %s155, %s156
      %p165 = scmp.eq.s32.totalorder %s26, 0
      %p166 = por %p164, %p165
      %p167 = scmp.ne.s32.totalorder %s155, %s156
      %p168 = scmp.eq.s32.totalorder %s27, 1
      %p169 = por %p167, %p168
      %p171 = scmp.ne.s32.totalorder %s156, %s170
      %p172 = scmp.eq.s32.totalorder %s27, 0
      %p173 = por %p171, %p172
      %s175 = sadd.s32 %s174, 1
      %p178 = scmp.eq.s32.totalorder %s21, 1
      %p179 = scmp.ne.s32.totalorder %s174, %s176
      %p180 = scmp.eq.s32.totalorder %s21, 0
      %p181 = por %p179, %p180
      %p182 = scmp.ne.s32.totalorder %s174, %s176
      %p183 = scmp.eq.s32.totalorder %s26, 1
      %p184 = por %p182, %p183
      %p185 = scmp.ne.s32.totalorder %s176, %s177
      %p186 = scmp.eq.s32.totalorder %s26, 0
      %p187 = por %p185, %p186
      %p188 = scmp.ne.s32.totalorder %s176, %s177
      %p189 = scmp.eq.s32.totalorder %s27, 1
      %p190 = por %p188, %p189
      %p192 = scmp.ne.s32.totalorder %s177, %s191
      %p193 = scmp.eq.s32.totalorder %s27, 0
      %p194 = por %p192, %p193
      %s196 = sadd.s32 %s195, 1
      %p199 = scmp.eq.s32.totalorder %s21, 1
      %p200 = scmp.ne.s32.totalorder %s195, %s197
      %p201 = scmp.eq.s32.totalorder %s21, 0
      %p202 = por %p200, %p201
      %p203 = scmp.ne.s32.totalorder %s195, %s197
      %p204 = scmp.eq.s32.totalorder %s26, 1
      %p205 = por %p203, %p204
      %p206 = scmp.ne.s32.totalorder %s197, %s198
      %p207 = scmp.eq.s32.totalorder %s26, 0
      %p208 = por %p206, %p207
      %p209 = scmp.ne.s32.totalorder %s197, %s198
      %p210 = scmp.eq.s32.totalorder %s27, 1
      %p211 = por %p209, %p210
      %p213 = scmp.ne.s32.totalorder %s198, %s212
      %p214 = scmp.eq.s32.totalorder %s27, 0
      %p215 = por %p213, %p214
      %s217 = sadd.s32 %s216, 1
      %p220 = scmp.eq.s32.totalorder %s21, 1
      %p221 = scmp.ne.s32.totalorder %s216, %s218
      %p222 = scmp.eq.s32.totalorder %s21, 0
      %p223 = por %p221, %p222
      %p224 = scmp.ne.s32.totalorder %s216, %s218
      %p225 = scmp.eq.s32.totalorder %s26, 1
      %p226 = por %p224, %p225
      %p227 = scmp.ne.s32.totalorder %s218, %s219
      %p228 = scmp.eq.s32.totalorder %s26, 0
      %p229 = por %p227, %p228
      %p230 = scmp.ne.s32.totalorder %s218, %s219
      %p231 = scmp.eq.s32.totalorder %s27, 1
      %p232 = por %p230, %p231
      %p234 = scmp.ne.s32.totalorder %s219, %s233
      %p235 = scmp.eq.s32.totalorder %s27, 0
      %p236 = por %p234, %p235
      %s238 = sadd.s32 %s237, 1
      %p241 = scmp.eq.s32.totalorder %s21, 1
      %p242 = scmp.ne.s32.totalorder %s237, %s239
      %p243 = scmp.eq.s32.totalorder %s21, 0
      %p244 = por %p242, %p243
      %p245 = scmp.ne.s32.totalorder %s237, %s239
      %p246 = scmp.eq.s32.totalorder %s26, 1
      %p247 = por %p245, %p246
      %p248 = scmp.ne.s32.totalorder %s239, %s240
      %p249 = scmp.eq.s32.totalorder %s26, 0
      %p250 = por %p248, %p249
      %p251 = scmp.ne.s32.totalorder %s239, %s240
      %p252 = scmp.eq.s32.totalorder %s27, 1
      %p253 = por %p251, %p252
      %p255 = scmp.ne.s32.totalorder %s240, %s254
      %p256 = scmp.eq.s32.totalorder %s27, 0
      %p257 = por %p255, %p256
      %s259 = sadd.s32 %s258, 1
      %p262 = scmp.eq.s32.totalorder %s21, 1
      %p263 = scmp.ne.s32.totalorder %s258, %s260
      %p264 = scmp.eq.s32.totalorder %s21, 0
      %p265 = por %p263, %p264
      %p266 = scmp.ne.s32.totalorder %s258, %s260
      %p267 = scmp.eq.s32.totalorder %s26, 1
      %p268 = por %p266, %p267
      %p269 = scmp.ne.s32.totalorder %s260, %s261
      %p270 = scmp.eq.s32.totalorder %s26, 0
      %p271 = por %p269, %p270
      %p272 = scmp.ne.s32.totalorder %s260, %s261
      %p273 = scmp.eq.s32.totalorder %s27, 1
      %p274 = por %p272, %p273
      %p276 = scmp.ne.s32.totalorder %s261, %s275
      %p277 = scmp.eq.s32.totalorder %s27, 0
      %p278 = por %p276, %p277
      %s280 = sadd.s32 %s279, 1
      %p283 = scmp.eq.s32.totalorder %s21, 1
      %p284 = scmp.ne.s32.totalorder %s279, %s281
      %p285 = scmp.eq.s32.totalorder %s21, 0
      %p286 = por %p284, %p285
      %p287 = scmp.ne.s32.totalorder %s279, %s281
      %p288 = scmp.eq.s32.totalorder %s26, 1
      %p289 = por %p287, %p288
      %p290 = scmp.ne.s32.totalorder %s281, %s282
      %p291 = scmp.eq.s32.totalorder %s26, 0
      %p292 = por %p290, %p291
      %p293 = scmp.ne.s32.totalorder %s281, %s282
      %p294 = scmp.eq.s32.totalorder %s27, 1
      %p295 = por %p293, %p294
      %p297 = scmp.ne.s32.totalorder %s282, %s296
      %p298 = scmp.eq.s32.totalorder %s27, 0
      %p299 = por %p297, %p298
      %s301 = sadd.s32 %s300, 1
      %p304 = scmp.eq.s32.totalorder %s21, 1
      %p305 = scmp.ne.s32.totalorder %s300, %s302
      %p306 = scmp.eq.s32.totalorder %s21, 0
      %p307 = por %p305, %p306
      %p308 = scmp.ne.s32.totalorder %s300, %s302
      %p309 = scmp.eq.s32.totalorder %s26, 1
      %p310 = por %p308, %p309
      %p311 = scmp.ne.s32.totalorder %s302, %s303
      %p312 = scmp.eq.s32.totalorder %s26, 0
      %p313 = por %p311, %p312
      %p314 = scmp.ne.s32.totalorder %s302, %s303
      %p315 = scmp.eq.s32.totalorder %s27, 1
      %p316 = por %p314, %p315
      %p318 = scmp.ne.s32.totalorder %s303, %s317
      %p319 = scmp.eq.s32.totalorder %s27, 0
      %p320 = por %p318, %p319
      %s321 = ssub.s32 %s28, %s40
      %p322 = scmp.eq.s32.totalorder %s321, 0
      %s324 = sadd.s32 %s323, 1
      %s325 = scalar_select %p322, %s323, %s324
      %p328 = pneg %p322
      %p329 = scmp.eq.s32.totalorder %s21, 1
      %p330 = por %p328, %p329
      %p331 = scmp.ne.s32.totalorder %s323, %s326
      %p332 = scmp.eq.s32.totalorder %s21, 0
      %p333 = por %p331, %p332
      %p334 = scmp.ne.s32.totalorder %s323, %s326
      %p335 = scmp.eq.s32.totalorder %s26, 1
      %p336 = por %p334, %p335
      %p337 = scmp.ne.s32.totalorder %s326, %s327
      %p338 = scmp.eq.s32.totalorder %s26, 0
      %p339 = por %p337, %p338
      %p340 = scmp.ne.s32.totalorder %s326, %s327
      %p341 = scmp.eq.s32.totalorder %s27, 1
      %p342 = por %p340, %p341
      %p344 = scmp.ne.s32.totalorder %s327, %s343
      %p345 = scmp.eq.s32.totalorder %s27, 0
      %p346 = por %p344, %p345
      %p347 = scmp.le.s32.totalorder 1, %s21
      %p348 = scmp.lt.s32.totalorder %s21, 3
      %p349 = pnand %p347, %p348
      %p350 = pneg %p349
      // Predicated region
      $region9: #{tpu_custom_call.1} parent=5 // pred_check
        _
      $region10: #{tpu_custom_call.1} parent=5 // pred_check_branch
        %352 = sbr.rel (%p349) target = $region12
      $region11: #{tpu_custom_call.1} parent=5 // pred_region
        %s353 = ssub.s32 %s21, 1
        // Predicated region
        $region13: #{tpu_custom_call.1} parent=11 // pred_check
          %p354 = pneg %p82
        $region14: #{tpu_custom_call.1} parent=11 // pred_check_branch
          %356 = sbr.rel (%p354) target = $region16
        $region15: #{tpu_custom_call.1} parent=11 // pred_region
          _
        $region16: #{tpu_custom_call.1} parent=11 // pred_fallthru
          _
        // Predicated region
        $region17: #{tpu_custom_call.1} parent=11 // pred_check
          %p357 = pneg %p103
        $region18: #{tpu_custom_call.1} parent=11 // pred_check_branch
          %359 = sbr.rel (%p357) target = $region20
        $region19: #{tpu_custom_call.1} parent=11 // pred_region
          _
        $region20: #{tpu_custom_call.1} parent=11 // pred_fallthru
          _
        // Predicated region
        $region21: #{tpu_custom_call.1} parent=11 // pred_check
          %p360 = pneg %p124
        $region22: #{tpu_custom_call.1} parent=11 // pred_check_branch
          %362 = sbr.rel (%p360) target = $region24
        $region23: #{tpu_custom_call.1} parent=11 // pred_region
          _
        $region24: #{tpu_custom_call.1} parent=11 // pred_fallthru
          _
        // Predicated region
        $region25: #{tpu_custom_call.1} parent=11 // pred_check
          %p363 = pneg %p145
        $region26: #{tpu_custom_call.1} parent=11 // pred_check_branch
          %365 = sbr.rel (%p363) target = $region28
        $region27: #{tpu_custom_call.1} parent=11 // pred_region
          _
        $region28: #{tpu_custom_call.1} parent=11 // pred_fallthru
          _
        // Predicated region
        $region29: #{tpu_custom_call.1} parent=11 // pred_check
          %p366 = pneg %p166
        $region30: #{tpu_custom_call.1} parent=11 // pred_check_branch
          %368 = sbr.rel (%p366) target = $region32
        $region31: #{tpu_custom_call.1} parent=11 // pred_region
          %370 = vsyncadd [#allocation4], 0
          %s371 = sshll.u32 %s5, 4
          %s372 = int_to_ptr.hbm [resolvable:$true] %s371
          %s373 = sshll.u32 [#allocation3], 4
          %s374 = int_to_ptr.vmem [resolvable:$true] %s373
          %379 = dma.hbm_to_vmem [thread:$0]  %s372, 8192, %s374, [#allocation4], 64, 64, 4
        $region32: #{tpu_custom_call.1} parent=11 // pred_fallthru
          _
        // Predicated region
        $region33: #{tpu_custom_call.1} parent=11 // pred_check
          %p380 = pneg %p187
        $region34: #{tpu_custom_call.1} parent=11 // pred_check_branch
          %382 = sbr.rel (%p380) target = $region36
        $region35: #{tpu_custom_call.1} parent=11 // pred_region
          _
        $region36: #{tpu_custom_call.1} parent=11 // pred_fallthru
          _
        // Predicated region
        $region37: #{tpu_custom_call.1} parent=11 // pred_check
          %p383 = pneg %p208
        $region38: #{tpu_custom_call.1} parent=11 // pred_check_branch
          %385 = sbr.rel (%p383) target = $region40
        $region39: #{tpu_custom_call.1} parent=11 // pred_region
          _
        $region40: #{tpu_custom_call.1} parent=11 // pred_fallthru
          _
        // Predicated region
        $region41: #{tpu_custom_call.1} parent=11 // pred_check
          %p386 = pneg %p229
        $region42: #{tpu_custom_call.1} parent=11 // pred_check_branch
          %388 = sbr.rel (%p386) target = $region44
        $region43: #{tpu_custom_call.1} parent=11 // pred_region
          _
        $region44: #{tpu_custom_call.1} parent=11 // pred_fallthru
          _
        // Predicated region
        $region45: #{tpu_custom_call.1} parent=11 // pred_check
          %p389 = pneg %p250
        $region46: #{tpu_custom_call.1} parent=11 // pred_check_branch
          %391 = sbr.rel (%p389) target = $region48
        $region47: #{tpu_custom_call.1} parent=11 // pred_region
          %393 = vsyncadd [#allocation6], 0
          %s394 = sshll.u32 %s9, 4
          %s395 = int_to_ptr.hbm [resolvable:$true] %s394
          %s396 = sshll.u32 [#allocation5], 4
          %s397 = int_to_ptr.vmem [resolvable:$true] %s396
          %402 = dma.hbm_to_vmem [thread:$0]  %s395, 8192, %s397, [#allocation6], 256, 256, 16
        $region48: #{tpu_custom_call.1} parent=11 // pred_fallthru
          _
        // Predicated region
        $region49: #{tpu_custom_call.1} parent=11 // pred_check
          %p403 = pneg %p271
        $region50: #{tpu_custom_call.1} parent=11 // pred_check_branch
          %405 = sbr.rel (%p403) target = $region52
        $region51: #{tpu_custom_call.1} parent=11 // pred_region
          _
        $region52: #{tpu_custom_call.1} parent=11 // pred_fallthru
          _
        // Predicated region
        $region53: #{tpu_custom_call.1} parent=11 // pred_check
          %p406 = pneg %p292
        $region54: #{tpu_custom_call.1} parent=11 // pred_check_branch
          %408 = sbr.rel (%p406) target = $region56
        $region55: #{tpu_custom_call.1} parent=11 // pred_region
          _
        $region56: #{tpu_custom_call.1} parent=11 // pred_fallthru
          _
        // Predicated region
        $region57: #{tpu_custom_call.1} parent=11 // pred_check
          %p409 = pneg %p313
        $region58: #{tpu_custom_call.1} parent=11 // pred_check_branch
          %411 = sbr.rel (%p409) target = $region60
        $region59: #{tpu_custom_call.1} parent=11 // pred_region
          _
        $region60: #{tpu_custom_call.1} parent=11 // pred_fallthru
          _
      $region12: #{tpu_custom_call.1} parent=5 // pred_fallthru
        _
      %p412 = scmp.lt.s32.totalorder %s21, 2
      // Predicated region
      $region61: #{tpu_custom_call.1} parent=5 // pred_check
        %p413 = pneg %p412
      $region62: #{tpu_custom_call.1} parent=5 // pred_check_branch
        %415 = sbr.rel (%p413) target = $region64
      $region63: #{tpu_custom_call.1} parent=5 // pred_region
        // Predicated region
        $region65: #{tpu_custom_call.1} parent=63 // pred_check
          %p416 = pneg %p55
        $region66: #{tpu_custom_call.1} parent=63 // pred_check_branch
          %418 = sbr.rel (%p416) target = $region68
        $region67: #{tpu_custom_call.1} parent=63 // pred_region
          %p419 = scmp.lt.s32.totalorder %s28, 1
          %s420 = scalar_select %p419, %s28, 1
          %p421 = scmp.lt.s32.totalorder %s29, 0
          %s422 = scalar_select %p421, %s29, 0
          %s423 = sadd.s32 %s422, %s420
          %s424 = smul.addr %s423, 2
          %s425 = scalar_lea.vmem %s0, %s424
        $region68: #{tpu_custom_call.1} parent=63 // pred_fallthru
          _
      $region64: #{tpu_custom_call.1} parent=5 // pred_fallthru
        _
      %p426 = scmp.le.s32.totalorder 1, %s21
      %p427 = scmp.lt.s32.totalorder %s21, 3
      %p428 = pnand %p426, %p427
      %p429 = pneg %p428
      // Predicated region
      $region69: #{tpu_custom_call.1} parent=5 // pred_check
        _
      $region70: #{tpu_custom_call.1} parent=5 // pred_check_branch
        %431 = sbr.rel (%p428) target = $region72
      $region71: #{tpu_custom_call.1} parent=5 // pred_region
        %s432 = ssub.s32 %s21, 1
        // Predicated region
        $region73: #{tpu_custom_call.1} parent=71 // pred_check
          %p433 = pneg %p166
        $region74: #{tpu_custom_call.1} parent=71 // pred_check_branch
          %435 = sbr.rel (%p433) target = $region76
        $region75: #{tpu_custom_call.1} parent=71 // pred_region
          %437 = dma.done [#allocation4], 8192
        $region76: #{tpu_custom_call.1} parent=71 // pred_fallthru
          _
        // Predicated region
        $region77: #{tpu_custom_call.1} parent=71 // pred_check
          %p438 = pneg %p250
        $region78: #{tpu_custom_call.1} parent=71 // pred_check_branch
          %440 = sbr.rel (%p438) target = $region80
        $region79: #{tpu_custom_call.1} parent=71 // pred_region
          %442 = dma.done [#allocation6], 8192
        $region80: #{tpu_custom_call.1} parent=71 // pred_fallthru
          _
        %p443 = scmp.lt.s32.totalorder %s30, 1
        %s444 = scalar_select %p443, %s30, 1
        %p445 = scmp.lt.s32.totalorder %s31, 0
        %s446 = scalar_select %p445, %s31, 0
        %s447 = sadd.s32 %s446, %s444
        %s448 = smul.addr %s447, 2
        %s449 = scalar_lea.vmem %s0, %s448
        %p450 = pneg %p61
        %p451 = pneg %p58
        %p452 = pneg %p82
        %p453 = pneg %p79
        %p454 = pneg %p103
        %p455 = pneg %p100
        %p456 = pneg %p124
        %p457 = pneg %p121
        %p458 = pneg %p145
        %p459 = pneg %p142
        %p460 = pneg %p166
        %p461 = pneg %p163
        %p462 = pneg %p187
        %p463 = pneg %p184
        %p464 = pneg %p208
        %p465 = pneg %p205
        %p466 = pneg %p229
        %p467 = pneg %p226
        %p468 = pneg %p250
        %p469 = pneg %p247
        %p470 = pneg %p271
        %p471 = pneg %p268
        %p472 = pneg %p292
        %p473 = pneg %p289
        %p474 = pneg %p313
        %p475 = pneg %p310
        %p476 = pneg %p339
        %p477 = pneg %p336
        %p478 = scmp.lt.s32.totalorder %s30, 1
        %s479 = scalar_select %p478, %s30, 1
        %s480 = smul.addr %s479, 2
        %s481 = smul.addr %s480, 8
        %s482 = scalar_lea.vmem %s13, %s481
        %p483 = scmp.lt.s32.totalorder %s30, 1
        %s484 = scalar_select %p483, %s30, 1
        %p485 = scmp.lt.s32.totalorder %s31, 0
        %s486 = scalar_select %p485, %s31, 0
        %s487 = sadd.s32 %s486, %s484
        %s488 = smul.addr %s487, 2
        %s489 = scalar_lea.vmem %s0, %s488
        %p490 = scmp.lt.s32.totalorder %s30, 1
        %s491 = scalar_select %p490, %s30, 1
        %s492 = smul.addr %s491, 2
        %s493 = smul.addr %s492, 8
        %s494 = scalar_lea.vmem %s13, %s493
        %p496 = scmp.eq.s32.totalorder %s31, 0
        // Predicated region
        $region81: #{tpu_custom_call.1} parent=71 // pred_check
          %p497 = pneg %p496
        $region82: #{tpu_custom_call.1} parent=71 // pred_check_branch
          %499 = sbr.rel (%p497) target = $region84
        $region83: #{tpu_custom_call.1} parent=71 // pred_region
          %500 = vst [vmem:[#allocation2] sm:$0xff] -inf
          %501 = vst [vmem:[#allocation2 + $0x8] sm:$0xff] -inf
          %502 = vst [vmem:[#allocation2 + $0x10] sm:$0xff] -inf
          %503 = vst [vmem:[#allocation2 + $0x18] sm:$0xff] -inf
          %504 = vst [vmem:[#allocation2 + $0x20] sm:$0xff] -inf
          %505 = vst [vmem:[#allocation2 + $0x28] sm:$0xff] -inf
          %506 = vst [vmem:[#allocation2 + $0x30] sm:$0xff] -inf
          %507 = vst [vmem:[#allocation2 + $0x38] sm:$0xff] -inf
          %508 = vst [vmem:[#allocation2 + $0x40] sm:$0xff] -inf
          %509 = vst [vmem:[#allocation2 + $0x48] sm:$0xff] -inf
          %510 = vst [vmem:[#allocation2 + $0x50] sm:$0xff] -inf
          %511 = vst [vmem:[#allocation2 + $0x58] sm:$0xff] -inf
          %512 = vst [vmem:[#allocation2 + $0x60] sm:$0xff] -inf
          %513 = vst [vmem:[#allocation2 + $0x68] sm:$0xff] -inf
          %514 = vst [vmem:[#allocation2 + $0x70] sm:$0xff] -inf
          %515 = vst [vmem:[#allocation2 + $0x78] sm:$0xff] -inf
          %516 = vst [vmem:[#allocation2 + $0x80] sm:$0xff] -inf
          %517 = vst [vmem:[#allocation2 + $0x88] sm:$0xff] -inf
          %518 = vst [vmem:[#allocation2 + $0x90] sm:$0xff] -inf
          %519 = vst [vmem:[#allocation2 + $0x98] sm:$0xff] -inf
          %520 = vst [vmem:[#allocation2 + $0xa0] sm:$0xff] -inf
          %521 = vst [vmem:[#allocation2 + $0xa8] sm:$0xff] -inf
          %522 = vst [vmem:[#allocation2 + $0xb0] sm:$0xff] -inf
          %523 = vst [vmem:[#allocation2 + $0xb8] sm:$0xff] -inf
          %524 = vst [vmem:[#allocation2 + $0xc0] sm:$0xff] -inf
          %525 = vst [vmem:[#allocation2 + $0xc8] sm:$0xff] -inf
          %526 = vst [vmem:[#allocation2 + $0xd0] sm:$0xff] -inf
          %527 = vst [vmem:[#allocation2 + $0xd8] sm:$0xff] -inf
          %528 = vst [vmem:[#allocation2 + $0xe0] sm:$0xff] -inf
          %529 = vst [vmem:[#allocation2 + $0xe8] sm:$0xff] -inf
          %530 = vst [vmem:[#allocation2 + $0xf0] sm:$0xff] -inf
          %531 = vst [vmem:[#allocation2 + $0xf8] sm:$0xff] -inf
          %532 = vst [vmem:[#allocation2 + $0x100] sm:$0xff] -inf
          %533 = vst [vmem:[#allocation2 + $0x108] sm:$0xff] -inf
          %534 = vst [vmem:[#allocation2 + $0x110] sm:$0xff] -inf
          %535 = vst [vmem:[#allocation2 + $0x118] sm:$0xff] -inf
          %536 = vst [vmem:[#allocation2 + $0x120] sm:$0xff] -inf
          %537 = vst [vmem:[#allocation2 + $0x128] sm:$0xff] -inf
          %538 = vst [vmem:[#allocation2 + $0x130] sm:$0xff] -inf
          %539 = vst [vmem:[#allocation2 + $0x138] sm:$0xff] -inf
          %540 = vst [vmem:[#allocation2 + $0x140] sm:$0xff] -inf
          %541 = vst [vmem:[#allocation2 + $0x148] sm:$0xff] -inf
          %542 = vst [vmem:[#allocation2 + $0x150] sm:$0xff] -inf
          %543 = vst [vmem:[#allocation2 + $0x158] sm:$0xff] -inf
          %544 = vst [vmem:[#allocation2 + $0x160] sm:$0xff] -inf
          %545 = vst [vmem:[#allocation2 + $0x168] sm:$0xff] -inf
          %546 = vst [vmem:[#allocation2 + $0x170] sm:$0xff] -inf
          %547 = vst [vmem:[#allocation2 + $0x178] sm:$0xff] -inf
          %548 = vst [vmem:[#allocation2 + $0x180] sm:$0xff] -inf
          %549 = vst [vmem:[#allocation2 + $0x188] sm:$0xff] -inf
          %550 = vst [vmem:[#allocation2 + $0x190] sm:$0xff] -inf
          %551 = vst [vmem:[#allocation2 + $0x198] sm:$0xff] -inf
          %552 = vst [vmem:[#allocation2 + $0x1a0] sm:$0xff] -inf
          %553 = vst [vmem:[#allocation2 + $0x1a8] sm:$0xff] -inf
          %554 = vst [vmem:[#allocation2 + $0x1b0] sm:$0xff] -inf
          %555 = vst [vmem:[#allocation2 + $0x1b8] sm:$0xff] -inf
          %556 = vst [vmem:[#allocation2 + $0x1c0] sm:$0xff] -inf
          %557 = vst [vmem:[#allocation2 + $0x1c8] sm:$0xff] -inf
          %558 = vst [vmem:[#allocation2 + $0x1d0] sm:$0xff] -inf
          %559 = vst [vmem:[#allocation2 + $0x1d8] sm:$0xff] -inf
          %560 = vst [vmem:[#allocation2 + $0x1e0] sm:$0xff] -inf
          %561 = vst [vmem:[#allocation2 + $0x1e8] sm:$0xff] -inf
          %562 = vst [vmem:[#allocation2 + $0x1f0] sm:$0xff] -inf
          %563 = vst [vmem:[#allocation2 + $0x1f8] sm:$0xff] -inf
          %564 = vst [vmem:[#allocation2 + $0x200] sm:$0xff] -inf
          %565 = vst [vmem:[#allocation2 + $0x208] sm:$0xff] -inf
          %566 = vst [vmem:[#allocation2 + $0x210] sm:$0xff] -inf
          %567 = vst [vmem:[#allocation2 + $0x218] sm:$0xff] -inf
          %568 = vst [vmem:[#allocation2 + $0x220] sm:$0xff] -inf
          %569 = vst [vmem:[#allocation2 + $0x228] sm:$0xff] -inf
          %570 = vst [vmem:[#allocation2 + $0x230] sm:$0xff] -inf
          %571 = vst [vmem:[#allocation2 + $0x238] sm:$0xff] -inf
          %572 = vst [vmem:[#allocation2 + $0x240] sm:$0xff] -inf
          %573 = vst [vmem:[#allocation2 + $0x248] sm:$0xff] -inf
          %574 = vst [vmem:[#allocation2 + $0x250] sm:$0xff] -inf
          %575 = vst [vmem:[#allocation2 + $0x258] sm:$0xff] -inf
          %576 = vst [vmem:[#allocation2 + $0x260] sm:$0xff] -inf
          %577 = vst [vmem:[#allocation2 + $0x268] sm:$0xff] -inf
          %578 = vst [vmem:[#allocation2 + $0x270] sm:$0xff] -inf
          %579 = vst [vmem:[#allocation2 + $0x278] sm:$0xff] -inf
          %580 = vst [vmem:[#allocation2 + $0x280] sm:$0xff] -inf
          %581 = vst [vmem:[#allocation2 + $0x288] sm:$0xff] -inf
          %582 = vst [vmem:[#allocation2 + $0x290] sm:$0xff] -inf
          %583 = vst [vmem:[#allocation2 + $0x298] sm:$0xff] -inf
          %584 = vst [vmem:[#allocation2 + $0x2a0] sm:$0xff] -inf
          %585 = vst [vmem:[#allocation2 + $0x2a8] sm:$0xff] -inf
          %586 = vst [vmem:[#allocation2 + $0x2b0] sm:$0xff] -inf
          %587 = vst [vmem:[#allocation2 + $0x2b8] sm:$0xff] -inf
          %588 = vst [vmem:[#allocation2 + $0x2c0] sm:$0xff] -inf
          %589 = vst [vmem:[#allocation2 + $0x2c8] sm:$0xff] -inf
          %590 = vst [vmem:[#allocation2 + $0x2d0] sm:$0xff] -inf
          %591 = vst [vmem:[#allocation2 + $0x2d8] sm:$0xff] -inf
          %592 = vst [vmem:[#allocation2 + $0x2e0] sm:$0xff] -inf
          %593 = vst [vmem:[#allocation2 + $0x2e8] sm:$0xff] -inf
          %594 = vst [vmem:[#allocation2 + $0x2f0] sm:$0xff] -inf
          %595 = vst [vmem:[#allocation2 + $0x2f8] sm:$0xff] -inf
          %596 = vst [vmem:[#allocation2 + $0x300] sm:$0xff] -inf
          %597 = vst [vmem:[#allocation2 + $0x308] sm:$0xff] -inf
          %598 = vst [vmem:[#allocation2 + $0x310] sm:$0xff] -inf
          %599 = vst [vmem:[#allocation2 + $0x318] sm:$0xff] -inf
          %600 = vst [vmem:[#allocation2 + $0x320] sm:$0xff] -inf
          %601 = vst [vmem:[#allocation2 + $0x328] sm:$0xff] -inf
          %602 = vst [vmem:[#allocation2 + $0x330] sm:$0xff] -inf
          %603 = vst [vmem:[#allocation2 + $0x338] sm:$0xff] -inf
          %604 = vst [vmem:[#allocation2 + $0x340] sm:$0xff] -inf
          %605 = vst [vmem:[#allocation2 + $0x348] sm:$0xff] -inf
          %606 = vst [vmem:[#allocation2 + $0x350] sm:$0xff] -inf
          %607 = vst [vmem:[#allocation2 + $0x358] sm:$0xff] -inf
          %608 = vst [vmem:[#allocation2 + $0x360] sm:$0xff] -inf
          %609 = vst [vmem:[#allocation2 + $0x368] sm:$0xff] -inf
          %610 = vst [vmem:[#allocation2 + $0x370] sm:$0xff] -inf
          %611 = vst [vmem:[#allocation2 + $0x378] sm:$0xff] -inf
          %612 = vst [vmem:[#allocation2 + $0x380] sm:$0xff] -inf
          %613 = vst [vmem:[#allocation2 + $0x388] sm:$0xff] -inf
          %614 = vst [vmem:[#allocation2 + $0x390] sm:$0xff] -inf
          %615 = vst [vmem:[#allocation2 + $0x398] sm:$0xff] -inf
          %616 = vst [vmem:[#allocation2 + $0x3a0] sm:$0xff] -inf
          %617 = vst [vmem:[#allocation2 + $0x3a8] sm:$0xff] -inf
          %618 = vst [vmem:[#allocation2 + $0x3b0] sm:$0xff] -inf
          %619 = vst [vmem:[#allocation2 + $0x3b8] sm:$0xff] -inf
          %620 = vst [vmem:[#allocation2 + $0x3c0] sm:$0xff] -inf
          %621 = vst [vmem:[#allocation2 + $0x3c8] sm:$0xff] -inf
          %622 = vst [vmem:[#allocation2 + $0x3d0] sm:$0xff] -inf
          %623 = vst [vmem:[#allocation2 + $0x3d8] sm:$0xff] -inf
          %624 = vst [vmem:[#allocation2 + $0x3e0] sm:$0xff] -inf
          %625 = vst [vmem:[#allocation2 + $0x3e8] sm:$0xff] -inf
          %626 = vst [vmem:[#allocation2 + $0x3f0] sm:$0xff] -inf
          %627 = vst [vmem:[#allocation2 + $0x3f8] sm:$0xff] -inf
        $region84: #{tpu_custom_call.1} parent=71 // pred_fallthru
          _
        %v628 = vld [vmem:[%s489] sm:$0x3]
        %v629 = vld [vmem:[%s1] sm:$0xf]
        %v630 = vld [vmem:[%s1 + $0x4] sm:$0xf]
        %v631 = vld [vmem:[%s1 + $0x8] sm:$0xf]
        %v632 = vld [vmem:[%s1 + $0xc] sm:$0xf]
        %v633 = vld [vmem:[%s1 + $0x10] sm:$0xf]
        %v634 = vld [vmem:[%s1 + $0x14] sm:$0xf]
        %v635 = vld [vmem:[%s1 + $0x18] sm:$0xf]
        %v636 = vld [vmem:[%s1 + $0x1c] sm:$0xf]
        %v637 = vld [vmem:[%s2] sm:$0xff]
        %v638 = vld [vmem:[%s2 + $0x8] sm:$0xff]
        %v639 = vld [vmem:[%s2 + $0x10] sm:$0xff]
        %v640 = vld [vmem:[%s2 + $0x18] sm:$0xff]
        %v641 = vld [vmem:[%s2 + $0x20] sm:$0xff]
        %v642 = vld [vmem:[%s2 + $0x28] sm:$0xff]
        %v643 = vld [vmem:[%s2 + $0x30] sm:$0xff]
        %v644 = vld [vmem:[%s2 + $0x38] sm:$0xff]
        %646 = vset.pattern.permute.xlu0 0
        %647 = vperm.xlu0 %646, %v637
        %v648 = vpop.permute.xlu0 %647
        %651 = vset.pattern.permute.xlu0 0
        %652 = vperm.xlu0 %651, %v638
        %v653 = vpop.permute.xlu0 %652
        %656 = vset.pattern.permute.xlu0 0
        %657 = vperm.xlu0 %656, %v639
        %v658 = vpop.permute.xlu0 %657
        %661 = vset.pattern.permute.xlu0 0
        %662 = vperm.xlu0 %661, %v640
        %v663 = vpop.permute.xlu0 %662
        %666 = vset.pattern.permute.xlu0 0
        %667 = vperm.xlu0 %666, %v641
        %v668 = vpop.permute.xlu0 %667
        %671 = vset.pattern.permute.xlu0 0
        %672 = vperm.xlu0 %671, %v642
        %v673 = vpop.permute.xlu0 %672
        %676 = vset.pattern.permute.xlu0 0
        %677 = vperm.xlu0 %676, %v643
        %v678 = vpop.permute.xlu0 %677
        %681 = vset.pattern.permute.xlu0 0
        %682 = vperm.xlu0 %681, %v644
        %v683 = vpop.permute.xlu0 %682
        %v693 = vunpack.c.l.b16 %v629
        %v694 = vunpack.c.l.b16 %v630
        %v695 = vunpack.c.l.b16 %v631
        %v696 = vunpack.c.l.b16 %v632
        %v697 = vunpack.c.l.b16 %v633
        %v698 = vunpack.c.l.b16 %v634
        %v699 = vunpack.c.l.b16 %v635
        %v700 = vunpack.c.l.b16 %v636
        %v701 = vpack.c.b16 %v694, %v693
        %v702 = vpack.c.b16 %v696, %v695
        %v703 = vpack.c.b16 %v698, %v697
        %v704 = vpack.c.b16 %v700, %v699
        %vm705 = vcmask 23552
        %v707 = vsel %vm705, %v701, 0
        %v710 = vsel %vm705, %v702, 0
        %v713 = vsel %vm705, %v703, 0
        %v716 = vsel %vm705, %v704, 0
        %vm718 = vcmask 1040384
        %vm719 = vcmask 1041408
        %v720 = vsel %vm718, 4294967295, 65535
        %v721 = vsel %vm719, %v720, 0
        %v723 = vand.u32 %v628, %v721
        %725 = vmatpush.bf16.msra.mxu0 0
        %726 = vmatpush.bf16.msra.mxu0 0
        %727 = vmatpush.bf16.msra.mxu0 0
        %728 = vmatpush.bf16.msra.mxu0 0
        %729 = vmatpush.bf16.msra.mxu0 0
        %730 = vmatpush.bf16.msra.mxu0 0
        %731 = vmatpush.bf16.msra.mxu0 0
        %732 = vmatpush.bf16.msra.mxu0 %v723
        %733 = vmatmul.bf16.gmra.mxu0 %v707
        %v734 = vpop.f32.mrf.mxu0
        %v735 = vadd.f32 %v648, %v734
        %v736 = vpop.f32.mrf.mxu0
        %v737 = vadd.f32 %v653, %v736
        %738 = vmatmul.bf16.gmra.mxu0 %v710
        %v739 = vpop.f32.mrf.mxu0
        %v740 = vadd.f32 %v658, %v739
        %v741 = vpop.f32.mrf.mxu0
        %v742 = vadd.f32 %v663, %v741
        %743 = vmatmul.bf16.gmra.mxu0 %v713
        %v744 = vpop.f32.mrf.mxu0
        %v745 = vadd.f32 %v668, %v744
        %v746 = vpop.f32.mrf.mxu0
        %v747 = vadd.f32 %v673, %v746
        %748 = vmatmul.bf16.gmra.mxu0 %v716
        %v749 = vpop.f32.mrf.mxu0
        %v750 = vadd.f32 %v678, %v749
        %v751 = vpop.f32.mrf.mxu0
        %v752 = vadd.f32 %v683, %v751
        %753 = vdwg.mxu0
        %v754 = vmax.f32 %v735, 0.0
        %v755 = vmax.f32 %v737, 0.0
        %v756 = vmax.f32 %v740, 0.0
        %v757 = vmax.f32 %v742, 0.0
        %v758 = vmax.f32 %v745, 0.0
        %v759 = vmax.f32 %v747, 0.0
        %v760 = vmax.f32 %v750, 0.0
        %v761 = vmax.f32 %v752, 0.0
        %v762 = vpack.c.bf16 %v755, %v754
        %v763 = vpack.c.bf16 %v757, %v756
        %v764 = vpack.c.bf16 %v759, %v758
        %v765 = vpack.c.bf16 %v761, %v760
        %v766 = vld [vmem:[%s3] sm:$0xf]
        %v767 = vld [vmem:[%s3 + $0x4] sm:$0xf]
        %v768 = vld [vmem:[%s3 + $0x8] sm:$0xf]
        %v769 = vld [vmem:[%s3 + $0xc] sm:$0xf]
        %v770 = vld [vmem:[%s3 + $0x10] sm:$0xf]
        %v771 = vld [vmem:[%s3 + $0x14] sm:$0xf]
        %v772 = vld [vmem:[%s3 + $0x18] sm:$0xf]
        %v773 = vld [vmem:[%s3 + $0x1c] sm:$0xf]
        %v774 = vld [vmem:[%s3 + $0x20] sm:$0xf]
        %v775 = vld [vmem:[%s3 + $0x24] sm:$0xf]
        %v776 = vld [vmem:[%s3 + $0x28] sm:$0xf]
        %v777 = vld [vmem:[%s3 + $0x2c] sm:$0xf]
        %v778 = vld [vmem:[%s3 + $0x30] sm:$0xf]
        %v779 = vld [vmem:[%s3 + $0x34] sm:$0xf]
        %v780 = vld [vmem:[%s3 + $0x38] sm:$0xf]
        %v781 = vld [vmem:[%s3 + $0x3c] sm:$0xf]
        %v782 = vld [vmem:[%s4] sm:$0xff]
        %v783 = vld [vmem:[%s4 + $0x8] sm:$0xff]
        %v784 = vld [vmem:[%s4 + $0x10] sm:$0xff]
        %v785 = vld [vmem:[%s4 + $0x18] sm:$0xff]
        %v786 = vld [vmem:[%s4 + $0x20] sm:$0xff]
        %v787 = vld [vmem:[%s4 + $0x28] sm:$0xff]
        %v788 = vld [vmem:[%s4 + $0x30] sm:$0xff]
        %v789 = vld [vmem:[%s4 + $0x38] sm:$0xff]
        %v790 = vld [vmem:[%s4 + $0x40] sm:$0xff]
        %v791 = vld [vmem:[%s4 + $0x48] sm:$0xff]
        %v792 = vld [vmem:[%s4 + $0x50] sm:$0xff]
        %v793 = vld [vmem:[%s4 + $0x58] sm:$0xff]
        %v794 = vld [vmem:[%s4 + $0x60] sm:$0xff]
        %v795 = vld [vmem:[%s4 + $0x68] sm:$0xff]
        %v796 = vld [vmem:[%s4 + $0x70] sm:$0xff]
        %v797 = vld [vmem:[%s4 + $0x78] sm:$0xff]
        %799 = vset.pattern.permute.xlu0 0
        %800 = vperm.xlu0 %799, %v782
        %v801 = vpop.permute.xlu0 %800
        %804 = vset.pattern.permute.xlu0 0
        %805 = vperm.xlu0 %804, %v783
        %v806 = vpop.permute.xlu0 %805
        %809 = vset.pattern.permute.xlu0 0
        %810 = vperm.xlu0 %809, %v784
        %v811 = vpop.permute.xlu0 %810
        %814 = vset.pattern.permute.xlu0 0
        %815 = vperm.xlu0 %814, %v785
        %v816 = vpop.permute.xlu0 %815
        %819 = vset.pattern.permute.xlu0 0
        %820 = vperm.xlu0 %819, %v786
        %v821 = vpop.permute.xlu0 %820
        %824 = vset.pattern.permute.xlu0 0
        %825 = vperm.xlu0 %824, %v787
        %v826 = vpop.permute.xlu0 %825
        %829 = vset.pattern.permute.xlu0 0
        %830 = vperm.xlu0 %829, %v788
        %v831 = vpop.permute.xlu0 %830
        %834 = vset.pattern.permute.xlu0 0
        %835 = vperm.xlu0 %834, %v789
        %v836 = vpop.permute.xlu0 %835
        %839 = vset.pattern.permute.xlu0 0
        %840 = vperm.xlu0 %839, %v790
        %v841 = vpop.permute.xlu0 %840
        %844 = vset.pattern.permute.xlu0 0
        %845 = vperm.xlu0 %844, %v791
        %v846 = vpop.permute.xlu0 %845
        %849 = vset.pattern.permute.xlu0 0
        %850 = vperm.xlu0 %849, %v792
        %v851 = vpop.permute.xlu0 %850
        %854 = vset.pattern.permute.xlu0 0
        %855 = vperm.xlu0 %854, %v793
        %v856 = vpop.permute.xlu0 %855
        %859 = vset.pattern.permute.xlu0 0
        %860 = vperm.xlu0 %859, %v794
        %v861 = vpop.permute.xlu0 %860
        %864 = vset.pattern.permute.xlu0 0
        %865 = vperm.xlu0 %864, %v795
        %v866 = vpop.permute.xlu0 %865
        %869 = vset.pattern.permute.xlu0 0
        %870 = vperm.xlu0 %869, %v796
        %v871 = vpop.permute.xlu0 %870
        %874 = vset.pattern.permute.xlu0 0
        %875 = vperm.xlu0 %874, %v797
        %v876 = vpop.permute.xlu0 %875
        %v894 = vunpack.c.l.b16 %v766
        %v895 = vunpack.c.l.b16 %v767
        %v896 = vunpack.c.l.b16 %v768
        %v897 = vunpack.c.l.b16 %v769
        %v898 = vunpack.c.l.b16 %v770
        %v899 = vunpack.c.l.b16 %v771
        %v900 = vunpack.c.l.b16 %v772
        %v901 = vunpack.c.l.b16 %v773
        %v902 = vunpack.c.l.b16 %v774
        %v903 = vunpack.c.l.b16 %v775
        %v904 = vunpack.c.l.b16 %v776
        %v905 = vunpack.c.l.b16 %v777
        %v906 = vunpack.c.l.b16 %v778
        %v907 = vunpack.c.l.b16 %v779
        %v908 = vunpack.c.l.b16 %v780
        %v909 = vunpack.c.l.b16 %v781
        %v910 = vpack.c.b16 %v895, %v894
        %v911 = vpack.c.b16 %v897, %v896
        %v912 = vpack.c.b16 %v899, %v898
        %v913 = vpack.c.b16 %v901, %v900
        %v914 = vpack.c.b16 %v903, %v902
        %v915 = vpack.c.b16 %v905, %v904
        %v916 = vpack.c.b16 %v907, %v906
        %v917 = vpack.c.b16 %v909, %v908
        %vm918 = vcmask 523264
        %v920 = vsel %vm918, %v910, 0
        %v923 = vsel %vm918, %v911, 0
        %v926 = vsel %vm918, %v912, 0
        %v929 = vsel %vm918, %v913, 0
        %v932 = vsel %vm918, %v914, 0
        %v935 = vsel %vm918, %v915, 0
        %v938 = vsel %vm918, %v916, 0
        %v941 = vsel %vm918, %v917, 0
        %943 = vmatpush.bf16.msra.mxu0 0
        %944 = vmatpush.bf16.msra.mxu0 0
        %945 = vmatpush.bf16.msra.mxu0 0
        %946 = vmatpush.bf16.msra.mxu0 0
        %947 = vmatpush.bf16.msra.mxu0 %v765
        %948 = vmatpush.bf16.msra.mxu0 %v764
        %949 = vmatpush.bf16.msra.mxu0 %v763
        %950 = vmatpush.bf16.msra.mxu0 %v762
        %951 = vmatmul.bf16.gmra.mxu0 %v920
        %v952 = vpop.f32.mrf.mxu0
        %v953 = vadd.f32 %v801, %v952
        %v954 = vpop.f32.mrf.mxu0
        %v955 = vadd.f32 %v806, %v954
        %956 = vmatmul.bf16.gmra.mxu0 %v923
        %v957 = vpop.f32.mrf.mxu0
        %v958 = vadd.f32 %v811, %v957
        %v959 = vpop.f32.mrf.mxu0
        %v960 = vadd.f32 %v816, %v959
        %961 = vmatmul.bf16.gmra.mxu0 %v926
        %v962 = vpop.f32.mrf.mxu0
        %v963 = vadd.f32 %v821, %v962
        %v964 = vpop.f32.mrf.mxu0
        %v965 = vadd.f32 %v826, %v964
        %966 = vmatmul.bf16.gmra.mxu0 %v929
        %v967 = vpop.f32.mrf.mxu0
        %v968 = vadd.f32 %v831, %v967
        %v969 = vpop.f32.mrf.mxu0
        %v970 = vadd.f32 %v836, %v969
        %971 = vmatmul.bf16.gmra.mxu0 %v932
        %v972 = vpop.f32.mrf.mxu0
        %v973 = vadd.f32 %v841, %v972
        %v974 = vpop.f32.mrf.mxu0
        %v975 = vadd.f32 %v846, %v974
        %976 = vmatmul.bf16.gmra.mxu0 %v935
        %v977 = vpop.f32.mrf.mxu0
        %v978 = vadd.f32 %v851, %v977
        %v979 = vpop.f32.mrf.mxu0
        %v980 = vadd.f32 %v856, %v979
        %981 = vmatmul.bf16.gmra.mxu0 %v938
        %v982 = vpop.f32.mrf.mxu0
        %v983 = vadd.f32 %v861, %v982
        %v984 = vpop.f32.mrf.mxu0
        %v985 = vadd.f32 %v866, %v984
        %986 = vmatmul.bf16.gmra.mxu0 %v941
        %v987 = vpop.f32.mrf.mxu0
        %v988 = vadd.f32 %v871, %v987
        %v989 = vpop.f32.mrf.mxu0
        %v990 = vadd.f32 %v876, %v989
        %991 = vdwg.mxu0
        %v992 = vmax.f32 %v953, 0.0
        %v993 = vmax.f32 %v955, 0.0
        %v994 = vmax.f32 %v958, 0.0
        %v995 = vmax.f32 %v960, 0.0
        %v996 = vmax.f32 %v963, 0.0
        %v997 = vmax.f32 %v965, 0.0
        %v998 = vmax.f32 %v968, 0.0
        %v999 = vmax.f32 %v970, 0.0
        %v1000 = vmax.f32 %v973, 0.0
        %v1001 = vmax.f32 %v975, 0.0
        %v1002 = vmax.f32 %v978, 0.0
        %v1003 = vmax.f32 %v980, 0.0
        %v1004 = vmax.f32 %v983, 0.0
        %v1005 = vmax.f32 %v985, 0.0
        %v1006 = vmax.f32 %v988, 0.0
        %v1007 = vmax.f32 %v990, 0.0
        %v1008 = vpack.c.bf16 %v993, %v992
        %v1009 = vpack.c.bf16 %v995, %v994
        %v1010 = vpack.c.bf16 %v997, %v996
        %v1011 = vpack.c.bf16 %v999, %v998
        %v1012 = vpack.c.bf16 %v1001, %v1000
        %v1013 = vpack.c.bf16 %v1003, %v1002
        %v1014 = vpack.c.bf16 %v1005, %v1004
        %v1015 = vpack.c.bf16 %v1007, %v1006
        %v1016 = vld [vmem:[#allocation3] sm:$0xf]
        %v1017 = vld [vmem:[#allocation3 + $0x4] sm:$0xf]
        %v1018 = vld [vmem:[#allocation3 + $0x8] sm:$0xf]
        %v1019 = vld [vmem:[#allocation3 + $0xc] sm:$0xf]
        %v1020 = vld [vmem:[#allocation3 + $0x10] sm:$0xf]
        %v1021 = vld [vmem:[#allocation3 + $0x14] sm:$0xf]
        %v1022 = vld [vmem:[#allocation3 + $0x18] sm:$0xf]
        %v1023 = vld [vmem:[#allocation3 + $0x1c] sm:$0xf]
        %v1024 = vld [vmem:[#allocation3 + $0x20] sm:$0xf]
        %v1025 = vld [vmem:[#allocation3 + $0x24] sm:$0xf]
        %v1026 = vld [vmem:[#allocation3 + $0x28] sm:$0xf]
        %v1027 = vld [vmem:[#allocation3 + $0x2c] sm:$0xf]
        %v1028 = vld [vmem:[#allocation3 + $0x30] sm:$0xf]
        %v1029 = vld [vmem:[#allocation3 + $0x34] sm:$0xf]
        %v1030 = vld [vmem:[#allocation3 + $0x38] sm:$0xf]
        %v1031 = vld [vmem:[#allocation3 + $0x3c] sm:$0xf]
        %v1048 = vunpack.c.l.b16 %v1016
        %v1049 = vunpack.c.l.b16 %v1017
        %v1050 = vunpack.c.l.b16 %v1018
        %v1051 = vunpack.c.l.b16 %v1019
        %v1052 = vunpack.c.l.b16 %v1020
        %v1053 = vunpack.c.l.b16 %v1021
        %v1054 = vunpack.c.l.b16 %v1022
        %v1055 = vunpack.c.l.b16 %v1023
        %v1056 = vunpack.c.l.b16 %v1024
        %v1057 = vunpack.c.l.b16 %v1025
        %v1058 = vunpack.c.l.b16 %v1026
        %v1059 = vunpack.c.l.b16 %v1027
        %v1060 = vunpack.c.l.b16 %v1028
        %v1061 = vunpack.c.l.b16 %v1029
        %v1062 = vunpack.c.l.b16 %v1030
        %v1063 = vunpack.c.l.b16 %v1031
        %v1064 = vpack.c.b16 %v1049, %v1048
        %v1065 = vpack.c.b16 %v1051, %v1050
        %v1066 = vpack.c.b16 %v1053, %v1052
        %v1067 = vpack.c.b16 %v1055, %v1054
        %v1068 = vpack.c.b16 %v1057, %v1056
        %v1069 = vpack.c.b16 %v1059, %v1058
        %v1070 = vpack.c.b16 %v1061, %v1060
        %v1071 = vpack.c.b16 %v1063, %v1062
        %1080 = vmatpush.bf16.msra.mxu0 %v1015
        %1081 = vmatpush.bf16.msra.mxu0 %v1014
        %1082 = vmatpush.bf16.msra.mxu0 %v1013
        %1083 = vmatpush.bf16.msra.mxu0 %v1012
        %1084 = vmatpush.bf16.msra.mxu0 %v1011
        %1085 = vmatpush.bf16.msra.mxu0 %v1010
        %1086 = vmatpush.bf16.msra.mxu0 %v1009
        %1087 = vmatpush.bf16.msra.mxu0 %v1008
        %1088 = vmatmul.bf16.gmra.mxu0 %v1064
        %v1089 = vpop.f32.mrf.mxu0
        %v1090 = vadd.f32 0.0, %v1089
        %v1091 = vpop.f32.mrf.mxu0
        %v1092 = vadd.f32 0.0, %v1091
        %1093 = vmatmul.bf16.gmra.mxu0 %v1065
        %v1094 = vpop.f32.mrf.mxu0
        %v1095 = vadd.f32 0.0, %v1094
        %v1096 = vpop.f32.mrf.mxu0
        %v1097 = vadd.f32 0.0, %v1096
        %1098 = vmatmul.bf16.gmra.mxu0 %v1066
        %v1099 = vpop.f32.mrf.mxu0
        %v1100 = vadd.f32 0.0, %v1099
        %v1101 = vpop.f32.mrf.mxu0
        %v1102 = vadd.f32 0.0, %v1101
        %1103 = vmatmul.bf16.gmra.mxu0 %v1067
        %v1104 = vpop.f32.mrf.mxu0
        %v1105 = vadd.f32 0.0, %v1104
        %v1106 = vpop.f32.mrf.mxu0
        %v1107 = vadd.f32 0.0, %v1106
        %1108 = vmatmul.bf16.gmra.mxu0 %v1068
        %v1109 = vpop.f32.mrf.mxu0
        %v1110 = vadd.f32 0.0, %v1109
        %v1111 = vpop.f32.mrf.mxu0
        %v1112 = vadd.f32 0.0, %v1111
        %1113 = vmatmul.bf16.gmra.mxu0 %v1069
        %v1114 = vpop.f32.mrf.mxu0
        %v1115 = vadd.f32 0.0, %v1114
        %v1116 = vpop.f32.mrf.mxu0
        %v1117 = vadd.f32 0.0, %v1116
        %1118 = vmatmul.bf16.gmra.mxu0 %v1070
        %v1119 = vpop.f32.mrf.mxu0
        %v1120 = vadd.f32 0.0, %v1119
        %v1121 = vpop.f32.mrf.mxu0
        %v1122 = vadd.f32 0.0, %v1121
        %1123 = vmatmul.bf16.gmra.mxu0 %v1071
        %v1124 = vpop.f32.mrf.mxu0
        %v1125 = vadd.f32 0.0, %v1124
        %v1126 = vpop.f32.mrf.mxu0
        %v1127 = vadd.f32 0.0, %v1126
        %1128 = vdwg.mxu0
        %v1129 = vld [vmem:[#allocation2] sm:$0xff]
        %v1130 = vld [vmem:[#allocation2 + $0x8] sm:$0xff]
        %v1131 = vld [vmem:[#allocation2 + $0x10] sm:$0xff]
        %v1132 = vld [vmem:[#allocation2 + $0x18] sm:$0xff]
        %v1133 = vld [vmem:[#allocation2 + $0x20] sm:$0xff]
        %v1134 = vld [vmem:[#allocation2 + $0x28] sm:$0xff]
        %v1135 = vld [vmem:[#allocation2 + $0x30] sm:$0xff]
        %v1136 = vld [vmem:[#allocation2 + $0x38] sm:$0xff]
        %v1137 = vld [vmem:[#allocation2 + $0x40] sm:$0xff]
        %v1138 = vld [vmem:[#allocation2 + $0x48] sm:$0xff]
        %v1139 = vld [vmem:[#allocation2 + $0x50] sm:$0xff]
        %v1140 = vld [vmem:[#allocation2 + $0x58] sm:$0xff]
        %v1141 = vld [vmem:[#allocation2 + $0x60] sm:$0xff]
        %v1142 = vld [vmem:[#allocation2 + $0x68] sm:$0xff]
        %v1143 = vld [vmem:[#allocation2 + $0x70] sm:$0xff]
        %v1144 = vld [vmem:[#allocation2 + $0x78] sm:$0xff]
        %v1145 = vmax.f32 %v1129, %v1090
        %v1146 = vmax.f32 %v1130, %v1092
        %v1147 = vmax.f32 %v1131, %v1095
        %v1148 = vmax.f32 %v1132, %v1097
        %v1149 = vmax.f32 %v1133, %v1100
        %v1150 = vmax.f32 %v1134, %v1102
        %v1151 = vmax.f32 %v1135, %v1105
        %v1152 = vmax.f32 %v1136, %v1107
        %v1153 = vmax.f32 %v1137, %v1110
        %v1154 = vmax.f32 %v1138, %v1112
        %v1155 = vmax.f32 %v1139, %v1115
        %v1156 = vmax.f32 %v1140, %v1117
        %v1157 = vmax.f32 %v1141, %v1120
        %v1158 = vmax.f32 %v1142, %v1122
        %v1159 = vmax.f32 %v1143, %v1125
        %v1160 = vmax.f32 %v1144, %v1127
        %1161 = vst [vmem:[#allocation2] sm:$0xff] %v1145
        %1162 = vst [vmem:[#allocation2 + $0x8] sm:$0xff] %v1146
        %1163 = vst [vmem:[#allocation2 + $0x10] sm:$0xff] %v1147
        %1164 = vst [vmem:[#allocation2 + $0x18] sm:$0xff] %v1148
        %1165 = vst [vmem:[#allocation2 + $0x20] sm:$0xff] %v1149
        %1166 = vst [vmem:[#allocation2 + $0x28] sm:$0xff] %v1150
        %1167 = vst [vmem:[#allocation2 + $0x30] sm:$0xff] %v1151
        %1168 = vst [vmem:[#allocation2 + $0x38] sm:$0xff] %v1152
        %1169 = vst [vmem:[#allocation2 + $0x40] sm:$0xff] %v1153
        %1170 = vst [vmem:[#allocation2 + $0x48] sm:$0xff] %v1154
        %1171 = vst [vmem:[#allocation2 + $0x50] sm:$0xff] %v1155
        %1172 = vst [vmem:[#allocation2 + $0x58] sm:$0xff] %v1156
        %1173 = vst [vmem:[#allocation2 + $0x60] sm:$0xff] %v1157
        %1174 = vst [vmem:[#allocation2 + $0x68] sm:$0xff] %v1158
        %1175 = vst [vmem:[#allocation2 + $0x70] sm:$0xff] %v1159
        %1176 = vst [vmem:[#allocation2 + $0x78] sm:$0xff] %v1160
        %v1177 = vld [vmem:[#allocation3 + $0x40] sm:$0xf]
        %v1178 = vld [vmem:[#allocation3 + $0x44] sm:$0xf]
        %v1179 = vld [vmem:[#allocation3 + $0x48] sm:$0xf]
        %v1180 = vld [vmem:[#allocation3 + $0x4c] sm:$0xf]
        %v1181 = vld [vmem:[#allocation3 + $0x50] sm:$0xf]
        %v1182 = vld [vmem:[#allocation3 + $0x54] sm:$0xf]
        %v1183 = vld [vmem:[#allocation3 + $0x58] sm:$0xf]
        %v1184 = vld [vmem:[#allocation3 + $0x5c] sm:$0xf]
        %v1185 = vld [vmem:[#allocation3 + $0x60] sm:$0xf]
        %v1186 = vld [vmem:[#allocation3 + $0x64] sm:$0xf]
        %v1187 = vld [vmem:[#allocation3 + $0x68] sm:$0xf]
        %v1188 = vld [vmem:[#allocation3 + $0x6c] sm:$0xf]
        %v1189 = vld [vmem:[#allocation3 + $0x70] sm:$0xf]
        %v1190 = vld [vmem:[#allocation3 + $0x74] sm:$0xf]
        %v1191 = vld [vmem:[#allocation3 + $0x78] sm:$0xf]
        %v1192 = vld [vmem:[#allocation3 + $0x7c] sm:$0xf]
        %v1209 = vunpack.c.l.b16 %v1177
        %v1210 = vunpack.c.l.b16 %v1178
        %v1211 = vunpack.c.l.b16 %v1179
        %v1212 = vunpack.c.l.b16 %v1180
        %v1213 = vunpack.c.l.b16 %v1181
        %v1214 = vunpack.c.l.b16 %v1182
        %v1215 = vunpack.c.l.b16 %v1183
        %v1216 = vunpack.c.l.b16 %v1184
        %v1217 = vunpack.c.l.b16 %v1185
        %v1218 = vunpack.c.l.b16 %v1186
        %v1219 = vunpack.c.l.b16 %v1187
        %v1220 = vunpack.c.l.b16 %v1188
        %v1221 = vunpack.c.l.b16 %v1189
        %v1222 = vunpack.c.l.b16 %v1190
        %v1223 = vunpack.c.l.b16 %v1191
        %v1224 = vunpack.c.l.b16 %v1192
        %v1225 = vpack.c.b16 %v1210, %v1209
        %v1226 = vpack.c.b16 %v1212, %v1211
        %v1227 = vpack.c.b16 %v1214, %v1213
        %v1228 = vpack.c.b16 %v1216, %v1215
        %v1229 = vpack.c.b16 %v1218, %v1217
        %v1230 = vpack.c.b16 %v1220, %v1219
        %v1231 = vpack.c.b16 %v1222, %v1221
        %v1232 = vpack.c.b16 %v1224, %v1223
        %1241 = vmatpush.bf16.msra.mxu0 %v1015
        %1242 = vmatpush.bf16.msra.mxu0 %v1014
        %1243 = vmatpush.bf16.msra.mxu0 %v1013
        %1244 = vmatpush.bf16.msra.mxu0 %v1012
        %1245 = vmatpush.bf16.msra.mxu0 %v1011
        %1246 = vmatpush.bf16.msra.mxu0 %v1010
        %1247 = vmatpush.bf16.msra.mxu0 %v1009
        %1248 = vmatpush.bf16.msra.mxu0 %v1008
        %1249 = vmatmul.bf16.gmra.mxu0 %v1225
        %v1250 = vpop.f32.mrf.mxu0
        %v1251 = vadd.f32 0.0, %v1250
        %v1252 = vpop.f32.mrf.mxu0
        %v1253 = vadd.f32 0.0, %v1252
        %1254 = vmatmul.bf16.gmra.mxu0 %v1226
        %v1255 = vpop.f32.mrf.mxu0
        %v1256 = vadd.f32 0.0, %v1255
        %v1257 = vpop.f32.mrf.mxu0
        %v1258 = vadd.f32 0.0, %v1257
        %1259 = vmatmul.bf16.gmra.mxu0 %v1227
        %v1260 = vpop.f32.mrf.mxu0
        %v1261 = vadd.f32 0.0, %v1260
        %v1262 = vpop.f32.mrf.mxu0
        %v1263 = vadd.f32 0.0, %v1262
        %1264 = vmatmul.bf16.gmra.mxu0 %v1228
        %v1265 = vpop.f32.mrf.mxu0
        %v1266 = vadd.f32 0.0, %v1265
        %v1267 = vpop.f32.mrf.mxu0
        %v1268 = vadd.f32 0.0, %v1267
        %1269 = vmatmul.bf16.gmra.mxu0 %v1229
        %v1270 = vpop.f32.mrf.mxu0
        %v1271 = vadd.f32 0.0, %v1270
        %v1272 = vpop.f32.mrf.mxu0
        %v1273 = vadd.f32 0.0, %v1272
        %1274 = vmatmul.bf16.gmra.mxu0 %v1230
        %v1275 = vpop.f32.mrf.mxu0
        %v1276 = vadd.f32 0.0, %v1275
        %v1277 = vpop.f32.mrf.mxu0
        %v1278 = vadd.f32 0.0, %v1277
        %1279 = vmatmul.bf16.gmra.mxu0 %v1231
        %v1280 = vpop.f32.mrf.mxu0
        %v1281 = vadd.f32 0.0, %v1280
        %v1282 = vpop.f32.mrf.mxu0
        %v1283 = vadd.f32 0.0, %v1282
        %1284 = vmatmul.bf16.gmra.mxu0 %v1232
        %v1285 = vpop.f32.mrf.mxu0
        %v1286 = vadd.f32 0.0, %v1285
        %v1287 = vpop.f32.mrf.mxu0
        %v1288 = vadd.f32 0.0, %v1287
        %1289 = vdwg.mxu0
        %v1290 = vld [vmem:[#allocation2 + $0x80] sm:$0xff]
        %v1291 = vld [vmem:[#allocation2 + $0x88] sm:$0xff]
        %v1292 = vld [vmem:[#allocation2 + $0x90] sm:$0xff]
        %v1293 = vld [vmem:[#allocation2 + $0x98] sm:$0xff]
        %v1294 = vld [vmem:[#allocation2 + $0xa0] sm:$0xff]
        %v1295 = vld [vmem:[#allocation2 + $0xa8] sm:$0xff]
        %v1296 = vld [vmem:[#allocation2 + $0xb0] sm:$0xff]
        %v1297 = vld [vmem:[#allocation2 + $0xb8] sm:$0xff]
        %v1298 = vld [vmem:[#allocation2 + $0xc0] sm:$0xff]
        %v1299 = vld [vmem:[#allocation2 + $0xc8] sm:$0xff]
        %v1300 = vld [vmem:[#allocation2 + $0xd0] sm:$0xff]
        %v1301 = vld [vmem:[#allocation2 + $0xd8] sm:$0xff]
        %v1302 = vld [vmem:[#allocation2 + $0xe0] sm:$0xff]
        %v1303 = vld [vmem:[#allocation2 + $0xe8] sm:$0xff]
        %v1304 = vld [vmem:[#allocation2 + $0xf0] sm:$0xff]
        %v1305 = vld [vmem:[#allocation2 + $0xf8] sm:$0xff]
        %v1306 = vmax.f32 %v1290, %v1251
        %v1307 = vmax.f32 %v1291, %v1253
        %v1308 = vmax.f32 %v1292, %v1256
        %v1309 = vmax.f32 %v1293, %v1258
        %v1310 = vmax.f32 %v1294, %v1261
        %v1311 = vmax.f32 %v1295, %v1263
        %v1312 = vmax.f32 %v1296, %v1266
        %v1313 = vmax.f32 %v1297, %v1268
        %v1314 = vmax.f32 %v1298, %v1271
        %v1315 = vmax.f32 %v1299, %v1273
        %v1316 = vmax.f32 %v1300, %v1276
        %v1317 = vmax.f32 %v1301, %v1278
        %v1318 = vmax.f32 %v1302, %v1281
        %v1319 = vmax.f32 %v1303, %v1283
        %v1320 = vmax.f32 %v1304, %v1286
        %v1321 = vmax.f32 %v1305, %v1288
        %1322 = vst [vmem:[#allocation2 + $0x80] sm:$0xff] %v1306
        %1323 = vst [vmem:[#allocation2 + $0x88] sm:$0xff] %v1307
        %1324 = vst [vmem:[#allocation2 + $0x90] sm:$0xff] %v1308
        %1325 = vst [vmem:[#allocation2 + $0x98] sm:$0xff] %v1309
        %1326 = vst [vmem:[#allocation2 + $0xa0] sm:$0xff] %v1310
        %1327 = vst [vmem:[#allocation2 + $0xa8] sm:$0xff] %v1311
        %1328 = vst [vmem:[#allocation2 + $0xb0] sm:$0xff] %v1312
        %1329 = vst [vmem:[#allocation2 + $0xb8] sm:$0xff] %v1313
        %1330 = vst [vmem:[#allocation2 + $0xc0] sm:$0xff] %v1314
        %1331 = vst [vmem:[#allocation2 + $0xc8] sm:$0xff] %v1315
        %1332 = vst [vmem:[#allocation2 + $0xd0] sm:$0xff] %v1316
        %1333 = vst [vmem:[#allocation2 + $0xd8] sm:$0xff] %v1317
        %1334 = vst [vmem:[#allocation2 + $0xe0] sm:$0xff] %v1318
        %1335 = vst [vmem:[#allocation2 + $0xe8] sm:$0xff] %v1319
        %1336 = vst [vmem:[#allocation2 + $0xf0] sm:$0xff] %v1320
        %1337 = vst [vmem:[#allocation2 + $0xf8] sm:$0xff] %v1321
        %v1338 = vld [vmem:[#allocation3 + $0x80] sm:$0xf]
        %v1339 = vld [vmem:[#allocation3 + $0x84] sm:$0xf]
        %v1340 = vld [vmem:[#allocation3 + $0x88] sm:$0xf]
        %v1341 = vld [vmem:[#allocation3 + $0x8c] sm:$0xf]
        %v1342 = vld [vmem:[#allocation3 + $0x90] sm:$0xf]
        %v1343 = vld [vmem:[#allocation3 + $0x94] sm:$0xf]
        %v1344 = vld [vmem:[#allocation3 + $0x98] sm:$0xf]
        %v1345 = vld [vmem:[#allocation3 + $0x9c] sm:$0xf]
        %v1346 = vld [vmem:[#allocation3 + $0xa0] sm:$0xf]
        %v1347 = vld [vmem:[#allocation3 + $0xa4] sm:$0xf]
        %v1348 = vld [vmem:[#allocation3 + $0xa8] sm:$0xf]
        %v1349 = vld [vmem:[#allocation3 + $0xac] sm:$0xf]
        %v1350 = vld [vmem:[#allocation3 + $0xb0] sm:$0xf]
        %v1351 = vld [vmem:[#allocation3 + $0xb4] sm:$0xf]
        %v1352 = vld [vmem:[#allocation3 + $0xb8] sm:$0xf]
        %v1353 = vld [vmem:[#allocation3 + $0xbc] sm:$0xf]
        %v1370 = vunpack.c.l.b16 %v1338
        %v1371 = vunpack.c.l.b16 %v1339
        %v1372 = vunpack.c.l.b16 %v1340
        %v1373 = vunpack.c.l.b16 %v1341
        %v1374 = vunpack.c.l.b16 %v1342
        %v1375 = vunpack.c.l.b16 %v1343
        %v1376 = vunpack.c.l.b16 %v1344
        %v1377 = vunpack.c.l.b16 %v1345
        %v1378 = vunpack.c.l.b16 %v1346
        %v1379 = vunpack.c.l.b16 %v1347
        %v1380 = vunpack.c.l.b16 %v1348
        %v1381 = vunpack.c.l.b16 %v1349
        %v1382 = vunpack.c.l.b16 %v1350
        %v1383 = vunpack.c.l.b16 %v1351
        %v1384 = vunpack.c.l.b16 %v1352
        %v1385 = vunpack.c.l.b16 %v1353
        %v1386 = vpack.c.b16 %v1371, %v1370
        %v1387 = vpack.c.b16 %v1373, %v1372
        %v1388 = vpack.c.b16 %v1375, %v1374
        %v1389 = vpack.c.b16 %v1377, %v1376
        %v1390 = vpack.c.b16 %v1379, %v1378
        %v1391 = vpack.c.b16 %v1381, %v1380
        %v1392 = vpack.c.b16 %v1383, %v1382
        %v1393 = vpack.c.b16 %v1385, %v1384
        %1402 = vmatpush.bf16.msra.mxu0 %v1015
        %1403 = vmatpush.bf16.msra.mxu0 %v1014
        %1404 = vmatpush.bf16.msra.mxu0 %v1013
        %1405 = vmatpush.bf16.msra.mxu0 %v1012
        %1406 = vmatpush.bf16.msra.mxu0 %v1011
        %1407 = vmatpush.bf16.msra.mxu0 %v1010
        %1408 = vmatpush.bf16.msra.mxu0 %v1009
        %1409 = vmatpush.bf16.msra.mxu0 %v1008
        %1410 = vmatmul.bf16.gmra.mxu0 %v1386
        %v1411 = vpop.f32.mrf.mxu0
        %v1412 = vadd.f32 0.0, %v1411
        %v1413 = vpop.f32.mrf.mxu0
        %v1414 = vadd.f32 0.0, %v1413
        %1415 = vmatmul.bf16.gmra.mxu0 %v1387
        %v1416 = vpop.f32.mrf.mxu0
        %v1417 = vadd.f32 0.0, %v1416
        %v1418 = vpop.f32.mrf.mxu0
        %v1419 = vadd.f32 0.0, %v1418
        %1420 = vmatmul.bf16.gmra.mxu0 %v1388
        %v1421 = vpop.f32.mrf.mxu0
        %v1422 = vadd.f32 0.0, %v1421
        %v1423 = vpop.f32.mrf.mxu0
        %v1424 = vadd.f32 0.0, %v1423
        %1425 = vmatmul.bf16.gmra.mxu0 %v1389
        %v1426 = vpop.f32.mrf.mxu0
        %v1427 = vadd.f32 0.0, %v1426
        %v1428 = vpop.f32.mrf.mxu0
        %v1429 = vadd.f32 0.0, %v1428
        %1430 = vmatmul.bf16.gmra.mxu0 %v1390
        %v1431 = vpop.f32.mrf.mxu0
        %v1432 = vadd.f32 0.0, %v1431
        %v1433 = vpop.f32.mrf.mxu0
        %v1434 = vadd.f32 0.0, %v1433
        %1435 = vmatmul.bf16.gmra.mxu0 %v1391
        %v1436 = vpop.f32.mrf.mxu0
        %v1437 = vadd.f32 0.0, %v1436
        %v1438 = vpop.f32.mrf.mxu0
        %v1439 = vadd.f32 0.0, %v1438
        %1440 = vmatmul.bf16.gmra.mxu0 %v1392
        %v1441 = vpop.f32.mrf.mxu0
        %v1442 = vadd.f32 0.0, %v1441
        %v1443 = vpop.f32.mrf.mxu0
        %v1444 = vadd.f32 0.0, %v1443
        %1445 = vmatmul.bf16.gmra.mxu0 %v1393
        %v1446 = vpop.f32.mrf.mxu0
        %v1447 = vadd.f32 0.0, %v1446
        %v1448 = vpop.f32.mrf.mxu0
        %v1449 = vadd.f32 0.0, %v1448
        %1450 = vdwg.mxu0
        %v1451 = vld [vmem:[#allocation2 + $0x100] sm:$0xff]
        %v1452 = vld [vmem:[#allocation2 + $0x108] sm:$0xff]
        %v1453 = vld [vmem:[#allocation2 + $0x110] sm:$0xff]
        %v1454 = vld [vmem:[#allocation2 + $0x118] sm:$0xff]
        %v1455 = vld [vmem:[#allocation2 + $0x120] sm:$0xff]
        %v1456 = vld [vmem:[#allocation2 + $0x128] sm:$0xff]
        %v1457 = vld [vmem:[#allocation2 + $0x130] sm:$0xff]
        %v1458 = vld [vmem:[#allocation2 + $0x138] sm:$0xff]
        %v1459 = vld [vmem:[#allocation2 + $0x140] sm:$0xff]
        %v1460 = vld [vmem:[#allocation2 + $0x148] sm:$0xff]
        %v1461 = vld [vmem:[#allocation2 + $0x150] sm:$0xff]
        %v1462 = vld [vmem:[#allocation2 + $0x158] sm:$0xff]
        %v1463 = vld [vmem:[#allocation2 + $0x160] sm:$0xff]
        %v1464 = vld [vmem:[#allocation2 + $0x168] sm:$0xff]
        %v1465 = vld [vmem:[#allocation2 + $0x170] sm:$0xff]
        %v1466 = vld [vmem:[#allocation2 + $0x178] sm:$0xff]
        %v1467 = vmax.f32 %v1451, %v1412
        %v1468 = vmax.f32 %v1452, %v1414
        %v1469 = vmax.f32 %v1453, %v1417
        %v1470 = vmax.f32 %v1454, %v1419
        %v1471 = vmax.f32 %v1455, %v1422
        %v1472 = vmax.f32 %v1456, %v1424
        %v1473 = vmax.f32 %v1457, %v1427
        %v1474 = vmax.f32 %v1458, %v1429
        %v1475 = vmax.f32 %v1459, %v1432
        %v1476 = vmax.f32 %v1460, %v1434
        %v1477 = vmax.f32 %v1461, %v1437
        %v1478 = vmax.f32 %v1462, %v1439
        %v1479 = vmax.f32 %v1463, %v1442
        %v1480 = vmax.f32 %v1464, %v1444
        %v1481 = vmax.f32 %v1465, %v1447
        %v1482 = vmax.f32 %v1466, %v1449
        %1483 = vst [vmem:[#allocation2 + $0x100] sm:$0xff] %v1467
        %1484 = vst [vmem:[#allocation2 + $0x108] sm:$0xff] %v1468
        %1485 = vst [vmem:[#allocation2 + $0x110] sm:$0xff] %v1469
        %1486 = vst [vmem:[#allocation2 + $0x118] sm:$0xff] %v1470
        %1487 = vst [vmem:[#allocation2 + $0x120] sm:$0xff] %v1471
        %1488 = vst [vmem:[#allocation2 + $0x128] sm:$0xff] %v1472
        %1489 = vst [vmem:[#allocation2 + $0x130] sm:$0xff] %v1473
        %1490 = vst [vmem:[#allocation2 + $0x138] sm:$0xff] %v1474
        %1491 = vst [vmem:[#allocation2 + $0x140] sm:$0xff] %v1475
        %1492 = vst [vmem:[#allocation2 + $0x148] sm:$0xff] %v1476
        %1493 = vst [vmem:[#allocation2 + $0x150] sm:$0xff] %v1477
        %1494 = vst [vmem:[#allocation2 + $0x158] sm:$0xff] %v1478
        %1495 = vst [vmem:[#allocation2 + $0x160] sm:$0xff] %v1479
        %1496 = vst [vmem:[#allocation2 + $0x168] sm:$0xff] %v1480
        %1497 = vst [vmem:[#allocation2 + $0x170] sm:$0xff] %v1481
        %1498 = vst [vmem:[#allocation2 + $0x178] sm:$0xff] %v1482
        %v1499 = vld [vmem:[#allocation3 + $0xc0] sm:$0xf]
        %v1500 = vld [vmem:[#allocation3 + $0xc4] sm:$0xf]
        %v1501 = vld [vmem:[#allocation3 + $0xc8] sm:$0xf]
        %v1502 = vld [vmem:[#allocation3 + $0xcc] sm:$0xf]
        %v1503 = vld [vmem:[#allocation3 + $0xd0] sm:$0xf]
        %v1504 = vld [vmem:[#allocation3 + $0xd4] sm:$0xf]
        %v1505 = vld [vmem:[#allocation3 + $0xd8] sm:$0xf]
        %v1506 = vld [vmem:[#allocation3 + $0xdc] sm:$0xf]
        %v1507 = vld [vmem:[#allocation3 + $0xe0] sm:$0xf]
        %v1508 = vld [vmem:[#allocation3 + $0xe4] sm:$0xf]
        %v1509 = vld [vmem:[#allocation3 + $0xe8] sm:$0xf]
        %v1510 = vld [vmem:[#allocation3 + $0xec] sm:$0xf]
        %v1511 = vld [vmem:[#allocation3 + $0xf0] sm:$0xf]
        %v1512 = vld [vmem:[#allocation3 + $0xf4] sm:$0xf]
        %v1513 = vld [vmem:[#allocation3 + $0xf8] sm:$0xf]
        %v1514 = vld [vmem:[#allocation3 + $0xfc] sm:$0xf]
        %v1531 = vunpack.c.l.b16 %v1499
        %v1532 = vunpack.c.l.b16 %v1500
        %v1533 = vunpack.c.l.b16 %v1501
        %v1534 = vunpack.c.l.b16 %v1502
        %v1535 = vunpack.c.l.b16 %v1503
        %v1536 = vunpack.c.l.b16 %v1504
        %v1537 = vunpack.c.l.b16 %v1505
        %v1538 = vunpack.c.l.b16 %v1506
        %v1539 = vunpack.c.l.b16 %v1507
        %v1540 = vunpack.c.l.b16 %v1508
        %v1541 = vunpack.c.l.b16 %v1509
        %v1542 = vunpack.c.l.b16 %v1510
        %v1543 = vunpack.c.l.b16 %v1511
        %v1544 = vunpack.c.l.b16 %v1512
        %v1545 = vunpack.c.l.b16 %v1513
        %v1546 = vunpack.c.l.b16 %v1514
        %v1547 = vpack.c.b16 %v1532, %v1531
        %v1548 = vpack.c.b16 %v1534, %v1533
        %v1549 = vpack.c.b16 %v1536, %v1535
        %v1550 = vpack.c.b16 %v1538, %v1537
        %v1551 = vpack.c.b16 %v1540, %v1539
        %v1552 = vpack.c.b16 %v1542, %v1541
        %v1553 = vpack.c.b16 %v1544, %v1543
        %v1554 = vpack.c.b16 %v1546, %v1545
        %1563 = vmatpush.bf16.msra.mxu0 %v1015
        %1564 = vmatpush.bf16.msra.mxu0 %v1014
        %1565 = vmatpush.bf16.msra.mxu0 %v1013
        %1566 = vmatpush.bf16.msra.mxu0 %v1012
        %1567 = vmatpush.bf16.msra.mxu0 %v1011
        %1568 = vmatpush.bf16.msra.mxu0 %v1010
        %1569 = vmatpush.bf16.msra.mxu0 %v1009
        %1570 = vmatpush.bf16.msra.mxu0 %v1008
        %1571 = vmatmul.bf16.gmra.mxu0 %v1547
        %v1572 = vpop.f32.mrf.mxu0
        %v1573 = vadd.f32 0.0, %v1572
        %v1574 = vpop.f32.mrf.mxu0
        %v1575 = vadd.f32 0.0, %v1574
        %1576 = vmatmul.bf16.gmra.mxu0 %v1548
        %v1577 = vpop.f32.mrf.mxu0
        %v1578 = vadd.f32 0.0, %v1577
        %v1579 = vpop.f32.mrf.mxu0
        %v1580 = vadd.f32 0.0, %v1579
        %1581 = vmatmul.bf16.gmra.mxu0 %v1549
        %v1582 = vpop.f32.mrf.mxu0
        %v1583 = vadd.f32 0.0, %v1582
        %v1584 = vpop.f32.mrf.mxu0
        %v1585 = vadd.f32 0.0, %v1584
        %1586 = vmatmul.bf16.gmra.mxu0 %v1550
        %v1587 = vpop.f32.mrf.mxu0
        %v1588 = vadd.f32 0.0, %v1587
        %v1589 = vpop.f32.mrf.mxu0
        %v1590 = vadd.f32 0.0, %v1589
        %1591 = vmatmul.bf16.gmra.mxu0 %v1551
        %v1592 = vpop.f32.mrf.mxu0
        %v1593 = vadd.f32 0.0, %v1592
        %v1594 = vpop.f32.mrf.mxu0
        %v1595 = vadd.f32 0.0, %v1594
        %1596 = vmatmul.bf16.gmra.mxu0 %v1552
        %v1597 = vpop.f32.mrf.mxu0
        %v1598 = vadd.f32 0.0, %v1597
        %v1599 = vpop.f32.mrf.mxu0
        %v1600 = vadd.f32 0.0, %v1599
        %1601 = vmatmul.bf16.gmra.mxu0 %v1553
        %v1602 = vpop.f32.mrf.mxu0
        %v1603 = vadd.f32 0.0, %v1602
        %v1604 = vpop.f32.mrf.mxu0
        %v1605 = vadd.f32 0.0, %v1604
        %1606 = vmatmul.bf16.gmra.mxu0 %v1554
        %v1607 = vpop.f32.mrf.mxu0
        %v1608 = vadd.f32 0.0, %v1607
        %v1609 = vpop.f32.mrf.mxu0
        %v1610 = vadd.f32 0.0, %v1609
        %1611 = vdwg.mxu0
        %v1612 = vld [vmem:[#allocation2 + $0x180] sm:$0xff]
        %v1613 = vld [vmem:[#allocation2 + $0x188] sm:$0xff]
        %v1614 = vld [vmem:[#allocation2 + $0x190] sm:$0xff]
        %v1615 = vld [vmem:[#allocation2 + $0x198] sm:$0xff]
        %v1616 = vld [vmem:[#allocation2 + $0x1a0] sm:$0xff]
        %v1617 = vld [vmem:[#allocation2 + $0x1a8] sm:$0xff]
        %v1618 = vld [vmem:[#allocation2 + $0x1b0] sm:$0xff]
        %v1619 = vld [vmem:[#allocation2 + $0x1b8] sm:$0xff]
        %v1620 = vld [vmem:[#allocation2 + $0x1c0] sm:$0xff]
        %v1621 = vld [vmem:[#allocation2 + $0x1c8] sm:$0xff]
        %v1622 = vld [vmem:[#allocation2 + $0x1d0] sm:$0xff]
        %v1623 = vld [vmem:[#allocation2 + $0x1d8] sm:$0xff]
        %v1624 = vld [vmem:[#allocation2 + $0x1e0] sm:$0xff]
        %v1625 = vld [vmem:[#allocation2 + $0x1e8] sm:$0xff]
        %v1626 = vld [vmem:[#allocation2 + $0x1f0] sm:$0xff]
        %v1627 = vld [vmem:[#allocation2 + $0x1f8] sm:$0xff]
        %v1628 = vmax.f32 %v1612, %v1573
        %v1629 = vmax.f32 %v1613, %v1575
        %v1630 = vmax.f32 %v1614, %v1578
        %v1631 = vmax.f32 %v1615, %v1580
        %v1632 = vmax.f32 %v1616, %v1583
        %v1633 = vmax.f32 %v1617, %v1585
        %v1634 = vmax.f32 %v1618, %v1588
        %v1635 = vmax.f32 %v1619, %v1590
        %v1636 = vmax.f32 %v1620, %v1593
        %v1637 = vmax.f32 %v1621, %v1595
        %v1638 = vmax.f32 %v1622, %v1598
        %v1639 = vmax.f32 %v1623, %v1600
        %v1640 = vmax.f32 %v1624, %v1603
        %v1641 = vmax.f32 %v1625, %v1605
        %v1642 = vmax.f32 %v1626, %v1608
        %v1643 = vmax.f32 %v1627, %v1610
        %1644 = vst [vmem:[#allocation2 + $0x180] sm:$0xff] %v1628
        %1645 = vst [vmem:[#allocation2 + $0x188] sm:$0xff] %v1629
        %1646 = vst [vmem:[#allocation2 + $0x190] sm:$0xff] %v1630
        %1647 = vst [vmem:[#allocation2 + $0x198] sm:$0xff] %v1631
        %1648 = vst [vmem:[#allocation2 + $0x1a0] sm:$0xff] %v1632
        %1649 = vst [vmem:[#allocation2 + $0x1a8] sm:$0xff] %v1633
        %1650 = vst [vmem:[#allocation2 + $0x1b0] sm:$0xff] %v1634
        %1651 = vst [vmem:[#allocation2 + $0x1b8] sm:$0xff] %v1635
        %1652 = vst [vmem:[#allocation2 + $0x1c0] sm:$0xff] %v1636
        %1653 = vst [vmem:[#allocation2 + $0x1c8] sm:$0xff] %v1637
        %1654 = vst [vmem:[#allocation2 + $0x1d0] sm:$0xff] %v1638
        %1655 = vst [vmem:[#allocation2 + $0x1d8] sm:$0xff] %v1639
        %1656 = vst [vmem:[#allocation2 + $0x1e0] sm:$0xff] %v1640
        %1657 = vst [vmem:[#allocation2 + $0x1e8] sm:$0xff] %v1641
        %1658 = vst [vmem:[#allocation2 + $0x1f0] sm:$0xff] %v1642
        %1659 = vst [vmem:[#allocation2 + $0x1f8] sm:$0xff] %v1643
        %v1660 = vld [vmem:[#allocation3 + $0x100] sm:$0xf]
        %v1661 = vld [vmem:[#allocation3 + $0x104] sm:$0xf]
        %v1662 = vld [vmem:[#allocation3 + $0x108] sm:$0xf]
        %v1663 = vld [vmem:[#allocation3 + $0x10c] sm:$0xf]
        %v1664 = vld [vmem:[#allocation3 + $0x110] sm:$0xf]
        %v1665 = vld [vmem:[#allocation3 + $0x114] sm:$0xf]
        %v1666 = vld [vmem:[#allocation3 + $0x118] sm:$0xf]
        %v1667 = vld [vmem:[#allocation3 + $0x11c] sm:$0xf]
        %v1668 = vld [vmem:[#allocation3 + $0x120] sm:$0xf]
        %v1669 = vld [vmem:[#allocation3 + $0x124] sm:$0xf]
        %v1670 = vld [vmem:[#allocation3 + $0x128] sm:$0xf]
        %v1671 = vld [vmem:[#allocation3 + $0x12c] sm:$0xf]
        %v1672 = vld [vmem:[#allocation3 + $0x130] sm:$0xf]
        %v1673 = vld [vmem:[#allocation3 + $0x134] sm:$0xf]
        %v1674 = vld [vmem:[#allocation3 + $0x138] sm:$0xf]
        %v1675 = vld [vmem:[#allocation3 + $0x13c] sm:$0xf]
        %v1692 = vunpack.c.l.b16 %v1660
        %v1693 = vunpack.c.l.b16 %v1661
        %v1694 = vunpack.c.l.b16 %v1662
        %v1695 = vunpack.c.l.b16 %v1663
        %v1696 = vunpack.c.l.b16 %v1664
        %v1697 = vunpack.c.l.b16 %v1665
        %v1698 = vunpack.c.l.b16 %v1666
        %v1699 = vunpack.c.l.b16 %v1667
        %v1700 = vunpack.c.l.b16 %v1668
        %v1701 = vunpack.c.l.b16 %v1669
        %v1702 = vunpack.c.l.b16 %v1670
        %v1703 = vunpack.c.l.b16 %v1671
        %v1704 = vunpack.c.l.b16 %v1672
        %v1705 = vunpack.c.l.b16 %v1673
        %v1706 = vunpack.c.l.b16 %v1674
        %v1707 = vunpack.c.l.b16 %v1675
        %v1708 = vpack.c.b16 %v1693, %v1692
        %v1709 = vpack.c.b16 %v1695, %v1694
        %v1710 = vpack.c.b16 %v1697, %v1696
        %v1711 = vpack.c.b16 %v1699, %v1698
        %v1712 = vpack.c.b16 %v1701, %v1700
        %v1713 = vpack.c.b16 %v1703, %v1702
        %v1714 = vpack.c.b16 %v1705, %v1704
        %v1715 = vpack.c.b16 %v1707, %v1706
        %1724 = vmatpush.bf16.msra.mxu0 %v1015
        %1725 = vmatpush.bf16.msra.mxu0 %v1014
        %1726 = vmatpush.bf16.msra.mxu0 %v1013
        %1727 = vmatpush.bf16.msra.mxu0 %v1012
        %1728 = vmatpush.bf16.msra.mxu0 %v1011
        %1729 = vmatpush.bf16.msra.mxu0 %v1010
        %1730 = vmatpush.bf16.msra.mxu0 %v1009
        %1731 = vmatpush.bf16.msra.mxu0 %v1008
        %1732 = vmatmul.bf16.gmra.mxu0 %v1708
        %v1733 = vpop.f32.mrf.mxu0
        %v1734 = vadd.f32 0.0, %v1733
        %v1735 = vpop.f32.mrf.mxu0
        %v1736 = vadd.f32 0.0, %v1735
        %1737 = vmatmul.bf16.gmra.mxu0 %v1709
        %v1738 = vpop.f32.mrf.mxu0
        %v1739 = vadd.f32 0.0, %v1738
        %v1740 = vpop.f32.mrf.mxu0
        %v1741 = vadd.f32 0.0, %v1740
        %1742 = vmatmul.bf16.gmra.mxu0 %v1710
        %v1743 = vpop.f32.mrf.mxu0
        %v1744 = vadd.f32 0.0, %v1743
        %v1745 = vpop.f32.mrf.mxu0
        %v1746 = vadd.f32 0.0, %v1745
        %1747 = vmatmul.bf16.gmra.mxu0 %v1711
        %v1748 = vpop.f32.mrf.mxu0
        %v1749 = vadd.f32 0.0, %v1748
        %v1750 = vpop.f32.mrf.mxu0
        %v1751 = vadd.f32 0.0, %v1750
        %1752 = vmatmul.bf16.gmra.mxu0 %v1712
        %v1753 = vpop.f32.mrf.mxu0
        %v1754 = vadd.f32 0.0, %v1753
        %v1755 = vpop.f32.mrf.mxu0
        %v1756 = vadd.f32 0.0, %v1755
        %1757 = vmatmul.bf16.gmra.mxu0 %v1713
        %v1758 = vpop.f32.mrf.mxu0
        %v1759 = vadd.f32 0.0, %v1758
        %v1760 = vpop.f32.mrf.mxu0
        %v1761 = vadd.f32 0.0, %v1760
        %1762 = vmatmul.bf16.gmra.mxu0 %v1714
        %v1763 = vpop.f32.mrf.mxu0
        %v1764 = vadd.f32 0.0, %v1763
        %v1765 = vpop.f32.mrf.mxu0
        %v1766 = vadd.f32 0.0, %v1765
        %1767 = vmatmul.bf16.gmra.mxu0 %v1715
        %v1768 = vpop.f32.mrf.mxu0
        %v1769 = vadd.f32 0.0, %v1768
        %v1770 = vpop.f32.mrf.mxu0
        %v1771 = vadd.f32 0.0, %v1770
        %1772 = vdwg.mxu0
        %v1773 = vld [vmem:[#allocation2 + $0x200] sm:$0xff]
        %v1774 = vld [vmem:[#allocation2 + $0x208] sm:$0xff]
        %v1775 = vld [vmem:[#allocation2 + $0x210] sm:$0xff]
        %v1776 = vld [vmem:[#allocation2 + $0x218] sm:$0xff]
        %v1777 = vld [vmem:[#allocation2 + $0x220] sm:$0xff]
        %v1778 = vld [vmem:[#allocation2 + $0x228] sm:$0xff]
        %v1779 = vld [vmem:[#allocation2 + $0x230] sm:$0xff]
        %v1780 = vld [vmem:[#allocation2 + $0x238] sm:$0xff]
        %v1781 = vld [vmem:[#allocation2 + $0x240] sm:$0xff]
        %v1782 = vld [vmem:[#allocation2 + $0x248] sm:$0xff]
        %v1783 = vld [vmem:[#allocation2 + $0x250] sm:$0xff]
        %v1784 = vld [vmem:[#allocation2 + $0x258] sm:$0xff]
        %v1785 = vld [vmem:[#allocation2 + $0x260] sm:$0xff]
        %v1786 = vld [vmem:[#allocation2 + $0x268] sm:$0xff]
        %v1787 = vld [vmem:[#allocation2 + $0x270] sm:$0xff]
        %v1788 = vld [vmem:[#allocation2 + $0x278] sm:$0xff]
        %v1789 = vmax.f32 %v1773, %v1734
        %v1790 = vmax.f32 %v1774, %v1736
        %v1791 = vmax.f32 %v1775, %v1739
        %v1792 = vmax.f32 %v1776, %v1741
        %v1793 = vmax.f32 %v1777, %v1744
        %v1794 = vmax.f32 %v1778, %v1746
        %v1795 = vmax.f32 %v1779, %v1749
        %v1796 = vmax.f32 %v1780, %v1751
        %v1797 = vmax.f32 %v1781, %v1754
        %v1798 = vmax.f32 %v1782, %v1756
        %v1799 = vmax.f32 %v1783, %v1759
        %v1800 = vmax.f32 %v1784, %v1761
        %v1801 = vmax.f32 %v1785, %v1764
        %v1802 = vmax.f32 %v1786, %v1766
        %v1803 = vmax.f32 %v1787, %v1769
        %v1804 = vmax.f32 %v1788, %v1771
        %1805 = vst [vmem:[#allocation2 + $0x200] sm:$0xff] %v1789
        %1806 = vst [vmem:[#allocation2 + $0x208] sm:$0xff] %v1790
        %1807 = vst [vmem:[#allocation2 + $0x210] sm:$0xff] %v1791
        %1808 = vst [vmem:[#allocation2 + $0x218] sm:$0xff] %v1792
        %1809 = vst [vmem:[#allocation2 + $0x220] sm:$0xff] %v1793
        %1810 = vst [vmem:[#allocation2 + $0x228] sm:$0xff] %v1794
        %1811 = vst [vmem:[#allocation2 + $0x230] sm:$0xff] %v1795
        %1812 = vst [vmem:[#allocation2 + $0x238] sm:$0xff] %v1796
        %1813 = vst [vmem:[#allocation2 + $0x240] sm:$0xff] %v1797
        %1814 = vst [vmem:[#allocation2 + $0x248] sm:$0xff] %v1798
        %1815 = vst [vmem:[#allocation2 + $0x250] sm:$0xff] %v1799
        %1816 = vst [vmem:[#allocation2 + $0x258] sm:$0xff] %v1800
        %1817 = vst [vmem:[#allocation2 + $0x260] sm:$0xff] %v1801
        %1818 = vst [vmem:[#allocation2 + $0x268] sm:$0xff] %v1802
        %1819 = vst [vmem:[#allocation2 + $0x270] sm:$0xff] %v1803
        %1820 = vst [vmem:[#allocation2 + $0x278] sm:$0xff] %v1804
        %v1821 = vld [vmem:[#allocation3 + $0x140] sm:$0xf]
        %v1822 = vld [vmem:[#allocation3 + $0x144] sm:$0xf]
        %v1823 = vld [vmem:[#allocation3 + $0x148] sm:$0xf]
        %v1824 = vld [vmem:[#allocation3 + $0x14c] sm:$0xf]
        %v1825 = vld [vmem:[#allocation3 + $0x150] sm:$0xf]
        %v1826 = vld [vmem:[#allocation3 + $0x154] sm:$0xf]
        %v1827 = vld [vmem:[#allocation3 + $0x158] sm:$0xf]
        %v1828 = vld [vmem:[#allocation3 + $0x15c] sm:$0xf]
        %v1829 = vld [vmem:[#allocation3 + $0x160] sm:$0xf]
        %v1830 = vld [vmem:[#allocation3 + $0x164] sm:$0xf]
        %v1831 = vld [vmem:[#allocation3 + $0x168] sm:$0xf]
        %v1832 = vld [vmem:[#allocation3 + $0x16c] sm:$0xf]
        %v1833 = vld [vmem:[#allocation3 + $0x170] sm:$0xf]
        %v1834 = vld [vmem:[#allocation3 + $0x174] sm:$0xf]
        %v1835 = vld [vmem:[#allocation3 + $0x178] sm:$0xf]
        %v1836 = vld [vmem:[#allocation3 + $0x17c] sm:$0xf]
        %v1853 = vunpack.c.l.b16 %v1821
        %v1854 = vunpack.c.l.b16 %v1822
        %v1855 = vunpack.c.l.b16 %v1823
        %v1856 = vunpack.c.l.b16 %v1824
        %v1857 = vunpack.c.l.b16 %v1825
        %v1858 = vunpack.c.l.b16 %v1826
        %v1859 = vunpack.c.l.b16 %v1827
        %v1860 = vunpack.c.l.b16 %v1828
        %v1861 = vunpack.c.l.b16 %v1829
        %v1862 = vunpack.c.l.b16 %v1830
        %v1863 = vunpack.c.l.b16 %v1831
        %v1864 = vunpack.c.l.b16 %v1832
        %v1865 = vunpack.c.l.b16 %v1833
        %v1866 = vunpack.c.l.b16 %v1834
        %v1867 = vunpack.c.l.b16 %v1835
        %v1868 = vunpack.c.l.b16 %v1836
        %v1869 = vpack.c.b16 %v1854, %v1853
        %v1870 = vpack.c.b16 %v1856, %v1855
        %v1871 = vpack.c.b16 %v1858, %v1857
        %v1872 = vpack.c.b16 %v1860, %v1859
        %v1873 = vpack.c.b16 %v1862, %v1861
        %v1874 = vpack.c.b16 %v1864, %v1863
        %v1875 = vpack.c.b16 %v1866, %v1865
        %v1876 = vpack.c.b16 %v1868, %v1867
        %1885 = vmatpush.bf16.msra.mxu0 %v1015
        %1886 = vmatpush.bf16.msra.mxu0 %v1014
        %1887 = vmatpush.bf16.msra.mxu0 %v1013
        %1888 = vmatpush.bf16.msra.mxu0 %v1012
        %1889 = vmatpush.bf16.msra.mxu0 %v1011
        %1890 = vmatpush.bf16.msra.mxu0 %v1010
        %1891 = vmatpush.bf16.msra.mxu0 %v1009
        %1892 = vmatpush.bf16.msra.mxu0 %v1008
        %1893 = vmatmul.bf16.gmra.mxu0 %v1869
        %v1894 = vpop.f32.mrf.mxu0
        %v1895 = vadd.f32 0.0, %v1894
        %v1896 = vpop.f32.mrf.mxu0
        %v1897 = vadd.f32 0.0, %v1896
        %1898 = vmatmul.bf16.gmra.mxu0 %v1870
        %v1899 = vpop.f32.mrf.mxu0
        %v1900 = vadd.f32 0.0, %v1899
        %v1901 = vpop.f32.mrf.mxu0
        %v1902 = vadd.f32 0.0, %v1901
        %1903 = vmatmul.bf16.gmra.mxu0 %v1871
        %v1904 = vpop.f32.mrf.mxu0
        %v1905 = vadd.f32 0.0, %v1904
        %v1906 = vpop.f32.mrf.mxu0
        %v1907 = vadd.f32 0.0, %v1906
        %1908 = vmatmul.bf16.gmra.mxu0 %v1872
        %v1909 = vpop.f32.mrf.mxu0
        %v1910 = vadd.f32 0.0, %v1909
        %v1911 = vpop.f32.mrf.mxu0
        %v1912 = vadd.f32 0.0, %v1911
        %1913 = vmatmul.bf16.gmra.mxu0 %v1873
        %v1914 = vpop.f32.mrf.mxu0
        %v1915 = vadd.f32 0.0, %v1914
        %v1916 = vpop.f32.mrf.mxu0
        %v1917 = vadd.f32 0.0, %v1916
        %1918 = vmatmul.bf16.gmra.mxu0 %v1874
        %v1919 = vpop.f32.mrf.mxu0
        %v1920 = vadd.f32 0.0, %v1919
        %v1921 = vpop.f32.mrf.mxu0
        %v1922 = vadd.f32 0.0, %v1921
        %1923 = vmatmul.bf16.gmra.mxu0 %v1875
        %v1924 = vpop.f32.mrf.mxu0
        %v1925 = vadd.f32 0.0, %v1924
        %v1926 = vpop.f32.mrf.mxu0
        %v1927 = vadd.f32 0.0, %v1926
        %1928 = vmatmul.bf16.gmra.mxu0 %v1876
        %v1929 = vpop.f32.mrf.mxu0
        %v1930 = vadd.f32 0.0, %v1929
        %v1931 = vpop.f32.mrf.mxu0
        %v1932 = vadd.f32 0.0, %v1931
        %1933 = vdwg.mxu0
        %v1934 = vld [vmem:[#allocation2 + $0x280] sm:$0xff]
        %v1935 = vld [vmem:[#allocation2 + $0x288] sm:$0xff]
        %v1936 = vld [vmem:[#allocation2 + $0x290] sm:$0xff]
        %v1937 = vld [vmem:[#allocation2 + $0x298] sm:$0xff]
        %v1938 = vld [vmem:[#allocation2 + $0x2a0] sm:$0xff]
        %v1939 = vld [vmem:[#allocation2 + $0x2a8] sm:$0xff]
        %v1940 = vld [vmem:[#allocation2 + $0x2b0] sm:$0xff]
        %v1941 = vld [vmem:[#allocation2 + $0x2b8] sm:$0xff]
        %v1942 = vld [vmem:[#allocation2 + $0x2c0] sm:$0xff]
        %v1943 = vld [vmem:[#allocation2 + $0x2c8] sm:$0xff]
        %v1944 = vld [vmem:[#allocation2 + $0x2d0] sm:$0xff]
        %v1945 = vld [vmem:[#allocation2 + $0x2d8] sm:$0xff]
        %v1946 = vld [vmem:[#allocation2 + $0x2e0] sm:$0xff]
        %v1947 = vld [vmem:[#allocation2 + $0x2e8] sm:$0xff]
        %v1948 = vld [vmem:[#allocation2 + $0x2f0] sm:$0xff]
        %v1949 = vld [vmem:[#allocation2 + $0x2f8] sm:$0xff]
        %v1950 = vmax.f32 %v1934, %v1895
        %v1951 = vmax.f32 %v1935, %v1897
        %v1952 = vmax.f32 %v1936, %v1900
        %v1953 = vmax.f32 %v1937, %v1902
        %v1954 = vmax.f32 %v1938, %v1905
        %v1955 = vmax.f32 %v1939, %v1907
        %v1956 = vmax.f32 %v1940, %v1910
        %v1957 = vmax.f32 %v1941, %v1912
        %v1958 = vmax.f32 %v1942, %v1915
        %v1959 = vmax.f32 %v1943, %v1917
        %v1960 = vmax.f32 %v1944, %v1920
        %v1961 = vmax.f32 %v1945, %v1922
        %v1962 = vmax.f32 %v1946, %v1925
        %v1963 = vmax.f32 %v1947, %v1927
        %v1964 = vmax.f32 %v1948, %v1930
        %v1965 = vmax.f32 %v1949, %v1932
        %1966 = vst [vmem:[#allocation2 + $0x280] sm:$0xff] %v1950
        %1967 = vst [vmem:[#allocation2 + $0x288] sm:$0xff] %v1951
        %1968 = vst [vmem:[#allocation2 + $0x290] sm:$0xff] %v1952
        %1969 = vst [vmem:[#allocation2 + $0x298] sm:$0xff] %v1953
        %1970 = vst [vmem:[#allocation2 + $0x2a0] sm:$0xff] %v1954
        %1971 = vst [vmem:[#allocation2 + $0x2a8] sm:$0xff] %v1955
        %1972 = vst [vmem:[#allocation2 + $0x2b0] sm:$0xff] %v1956
        %1973 = vst [vmem:[#allocation2 + $0x2b8] sm:$0xff] %v1957
        %1974 = vst [vmem:[#allocation2 + $0x2c0] sm:$0xff] %v1958
        %1975 = vst [vmem:[#allocation2 + $0x2c8] sm:$0xff] %v1959
        %1976 = vst [vmem:[#allocation2 + $0x2d0] sm:$0xff] %v1960
        %1977 = vst [vmem:[#allocation2 + $0x2d8] sm:$0xff] %v1961
        %1978 = vst [vmem:[#allocation2 + $0x2e0] sm:$0xff] %v1962
        %1979 = vst [vmem:[#allocation2 + $0x2e8] sm:$0xff] %v1963
        %1980 = vst [vmem:[#allocation2 + $0x2f0] sm:$0xff] %v1964
        %1981 = vst [vmem:[#allocation2 + $0x2f8] sm:$0xff] %v1965
        %v1982 = vld [vmem:[#allocation3 + $0x180] sm:$0xf]
        %v1983 = vld [vmem:[#allocation3 + $0x184] sm:$0xf]
        %v1984 = vld [vmem:[#allocation3 + $0x188] sm:$0xf]
        %v1985 = vld [vmem:[#allocation3 + $0x18c] sm:$0xf]
        %v1986 = vld [vmem:[#allocation3 + $0x190] sm:$0xf]
        %v1987 = vld [vmem:[#allocation3 + $0x194] sm:$0xf]
        %v1988 = vld [vmem:[#allocation3 + $0x198] sm:$0xf]
        %v1989 = vld [vmem:[#allocation3 + $0x19c] sm:$0xf]
        %v1990 = vld [vmem:[#allocation3 + $0x1a0] sm:$0xf]
        %v1991 = vld [vmem:[#allocation3 + $0x1a4] sm:$0xf]
        %v1992 = vld [vmem:[#allocation3 + $0x1a8] sm:$0xf]
        %v1993 = vld [vmem:[#allocation3 + $0x1ac] sm:$0xf]
        %v1994 = vld [vmem:[#allocation3 + $0x1b0] sm:$0xf]
        %v1995 = vld [vmem:[#allocation3 + $0x1b4] sm:$0xf]
        %v1996 = vld [vmem:[#allocation3 + $0x1b8] sm:$0xf]
        %v1997 = vld [vmem:[#allocation3 + $0x1bc] sm:$0xf]
        %v2014 = vunpack.c.l.b16 %v1982
        %v2015 = vunpack.c.l.b16 %v1983
        %v2016 = vunpack.c.l.b16 %v1984
        %v2017 = vunpack.c.l.b16 %v1985
        %v2018 = vunpack.c.l.b16 %v1986
        %v2019 = vunpack.c.l.b16 %v1987
        %v2020 = vunpack.c.l.b16 %v1988
        %v2021 = vunpack.c.l.b16 %v1989
        %v2022 = vunpack.c.l.b16 %v1990
        %v2023 = vunpack.c.l.b16 %v1991
        %v2024 = vunpack.c.l.b16 %v1992
        %v2025 = vunpack.c.l.b16 %v1993
        %v2026 = vunpack.c.l.b16 %v1994
        %v2027 = vunpack.c.l.b16 %v1995
        %v2028 = vunpack.c.l.b16 %v1996
        %v2029 = vunpack.c.l.b16 %v1997
        %v2030 = vpack.c.b16 %v2015, %v2014
        %v2031 = vpack.c.b16 %v2017, %v2016
        %v2032 = vpack.c.b16 %v2019, %v2018
        %v2033 = vpack.c.b16 %v2021, %v2020
        %v2034 = vpack.c.b16 %v2023, %v2022
        %v2035 = vpack.c.b16 %v2025, %v2024
        %v2036 = vpack.c.b16 %v2027, %v2026
        %v2037 = vpack.c.b16 %v2029, %v2028
        %2046 = vmatpush.bf16.msra.mxu0 %v1015
        %2047 = vmatpush.bf16.msra.mxu0 %v1014
        %2048 = vmatpush.bf16.msra.mxu0 %v1013
        %2049 = vmatpush.bf16.msra.mxu0 %v1012
        %2050 = vmatpush.bf16.msra.mxu0 %v1011
        %2051 = vmatpush.bf16.msra.mxu0 %v1010
        %2052 = vmatpush.bf16.msra.mxu0 %v1009
        %2053 = vmatpush.bf16.msra.mxu0 %v1008
        %2054 = vmatmul.bf16.gmra.mxu0 %v2030
        %v2055 = vpop.f32.mrf.mxu0
        %v2056 = vadd.f32 0.0, %v2055
        %v2057 = vpop.f32.mrf.mxu0
        %v2058 = vadd.f32 0.0, %v2057
        %2059 = vmatmul.bf16.gmra.mxu0 %v2031
        %v2060 = vpop.f32.mrf.mxu0
        %v2061 = vadd.f32 0.0, %v2060
        %v2062 = vpop.f32.mrf.mxu0
        %v2063 = vadd.f32 0.0, %v2062
        %2064 = vmatmul.bf16.gmra.mxu0 %v2032
        %v2065 = vpop.f32.mrf.mxu0
        %v2066 = vadd.f32 0.0, %v2065
        %v2067 = vpop.f32.mrf.mxu0
        %v2068 = vadd.f32 0.0, %v2067
        %2069 = vmatmul.bf16.gmra.mxu0 %v2033
        %v2070 = vpop.f32.mrf.mxu0
        %v2071 = vadd.f32 0.0, %v2070
        %v2072 = vpop.f32.mrf.mxu0
        %v2073 = vadd.f32 0.0, %v2072
        %2074 = vmatmul.bf16.gmra.mxu0 %v2034
        %v2075 = vpop.f32.mrf.mxu0
        %v2076 = vadd.f32 0.0, %v2075
        %v2077 = vpop.f32.mrf.mxu0
        %v2078 = vadd.f32 0.0, %v2077
        %2079 = vmatmul.bf16.gmra.mxu0 %v2035
        %v2080 = vpop.f32.mrf.mxu0
        %v2081 = vadd.f32 0.0, %v2080
        %v2082 = vpop.f32.mrf.mxu0
        %v2083 = vadd.f32 0.0, %v2082
        %2084 = vmatmul.bf16.gmra.mxu0 %v2036
        %v2085 = vpop.f32.mrf.mxu0
        %v2086 = vadd.f32 0.0, %v2085
        %v2087 = vpop.f32.mrf.mxu0
        %v2088 = vadd.f32 0.0, %v2087
        %2089 = vmatmul.bf16.gmra.mxu0 %v2037
        %v2090 = vpop.f32.mrf.mxu0
        %v2091 = vadd.f32 0.0, %v2090
        %v2092 = vpop.f32.mrf.mxu0
        %v2093 = vadd.f32 0.0, %v2092
        %2094 = vdwg.mxu0
        %v2095 = vld [vmem:[#allocation2 + $0x300] sm:$0xff]
        %v2096 = vld [vmem:[#allocation2 + $0x308] sm:$0xff]
        %v2097 = vld [vmem:[#allocation2 + $0x310] sm:$0xff]
        %v2098 = vld [vmem:[#allocation2 + $0x318] sm:$0xff]
        %v2099 = vld [vmem:[#allocation2 + $0x320] sm:$0xff]
        %v2100 = vld [vmem:[#allocation2 + $0x328] sm:$0xff]
        %v2101 = vld [vmem:[#allocation2 + $0x330] sm:$0xff]
        %v2102 = vld [vmem:[#allocation2 + $0x338] sm:$0xff]
        %v2103 = vld [vmem:[#allocation2 + $0x340] sm:$0xff]
        %v2104 = vld [vmem:[#allocation2 + $0x348] sm:$0xff]
        %v2105 = vld [vmem:[#allocation2 + $0x350] sm:$0xff]
        %v2106 = vld [vmem:[#allocation2 + $0x358] sm:$0xff]
        %v2107 = vld [vmem:[#allocation2 + $0x360] sm:$0xff]
        %v2108 = vld [vmem:[#allocation2 + $0x368] sm:$0xff]
        %v2109 = vld [vmem:[#allocation2 + $0x370] sm:$0xff]
        %v2110 = vld [vmem:[#allocation2 + $0x378] sm:$0xff]
        %v2111 = vmax.f32 %v2095, %v2056
        %v2112 = vmax.f32 %v2096, %v2058
        %v2113 = vmax.f32 %v2097, %v2061
        %v2114 = vmax.f32 %v2098, %v2063
        %v2115 = vmax.f32 %v2099, %v2066
        %v2116 = vmax.f32 %v2100, %v2068
        %v2117 = vmax.f32 %v2101, %v2071
        %v2118 = vmax.f32 %v2102, %v2073
        %v2119 = vmax.f32 %v2103, %v2076
        %v2120 = vmax.f32 %v2104, %v2078
        %v2121 = vmax.f32 %v2105, %v2081
        %v2122 = vmax.f32 %v2106, %v2083
        %v2123 = vmax.f32 %v2107, %v2086
        %v2124 = vmax.f32 %v2108, %v2088
        %v2125 = vmax.f32 %v2109, %v2091
        %v2126 = vmax.f32 %v2110, %v2093
        %2127 = vst [vmem:[#allocation2 + $0x300] sm:$0xff] %v2111
        %2128 = vst [vmem:[#allocation2 + $0x308] sm:$0xff] %v2112
        %2129 = vst [vmem:[#allocation2 + $0x310] sm:$0xff] %v2113
        %2130 = vst [vmem:[#allocation2 + $0x318] sm:$0xff] %v2114
        %2131 = vst [vmem:[#allocation2 + $0x320] sm:$0xff] %v2115
        %2132 = vst [vmem:[#allocation2 + $0x328] sm:$0xff] %v2116
        %2133 = vst [vmem:[#allocation2 + $0x330] sm:$0xff] %v2117
        %2134 = vst [vmem:[#allocation2 + $0x338] sm:$0xff] %v2118
        %2135 = vst [vmem:[#allocation2 + $0x340] sm:$0xff] %v2119
        %2136 = vst [vmem:[#allocation2 + $0x348] sm:$0xff] %v2120
        %2137 = vst [vmem:[#allocation2 + $0x350] sm:$0xff] %v2121
        %2138 = vst [vmem:[#allocation2 + $0x358] sm:$0xff] %v2122
        %2139 = vst [vmem:[#allocation2 + $0x360] sm:$0xff] %v2123
        %2140 = vst [vmem:[#allocation2 + $0x368] sm:$0xff] %v2124
        %2141 = vst [vmem:[#allocation2 + $0x370] sm:$0xff] %v2125
        %2142 = vst [vmem:[#allocation2 + $0x378] sm:$0xff] %v2126
        %v2143 = vld [vmem:[#allocation3 + $0x1c0] sm:$0xf]
        %v2144 = vld [vmem:[#allocation3 + $0x1c4] sm:$0xf]
        %v2145 = vld [vmem:[#allocation3 + $0x1c8] sm:$0xf]
        %v2146 = vld [vmem:[#allocation3 + $0x1cc] sm:$0xf]
        %v2147 = vld [vmem:[#allocation3 + $0x1d0] sm:$0xf]
        %v2148 = vld [vmem:[#allocation3 + $0x1d4] sm:$0xf]
        %v2149 = vld [vmem:[#allocation3 + $0x1d8] sm:$0xf]
        %v2150 = vld [vmem:[#allocation3 + $0x1dc] sm:$0xf]
        %v2151 = vld [vmem:[#allocation3 + $0x1e0] sm:$0xf]
        %v2152 = vld [vmem:[#allocation3 + $0x1e4] sm:$0xf]
        %v2153 = vld [vmem:[#allocation3 + $0x1e8] sm:$0xf]
        %v2154 = vld [vmem:[#allocation3 + $0x1ec] sm:$0xf]
        %v2155 = vld [vmem:[#allocation3 + $0x1f0] sm:$0xf]
        %v2156 = vld [vmem:[#allocation3 + $0x1f4] sm:$0xf]
        %v2157 = vld [vmem:[#allocation3 + $0x1f8] sm:$0xf]
        %v2158 = vld [vmem:[#allocation3 + $0x1fc] sm:$0xf]
        %v2175 = vunpack.c.l.b16 %v2143
        %v2176 = vunpack.c.l.b16 %v2144
        %v2177 = vunpack.c.l.b16 %v2145
        %v2178 = vunpack.c.l.b16 %v2146
        %v2179 = vunpack.c.l.b16 %v2147
        %v2180 = vunpack.c.l.b16 %v2148
        %v2181 = vunpack.c.l.b16 %v2149
        %v2182 = vunpack.c.l.b16 %v2150
        %v2183 = vunpack.c.l.b16 %v2151
        %v2184 = vunpack.c.l.b16 %v2152
        %v2185 = vunpack.c.l.b16 %v2153
        %v2186 = vunpack.c.l.b16 %v2154
        %v2187 = vunpack.c.l.b16 %v2155
        %v2188 = vunpack.c.l.b16 %v2156
        %v2189 = vunpack.c.l.b16 %v2157
        %v2190 = vunpack.c.l.b16 %v2158
        %v2191 = vpack.c.b16 %v2176, %v2175
        %v2192 = vpack.c.b16 %v2178, %v2177
        %v2193 = vpack.c.b16 %v2180, %v2179
        %v2194 = vpack.c.b16 %v2182, %v2181
        %v2195 = vpack.c.b16 %v2184, %v2183
        %v2196 = vpack.c.b16 %v2186, %v2185
        %v2197 = vpack.c.b16 %v2188, %v2187
        %v2198 = vpack.c.b16 %v2190, %v2189
        %2207 = vmatpush.bf16.msra.mxu0 %v1015
        %2208 = vmatpush.bf16.msra.mxu0 %v1014
        %2209 = vmatpush.bf16.msra.mxu0 %v1013
        %2210 = vmatpush.bf16.msra.mxu0 %v1012
        %2211 = vmatpush.bf16.msra.mxu0 %v1011
        %2212 = vmatpush.bf16.msra.mxu0 %v1010
        %2213 = vmatpush.bf16.msra.mxu0 %v1009
        %2214 = vmatpush.bf16.msra.mxu0 %v1008
        %2215 = vmatmul.bf16.gmra.mxu0 %v2191
        %v2216 = vpop.f32.mrf.mxu0
        %v2217 = vadd.f32 0.0, %v2216
        %v2218 = vpop.f32.mrf.mxu0
        %v2219 = vadd.f32 0.0, %v2218
        %2220 = vmatmul.bf16.gmra.mxu0 %v2192
        %v2221 = vpop.f32.mrf.mxu0
        %v2222 = vadd.f32 0.0, %v2221
        %v2223 = vpop.f32.mrf.mxu0
        %v2224 = vadd.f32 0.0, %v2223
        %2225 = vmatmul.bf16.gmra.mxu0 %v2193
        %v2226 = vpop.f32.mrf.mxu0
        %v2227 = vadd.f32 0.0, %v2226
        %v2228 = vpop.f32.mrf.mxu0
        %v2229 = vadd.f32 0.0, %v2228
        %2230 = vmatmul.bf16.gmra.mxu0 %v2194
        %v2231 = vpop.f32.mrf.mxu0
        %v2232 = vadd.f32 0.0, %v2231
        %v2233 = vpop.f32.mrf.mxu0
        %v2234 = vadd.f32 0.0, %v2233
        %2235 = vmatmul.bf16.gmra.mxu0 %v2195
        %v2236 = vpop.f32.mrf.mxu0
        %v2237 = vadd.f32 0.0, %v2236
        %v2238 = vpop.f32.mrf.mxu0
        %v2239 = vadd.f32 0.0, %v2238
        %2240 = vmatmul.bf16.gmra.mxu0 %v2196
        %v2241 = vpop.f32.mrf.mxu0
        %v2242 = vadd.f32 0.0, %v2241
        %v2243 = vpop.f32.mrf.mxu0
        %v2244 = vadd.f32 0.0, %v2243
        %2245 = vmatmul.bf16.gmra.mxu0 %v2197
        %v2246 = vpop.f32.mrf.mxu0
        %v2247 = vadd.f32 0.0, %v2246
        %v2248 = vpop.f32.mrf.mxu0
        %v2249 = vadd.f32 0.0, %v2248
        %2250 = vmatmul.bf16.gmra.mxu0 %v2198
        %v2251 = vpop.f32.mrf.mxu0
        %v2252 = vadd.f32 0.0, %v2251
        %v2253 = vpop.f32.mrf.mxu0
        %v2254 = vadd.f32 0.0, %v2253
        %2255 = vdwg.mxu0
        %v2256 = vld [vmem:[#allocation2 + $0x380] sm:$0xff]
        %v2257 = vld [vmem:[#allocation2 + $0x388] sm:$0xff]
        %v2258 = vld [vmem:[#allocation2 + $0x390] sm:$0xff]
        %v2259 = vld [vmem:[#allocation2 + $0x398] sm:$0xff]
        %v2260 = vld [vmem:[#allocation2 + $0x3a0] sm:$0xff]
        %v2261 = vld [vmem:[#allocation2 + $0x3a8] sm:$0xff]
        %v2262 = vld [vmem:[#allocation2 + $0x3b0] sm:$0xff]
        %v2263 = vld [vmem:[#allocation2 + $0x3b8] sm:$0xff]
        %v2264 = vld [vmem:[#allocation2 + $0x3c0] sm:$0xff]
        %v2265 = vld [vmem:[#allocation2 + $0x3c8] sm:$0xff]
        %v2266 = vld [vmem:[#allocation2 + $0x3d0] sm:$0xff]
        %v2267 = vld [vmem:[#allocation2 + $0x3d8] sm:$0xff]
        %v2268 = vld [vmem:[#allocation2 + $0x3e0] sm:$0xff]
        %v2269 = vld [vmem:[#allocation2 + $0x3e8] sm:$0xff]
        %v2270 = vld [vmem:[#allocation2 + $0x3f0] sm:$0xff]
        %v2271 = vld [vmem:[#allocation2 + $0x3f8] sm:$0xff]
        %v2272 = vmax.f32 %v2256, %v2217
        %v2273 = vmax.f32 %v2257, %v2219
        %v2274 = vmax.f32 %v2258, %v2222
        %v2275 = vmax.f32 %v2259, %v2224
        %v2276 = vmax.f32 %v2260, %v2227
        %v2277 = vmax.f32 %v2261, %v2229
        %v2278 = vmax.f32 %v2262, %v2232
        %v2279 = vmax.f32 %v2263, %v2234
        %v2280 = vmax.f32 %v2264, %v2237
        %v2281 = vmax.f32 %v2265, %v2239
        %v2282 = vmax.f32 %v2266, %v2242
        %v2283 = vmax.f32 %v2267, %v2244
        %v2284 = vmax.f32 %v2268, %v2247
        %v2285 = vmax.f32 %v2269, %v2249
        %v2286 = vmax.f32 %v2270, %v2252
        %v2287 = vmax.f32 %v2271, %v2254
        %2288 = vst [vmem:[#allocation2 + $0x380] sm:$0xff] %v2272
        %2289 = vst [vmem:[#allocation2 + $0x388] sm:$0xff] %v2273
        %2290 = vst [vmem:[#allocation2 + $0x390] sm:$0xff] %v2274
        %2291 = vst [vmem:[#allocation2 + $0x398] sm:$0xff] %v2275
        %2292 = vst [vmem:[#allocation2 + $0x3a0] sm:$0xff] %v2276
        %2293 = vst [vmem:[#allocation2 + $0x3a8] sm:$0xff] %v2277
        %2294 = vst [vmem:[#allocation2 + $0x3b0] sm:$0xff] %v2278
        %2295 = vst [vmem:[#allocation2 + $0x3b8] sm:$0xff] %v2279
        %2296 = vst [vmem:[#allocation2 + $0x3c0] sm:$0xff] %v2280
        %2297 = vst [vmem:[#allocation2 + $0x3c8] sm:$0xff] %v2281
        %2298 = vst [vmem:[#allocation2 + $0x3d0] sm:$0xff] %v2282
        %2299 = vst [vmem:[#allocation2 + $0x3d8] sm:$0xff] %v2283
        %2300 = vst [vmem:[#allocation2 + $0x3e0] sm:$0xff] %v2284
        %2301 = vst [vmem:[#allocation2 + $0x3e8] sm:$0xff] %v2285
        %2302 = vst [vmem:[#allocation2 + $0x3f0] sm:$0xff] %v2286
        %2303 = vst [vmem:[#allocation2 + $0x3f8] sm:$0xff] %v2287
        // Predicated region
        $region85: #{tpu_custom_call.1} parent=71 // pred_check
          %p2304 = pneg %p496
        $region86: #{tpu_custom_call.1} parent=71 // pred_check_branch
          %2306 = sbr.rel (%p2304) target = $region88
        $region87: #{tpu_custom_call.1} parent=71 // pred_region
          %v2307 = vld [vmem:[#allocation2] sm:$0xff]
          %v2308 = vld [vmem:[#allocation2 + $0x8] sm:$0xff]
          %v2309 = vld [vmem:[#allocation2 + $0x10] sm:$0xff]
          %v2310 = vld [vmem:[#allocation2 + $0x18] sm:$0xff]
          %v2311 = vld [vmem:[#allocation2 + $0x20] sm:$0xff]
          %v2312 = vld [vmem:[#allocation2 + $0x28] sm:$0xff]
          %v2313 = vld [vmem:[#allocation2 + $0x30] sm:$0xff]
          %v2314 = vld [vmem:[#allocation2 + $0x38] sm:$0xff]
          %v2315 = vld [vmem:[#allocation2 + $0x40] sm:$0xff]
          %v2316 = vld [vmem:[#allocation2 + $0x48] sm:$0xff]
          %v2317 = vld [vmem:[#allocation2 + $0x50] sm:$0xff]
          %v2318 = vld [vmem:[#allocation2 + $0x58] sm:$0xff]
          %v2319 = vld [vmem:[#allocation2 + $0x60] sm:$0xff]
          %v2320 = vld [vmem:[#allocation2 + $0x68] sm:$0xff]
          %v2321 = vld [vmem:[#allocation2 + $0x70] sm:$0xff]
          %v2322 = vld [vmem:[#allocation2 + $0x78] sm:$0xff]
          %v2323 = vld [vmem:[#allocation2 + $0x80] sm:$0xff]
          %v2324 = vld [vmem:[#allocation2 + $0x88] sm:$0xff]
          %v2325 = vld [vmem:[#allocation2 + $0x90] sm:$0xff]
          %v2326 = vld [vmem:[#allocation2 + $0x98] sm:$0xff]
          %v2327 = vld [vmem:[#allocation2 + $0xa0] sm:$0xff]
          %v2328 = vld [vmem:[#allocation2 + $0xa8] sm:$0xff]
          %v2329 = vld [vmem:[#allocation2 + $0xb0] sm:$0xff]
          %v2330 = vld [vmem:[#allocation2 + $0xb8] sm:$0xff]
          %v2331 = vld [vmem:[#allocation2 + $0xc0] sm:$0xff]
          %v2332 = vld [vmem:[#allocation2 + $0xc8] sm:$0xff]
          %v2333 = vld [vmem:[#allocation2 + $0xd0] sm:$0xff]
          %v2334 = vld [vmem:[#allocation2 + $0xd8] sm:$0xff]
          %v2335 = vld [vmem:[#allocation2 + $0xe0] sm:$0xff]
          %v2336 = vld [vmem:[#allocation2 + $0xe8] sm:$0xff]
          %v2337 = vld [vmem:[#allocation2 + $0xf0] sm:$0xff]
          %v2338 = vld [vmem:[#allocation2 + $0xf8] sm:$0xff]
          %v2339 = vld [vmem:[#allocation2 + $0x100] sm:$0xff]
          %v2340 = vld [vmem:[#allocation2 + $0x108] sm:$0xff]
          %v2341 = vld [vmem:[#allocation2 + $0x110] sm:$0xff]
          %v2342 = vld [vmem:[#allocation2 + $0x118] sm:$0xff]
          %v2343 = vld [vmem:[#allocation2 + $0x120] sm:$0xff]
          %v2344 = vld [vmem:[#allocation2 + $0x128] sm:$0xff]
          %v2345 = vld [vmem:[#allocation2 + $0x130] sm:$0xff]
          %v2346 = vld [vmem:[#allocation2 + $0x138] sm:$0xff]
          %v2347 = vld [vmem:[#allocation2 + $0x140] sm:$0xff]
          %v2348 = vld [vmem:[#allocation2 + $0x148] sm:$0xff]
          %v2349 = vld [vmem:[#allocation2 + $0x150] sm:$0xff]
          %v2350 = vld [vmem:[#allocation2 + $0x158] sm:$0xff]
          %v2351 = vld [vmem:[#allocation2 + $0x160] sm:$0xff]
          %v2352 = vld [vmem:[#allocation2 + $0x168] sm:$0xff]
          %v2353 = vld [vmem:[#allocation2 + $0x170] sm:$0xff]
          %v2354 = vld [vmem:[#allocation2 + $0x178] sm:$0xff]
          %v2355 = vld [vmem:[#allocation2 + $0x180] sm:$0xff]
          %v2356 = vld [vmem:[#allocation2 + $0x188] sm:$0xff]
          %v2357 = vld [vmem:[#allocation2 + $0x190] sm:$0xff]
          %v2358 = vld [vmem:[#allocation2 + $0x198] sm:$0xff]
          %v2359 = vld [vmem:[#allocation2 + $0x1a0] sm:$0xff]
          %v2360 = vld [vmem:[#allocation2 + $0x1a8] sm:$0xff]
          %v2361 = vld [vmem:[#allocation2 + $0x1b0] sm:$0xff]
          %v2362 = vld [vmem:[#allocation2 + $0x1b8] sm:$0xff]
          %v2363 = vld [vmem:[#allocation2 + $0x1c0] sm:$0xff]
          %v2364 = vld [vmem:[#allocation2 + $0x1c8] sm:$0xff]
          %v2365 = vld [vmem:[#allocation2 + $0x1d0] sm:$0xff]
          %v2366 = vld [vmem:[#allocation2 + $0x1d8] sm:$0xff]
          %v2367 = vld [vmem:[#allocation2 + $0x1e0] sm:$0xff]
          %v2368 = vld [vmem:[#allocation2 + $0x1e8] sm:$0xff]
          %v2369 = vld [vmem:[#allocation2 + $0x1f0] sm:$0xff]
          %v2370 = vld [vmem:[#allocation2 + $0x1f8] sm:$0xff]
          %v2371 = vld [vmem:[#allocation2 + $0x200] sm:$0xff]
          %v2372 = vld [vmem:[#allocation2 + $0x208] sm:$0xff]
          %v2373 = vld [vmem:[#allocation2 + $0x210] sm:$0xff]
          %v2374 = vld [vmem:[#allocation2 + $0x218] sm:$0xff]
          %v2375 = vld [vmem:[#allocation2 + $0x220] sm:$0xff]
          %v2376 = vld [vmem:[#allocation2 + $0x228] sm:$0xff]
          %v2377 = vld [vmem:[#allocation2 + $0x230] sm:$0xff]
          %v2378 = vld [vmem:[#allocation2 + $0x238] sm:$0xff]
          %v2379 = vld [vmem:[#allocation2 + $0x240] sm:$0xff]
          %v2380 = vld [vmem:[#allocation2 + $0x248] sm:$0xff]
          %v2381 = vld [vmem:[#allocation2 + $0x250] sm:$0xff]
          %v2382 = vld [vmem:[#allocation2 + $0x258] sm:$0xff]
          %v2383 = vld [vmem:[#allocation2 + $0x260] sm:$0xff]
          %v2384 = vld [vmem:[#allocation2 + $0x268] sm:$0xff]
          %v2385 = vld [vmem:[#allocation2 + $0x270] sm:$0xff]
          %v2386 = vld [vmem:[#allocation2 + $0x278] sm:$0xff]
          %v2387 = vld [vmem:[#allocation2 + $0x280] sm:$0xff]
          %v2388 = vld [vmem:[#allocation2 + $0x288] sm:$0xff]
          %v2389 = vld [vmem:[#allocation2 + $0x290] sm:$0xff]
          %v2390 = vld [vmem:[#allocation2 + $0x298] sm:$0xff]
          %v2391 = vld [vmem:[#allocation2 + $0x2a0] sm:$0xff]
          %v2392 = vld [vmem:[#allocation2 + $0x2a8] sm:$0xff]
          %v2393 = vld [vmem:[#allocation2 + $0x2b0] sm:$0xff]
          %v2394 = vld [vmem:[#allocation2 + $0x2b8] sm:$0xff]
          %v2395 = vld [vmem:[#allocation2 + $0x2c0] sm:$0xff]
          %v2396 = vld [vmem:[#allocation2 + $0x2c8] sm:$0xff]
          %v2397 = vld [vmem:[#allocation2 + $0x2d0] sm:$0xff]
          %v2398 = vld [vmem:[#allocation2 + $0x2d8] sm:$0xff]
          %v2399 = vld [vmem:[#allocation2 + $0x2e0] sm:$0xff]
          %v2400 = vld [vmem:[#allocation2 + $0x2e8] sm:$0xff]
          %v2401 = vld [vmem:[#allocation2 + $0x2f0] sm:$0xff]
          %v2402 = vld [vmem:[#allocation2 + $0x2f8] sm:$0xff]
          %v2403 = vld [vmem:[#allocation2 + $0x300] sm:$0xff]
          %v2404 = vld [vmem:[#allocation2 + $0x308] sm:$0xff]
          %v2405 = vld [vmem:[#allocation2 + $0x310] sm:$0xff]
          %v2406 = vld [vmem:[#allocation2 + $0x318] sm:$0xff]
          %v2407 = vld [vmem:[#allocation2 + $0x320] sm:$0xff]
          %v2408 = vld [vmem:[#allocation2 + $0x328] sm:$0xff]
          %v2409 = vld [vmem:[#allocation2 + $0x330] sm:$0xff]
          %v2410 = vld [vmem:[#allocation2 + $0x338] sm:$0xff]
          %v2411 = vld [vmem:[#allocation2 + $0x340] sm:$0xff]
          %v2412 = vld [vmem:[#allocation2 + $0x348] sm:$0xff]
          %v2413 = vld [vmem:[#allocation2 + $0x350] sm:$0xff]
          %v2414 = vld [vmem:[#allocation2 + $0x358] sm:$0xff]
          %v2415 = vld [vmem:[#allocation2 + $0x360] sm:$0xff]
          %v2416 = vld [vmem:[#allocation2 + $0x368] sm:$0xff]
          %v2417 = vld [vmem:[#allocation2 + $0x370] sm:$0xff]
          %v2418 = vld [vmem:[#allocation2 + $0x378] sm:$0xff]
          %v2419 = vld [vmem:[#allocation2 + $0x380] sm:$0xff]
          %v2420 = vld [vmem:[#allocation2 + $0x388] sm:$0xff]
          %v2421 = vld [vmem:[#allocation2 + $0x390] sm:$0xff]
          %v2422 = vld [vmem:[#allocation2 + $0x398] sm:$0xff]
          %v2423 = vld [vmem:[#allocation2 + $0x3a0] sm:$0xff]
          %v2424 = vld [vmem:[#allocation2 + $0x3a8] sm:$0xff]
          %v2425 = vld [vmem:[#allocation2 + $0x3b0] sm:$0xff]
          %v2426 = vld [vmem:[#allocation2 + $0x3b8] sm:$0xff]
          %v2427 = vld [vmem:[#allocation2 + $0x3c0] sm:$0xff]
          %v2428 = vld [vmem:[#allocation2 + $0x3c8] sm:$0xff]
          %v2429 = vld [vmem:[#allocation2 + $0x3d0] sm:$0xff]
          %v2430 = vld [vmem:[#allocation2 + $0x3d8] sm:$0xff]
          %v2431 = vld [vmem:[#allocation2 + $0x3e0] sm:$0xff]
          %v2432 = vld [vmem:[#allocation2 + $0x3e8] sm:$0xff]
          %v2433 = vld [vmem:[#allocation2 + $0x3f0] sm:$0xff]
          %v2434 = vld [vmem:[#allocation2 + $0x3f8] sm:$0xff]
          %2435 = vmax.xlane.f32.xlu0 %v2307
          %v2436 = vpop.xlane.xlu0 %2435
          %2437 = vmax.xlane.f32.xlu0 %v2308
          %v2438 = vpop.xlane.xlu0 %2437
          %2439 = vmax.xlane.f32.xlu0 %v2309
          %v2440 = vpop.xlane.xlu0 %2439
          %2441 = vmax.xlane.f32.xlu0 %v2310
          %v2442 = vpop.xlane.xlu0 %2441
          %2443 = vmax.xlane.f32.xlu0 %v2311
          %v2444 = vpop.xlane.xlu0 %2443
          %2445 = vmax.xlane.f32.xlu0 %v2312
          %v2446 = vpop.xlane.xlu0 %2445
          %2447 = vmax.xlane.f32.xlu0 %v2313
          %v2448 = vpop.xlane.xlu0 %2447
          %2449 = vmax.xlane.f32.xlu0 %v2314
          %v2450 = vpop.xlane.xlu0 %2449
          %2451 = vmax.xlane.f32.xlu0 %v2315
          %v2452 = vpop.xlane.xlu0 %2451
          %2453 = vmax.xlane.f32.xlu0 %v2316
          %v2454 = vpop.xlane.xlu0 %2453
          %2455 = vmax.xlane.f32.xlu0 %v2317
          %v2456 = vpop.xlane.xlu0 %2455
          %2457 = vmax.xlane.f32.xlu0 %v2318
          %v2458 = vpop.xlane.xlu0 %2457
          %2459 = vmax.xlane.f32.xlu0 %v2319
          %v2460 = vpop.xlane.xlu0 %2459
          %2461 = vmax.xlane.f32.xlu0 %v2320
          %v2462 = vpop.xlane.xlu0 %2461
          %2463 = vmax.xlane.f32.xlu0 %v2321
          %v2464 = vpop.xlane.xlu0 %2463
          %2465 = vmax.xlane.f32.xlu0 %v2322
          %v2466 = vpop.xlane.xlu0 %2465
          %2467 = vmax.xlane.f32.xlu0 %v2323
          %v2468 = vpop.xlane.xlu0 %2467
          %2469 = vmax.xlane.f32.xlu0 %v2324
          %v2470 = vpop.xlane.xlu0 %2469
          %2471 = vmax.xlane.f32.xlu0 %v2325
          %v2472 = vpop.xlane.xlu0 %2471
          %2473 = vmax.xlane.f32.xlu0 %v2326
          %v2474 = vpop.xlane.xlu0 %2473
          %2475 = vmax.xlane.f32.xlu0 %v2327
          %v2476 = vpop.xlane.xlu0 %2475
          %2477 = vmax.xlane.f32.xlu0 %v2328
          %v2478 = vpop.xlane.xlu0 %2477
          %2479 = vmax.xlane.f32.xlu0 %v2329
          %v2480 = vpop.xlane.xlu0 %2479
          %2481 = vmax.xlane.f32.xlu0 %v2330
          %v2482 = vpop.xlane.xlu0 %2481
          %2483 = vmax.xlane.f32.xlu0 %v2331
          %v2484 = vpop.xlane.xlu0 %2483
          %2485 = vmax.xlane.f32.xlu0 %v2332
          %v2486 = vpop.xlane.xlu0 %2485
          %2487 = vmax.xlane.f32.xlu0 %v2333
          %v2488 = vpop.xlane.xlu0 %2487
          %2489 = vmax.xlane.f32.xlu0 %v2334
          %v2490 = vpop.xlane.xlu0 %2489
          %2491 = vmax.xlane.f32.xlu0 %v2335
          %v2492 = vpop.xlane.xlu0 %2491
          %2493 = vmax.xlane.f32.xlu0 %v2336
          %v2494 = vpop.xlane.xlu0 %2493
          %2495 = vmax.xlane.f32.xlu0 %v2337
          %v2496 = vpop.xlane.xlu0 %2495
          %2497 = vmax.xlane.f32.xlu0 %v2338
          %v2498 = vpop.xlane.xlu0 %2497
          %2499 = vmax.xlane.f32.xlu0 %v2339
          %v2500 = vpop.xlane.xlu0 %2499
          %2501 = vmax.xlane.f32.xlu0 %v2340
          %v2502 = vpop.xlane.xlu0 %2501
          %2503 = vmax.xlane.f32.xlu0 %v2341
          %v2504 = vpop.xlane.xlu0 %2503
          %2505 = vmax.xlane.f32.xlu0 %v2342
          %v2506 = vpop.xlane.xlu0 %2505
          %2507 = vmax.xlane.f32.xlu0 %v2343
          %v2508 = vpop.xlane.xlu0 %2507
          %2509 = vmax.xlane.f32.xlu0 %v2344
          %v2510 = vpop.xlane.xlu0 %2509
          %2511 = vmax.xlane.f32.xlu0 %v2345
          %v2512 = vpop.xlane.xlu0 %2511
          %2513 = vmax.xlane.f32.xlu0 %v2346
          %v2514 = vpop.xlane.xlu0 %2513
          %2515 = vmax.xlane.f32.xlu0 %v2347
          %v2516 = vpop.xlane.xlu0 %2515
          %2517 = vmax.xlane.f32.xlu0 %v2348
          %v2518 = vpop.xlane.xlu0 %2517
          %2519 = vmax.xlane.f32.xlu0 %v2349
          %v2520 = vpop.xlane.xlu0 %2519
          %2521 = vmax.xlane.f32.xlu0 %v2350
          %v2522 = vpop.xlane.xlu0 %2521
          %2523 = vmax.xlane.f32.xlu0 %v2351
          %v2524 = vpop.xlane.xlu0 %2523
          %2525 = vmax.xlane.f32.xlu0 %v2352
          %v2526 = vpop.xlane.xlu0 %2525
          %2527 = vmax.xlane.f32.xlu0 %v2353
          %v2528 = vpop.xlane.xlu0 %2527
          %2529 = vmax.xlane.f32.xlu0 %v2354
          %v2530 = vpop.xlane.xlu0 %2529
          %2531 = vmax.xlane.f32.xlu0 %v2355
          %v2532 = vpop.xlane.xlu0 %2531
          %2533 = vmax.xlane.f32.xlu0 %v2356
          %v2534 = vpop.xlane.xlu0 %2533
          %2535 = vmax.xlane.f32.xlu0 %v2357
          %v2536 = vpop.xlane.xlu0 %2535
          %2537 = vmax.xlane.f32.xlu0 %v2358
          %v2538 = vpop.xlane.xlu0 %2537
          %2539 = vmax.xlane.f32.xlu0 %v2359
          %v2540 = vpop.xlane.xlu0 %2539
          %2541 = vmax.xlane.f32.xlu0 %v2360
          %v2542 = vpop.xlane.xlu0 %2541
          %2543 = vmax.xlane.f32.xlu0 %v2361
          %v2544 = vpop.xlane.xlu0 %2543
          %2545 = vmax.xlane.f32.xlu0 %v2362
          %v2546 = vpop.xlane.xlu0 %2545
          %2547 = vmax.xlane.f32.xlu0 %v2363
          %v2548 = vpop.xlane.xlu0 %2547
          %2549 = vmax.xlane.f32.xlu0 %v2364
          %v2550 = vpop.xlane.xlu0 %2549
          %2551 = vmax.xlane.f32.xlu0 %v2365
          %v2552 = vpop.xlane.xlu0 %2551
          %2553 = vmax.xlane.f32.xlu0 %v2366
          %v2554 = vpop.xlane.xlu0 %2553
          %2555 = vmax.xlane.f32.xlu0 %v2367
          %v2556 = vpop.xlane.xlu0 %2555
          %2557 = vmax.xlane.f32.xlu0 %v2368
          %v2558 = vpop.xlane.xlu0 %2557
          %2559 = vmax.xlane.f32.xlu0 %v2369
          %v2560 = vpop.xlane.xlu0 %2559
          %2561 = vmax.xlane.f32.xlu0 %v2370
          %v2562 = vpop.xlane.xlu0 %2561
          %2563 = vmax.xlane.f32.xlu0 %v2371
          %v2564 = vpop.xlane.xlu0 %2563
          %2565 = vmax.xlane.f32.xlu0 %v2372
          %v2566 = vpop.xlane.xlu0 %2565
          %2567 = vmax.xlane.f32.xlu0 %v2373
          %v2568 = vpop.xlane.xlu0 %2567
          %2569 = vmax.xlane.f32.xlu0 %v2374
          %v2570 = vpop.xlane.xlu0 %2569
          %2571 = vmax.xlane.f32.xlu0 %v2375
          %v2572 = vpop.xlane.xlu0 %2571
          %2573 = vmax.xlane.f32.xlu0 %v2376
          %v2574 = vpop.xlane.xlu0 %2573
          %2575 = vmax.xlane.f32.xlu0 %v2377
          %v2576 = vpop.xlane.xlu0 %2575
          %2577 = vmax.xlane.f32.xlu0 %v2378
          %v2578 = vpop.xlane.xlu0 %2577
          %2579 = vmax.xlane.f32.xlu0 %v2379
          %v2580 = vpop.xlane.xlu0 %2579
          %2581 = vmax.xlane.f32.xlu0 %v2380
          %v2582 = vpop.xlane.xlu0 %2581
          %2583 = vmax.xlane.f32.xlu0 %v2381
          %v2584 = vpop.xlane.xlu0 %2583
          %2585 = vmax.xlane.f32.xlu0 %v2382
          %v2586 = vpop.xlane.xlu0 %2585
          %2587 = vmax.xlane.f32.xlu0 %v2383
          %v2588 = vpop.xlane.xlu0 %2587
          %2589 = vmax.xlane.f32.xlu0 %v2384
          %v2590 = vpop.xlane.xlu0 %2589
          %2591 = vmax.xlane.f32.xlu0 %v2385
          %v2592 = vpop.xlane.xlu0 %2591
          %2593 = vmax.xlane.f32.xlu0 %v2386
          %v2594 = vpop.xlane.xlu0 %2593
          %2595 = vmax.xlane.f32.xlu0 %v2387
          %v2596 = vpop.xlane.xlu0 %2595
          %2597 = vmax.xlane.f32.xlu0 %v2388
          %v2598 = vpop.xlane.xlu0 %2597
          %2599 = vmax.xlane.f32.xlu0 %v2389
          %v2600 = vpop.xlane.xlu0 %2599
          %2601 = vmax.xlane.f32.xlu0 %v2390
          %v2602 = vpop.xlane.xlu0 %2601
          %2603 = vmax.xlane.f32.xlu0 %v2391
          %v2604 = vpop.xlane.xlu0 %2603
          %2605 = vmax.xlane.f32.xlu0 %v2392
          %v2606 = vpop.xlane.xlu0 %2605
          %2607 = vmax.xlane.f32.xlu0 %v2393
          %v2608 = vpop.xlane.xlu0 %2607
          %2609 = vmax.xlane.f32.xlu0 %v2394
          %v2610 = vpop.xlane.xlu0 %2609
          %2611 = vmax.xlane.f32.xlu0 %v2395
          %v2612 = vpop.xlane.xlu0 %2611
          %2613 = vmax.xlane.f32.xlu0 %v2396
          %v2614 = vpop.xlane.xlu0 %2613
          %2615 = vmax.xlane.f32.xlu0 %v2397
          %v2616 = vpop.xlane.xlu0 %2615
          %2617 = vmax.xlane.f32.xlu0 %v2398
          %v2618 = vpop.xlane.xlu0 %2617
          %2619 = vmax.xlane.f32.xlu0 %v2399
          %v2620 = vpop.xlane.xlu0 %2619
          %2621 = vmax.xlane.f32.xlu0 %v2400
          %v2622 = vpop.xlane.xlu0 %2621
          %2623 = vmax.xlane.f32.xlu0 %v2401
          %v2624 = vpop.xlane.xlu0 %2623
          %2625 = vmax.xlane.f32.xlu0 %v2402
          %v2626 = vpop.xlane.xlu0 %2625
          %2627 = vmax.xlane.f32.xlu0 %v2403
          %v2628 = vpop.xlane.xlu0 %2627
          %2629 = vmax.xlane.f32.xlu0 %v2404
          %v2630 = vpop.xlane.xlu0 %2629
          %2631 = vmax.xlane.f32.xlu0 %v2405
          %v2632 = vpop.xlane.xlu0 %2631
          %2633 = vmax.xlane.f32.xlu0 %v2406
          %v2634 = vpop.xlane.xlu0 %2633
          %2635 = vmax.xlane.f32.xlu0 %v2407
          %v2636 = vpop.xlane.xlu0 %2635
          %2637 = vmax.xlane.f32.xlu0 %v2408
          %v2638 = vpop.xlane.xlu0 %2637
          %2639 = vmax.xlane.f32.xlu0 %v2409
          %v2640 = vpop.xlane.xlu0 %2639
          %2641 = vmax.xlane.f32.xlu0 %v2410
          %v2642 = vpop.xlane.xlu0 %2641
          %2643 = vmax.xlane.f32.xlu0 %v2411
          %v2644 = vpop.xlane.xlu0 %2643
          %2645 = vmax.xlane.f32.xlu0 %v2412
          %v2646 = vpop.xlane.xlu0 %2645
          %2647 = vmax.xlane.f32.xlu0 %v2413
          %v2648 = vpop.xlane.xlu0 %2647
          %2649 = vmax.xlane.f32.xlu0 %v2414
          %v2650 = vpop.xlane.xlu0 %2649
          %2651 = vmax.xlane.f32.xlu0 %v2415
          %v2652 = vpop.xlane.xlu0 %2651
          %2653 = vmax.xlane.f32.xlu0 %v2416
          %v2654 = vpop.xlane.xlu0 %2653
          %2655 = vmax.xlane.f32.xlu0 %v2417
          %v2656 = vpop.xlane.xlu0 %2655
          %2657 = vmax.xlane.f32.xlu0 %v2418
          %v2658 = vpop.xlane.xlu0 %2657
          %2659 = vmax.xlane.f32.xlu0 %v2419
          %v2660 = vpop.xlane.xlu0 %2659
          %2661 = vmax.xlane.f32.xlu0 %v2420
          %v2662 = vpop.xlane.xlu0 %2661
          %2663 = vmax.xlane.f32.xlu0 %v2421
          %v2664 = vpop.xlane.xlu0 %2663
          %2665 = vmax.xlane.f32.xlu0 %v2422
          %v2666 = vpop.xlane.xlu0 %2665
          %2667 = vmax.xlane.f32.xlu0 %v2423
          %v2668 = vpop.xlane.xlu0 %2667
          %2669 = vmax.xlane.f32.xlu0 %v2424
          %v2670 = vpop.xlane.xlu0 %2669
          %2671 = vmax.xlane.f32.xlu0 %v2425
          %v2672 = vpop.xlane.xlu0 %2671
          %2673 = vmax.xlane.f32.xlu0 %v2426
          %v2674 = vpop.xlane.xlu0 %2673
          %2675 = vmax.xlane.f32.xlu0 %v2427
          %v2676 = vpop.xlane.xlu0 %2675
          %2677 = vmax.xlane.f32.xlu0 %v2428
          %v2678 = vpop.xlane.xlu0 %2677
          %2679 = vmax.xlane.f32.xlu0 %v2429
          %v2680 = vpop.xlane.xlu0 %2679
          %2681 = vmax.xlane.f32.xlu0 %v2430
          %v2682 = vpop.xlane.xlu0 %2681
          %2683 = vmax.xlane.f32.xlu0 %v2431
          %v2684 = vpop.xlane.xlu0 %2683
          %2685 = vmax.xlane.f32.xlu0 %v2432
          %v2686 = vpop.xlane.xlu0 %2685
          %2687 = vmax.xlane.f32.xlu0 %v2433
          %v2688 = vpop.xlane.xlu0 %2687
          %2689 = vmax.xlane.f32.xlu0 %v2434
          %v2690 = vpop.xlane.xlu0 %2689
          %v2691 = vld [vmem:[%s6] sm:$0xff]
          %v2692 = vld [vmem:[%s6 + $0x8] sm:$0xff]
          %v2693 = vld [vmem:[%s6 + $0x10] sm:$0xff]
          %v2694 = vld [vmem:[%s6 + $0x18] sm:$0xff]
          %v2695 = vld [vmem:[%s6 + $0x20] sm:$0xff]
          %v2696 = vld [vmem:[%s6 + $0x28] sm:$0xff]
          %v2697 = vld [vmem:[%s6 + $0x30] sm:$0xff]
          %v2698 = vld [vmem:[%s6 + $0x38] sm:$0xff]
          %v2699 = vld [vmem:[%s6 + $0x40] sm:$0xff]
          %v2700 = vld [vmem:[%s6 + $0x48] sm:$0xff]
          %v2701 = vld [vmem:[%s6 + $0x50] sm:$0xff]
          %v2702 = vld [vmem:[%s6 + $0x58] sm:$0xff]
          %v2703 = vld [vmem:[%s6 + $0x60] sm:$0xff]
          %v2704 = vld [vmem:[%s6 + $0x68] sm:$0xff]
          %v2705 = vld [vmem:[%s6 + $0x70] sm:$0xff]
          %v2706 = vld [vmem:[%s6 + $0x78] sm:$0xff]
          %v2707 = vld [vmem:[%s6 + $0x80] sm:$0xff]
          %v2708 = vld [vmem:[%s6 + $0x88] sm:$0xff]
          %v2709 = vld [vmem:[%s6 + $0x90] sm:$0xff]
          %v2710 = vld [vmem:[%s6 + $0x98] sm:$0xff]
          %v2711 = vld [vmem:[%s6 + $0xa0] sm:$0xff]
          %v2712 = vld [vmem:[%s6 + $0xa8] sm:$0xff]
          %v2713 = vld [vmem:[%s6 + $0xb0] sm:$0xff]
          %v2714 = vld [vmem:[%s6 + $0xb8] sm:$0xff]
          %v2715 = vld [vmem:[%s6 + $0xc0] sm:$0xff]
          %v2716 = vld [vmem:[%s6 + $0xc8] sm:$0xff]
          %v2717 = vld [vmem:[%s6 + $0xd0] sm:$0xff]
          %v2718 = vld [vmem:[%s6 + $0xd8] sm:$0xff]
          %v2719 = vld [vmem:[%s6 + $0xe0] sm:$0xff]
          %v2720 = vld [vmem:[%s6 + $0xe8] sm:$0xff]
          %v2721 = vld [vmem:[%s6 + $0xf0] sm:$0xff]
          %v2722 = vld [vmem:[%s6 + $0xf8] sm:$0xff]
          %v2723 = vld [vmem:[%s6 + $0x100] sm:$0xff]
          %v2724 = vld [vmem:[%s6 + $0x108] sm:$0xff]
          %v2725 = vld [vmem:[%s6 + $0x110] sm:$0xff]
          %v2726 = vld [vmem:[%s6 + $0x118] sm:$0xff]
          %v2727 = vld [vmem:[%s6 + $0x120] sm:$0xff]
          %v2728 = vld [vmem:[%s6 + $0x128] sm:$0xff]
          %v2729 = vld [vmem:[%s6 + $0x130] sm:$0xff]
          %v2730 = vld [vmem:[%s6 + $0x138] sm:$0xff]
          %v2731 = vld [vmem:[%s6 + $0x140] sm:$0xff]
          %v2732 = vld [vmem:[%s6 + $0x148] sm:$0xff]
          %v2733 = vld [vmem:[%s6 + $0x150] sm:$0xff]
          %v2734 = vld [vmem:[%s6 + $0x158] sm:$0xff]
          %v2735 = vld [vmem:[%s6 + $0x160] sm:$0xff]
          %v2736 = vld [vmem:[%s6 + $0x168] sm:$0xff]
          %v2737 = vld [vmem:[%s6 + $0x170] sm:$0xff]
          %v2738 = vld [vmem:[%s6 + $0x178] sm:$0xff]
          %v2739 = vld [vmem:[%s6 + $0x180] sm:$0xff]
          %v2740 = vld [vmem:[%s6 + $0x188] sm:$0xff]
          %v2741 = vld [vmem:[%s6 + $0x190] sm:$0xff]
          %v2742 = vld [vmem:[%s6 + $0x198] sm:$0xff]
          %v2743 = vld [vmem:[%s6 + $0x1a0] sm:$0xff]
          %v2744 = vld [vmem:[%s6 + $0x1a8] sm:$0xff]
          %v2745 = vld [vmem:[%s6 + $0x1b0] sm:$0xff]
          %v2746 = vld [vmem:[%s6 + $0x1b8] sm:$0xff]
          %v2747 = vld [vmem:[%s6 + $0x1c0] sm:$0xff]
          %v2748 = vld [vmem:[%s6 + $0x1c8] sm:$0xff]
          %v2749 = vld [vmem:[%s6 + $0x1d0] sm:$0xff]
          %v2750 = vld [vmem:[%s6 + $0x1d8] sm:$0xff]
          %v2751 = vld [vmem:[%s6 + $0x1e0] sm:$0xff]
          %v2752 = vld [vmem:[%s6 + $0x1e8] sm:$0xff]
          %v2753 = vld [vmem:[%s6 + $0x1f0] sm:$0xff]
          %v2754 = vld [vmem:[%s6 + $0x1f8] sm:$0xff]
          %v2755 = vld [vmem:[%s6 + $0x200] sm:$0xff]
          %v2756 = vld [vmem:[%s6 + $0x208] sm:$0xff]
          %v2757 = vld [vmem:[%s6 + $0x210] sm:$0xff]
          %v2758 = vld [vmem:[%s6 + $0x218] sm:$0xff]
          %v2759 = vld [vmem:[%s6 + $0x220] sm:$0xff]
          %v2760 = vld [vmem:[%s6 + $0x228] sm:$0xff]
          %v2761 = vld [vmem:[%s6 + $0x230] sm:$0xff]
          %v2762 = vld [vmem:[%s6 + $0x238] sm:$0xff]
          %v2763 = vld [vmem:[%s6 + $0x240] sm:$0xff]
          %v2764 = vld [vmem:[%s6 + $0x248] sm:$0xff]
          %v2765 = vld [vmem:[%s6 + $0x250] sm:$0xff]
          %v2766 = vld [vmem:[%s6 + $0x258] sm:$0xff]
          %v2767 = vld [vmem:[%s6 + $0x260] sm:$0xff]
          %v2768 = vld [vmem:[%s6 + $0x268] sm:$0xff]
          %v2769 = vld [vmem:[%s6 + $0x270] sm:$0xff]
          %v2770 = vld [vmem:[%s6 + $0x278] sm:$0xff]
          %v2771 = vld [vmem:[%s6 + $0x280] sm:$0xff]
          %v2772 = vld [vmem:[%s6 + $0x288] sm:$0xff]
          %v2773 = vld [vmem:[%s6 + $0x290] sm:$0xff]
          %v2774 = vld [vmem:[%s6 + $0x298] sm:$0xff]
          %v2775 = vld [vmem:[%s6 + $0x2a0] sm:$0xff]
          %v2776 = vld [vmem:[%s6 + $0x2a8] sm:$0xff]
          %v2777 = vld [vmem:[%s6 + $0x2b0] sm:$0xff]
          %v2778 = vld [vmem:[%s6 + $0x2b8] sm:$0xff]
          %v2779 = vld [vmem:[%s6 + $0x2c0] sm:$0xff]
          %v2780 = vld [vmem:[%s6 + $0x2c8] sm:$0xff]
          %v2781 = vld [vmem:[%s6 + $0x2d0] sm:$0xff]
          %v2782 = vld [vmem:[%s6 + $0x2d8] sm:$0xff]
          %v2783 = vld [vmem:[%s6 + $0x2e0] sm:$0xff]
          %v2784 = vld [vmem:[%s6 + $0x2e8] sm:$0xff]
          %v2785 = vld [vmem:[%s6 + $0x2f0] sm:$0xff]
          %v2786 = vld [vmem:[%s6 + $0x2f8] sm:$0xff]
          %v2787 = vld [vmem:[%s6 + $0x300] sm:$0xff]
          %v2788 = vld [vmem:[%s6 + $0x308] sm:$0xff]
          %v2789 = vld [vmem:[%s6 + $0x310] sm:$0xff]
          %v2790 = vld [vmem:[%s6 + $0x318] sm:$0xff]
          %v2791 = vld [vmem:[%s6 + $0x320] sm:$0xff]
          %v2792 = vld [vmem:[%s6 + $0x328] sm:$0xff]
          %v2793 = vld [vmem:[%s6 + $0x330] sm:$0xff]
          %v2794 = vld [vmem:[%s6 + $0x338] sm:$0xff]
          %v2795 = vld [vmem:[%s6 + $0x340] sm:$0xff]
          %v2796 = vld [vmem:[%s6 + $0x348] sm:$0xff]
          %v2797 = vld [vmem:[%s6 + $0x350] sm:$0xff]
          %v2798 = vld [vmem:[%s6 + $0x358] sm:$0xff]
          %v2799 = vld [vmem:[%s6 + $0x360] sm:$0xff]
          %v2800 = vld [vmem:[%s6 + $0x368] sm:$0xff]
          %v2801 = vld [vmem:[%s6 + $0x370] sm:$0xff]
          %v2802 = vld [vmem:[%s6 + $0x378] sm:$0xff]
          %v2803 = vld [vmem:[%s6 + $0x380] sm:$0xff]
          %v2804 = vld [vmem:[%s6 + $0x388] sm:$0xff]
          %v2805 = vld [vmem:[%s6 + $0x390] sm:$0xff]
          %v2806 = vld [vmem:[%s6 + $0x398] sm:$0xff]
          %v2807 = vld [vmem:[%s6 + $0x3a0] sm:$0xff]
          %v2808 = vld [vmem:[%s6 + $0x3a8] sm:$0xff]
          %v2809 = vld [vmem:[%s6 + $0x3b0] sm:$0xff]
          %v2810 = vld [vmem:[%s6 + $0x3b8] sm:$0xff]
          %v2811 = vld [vmem:[%s6 + $0x3c0] sm:$0xff]
          %v2812 = vld [vmem:[%s6 + $0x3c8] sm:$0xff]
          %v2813 = vld [vmem:[%s6 + $0x3d0] sm:$0xff]
          %v2814 = vld [vmem:[%s6 + $0x3d8] sm:$0xff]
          %v2815 = vld [vmem:[%s6 + $0x3e0] sm:$0xff]
          %v2816 = vld [vmem:[%s6 + $0x3e8] sm:$0xff]
          %v2817 = vld [vmem:[%s6 + $0x3f0] sm:$0xff]
          %v2818 = vld [vmem:[%s6 + $0x3f8] sm:$0xff]
          %v2819 = vadd.f32 %v2436, %v2691
          %v2820 = vadd.f32 %v2438, %v2692
          %v2821 = vadd.f32 %v2440, %v2693
          %v2822 = vadd.f32 %v2442, %v2694
          %v2823 = vadd.f32 %v2444, %v2695
          %v2824 = vadd.f32 %v2446, %v2696
          %v2825 = vadd.f32 %v2448, %v2697
          %v2826 = vadd.f32 %v2450, %v2698
          %v2827 = vadd.f32 %v2452, %v2699
          %v2828 = vadd.f32 %v2454, %v2700
          %v2829 = vadd.f32 %v2456, %v2701
          %v2830 = vadd.f32 %v2458, %v2702
          %v2831 = vadd.f32 %v2460, %v2703
          %v2832 = vadd.f32 %v2462, %v2704
          %v2833 = vadd.f32 %v2464, %v2705
          %v2834 = vadd.f32 %v2466, %v2706
          %v2835 = vadd.f32 %v2468, %v2707
          %v2836 = vadd.f32 %v2470, %v2708
          %v2837 = vadd.f32 %v2472, %v2709
          %v2838 = vadd.f32 %v2474, %v2710
          %v2839 = vadd.f32 %v2476, %v2711
          %v2840 = vadd.f32 %v2478, %v2712
          %v2841 = vadd.f32 %v2480, %v2713
          %v2842 = vadd.f32 %v2482, %v2714
          %v2843 = vadd.f32 %v2484, %v2715
          %v2844 = vadd.f32 %v2486, %v2716
          %v2845 = vadd.f32 %v2488, %v2717
          %v2846 = vadd.f32 %v2490, %v2718
          %v2847 = vadd.f32 %v2492, %v2719
          %v2848 = vadd.f32 %v2494, %v2720
          %v2849 = vadd.f32 %v2496, %v2721
          %v2850 = vadd.f32 %v2498, %v2722
          %v2851 = vadd.f32 %v2500, %v2723
          %v2852 = vadd.f32 %v2502, %v2724
          %v2853 = vadd.f32 %v2504, %v2725
          %v2854 = vadd.f32 %v2506, %v2726
          %v2855 = vadd.f32 %v2508, %v2727
          %v2856 = vadd.f32 %v2510, %v2728
          %v2857 = vadd.f32 %v2512, %v2729
          %v2858 = vadd.f32 %v2514, %v2730
          %v2859 = vadd.f32 %v2516, %v2731
          %v2860 = vadd.f32 %v2518, %v2732
          %v2861 = vadd.f32 %v2520, %v2733
          %v2862 = vadd.f32 %v2522, %v2734
          %v2863 = vadd.f32 %v2524, %v2735
          %v2864 = vadd.f32 %v2526, %v2736
          %v2865 = vadd.f32 %v2528, %v2737
          %v2866 = vadd.f32 %v2530, %v2738
          %v2867 = vadd.f32 %v2532, %v2739
          %v2868 = vadd.f32 %v2534, %v2740
          %v2869 = vadd.f32 %v2536, %v2741
          %v2870 = vadd.f32 %v2538, %v2742
          %v2871 = vadd.f32 %v2540, %v2743
          %v2872 = vadd.f32 %v2542, %v2744
          %v2873 = vadd.f32 %v2544, %v2745
          %v2874 = vadd.f32 %v2546, %v2746
          %v2875 = vadd.f32 %v2548, %v2747
          %v2876 = vadd.f32 %v2550, %v2748
          %v2877 = vadd.f32 %v2552, %v2749
          %v2878 = vadd.f32 %v2554, %v2750
          %v2879 = vadd.f32 %v2556, %v2751
          %v2880 = vadd.f32 %v2558, %v2752
          %v2881 = vadd.f32 %v2560, %v2753
          %v2882 = vadd.f32 %v2562, %v2754
          %v2883 = vadd.f32 %v2564, %v2755
          %v2884 = vadd.f32 %v2566, %v2756
          %v2885 = vadd.f32 %v2568, %v2757
          %v2886 = vadd.f32 %v2570, %v2758
          %v2887 = vadd.f32 %v2572, %v2759
          %v2888 = vadd.f32 %v2574, %v2760
          %v2889 = vadd.f32 %v2576, %v2761
          %v2890 = vadd.f32 %v2578, %v2762
          %v2891 = vadd.f32 %v2580, %v2763
          %v2892 = vadd.f32 %v2582, %v2764
          %v2893 = vadd.f32 %v2584, %v2765
          %v2894 = vadd.f32 %v2586, %v2766
          %v2895 = vadd.f32 %v2588, %v2767
          %v2896 = vadd.f32 %v2590, %v2768
          %v2897 = vadd.f32 %v2592, %v2769
          %v2898 = vadd.f32 %v2594, %v2770
          %v2899 = vadd.f32 %v2596, %v2771
          %v2900 = vadd.f32 %v2598, %v2772
          %v2901 = vadd.f32 %v2600, %v2773
          %v2902 = vadd.f32 %v2602, %v2774
          %v2903 = vadd.f32 %v2604, %v2775
          %v2904 = vadd.f32 %v2606, %v2776
          %v2905 = vadd.f32 %v2608, %v2777
          %v2906 = vadd.f32 %v2610, %v2778
          %v2907 = vadd.f32 %v2612, %v2779
          %v2908 = vadd.f32 %v2614, %v2780
          %v2909 = vadd.f32 %v2616, %v2781
          %v2910 = vadd.f32 %v2618, %v2782
          %v2911 = vadd.f32 %v2620, %v2783
          %v2912 = vadd.f32 %v2622, %v2784
          %v2913 = vadd.f32 %v2624, %v2785
          %v2914 = vadd.f32 %v2626, %v2786
          %v2915 = vadd.f32 %v2628, %v2787
          %v2916 = vadd.f32 %v2630, %v2788
          %v2917 = vadd.f32 %v2632, %v2789
          %v2918 = vadd.f32 %v2634, %v2790
          %v2919 = vadd.f32 %v2636, %v2791
          %v2920 = vadd.f32 %v2638, %v2792
          %v2921 = vadd.f32 %v2640, %v2793
          %v2922 = vadd.f32 %v2642, %v2794
          %v2923 = vadd.f32 %v2644, %v2795
          %v2924 = vadd.f32 %v2646, %v2796
          %v2925 = vadd.f32 %v2648, %v2797
          %v2926 = vadd.f32 %v2650, %v2798
          %v2927 = vadd.f32 %v2652, %v2799
          %v2928 = vadd.f32 %v2654, %v2800
          %v2929 = vadd.f32 %v2656, %v2801
          %v2930 = vadd.f32 %v2658, %v2802
          %v2931 = vadd.f32 %v2660, %v2803
          %v2932 = vadd.f32 %v2662, %v2804
          %v2933 = vadd.f32 %v2664, %v2805
          %v2934 = vadd.f32 %v2666, %v2806
          %v2935 = vadd.f32 %v2668, %v2807
          %v2936 = vadd.f32 %v2670, %v2808
          %v2937 = vadd.f32 %v2672, %v2809
          %v2938 = vadd.f32 %v2674, %v2810
          %v2939 = vadd.f32 %v2676, %v2811
          %v2940 = vadd.f32 %v2678, %v2812
          %v2941 = vadd.f32 %v2680, %v2813
          %v2942 = vadd.f32 %v2682, %v2814
          %v2943 = vadd.f32 %v2684, %v2815
          %v2944 = vadd.f32 %v2686, %v2816
          %v2945 = vadd.f32 %v2688, %v2817
          %v2946 = vadd.f32 %v2690, %v2818
          %v2947 = vmax.f32 %v2819, 0.0
          %v2948 = vmax.f32 %v2820, 0.0
          %v2949 = vmax.f32 %v2821, 0.0
          %v2950 = vmax.f32 %v2822, 0.0
          %v2951 = vmax.f32 %v2823, 0.0
          %v2952 = vmax.f32 %v2824, 0.0
          %v2953 = vmax.f32 %v2825, 0.0
          %v2954 = vmax.f32 %v2826, 0.0
          %v2955 = vmax.f32 %v2827, 0.0
          %v2956 = vmax.f32 %v2828, 0.0
          %v2957 = vmax.f32 %v2829, 0.0
          %v2958 = vmax.f32 %v2830, 0.0
          %v2959 = vmax.f32 %v2831, 0.0
          %v2960 = vmax.f32 %v2832, 0.0
          %v2961 = vmax.f32 %v2833, 0.0
          %v2962 = vmax.f32 %v2834, 0.0
          %v2963 = vmax.f32 %v2835, 0.0
          %v2964 = vmax.f32 %v2836, 0.0
          %v2965 = vmax.f32 %v2837, 0.0
          %v2966 = vmax.f32 %v2838, 0.0
          %v2967 = vmax.f32 %v2839, 0.0
          %v2968 = vmax.f32 %v2840, 0.0
          %v2969 = vmax.f32 %v2841, 0.0
          %v2970 = vmax.f32 %v2842, 0.0
          %v2971 = vmax.f32 %v2843, 0.0
          %v2972 = vmax.f32 %v2844, 0.0
          %v2973 = vmax.f32 %v2845, 0.0
          %v2974 = vmax.f32 %v2846, 0.0
          %v2975 = vmax.f32 %v2847, 0.0
          %v2976 = vmax.f32 %v2848, 0.0
          %v2977 = vmax.f32 %v2849, 0.0
          %v2978 = vmax.f32 %v2850, 0.0
          %v2979 = vmax.f32 %v2851, 0.0
          %v2980 = vmax.f32 %v2852, 0.0
          %v2981 = vmax.f32 %v2853, 0.0
          %v2982 = vmax.f32 %v2854, 0.0
          %v2983 = vmax.f32 %v2855, 0.0
          %v2984 = vmax.f32 %v2856, 0.0
          %v2985 = vmax.f32 %v2857, 0.0
          %v2986 = vmax.f32 %v2858, 0.0
          %v2987 = vmax.f32 %v2859, 0.0
          %v2988 = vmax.f32 %v2860, 0.0
          %v2989 = vmax.f32 %v2861, 0.0
          %v2990 = vmax.f32 %v2862, 0.0
          %v2991 = vmax.f32 %v2863, 0.0
          %v2992 = vmax.f32 %v2864, 0.0
          %v2993 = vmax.f32 %v2865, 0.0
          %v2994 = vmax.f32 %v2866, 0.0
          %v2995 = vmax.f32 %v2867, 0.0
          %v2996 = vmax.f32 %v2868, 0.0
          %v2997 = vmax.f32 %v2869, 0.0
          %v2998 = vmax.f32 %v2870, 0.0
          %v2999 = vmax.f32 %v2871, 0.0
          %v3000 = vmax.f32 %v2872, 0.0
          %v3001 = vmax.f32 %v2873, 0.0
          %v3002 = vmax.f32 %v2874, 0.0
          %v3003 = vmax.f32 %v2875, 0.0
          %v3004 = vmax.f32 %v2876, 0.0
          %v3005 = vmax.f32 %v2877, 0.0
          %v3006 = vmax.f32 %v2878, 0.0
          %v3007 = vmax.f32 %v2879, 0.0
          %v3008 = vmax.f32 %v2880, 0.0
          %v3009 = vmax.f32 %v2881, 0.0
          %v3010 = vmax.f32 %v2882, 0.0
          %v3011 = vmax.f32 %v2883, 0.0
          %v3012 = vmax.f32 %v2884, 0.0
          %v3013 = vmax.f32 %v2885, 0.0
          %v3014 = vmax.f32 %v2886, 0.0
          %v3015 = vmax.f32 %v2887, 0.0
          %v3016 = vmax.f32 %v2888, 0.0
          %v3017 = vmax.f32 %v2889, 0.0
          %v3018 = vmax.f32 %v2890, 0.0
          %v3019 = vmax.f32 %v2891, 0.0
          %v3020 = vmax.f32 %v2892, 0.0
          %v3021 = vmax.f32 %v2893, 0.0
          %v3022 = vmax.f32 %v2894, 0.0
          %v3023 = vmax.f32 %v2895, 0.0
          %v3024 = vmax.f32 %v2896, 0.0
          %v3025 = vmax.f32 %v2897, 0.0
          %v3026 = vmax.f32 %v2898, 0.0
          %v3027 = vmax.f32 %v2899, 0.0
          %v3028 = vmax.f32 %v2900, 0.0
          %v3029 = vmax.f32 %v2901, 0.0
          %v3030 = vmax.f32 %v2902, 0.0
          %v3031 = vmax.f32 %v2903, 0.0
          %v3032 = vmax.f32 %v2904, 0.0
          %v3033 = vmax.f32 %v2905, 0.0
          %v3034 = vmax.f32 %v2906, 0.0
          %v3035 = vmax.f32 %v2907, 0.0
          %v3036 = vmax.f32 %v2908, 0.0
          %v3037 = vmax.f32 %v2909, 0.0
          %v3038 = vmax.f32 %v2910, 0.0
          %v3039 = vmax.f32 %v2911, 0.0
          %v3040 = vmax.f32 %v2912, 0.0
          %v3041 = vmax.f32 %v2913, 0.0
          %v3042 = vmax.f32 %v2914, 0.0
          %v3043 = vmax.f32 %v2915, 0.0
          %v3044 = vmax.f32 %v2916, 0.0
          %v3045 = vmax.f32 %v2917, 0.0
          %v3046 = vmax.f32 %v2918, 0.0
          %v3047 = vmax.f32 %v2919, 0.0
          %v3048 = vmax.f32 %v2920, 0.0
          %v3049 = vmax.f32 %v2921, 0.0
          %v3050 = vmax.f32 %v2922, 0.0
          %v3051 = vmax.f32 %v2923, 0.0
          %v3052 = vmax.f32 %v2924, 0.0
          %v3053 = vmax.f32 %v2925, 0.0
          %v3054 = vmax.f32 %v2926, 0.0
          %v3055 = vmax.f32 %v2927, 0.0
          %v3056 = vmax.f32 %v2928, 0.0
          %v3057 = vmax.f32 %v2929, 0.0
          %v3058 = vmax.f32 %v2930, 0.0
          %v3059 = vmax.f32 %v2931, 0.0
          %v3060 = vmax.f32 %v2932, 0.0
          %v3061 = vmax.f32 %v2933, 0.0
          %v3062 = vmax.f32 %v2934, 0.0
          %v3063 = vmax.f32 %v2935, 0.0
          %v3064 = vmax.f32 %v2936, 0.0
          %v3065 = vmax.f32 %v2937, 0.0
          %v3066 = vmax.f32 %v2938, 0.0
          %v3067 = vmax.f32 %v2939, 0.0
          %v3068 = vmax.f32 %v2940, 0.0
          %v3069 = vmax.f32 %v2941, 0.0
          %v3070 = vmax.f32 %v2942, 0.0
          %v3071 = vmax.f32 %v2943, 0.0
          %v3072 = vmax.f32 %v2944, 0.0
          %v3073 = vmax.f32 %v2945, 0.0
          %v3074 = vmax.f32 %v2946, 0.0
          %v3075 = vpack.c.bf16 %v2948, %v2947
          %v3076 = vpack.c.bf16 %v2950, %v2949
          %v3077 = vpack.c.bf16 %v2952, %v2951
          %v3078 = vpack.c.bf16 %v2954, %v2953
          %v3079 = vpack.c.bf16 %v2956, %v2955
          %v3080 = vpack.c.bf16 %v2958, %v2957
          %v3081 = vpack.c.bf16 %v2960, %v2959
          %v3082 = vpack.c.bf16 %v2962, %v2961
          %v3083 = vpack.c.bf16 %v2964, %v2963
          %v3084 = vpack.c.bf16 %v2966, %v2965
          %v3085 = vpack.c.bf16 %v2968, %v2967
          %v3086 = vpack.c.bf16 %v2970, %v2969
          %v3087 = vpack.c.bf16 %v2972, %v2971
          %v3088 = vpack.c.bf16 %v2974, %v2973
          %v3089 = vpack.c.bf16 %v2976, %v2975
          %v3090 = vpack.c.bf16 %v2978, %v2977
          %v3091 = vpack.c.bf16 %v2980, %v2979
          %v3092 = vpack.c.bf16 %v2982, %v2981
          %v3093 = vpack.c.bf16 %v2984, %v2983
          %v3094 = vpack.c.bf16 %v2986, %v2985
          %v3095 = vpack.c.bf16 %v2988, %v2987
          %v3096 = vpack.c.bf16 %v2990, %v2989
          %v3097 = vpack.c.bf16 %v2992, %v2991
          %v3098 = vpack.c.bf16 %v2994, %v2993
          %v3099 = vpack.c.bf16 %v2996, %v2995
          %v3100 = vpack.c.bf16 %v2998, %v2997
          %v3101 = vpack.c.bf16 %v3000, %v2999
          %v3102 = vpack.c.bf16 %v3002, %v3001
          %v3103 = vpack.c.bf16 %v3004, %v3003
          %v3104 = vpack.c.bf16 %v3006, %v3005
          %v3105 = vpack.c.bf16 %v3008, %v3007
          %v3106 = vpack.c.bf16 %v3010, %v3009
          %v3107 = vpack.c.bf16 %v3012, %v3011
          %v3108 = vpack.c.bf16 %v3014, %v3013
          %v3109 = vpack.c.bf16 %v3016, %v3015
          %v3110 = vpack.c.bf16 %v3018, %v3017
          %v3111 = vpack.c.bf16 %v3020, %v3019
          %v3112 = vpack.c.bf16 %v3022, %v3021
          %v3113 = vpack.c.bf16 %v3024, %v3023
          %v3114 = vpack.c.bf16 %v3026, %v3025
          %v3115 = vpack.c.bf16 %v3028, %v3027
          %v3116 = vpack.c.bf16 %v3030, %v3029
          %v3117 = vpack.c.bf16 %v3032, %v3031
          %v3118 = vpack.c.bf16 %v3034, %v3033
          %v3119 = vpack.c.bf16 %v3036, %v3035
          %v3120 = vpack.c.bf16 %v3038, %v3037
          %v3121 = vpack.c.bf16 %v3040, %v3039
          %v3122 = vpack.c.bf16 %v3042, %v3041
          %v3123 = vpack.c.bf16 %v3044, %v3043
          %v3124 = vpack.c.bf16 %v3046, %v3045
          %v3125 = vpack.c.bf16 %v3048, %v3047
          %v3126 = vpack.c.bf16 %v3050, %v3049
          %v3127 = vpack.c.bf16 %v3052, %v3051
          %v3128 = vpack.c.bf16 %v3054, %v3053
          %v3129 = vpack.c.bf16 %v3056, %v3055
          %v3130 = vpack.c.bf16 %v3058, %v3057
          %v3131 = vpack.c.bf16 %v3060, %v3059
          %v3132 = vpack.c.bf16 %v3062, %v3061
          %v3133 = vpack.c.bf16 %v3064, %v3063
          %v3134 = vpack.c.bf16 %v3066, %v3065
          %v3135 = vpack.c.bf16 %v3068, %v3067
          %v3136 = vpack.c.bf16 %v3070, %v3069
          %v3137 = vpack.c.bf16 %v3072, %v3071
          %v3138 = vpack.c.bf16 %v3074, %v3073
          %v3139 = vld [vmem:[%s7] sm:$0xff]
          %v3140 = vld [vmem:[%s7 + $0x8] sm:$0xff]
          %v3141 = vld [vmem:[%s7 + $0x10] sm:$0xff]
          %v3142 = vld [vmem:[%s7 + $0x18] sm:$0xff]
          %v3143 = vld [vmem:[%s7 + $0x20] sm:$0xff]
          %v3144 = vld [vmem:[%s7 + $0x28] sm:$0xff]
          %v3145 = vld [vmem:[%s7 + $0x30] sm:$0xff]
          %v3146 = vld [vmem:[%s7 + $0x38] sm:$0xff]
          %v3147 = vld [vmem:[%s7 + $0x40] sm:$0xff]
          %v3148 = vld [vmem:[%s7 + $0x48] sm:$0xff]
          %v3149 = vld [vmem:[%s7 + $0x50] sm:$0xff]
          %v3150 = vld [vmem:[%s7 + $0x58] sm:$0xff]
          %v3151 = vld [vmem:[%s7 + $0x60] sm:$0xff]
          %v3152 = vld [vmem:[%s7 + $0x68] sm:$0xff]
          %v3153 = vld [vmem:[%s7 + $0x70] sm:$0xff]
          %v3154 = vld [vmem:[%s7 + $0x78] sm:$0xff]
          %v3155 = vld [vmem:[%s7 + $0x80] sm:$0xff]
          %v3156 = vld [vmem:[%s7 + $0x88] sm:$0xff]
          %v3157 = vld [vmem:[%s7 + $0x90] sm:$0xff]
          %v3158 = vld [vmem:[%s7 + $0x98] sm:$0xff]
          %v3159 = vld [vmem:[%s7 + $0xa0] sm:$0xff]
          %v3160 = vld [vmem:[%s7 + $0xa8] sm:$0xff]
          %v3161 = vld [vmem:[%s7 + $0xb0] sm:$0xff]
          %v3162 = vld [vmem:[%s7 + $0xb8] sm:$0xff]
          %v3163 = vld [vmem:[%s7 + $0xc0] sm:$0xff]
          %v3164 = vld [vmem:[%s7 + $0xc8] sm:$0xff]
          %v3165 = vld [vmem:[%s7 + $0xd0] sm:$0xff]
          %v3166 = vld [vmem:[%s7 + $0xd8] sm:$0xff]
          %v3167 = vld [vmem:[%s7 + $0xe0] sm:$0xff]
          %v3168 = vld [vmem:[%s7 + $0xe8] sm:$0xff]
          %v3169 = vld [vmem:[%s7 + $0xf0] sm:$0xff]
          %v3170 = vld [vmem:[%s7 + $0xf8] sm:$0xff]
          %v3171 = vld [vmem:[%s7 + $0x100] sm:$0xff]
          %v3172 = vld [vmem:[%s7 + $0x108] sm:$0xff]
          %v3173 = vld [vmem:[%s7 + $0x110] sm:$0xff]
          %v3174 = vld [vmem:[%s7 + $0x118] sm:$0xff]
          %v3175 = vld [vmem:[%s7 + $0x120] sm:$0xff]
          %v3176 = vld [vmem:[%s7 + $0x128] sm:$0xff]
          %v3177 = vld [vmem:[%s7 + $0x130] sm:$0xff]
          %v3178 = vld [vmem:[%s7 + $0x138] sm:$0xff]
          %v3179 = vld [vmem:[%s7 + $0x140] sm:$0xff]
          %v3180 = vld [vmem:[%s7 + $0x148] sm:$0xff]
          %v3181 = vld [vmem:[%s7 + $0x150] sm:$0xff]
          %v3182 = vld [vmem:[%s7 + $0x158] sm:$0xff]
          %v3183 = vld [vmem:[%s7 + $0x160] sm:$0xff]
          %v3184 = vld [vmem:[%s7 + $0x168] sm:$0xff]
          %v3185 = vld [vmem:[%s7 + $0x170] sm:$0xff]
          %v3186 = vld [vmem:[%s7 + $0x178] sm:$0xff]
          %v3187 = vld [vmem:[%s7 + $0x180] sm:$0xff]
          %v3188 = vld [vmem:[%s7 + $0x188] sm:$0xff]
          %v3189 = vld [vmem:[%s7 + $0x190] sm:$0xff]
          %v3190 = vld [vmem:[%s7 + $0x198] sm:$0xff]
          %v3191 = vld [vmem:[%s7 + $0x1a0] sm:$0xff]
          %v3192 = vld [vmem:[%s7 + $0x1a8] sm:$0xff]
          %v3193 = vld [vmem:[%s7 + $0x1b0] sm:$0xff]
          %v3194 = vld [vmem:[%s7 + $0x1b8] sm:$0xff]
          %v3195 = vld [vmem:[%s7 + $0x1c0] sm:$0xff]
          %v3196 = vld [vmem:[%s7 + $0x1c8] sm:$0xff]
          %v3197 = vld [vmem:[%s7 + $0x1d0] sm:$0xff]
          %v3198 = vld [vmem:[%s7 + $0x1d8] sm:$0xff]
          %v3199 = vld [vmem:[%s7 + $0x1e0] sm:$0xff]
          %v3200 = vld [vmem:[%s7 + $0x1e8] sm:$0xff]
          %v3201 = vld [vmem:[%s7 + $0x1f0] sm:$0xff]
          %v3202 = vld [vmem:[%s7 + $0x1f8] sm:$0xff]
          %v3203 = vld [vmem:[%s7 + $0x200] sm:$0xff]
          %v3204 = vld [vmem:[%s7 + $0x208] sm:$0xff]
          %v3205 = vld [vmem:[%s7 + $0x210] sm:$0xff]
          %v3206 = vld [vmem:[%s7 + $0x218] sm:$0xff]
          %v3207 = vld [vmem:[%s7 + $0x220] sm:$0xff]
          %v3208 = vld [vmem:[%s7 + $0x228] sm:$0xff]
          %v3209 = vld [vmem:[%s7 + $0x230] sm:$0xff]
          %v3210 = vld [vmem:[%s7 + $0x238] sm:$0xff]
          %v3211 = vld [vmem:[%s7 + $0x240] sm:$0xff]
          %v3212 = vld [vmem:[%s7 + $0x248] sm:$0xff]
          %v3213 = vld [vmem:[%s7 + $0x250] sm:$0xff]
          %v3214 = vld [vmem:[%s7 + $0x258] sm:$0xff]
          %v3215 = vld [vmem:[%s7 + $0x260] sm:$0xff]
          %v3216 = vld [vmem:[%s7 + $0x268] sm:$0xff]
          %v3217 = vld [vmem:[%s7 + $0x270] sm:$0xff]
          %v3218 = vld [vmem:[%s7 + $0x278] sm:$0xff]
          %v3219 = vld [vmem:[%s7 + $0x280] sm:$0xff]
          %v3220 = vld [vmem:[%s7 + $0x288] sm:$0xff]
          %v3221 = vld [vmem:[%s7 + $0x290] sm:$0xff]
          %v3222 = vld [vmem:[%s7 + $0x298] sm:$0xff]
          %v3223 = vld [vmem:[%s7 + $0x2a0] sm:$0xff]
          %v3224 = vld [vmem:[%s7 + $0x2a8] sm:$0xff]
          %v3225 = vld [vmem:[%s7 + $0x2b0] sm:$0xff]
          %v3226 = vld [vmem:[%s7 + $0x2b8] sm:$0xff]
          %v3227 = vld [vmem:[%s7 + $0x2c0] sm:$0xff]
          %v3228 = vld [vmem:[%s7 + $0x2c8] sm:$0xff]
          %v3229 = vld [vmem:[%s7 + $0x2d0] sm:$0xff]
          %v3230 = vld [vmem:[%s7 + $0x2d8] sm:$0xff]
          %v3231 = vld [vmem:[%s7 + $0x2e0] sm:$0xff]
          %v3232 = vld [vmem:[%s7 + $0x2e8] sm:$0xff]
          %v3233 = vld [vmem:[%s7 + $0x2f0] sm:$0xff]
          %v3234 = vld [vmem:[%s7 + $0x2f8] sm:$0xff]
          %v3235 = vld [vmem:[%s7 + $0x300] sm:$0xff]
          %v3236 = vld [vmem:[%s7 + $0x308] sm:$0xff]
          %v3237 = vld [vmem:[%s7 + $0x310] sm:$0xff]
          %v3238 = vld [vmem:[%s7 + $0x318] sm:$0xff]
          %v3239 = vld [vmem:[%s7 + $0x320] sm:$0xff]
          %v3240 = vld [vmem:[%s7 + $0x328] sm:$0xff]
          %v3241 = vld [vmem:[%s7 + $0x330] sm:$0xff]
          %v3242 = vld [vmem:[%s7 + $0x338] sm:$0xff]
          %v3243 = vld [vmem:[%s7 + $0x340] sm:$0xff]
          %v3244 = vld [vmem:[%s7 + $0x348] sm:$0xff]
          %v3245 = vld [vmem:[%s7 + $0x350] sm:$0xff]
          %v3246 = vld [vmem:[%s7 + $0x358] sm:$0xff]
          %v3247 = vld [vmem:[%s7 + $0x360] sm:$0xff]
          %v3248 = vld [vmem:[%s7 + $0x368] sm:$0xff]
          %v3249 = vld [vmem:[%s7 + $0x370] sm:$0xff]
          %v3250 = vld [vmem:[%s7 + $0x378] sm:$0xff]
          %v3251 = vld [vmem:[%s7 + $0x380] sm:$0xff]
          %v3252 = vld [vmem:[%s7 + $0x388] sm:$0xff]
          %v3253 = vld [vmem:[%s7 + $0x390] sm:$0xff]
          %v3254 = vld [vmem:[%s7 + $0x398] sm:$0xff]
          %v3255 = vld [vmem:[%s7 + $0x3a0] sm:$0xff]
          %v3256 = vld [vmem:[%s7 + $0x3a8] sm:$0xff]
          %v3257 = vld [vmem:[%s7 + $0x3b0] sm:$0xff]
          %v3258 = vld [vmem:[%s7 + $0x3b8] sm:$0xff]
          %v3259 = vld [vmem:[%s7 + $0x3c0] sm:$0xff]
          %v3260 = vld [vmem:[%s7 + $0x3c8] sm:$0xff]
          %v3261 = vld [vmem:[%s7 + $0x3d0] sm:$0xff]
          %v3262 = vld [vmem:[%s7 + $0x3d8] sm:$0xff]
          %v3263 = vld [vmem:[%s7 + $0x3e0] sm:$0xff]
          %v3264 = vld [vmem:[%s7 + $0x3e8] sm:$0xff]
          %v3265 = vld [vmem:[%s7 + $0x3f0] sm:$0xff]
          %v3266 = vld [vmem:[%s7 + $0x3f8] sm:$0xff]
          %v3267 = vld [vmem:[%s7 + $0x400] sm:$0xff]
          %v3268 = vld [vmem:[%s7 + $0x408] sm:$0xff]
          %v3269 = vld [vmem:[%s7 + $0x410] sm:$0xff]
          %v3270 = vld [vmem:[%s7 + $0x418] sm:$0xff]
          %v3271 = vld [vmem:[%s7 + $0x420] sm:$0xff]
          %v3272 = vld [vmem:[%s7 + $0x428] sm:$0xff]
          %v3273 = vld [vmem:[%s7 + $0x430] sm:$0xff]
          %v3274 = vld [vmem:[%s7 + $0x438] sm:$0xff]
          %v3275 = vld [vmem:[%s7 + $0x440] sm:$0xff]
          %v3276 = vld [vmem:[%s7 + $0x448] sm:$0xff]
          %v3277 = vld [vmem:[%s7 + $0x450] sm:$0xff]
          %v3278 = vld [vmem:[%s7 + $0x458] sm:$0xff]
          %v3279 = vld [vmem:[%s7 + $0x460] sm:$0xff]
          %v3280 = vld [vmem:[%s7 + $0x468] sm:$0xff]
          %v3281 = vld [vmem:[%s7 + $0x470] sm:$0xff]
          %v3282 = vld [vmem:[%s7 + $0x478] sm:$0xff]
          %v3283 = vld [vmem:[%s7 + $0x480] sm:$0xff]
          %v3284 = vld [vmem:[%s7 + $0x488] sm:$0xff]
          %v3285 = vld [vmem:[%s7 + $0x490] sm:$0xff]
          %v3286 = vld [vmem:[%s7 + $0x498] sm:$0xff]
          %v3287 = vld [vmem:[%s7 + $0x4a0] sm:$0xff]
          %v3288 = vld [vmem:[%s7 + $0x4a8] sm:$0xff]
          %v3289 = vld [vmem:[%s7 + $0x4b0] sm:$0xff]
          %v3290 = vld [vmem:[%s7 + $0x4b8] sm:$0xff]
          %v3291 = vld [vmem:[%s7 + $0x4c0] sm:$0xff]
          %v3292 = vld [vmem:[%s7 + $0x4c8] sm:$0xff]
          %v3293 = vld [vmem:[%s7 + $0x4d0] sm:$0xff]
          %v3294 = vld [vmem:[%s7 + $0x4d8] sm:$0xff]
          %v3295 = vld [vmem:[%s7 + $0x4e0] sm:$0xff]
          %v3296 = vld [vmem:[%s7 + $0x4e8] sm:$0xff]
          %v3297 = vld [vmem:[%s7 + $0x4f0] sm:$0xff]
          %v3298 = vld [vmem:[%s7 + $0x4f8] sm:$0xff]
          %v3299 = vld [vmem:[%s7 + $0x500] sm:$0xff]
          %v3300 = vld [vmem:[%s7 + $0x508] sm:$0xff]
          %v3301 = vld [vmem:[%s7 + $0x510] sm:$0xff]
          %v3302 = vld [vmem:[%s7 + $0x518] sm:$0xff]
          %v3303 = vld [vmem:[%s7 + $0x520] sm:$0xff]
          %v3304 = vld [vmem:[%s7 + $0x528] sm:$0xff]
          %v3305 = vld [vmem:[%s7 + $0x530] sm:$0xff]
          %v3306 = vld [vmem:[%s7 + $0x538] sm:$0xff]
          %v3307 = vld [vmem:[%s7 + $0x540] sm:$0xff]
          %v3308 = vld [vmem:[%s7 + $0x548] sm:$0xff]
          %v3309 = vld [vmem:[%s7 + $0x550] sm:$0xff]
          %v3310 = vld [vmem:[%s7 + $0x558] sm:$0xff]
          %v3311 = vld [vmem:[%s7 + $0x560] sm:$0xff]
          %v3312 = vld [vmem:[%s7 + $0x568] sm:$0xff]
          %v3313 = vld [vmem:[%s7 + $0x570] sm:$0xff]
          %v3314 = vld [vmem:[%s7 + $0x578] sm:$0xff]
          %v3315 = vld [vmem:[%s7 + $0x580] sm:$0xff]
          %v3316 = vld [vmem:[%s7 + $0x588] sm:$0xff]
          %v3317 = vld [vmem:[%s7 + $0x590] sm:$0xff]
          %v3318 = vld [vmem:[%s7 + $0x598] sm:$0xff]
          %v3319 = vld [vmem:[%s7 + $0x5a0] sm:$0xff]
          %v3320 = vld [vmem:[%s7 + $0x5a8] sm:$0xff]
          %v3321 = vld [vmem:[%s7 + $0x5b0] sm:$0xff]
          %v3322 = vld [vmem:[%s7 + $0x5b8] sm:$0xff]
          %v3323 = vld [vmem:[%s7 + $0x5c0] sm:$0xff]
          %v3324 = vld [vmem:[%s7 + $0x5c8] sm:$0xff]
          %v3325 = vld [vmem:[%s7 + $0x5d0] sm:$0xff]
          %v3326 = vld [vmem:[%s7 + $0x5d8] sm:$0xff]
          %v3327 = vld [vmem:[%s7 + $0x5e0] sm:$0xff]
          %v3328 = vld [vmem:[%s7 + $0x5e8] sm:$0xff]
          %v3329 = vld [vmem:[%s7 + $0x5f0] sm:$0xff]
          %v3330 = vld [vmem:[%s7 + $0x5f8] sm:$0xff]
          %v3331 = vld [vmem:[%s7 + $0x600] sm:$0xff]
          %v3332 = vld [vmem:[%s7 + $0x608] sm:$0xff]
          %v3333 = vld [vmem:[%s7 + $0x610] sm:$0xff]
          %v3334 = vld [vmem:[%s7 + $0x618] sm:$0xff]
          %v3335 = vld [vmem:[%s7 + $0x620] sm:$0xff]
          %v3336 = vld [vmem:[%s7 + $0x628] sm:$0xff]
          %v3337 = vld [vmem:[%s7 + $0x630] sm:$0xff]
          %v3338 = vld [vmem:[%s7 + $0x638] sm:$0xff]
          %v3339 = vld [vmem:[%s7 + $0x640] sm:$0xff]
          %v3340 = vld [vmem:[%s7 + $0x648] sm:$0xff]
          %v3341 = vld [vmem:[%s7 + $0x650] sm:$0xff]
          %v3342 = vld [vmem:[%s7 + $0x658] sm:$0xff]
          %v3343 = vld [vmem:[%s7 + $0x660] sm:$0xff]
          %v3344 = vld [vmem:[%s7 + $0x668] sm:$0xff]
          %v3345 = vld [vmem:[%s7 + $0x670] sm:$0xff]
          %v3346 = vld [vmem:[%s7 + $0x678] sm:$0xff]
          %v3347 = vld [vmem:[%s7 + $0x680] sm:$0xff]
          %v3348 = vld [vmem:[%s7 + $0x688] sm:$0xff]
          %v3349 = vld [vmem:[%s7 + $0x690] sm:$0xff]
          %v3350 = vld [vmem:[%s7 + $0x698] sm:$0xff]
          %v3351 = vld [vmem:[%s7 + $0x6a0] sm:$0xff]
          %v3352 = vld [vmem:[%s7 + $0x6a8] sm:$0xff]
          %v3353 = vld [vmem:[%s7 + $0x6b0] sm:$0xff]
          %v3354 = vld [vmem:[%s7 + $0x6b8] sm:$0xff]
          %v3355 = vld [vmem:[%s7 + $0x6c0] sm:$0xff]
          %v3356 = vld [vmem:[%s7 + $0x6c8] sm:$0xff]
          %v3357 = vld [vmem:[%s7 + $0x6d0] sm:$0xff]
          %v3358 = vld [vmem:[%s7 + $0x6d8] sm:$0xff]
          %v3359 = vld [vmem:[%s7 + $0x6e0] sm:$0xff]
          %v3360 = vld [vmem:[%s7 + $0x6e8] sm:$0xff]
          %v3361 = vld [vmem:[%s7 + $0x6f0] sm:$0xff]
          %v3362 = vld [vmem:[%s7 + $0x6f8] sm:$0xff]
          %v3363 = vld [vmem:[%s7 + $0x700] sm:$0xff]
          %v3364 = vld [vmem:[%s7 + $0x708] sm:$0xff]
          %v3365 = vld [vmem:[%s7 + $0x710] sm:$0xff]
          %v3366 = vld [vmem:[%s7 + $0x718] sm:$0xff]
          %v3367 = vld [vmem:[%s7 + $0x720] sm:$0xff]
          %v3368 = vld [vmem:[%s7 + $0x728] sm:$0xff]
          %v3369 = vld [vmem:[%s7 + $0x730] sm:$0xff]
          %v3370 = vld [vmem:[%s7 + $0x738] sm:$0xff]
          %v3371 = vld [vmem:[%s7 + $0x740] sm:$0xff]
          %v3372 = vld [vmem:[%s7 + $0x748] sm:$0xff]
          %v3373 = vld [vmem:[%s7 + $0x750] sm:$0xff]
          %v3374 = vld [vmem:[%s7 + $0x758] sm:$0xff]
          %v3375 = vld [vmem:[%s7 + $0x760] sm:$0xff]
          %v3376 = vld [vmem:[%s7 + $0x768] sm:$0xff]
          %v3377 = vld [vmem:[%s7 + $0x770] sm:$0xff]
          %v3378 = vld [vmem:[%s7 + $0x778] sm:$0xff]
          %v3379 = vld [vmem:[%s7 + $0x780] sm:$0xff]
          %v3380 = vld [vmem:[%s7 + $0x788] sm:$0xff]
          %v3381 = vld [vmem:[%s7 + $0x790] sm:$0xff]
          %v3382 = vld [vmem:[%s7 + $0x798] sm:$0xff]
          %v3383 = vld [vmem:[%s7 + $0x7a0] sm:$0xff]
          %v3384 = vld [vmem:[%s7 + $0x7a8] sm:$0xff]
          %v3385 = vld [vmem:[%s7 + $0x7b0] sm:$0xff]
          %v3386 = vld [vmem:[%s7 + $0x7b8] sm:$0xff]
          %v3387 = vld [vmem:[%s7 + $0x7c0] sm:$0xff]
          %v3388 = vld [vmem:[%s7 + $0x7c8] sm:$0xff]
          %v3389 = vld [vmem:[%s7 + $0x7d0] sm:$0xff]
          %v3390 = vld [vmem:[%s7 + $0x7d8] sm:$0xff]
          %v3391 = vld [vmem:[%s7 + $0x7e0] sm:$0xff]
          %v3392 = vld [vmem:[%s7 + $0x7e8] sm:$0xff]
          %v3393 = vld [vmem:[%s7 + $0x7f0] sm:$0xff]
          %v3394 = vld [vmem:[%s7 + $0x7f8] sm:$0xff]
          %v3395 = vld [vmem:[%s8] sm:$0xff]
          %v3396 = vld [vmem:[%s8 + $0x8] sm:$0xff]
          %v3397 = vld [vmem:[%s8 + $0x10] sm:$0xff]
          %v3398 = vld [vmem:[%s8 + $0x18] sm:$0xff]
          %v3399 = vld [vmem:[%s8 + $0x20] sm:$0xff]
          %v3400 = vld [vmem:[%s8 + $0x28] sm:$0xff]
          %v3401 = vld [vmem:[%s8 + $0x30] sm:$0xff]
          %v3402 = vld [vmem:[%s8 + $0x38] sm:$0xff]
          %v3403 = vld [vmem:[%s8 + $0x40] sm:$0xff]
          %v3404 = vld [vmem:[%s8 + $0x48] sm:$0xff]
          %v3405 = vld [vmem:[%s8 + $0x50] sm:$0xff]
          %v3406 = vld [vmem:[%s8 + $0x58] sm:$0xff]
          %v3407 = vld [vmem:[%s8 + $0x60] sm:$0xff]
          %v3408 = vld [vmem:[%s8 + $0x68] sm:$0xff]
          %v3409 = vld [vmem:[%s8 + $0x70] sm:$0xff]
          %v3410 = vld [vmem:[%s8 + $0x78] sm:$0xff]
          %v3411 = vld [vmem:[%s8 + $0x80] sm:$0xff]
          %v3412 = vld [vmem:[%s8 + $0x88] sm:$0xff]
          %v3413 = vld [vmem:[%s8 + $0x90] sm:$0xff]
          %v3414 = vld [vmem:[%s8 + $0x98] sm:$0xff]
          %v3415 = vld [vmem:[%s8 + $0xa0] sm:$0xff]
          %v3416 = vld [vmem:[%s8 + $0xa8] sm:$0xff]
          %v3417 = vld [vmem:[%s8 + $0xb0] sm:$0xff]
          %v3418 = vld [vmem:[%s8 + $0xb8] sm:$0xff]
          %v3419 = vld [vmem:[%s8 + $0xc0] sm:$0xff]
          %v3420 = vld [vmem:[%s8 + $0xc8] sm:$0xff]
          %v3421 = vld [vmem:[%s8 + $0xd0] sm:$0xff]
          %v3422 = vld [vmem:[%s8 + $0xd8] sm:$0xff]
          %v3423 = vld [vmem:[%s8 + $0xe0] sm:$0xff]
          %v3424 = vld [vmem:[%s8 + $0xe8] sm:$0xff]
          %v3425 = vld [vmem:[%s8 + $0xf0] sm:$0xff]
          %v3426 = vld [vmem:[%s8 + $0xf8] sm:$0xff]
          %v3427 = vld [vmem:[%s8 + $0x100] sm:$0xff]
          %v3428 = vld [vmem:[%s8 + $0x108] sm:$0xff]
          %v3429 = vld [vmem:[%s8 + $0x110] sm:$0xff]
          %v3430 = vld [vmem:[%s8 + $0x118] sm:$0xff]
          %v3431 = vld [vmem:[%s8 + $0x120] sm:$0xff]
          %v3432 = vld [vmem:[%s8 + $0x128] sm:$0xff]
          %v3433 = vld [vmem:[%s8 + $0x130] sm:$0xff]
          %v3434 = vld [vmem:[%s8 + $0x138] sm:$0xff]
          %v3435 = vld [vmem:[%s8 + $0x140] sm:$0xff]
          %v3436 = vld [vmem:[%s8 + $0x148] sm:$0xff]
          %v3437 = vld [vmem:[%s8 + $0x150] sm:$0xff]
          %v3438 = vld [vmem:[%s8 + $0x158] sm:$0xff]
          %v3439 = vld [vmem:[%s8 + $0x160] sm:$0xff]
          %v3440 = vld [vmem:[%s8 + $0x168] sm:$0xff]
          %v3441 = vld [vmem:[%s8 + $0x170] sm:$0xff]
          %v3442 = vld [vmem:[%s8 + $0x178] sm:$0xff]
          %v3443 = vld [vmem:[%s8 + $0x180] sm:$0xff]
          %v3444 = vld [vmem:[%s8 + $0x188] sm:$0xff]
          %v3445 = vld [vmem:[%s8 + $0x190] sm:$0xff]
          %v3446 = vld [vmem:[%s8 + $0x198] sm:$0xff]
          %v3447 = vld [vmem:[%s8 + $0x1a0] sm:$0xff]
          %v3448 = vld [vmem:[%s8 + $0x1a8] sm:$0xff]
          %v3449 = vld [vmem:[%s8 + $0x1b0] sm:$0xff]
          %v3450 = vld [vmem:[%s8 + $0x1b8] sm:$0xff]
          %v3451 = vld [vmem:[%s8 + $0x1c0] sm:$0xff]
          %v3452 = vld [vmem:[%s8 + $0x1c8] sm:$0xff]
          %v3453 = vld [vmem:[%s8 + $0x1d0] sm:$0xff]
          %v3454 = vld [vmem:[%s8 + $0x1d8] sm:$0xff]
          %v3455 = vld [vmem:[%s8 + $0x1e0] sm:$0xff]
          %v3456 = vld [vmem:[%s8 + $0x1e8] sm:$0xff]
          %v3457 = vld [vmem:[%s8 + $0x1f0] sm:$0xff]
          %v3458 = vld [vmem:[%s8 + $0x1f8] sm:$0xff]
          %v3715 = vunpack.c.l.b16 %v3139
          %v3716 = vunpack.c.h.b16 %v3139
          %v3717 = vunpack.c.l.b16 %v3140
          %v3718 = vunpack.c.h.b16 %v3140
          %v3719 = vunpack.c.l.b16 %v3141
          %v3720 = vunpack.c.h.b16 %v3141
          %v3721 = vunpack.c.l.b16 %v3142
          %v3722 = vunpack.c.h.b16 %v3142
          %v3723 = vunpack.c.l.b16 %v3143
          %v3724 = vunpack.c.h.b16 %v3143
          %v3725 = vunpack.c.l.b16 %v3144
          %v3726 = vunpack.c.h.b16 %v3144
          %v3727 = vunpack.c.l.b16 %v3145
          %v3728 = vunpack.c.h.b16 %v3145
          %v3729 = vunpack.c.l.b16 %v3146
          %v3730 = vunpack.c.h.b16 %v3146
          %v3731 = vunpack.c.l.b16 %v3147
          %v3732 = vunpack.c.h.b16 %v3147
          %v3733 = vunpack.c.l.b16 %v3148
          %v3734 = vunpack.c.h.b16 %v3148
          %v3735 = vunpack.c.l.b16 %v3149
          %v3736 = vunpack.c.h.b16 %v3149
          %v3737 = vunpack.c.l.b16 %v3150
          %v3738 = vunpack.c.h.b16 %v3150
          %v3739 = vunpack.c.l.b16 %v3151
          %v3740 = vunpack.c.h.b16 %v3151
          %v3741 = vunpack.c.l.b16 %v3152
          %v3742 = vunpack.c.h.b16 %v3152
          %v3743 = vunpack.c.l.b16 %v3153
          %v3744 = vunpack.c.h.b16 %v3153
          %v3745 = vunpack.c.l.b16 %v3154
          %v3746 = vunpack.c.h.b16 %v3154
          %v3747 = vunpack.c.l.b16 %v3155
          %v3748 = vunpack.c.h.b16 %v3155
          %v3749 = vunpack.c.l.b16 %v3156
          %v3750 = vunpack.c.h.b16 %v3156
          %v3751 = vunpack.c.l.b16 %v3157
          %v3752 = vunpack.c.h.b16 %v3157
          %v3753 = vunpack.c.l.b16 %v3158
          %v3754 = vunpack.c.h.b16 %v3158
          %v3755 = vunpack.c.l.b16 %v3159
          %v3756 = vunpack.c.h.b16 %v3159
          %v3757 = vunpack.c.l.b16 %v3160
          %v3758 = vunpack.c.h.b16 %v3160
          %v3759 = vunpack.c.l.b16 %v3161
          %v3760 = vunpack.c.h.b16 %v3161
          %v3761 = vunpack.c.l.b16 %v3162
          %v3762 = vunpack.c.h.b16 %v3162
          %v3763 = vunpack.c.l.b16 %v3163
          %v3764 = vunpack.c.h.b16 %v3163
          %v3765 = vunpack.c.l.b16 %v3164
          %v3766 = vunpack.c.h.b16 %v3164
          %v3767 = vunpack.c.l.b16 %v3165
          %v3768 = vunpack.c.h.b16 %v3165
          %v3769 = vunpack.c.l.b16 %v3166
          %v3770 = vunpack.c.h.b16 %v3166
          %v3771 = vunpack.c.l.b16 %v3167
          %v3772 = vunpack.c.h.b16 %v3167
          %v3773 = vunpack.c.l.b16 %v3168
          %v3774 = vunpack.c.h.b16 %v3168
          %v3775 = vunpack.c.l.b16 %v3169
          %v3776 = vunpack.c.h.b16 %v3169
          %v3777 = vunpack.c.l.b16 %v3170
          %v3778 = vunpack.c.h.b16 %v3170
          %v3779 = vunpack.c.l.b16 %v3171
          %v3780 = vunpack.c.h.b16 %v3171
          %v3781 = vunpack.c.l.b16 %v3172
          %v3782 = vunpack.c.h.b16 %v3172
          %v3783 = vunpack.c.l.b16 %v3173
          %v3784 = vunpack.c.h.b16 %v3173
          %v3785 = vunpack.c.l.b16 %v3174
          %v3786 = vunpack.c.h.b16 %v3174
          %v3787 = vunpack.c.l.b16 %v3175
          %v3788 = vunpack.c.h.b16 %v3175
          %v3789 = vunpack.c.l.b16 %v3176
          %v3790 = vunpack.c.h.b16 %v3176
          %v3791 = vunpack.c.l.b16 %v3177
          %v3792 = vunpack.c.h.b16 %v3177
          %v3793 = vunpack.c.l.b16 %v3178
          %v3794 = vunpack.c.h.b16 %v3178
          %v3795 = vunpack.c.l.b16 %v3179
          %v3796 = vunpack.c.h.b16 %v3179
          %v3797 = vunpack.c.l.b16 %v3180
          %v3798 = vunpack.c.h.b16 %v3180
          %v3799 = vunpack.c.l.b16 %v3181
          %v3800 = vunpack.c.h.b16 %v3181
          %v3801 = vunpack.c.l.b16 %v3182
          %v3802 = vunpack.c.h.b16 %v3182
          %v3803 = vunpack.c.l.b16 %v3183
          %v3804 = vunpack.c.h.b16 %v3183
          %v3805 = vunpack.c.l.b16 %v3184
          %v3806 = vunpack.c.h.b16 %v3184
          %v3807 = vunpack.c.l.b16 %v3185
          %v3808 = vunpack.c.h.b16 %v3185
          %v3809 = vunpack.c.l.b16 %v3186
          %v3810 = vunpack.c.h.b16 %v3186
          %v3811 = vunpack.c.l.b16 %v3187
          %v3812 = vunpack.c.h.b16 %v3187
          %v3813 = vunpack.c.l.b16 %v3188
          %v3814 = vunpack.c.h.b16 %v3188
          %v3815 = vunpack.c.l.b16 %v3189
          %v3816 = vunpack.c.h.b16 %v3189
          %v3817 = vunpack.c.l.b16 %v3190
          %v3818 = vunpack.c.h.b16 %v3190
          %v3819 = vunpack.c.l.b16 %v3191
          %v3820 = vunpack.c.h.b16 %v3191
          %v3821 = vunpack.c.l.b16 %v3192
          %v3822 = vunpack.c.h.b16 %v3192
          %v3823 = vunpack.c.l.b16 %v3193
          %v3824 = vunpack.c.h.b16 %v3193
          %v3825 = vunpack.c.l.b16 %v3194
          %v3826 = vunpack.c.h.b16 %v3194
          %v3827 = vunpack.c.l.b16 %v3195
          %v3828 = vunpack.c.h.b16 %v3195
          %v3829 = vunpack.c.l.b16 %v3196
          %v3830 = vunpack.c.h.b16 %v3196
          %v3831 = vunpack.c.l.b16 %v3197
          %v3832 = vunpack.c.h.b16 %v3197
          %v3833 = vunpack.c.l.b16 %v3198
          %v3834 = vunpack.c.h.b16 %v3198
          %v3835 = vunpack.c.l.b16 %v3199
          %v3836 = vunpack.c.h.b16 %v3199
          %v3837 = vunpack.c.l.b16 %v3200
          %v3838 = vunpack.c.h.b16 %v3200
          %v3839 = vunpack.c.l.b16 %v3201
          %v3840 = vunpack.c.h.b16 %v3201
          %v3841 = vunpack.c.l.b16 %v3202
          %v3842 = vunpack.c.h.b16 %v3202
          %v3843 = vunpack.c.l.b16 %v3203
          %v3844 = vunpack.c.h.b16 %v3203
          %v3845 = vunpack.c.l.b16 %v3204
          %v3846 = vunpack.c.h.b16 %v3204
          %v3847 = vunpack.c.l.b16 %v3205
          %v3848 = vunpack.c.h.b16 %v3205
          %v3849 = vunpack.c.l.b16 %v3206
          %v3850 = vunpack.c.h.b16 %v3206
          %v3851 = vunpack.c.l.b16 %v3207
          %v3852 = vunpack.c.h.b16 %v3207
          %v3853 = vunpack.c.l.b16 %v3208
          %v3854 = vunpack.c.h.b16 %v3208
          %v3855 = vunpack.c.l.b16 %v3209
          %v3856 = vunpack.c.h.b16 %v3209
          %v3857 = vunpack.c.l.b16 %v3210
          %v3858 = vunpack.c.h.b16 %v3210
          %v3859 = vunpack.c.l.b16 %v3211
          %v3860 = vunpack.c.h.b16 %v3211
          %v3861 = vunpack.c.l.b16 %v3212
          %v3862 = vunpack.c.h.b16 %v3212
          %v3863 = vunpack.c.l.b16 %v3213
          %v3864 = vunpack.c.h.b16 %v3213
          %v3865 = vunpack.c.l.b16 %v3214
          %v3866 = vunpack.c.h.b16 %v3214
          %v3867 = vunpack.c.l.b16 %v3215
          %v3868 = vunpack.c.h.b16 %v3215
          %v3869 = vunpack.c.l.b16 %v3216
          %v3870 = vunpack.c.h.b16 %v3216
          %v3871 = vunpack.c.l.b16 %v3217
          %v3872 = vunpack.c.h.b16 %v3217
          %v3873 = vunpack.c.l.b16 %v3218
          %v3874 = vunpack.c.h.b16 %v3218
          %v3875 = vunpack.c.l.b16 %v3219
          %v3876 = vunpack.c.h.b16 %v3219
          %v3877 = vunpack.c.l.b16 %v3220
          %v3878 = vunpack.c.h.b16 %v3220
          %v3879 = vunpack.c.l.b16 %v3221
          %v3880 = vunpack.c.h.b16 %v3221
          %v3881 = vunpack.c.l.b16 %v3222
          %v3882 = vunpack.c.h.b16 %v3222
          %v3883 = vunpack.c.l.b16 %v3223
          %v3884 = vunpack.c.h.b16 %v3223
          %v3885 = vunpack.c.l.b16 %v3224
          %v3886 = vunpack.c.h.b16 %v3224
          %v3887 = vunpack.c.l.b16 %v3225
          %v3888 = vunpack.c.h.b16 %v3225
          %v3889 = vunpack.c.l.b16 %v3226
          %v3890 = vunpack.c.h.b16 %v3226
          %v3891 = vunpack.c.l.b16 %v3227
          %v3892 = vunpack.c.h.b16 %v3227
          %v3893 = vunpack.c.l.b16 %v3228
          %v3894 = vunpack.c.h.b16 %v3228
          %v3895 = vunpack.c.l.b16 %v3229
          %v3896 = vunpack.c.h.b16 %v3229
          %v3897 = vunpack.c.l.b16 %v3230
          %v3898 = vunpack.c.h.b16 %v3230
          %v3899 = vunpack.c.l.b16 %v3231
          %v3900 = vunpack.c.h.b16 %v3231
          %v3901 = vunpack.c.l.b16 %v3232
          %v3902 = vunpack.c.h.b16 %v3232
          %v3903 = vunpack.c.l.b16 %v3233
          %v3904 = vunpack.c.h.b16 %v3233
          %v3905 = vunpack.c.l.b16 %v3234
          %v3906 = vunpack.c.h.b16 %v3234
          %v3907 = vunpack.c.l.b16 %v3235
          %v3908 = vunpack.c.h.b16 %v3235
          %v3909 = vunpack.c.l.b16 %v3236
          %v3910 = vunpack.c.h.b16 %v3236
          %v3911 = vunpack.c.l.b16 %v3237
          %v3912 = vunpack.c.h.b16 %v3237
          %v3913 = vunpack.c.l.b16 %v3238
          %v3914 = vunpack.c.h.b16 %v3238
          %v3915 = vunpack.c.l.b16 %v3239
          %v3916 = vunpack.c.h.b16 %v3239
          %v3917 = vunpack.c.l.b16 %v3240
          %v3918 = vunpack.c.h.b16 %v3240
          %v3919 = vunpack.c.l.b16 %v3241
          %v3920 = vunpack.c.h.b16 %v3241
          %v3921 = vunpack.c.l.b16 %v3242
          %v3922 = vunpack.c.h.b16 %v3242
          %v3923 = vunpack.c.l.b16 %v3243
          %v3924 = vunpack.c.h.b16 %v3243
          %v3925 = vunpack.c.l.b16 %v3244
          %v3926 = vunpack.c.h.b16 %v3244
          %v3927 = vunpack.c.l.b16 %v3245
          %v3928 = vunpack.c.h.b16 %v3245
          %v3929 = vunpack.c.l.b16 %v3246
          %v3930 = vunpack.c.h.b16 %v3246
          %v3931 = vunpack.c.l.b16 %v3247
          %v3932 = vunpack.c.h.b16 %v3247
          %v3933 = vunpack.c.l.b16 %v3248
          %v3934 = vunpack.c.h.b16 %v3248
          %v3935 = vunpack.c.l.b16 %v3249
          %v3936 = vunpack.c.h.b16 %v3249
          %v3937 = vunpack.c.l.b16 %v3250
          %v3938 = vunpack.c.h.b16 %v3250
          %v3939 = vunpack.c.l.b16 %v3251
          %v3940 = vunpack.c.h.b16 %v3251
          %v3941 = vunpack.c.l.b16 %v3252
          %v3942 = vunpack.c.h.b16 %v3252
          %v3943 = vunpack.c.l.b16 %v3253
          %v3944 = vunpack.c.h.b16 %v3253
          %v3945 = vunpack.c.l.b16 %v3254
          %v3946 = vunpack.c.h.b16 %v3254
          %v3947 = vunpack.c.l.b16 %v3255
          %v3948 = vunpack.c.h.b16 %v3255
          %v3949 = vunpack.c.l.b16 %v3256
          %v3950 = vunpack.c.h.b16 %v3256
          %v3951 = vunpack.c.l.b16 %v3257
          %v3952 = vunpack.c.h.b16 %v3257
          %v3953 = vunpack.c.l.b16 %v3258
          %v3954 = vunpack.c.h.b16 %v3258
          %v3955 = vunpack.c.l.b16 %v3259
          %v3956 = vunpack.c.h.b16 %v3259
          %v3957 = vunpack.c.l.b16 %v3260
          %v3958 = vunpack.c.h.b16 %v3260
          %v3959 = vunpack.c.l.b16 %v3261
          %v3960 = vunpack.c.h.b16 %v3261
          %v3961 = vunpack.c.l.b16 %v3262
          %v3962 = vunpack.c.h.b16 %v3262
          %v3963 = vunpack.c.l.b16 %v3263
          %v3964 = vunpack.c.h.b16 %v3263
          %v3965 = vunpack.c.l.b16 %v3264
          %v3966 = vunpack.c.h.b16 %v3264
          %v3967 = vunpack.c.l.b16 %v3265
          %v3968 = vunpack.c.h.b16 %v3265
          %v3969 = vunpack.c.l.b16 %v3266
          %v3970 = vunpack.c.h.b16 %v3266
          %v3971 = vunpack.c.l.b16 %v3267
          %v3972 = vunpack.c.h.b16 %v3267
          %v3973 = vunpack.c.l.b16 %v3268
          %v3974 = vunpack.c.h.b16 %v3268
          %v3975 = vunpack.c.l.b16 %v3269
          %v3976 = vunpack.c.h.b16 %v3269
          %v3977 = vunpack.c.l.b16 %v3270
          %v3978 = vunpack.c.h.b16 %v3270
          %v3979 = vunpack.c.l.b16 %v3271
          %v3980 = vunpack.c.h.b16 %v3271
          %v3981 = vunpack.c.l.b16 %v3272
          %v3982 = vunpack.c.h.b16 %v3272
          %v3983 = vunpack.c.l.b16 %v3273
          %v3984 = vunpack.c.h.b16 %v3273
          %v3985 = vunpack.c.l.b16 %v3274
          %v3986 = vunpack.c.h.b16 %v3274
          %v3987 = vunpack.c.l.b16 %v3275
          %v3988 = vunpack.c.h.b16 %v3275
          %v3989 = vunpack.c.l.b16 %v3276
          %v3990 = vunpack.c.h.b16 %v3276
          %v3991 = vunpack.c.l.b16 %v3277
          %v3992 = vunpack.c.h.b16 %v3277
          %v3993 = vunpack.c.l.b16 %v3278
          %v3994 = vunpack.c.h.b16 %v3278
          %v3995 = vunpack.c.l.b16 %v3279
          %v3996 = vunpack.c.h.b16 %v3279
          %v3997 = vunpack.c.l.b16 %v3280
          %v3998 = vunpack.c.h.b16 %v3280
          %v3999 = vunpack.c.l.b16 %v3281
          %v4000 = vunpack.c.h.b16 %v3281
          %v4001 = vunpack.c.l.b16 %v3282
          %v4002 = vunpack.c.h.b16 %v3282
          %v4003 = vunpack.c.l.b16 %v3283
          %v4004 = vunpack.c.h.b16 %v3283
          %v4005 = vunpack.c.l.b16 %v3284
          %v4006 = vunpack.c.h.b16 %v3284
          %v4007 = vunpack.c.l.b16 %v3285
          %v4008 = vunpack.c.h.b16 %v3285
          %v4009 = vunpack.c.l.b16 %v3286
          %v4010 = vunpack.c.h.b16 %v3286
          %v4011 = vunpack.c.l.b16 %v3287
          %v4012 = vunpack.c.h.b16 %v3287
          %v4013 = vunpack.c.l.b16 %v3288
          %v4014 = vunpack.c.h.b16 %v3288
          %v4015 = vunpack.c.l.b16 %v3289
          %v4016 = vunpack.c.h.b16 %v3289
          %v4017 = vunpack.c.l.b16 %v3290
          %v4018 = vunpack.c.h.b16 %v3290
          %v4019 = vunpack.c.l.b16 %v3291
          %v4020 = vunpack.c.h.b16 %v3291
          %v4021 = vunpack.c.l.b16 %v3292
          %v4022 = vunpack.c.h.b16 %v3292
          %v4023 = vunpack.c.l.b16 %v3293
          %v4024 = vunpack.c.h.b16 %v3293
          %v4025 = vunpack.c.l.b16 %v3294
          %v4026 = vunpack.c.h.b16 %v3294
          %v4027 = vunpack.c.l.b16 %v3295
          %v4028 = vunpack.c.h.b16 %v3295
          %v4029 = vunpack.c.l.b16 %v3296
          %v4030 = vunpack.c.h.b16 %v3296
          %v4031 = vunpack.c.l.b16 %v3297
          %v4032 = vunpack.c.h.b16 %v3297
          %v4033 = vunpack.c.l.b16 %v3298
          %v4034 = vunpack.c.h.b16 %v3298
          %v4035 = vunpack.c.l.b16 %v3299
          %v4036 = vunpack.c.h.b16 %v3299
          %v4037 = vunpack.c.l.b16 %v3300
          %v4038 = vunpack.c.h.b16 %v3300
          %v4039 = vunpack.c.l.b16 %v3301
          %v4040 = vunpack.c.h.b16 %v3301
          %v4041 = vunpack.c.l.b16 %v3302
          %v4042 = vunpack.c.h.b16 %v3302
          %v4043 = vunpack.c.l.b16 %v3303
          %v4044 = vunpack.c.h.b16 %v3303
          %v4045 = vunpack.c.l.b16 %v3304
          %v4046 = vunpack.c.h.b16 %v3304
          %v4047 = vunpack.c.l.b16 %v3305
          %v4048 = vunpack.c.h.b16 %v3305
          %v4049 = vunpack.c.l.b16 %v3306
          %v4050 = vunpack.c.h.b16 %v3306
          %v4051 = vunpack.c.l.b16 %v3307
          %v4052 = vunpack.c.h.b16 %v3307
          %v4053 = vunpack.c.l.b16 %v3308
          %v4054 = vunpack.c.h.b16 %v3308
          %v4055 = vunpack.c.l.b16 %v3309
          %v4056 = vunpack.c.h.b16 %v3309
          %v4057 = vunpack.c.l.b16 %v3310
          %v4058 = vunpack.c.h.b16 %v3310
          %v4059 = vunpack.c.l.b16 %v3311
          %v4060 = vunpack.c.h.b16 %v3311
          %v4061 = vunpack.c.l.b16 %v3312
          %v4062 = vunpack.c.h.b16 %v3312
          %v4063 = vunpack.c.l.b16 %v3313
          %v4064 = vunpack.c.h.b16 %v3313
          %v4065 = vunpack.c.l.b16 %v3314
          %v4066 = vunpack.c.h.b16 %v3314
          %v4067 = vunpack.c.l.b16 %v3315
          %v4068 = vunpack.c.h.b16 %v3315
          %v4069 = vunpack.c.l.b16 %v3316
          %v4070 = vunpack.c.h.b16 %v3316
          %v4071 = vunpack.c.l.b16 %v3317
          %v4072 = vunpack.c.h.b16 %v3317
          %v4073 = vunpack.c.l.b16 %v3318
          %v4074 = vunpack.c.h.b16 %v3318
          %v4075 = vunpack.c.l.b16 %v3319
          %v4076 = vunpack.c.h.b16 %v3319
          %v4077 = vunpack.c.l.b16 %v3320
          %v4078 = vunpack.c.h.b16 %v3320
          %v4079 = vunpack.c.l.b16 %v3321
          %v4080 = vunpack.c.h.b16 %v3321
          %v4081 = vunpack.c.l.b16 %v3322
          %v4082 = vunpack.c.h.b16 %v3322
          %v4083 = vunpack.c.l.b16 %v3323
          %v4084 = vunpack.c.h.b16 %v3323
          %v4085 = vunpack.c.l.b16 %v3324
          %v4086 = vunpack.c.h.b16 %v3324
          %v4087 = vunpack.c.l.b16 %v3325
          %v4088 = vunpack.c.h.b16 %v3325
          %v4089 = vunpack.c.l.b16 %v3326
          %v4090 = vunpack.c.h.b16 %v3326
          %v4091 = vunpack.c.l.b16 %v3327
          %v4092 = vunpack.c.h.b16 %v3327
          %v4093 = vunpack.c.l.b16 %v3328
          %v4094 = vunpack.c.h.b16 %v3328
          %v4095 = vunpack.c.l.b16 %v3329
          %v4096 = vunpack.c.h.b16 %v3329
          %v4097 = vunpack.c.l.b16 %v3330
          %v4098 = vunpack.c.h.b16 %v3330
          %v4099 = vunpack.c.l.b16 %v3331
          %v4100 = vunpack.c.h.b16 %v3331
          %v4101 = vunpack.c.l.b16 %v3332
          %v4102 = vunpack.c.h.b16 %v3332
          %v4103 = vunpack.c.l.b16 %v3333
          %v4104 = vunpack.c.h.b16 %v3333
          %v4105 = vunpack.c.l.b16 %v3334
          %v4106 = vunpack.c.h.b16 %v3334
          %v4107 = vunpack.c.l.b16 %v3335
          %v4108 = vunpack.c.h.b16 %v3335
          %v4109 = vunpack.c.l.b16 %v3336
          %v4110 = vunpack.c.h.b16 %v3336
          %v4111 = vunpack.c.l.b16 %v3337
          %v4112 = vunpack.c.h.b16 %v3337
          %v4113 = vunpack.c.l.b16 %v3338
          %v4114 = vunpack.c.h.b16 %v3338
          %v4115 = vunpack.c.l.b16 %v3339
          %v4116 = vunpack.c.h.b16 %v3339
          %v4117 = vunpack.c.l.b16 %v3340
          %v4118 = vunpack.c.h.b16 %v3340
          %v4119 = vunpack.c.l.b16 %v3341
          %v4120 = vunpack.c.h.b16 %v3341
          %v4121 = vunpack.c.l.b16 %v3342
          %v4122 = vunpack.c.h.b16 %v3342
          %v4123 = vunpack.c.l.b16 %v3343
          %v4124 = vunpack.c.h.b16 %v3343
          %v4125 = vunpack.c.l.b16 %v3344
          %v4126 = vunpack.c.h.b16 %v3344
          %v4127 = vunpack.c.l.b16 %v3345
          %v4128 = vunpack.c.h.b16 %v3345
          %v4129 = vunpack.c.l.b16 %v3346
          %v4130 = vunpack.c.h.b16 %v3346
          %v4131 = vunpack.c.l.b16 %v3347
          %v4132 = vunpack.c.h.b16 %v3347
          %v4133 = vunpack.c.l.b16 %v3348
          %v4134 = vunpack.c.h.b16 %v3348
          %v4135 = vunpack.c.l.b16 %v3349
          %v4136 = vunpack.c.h.b16 %v3349
          %v4137 = vunpack.c.l.b16 %v3350
          %v4138 = vunpack.c.h.b16 %v3350
          %v4139 = vunpack.c.l.b16 %v3351
          %v4140 = vunpack.c.h.b16 %v3351
          %v4141 = vunpack.c.l.b16 %v3352
          %v4142 = vunpack.c.h.b16 %v3352
          %v4143 = vunpack.c.l.b16 %v3353
          %v4144 = vunpack.c.h.b16 %v3353
          %v4145 = vunpack.c.l.b16 %v3354
          %v4146 = vunpack.c.h.b16 %v3354
          %v4147 = vunpack.c.l.b16 %v3355
          %v4148 = vunpack.c.h.b16 %v3355
          %v4149 = vunpack.c.l.b16 %v3356
          %v4150 = vunpack.c.h.b16 %v3356
          %v4151 = vunpack.c.l.b16 %v3357
          %v4152 = vunpack.c.h.b16 %v3357
          %v4153 = vunpack.c.l.b16 %v3358
          %v4154 = vunpack.c.h.b16 %v3358
          %v4155 = vunpack.c.l.b16 %v3359
          %v4156 = vunpack.c.h.b16 %v3359
          %v4157 = vunpack.c.l.b16 %v3360
          %v4158 = vunpack.c.h.b16 %v3360
          %v4159 = vunpack.c.l.b16 %v3361
          %v4160 = vunpack.c.h.b16 %v3361
          %v4161 = vunpack.c.l.b16 %v3362
          %v4162 = vunpack.c.h.b16 %v3362
          %v4163 = vunpack.c.l.b16 %v3363
          %v4164 = vunpack.c.h.b16 %v3363
          %v4165 = vunpack.c.l.b16 %v3364
          %v4166 = vunpack.c.h.b16 %v3364
          %v4167 = vunpack.c.l.b16 %v3365
          %v4168 = vunpack.c.h.b16 %v3365
          %v4169 = vunpack.c.l.b16 %v3366
          %v4170 = vunpack.c.h.b16 %v3366
          %v4171 = vunpack.c.l.b16 %v3367
          %v4172 = vunpack.c.h.b16 %v3367
          %v4173 = vunpack.c.l.b16 %v3368
          %v4174 = vunpack.c.h.b16 %v3368
          %v4175 = vunpack.c.l.b16 %v3369
          %v4176 = vunpack.c.h.b16 %v3369
          %v4177 = vunpack.c.l.b16 %v3370
          %v4178 = vunpack.c.h.b16 %v3370
          %v4179 = vunpack.c.l.b16 %v3371
          %v4180 = vunpack.c.h.b16 %v3371
          %v4181 = vunpack.c.l.b16 %v3372
          %v4182 = vunpack.c.h.b16 %v3372
          %v4183 = vunpack.c.l.b16 %v3373
          %v4184 = vunpack.c.h.b16 %v3373
          %v4185 = vunpack.c.l.b16 %v3374
          %v4186 = vunpack.c.h.b16 %v3374
          %v4187 = vunpack.c.l.b16 %v3375
          %v4188 = vunpack.c.h.b16 %v3375
          %v4189 = vunpack.c.l.b16 %v3376
          %v4190 = vunpack.c.h.b16 %v3376
          %v4191 = vunpack.c.l.b16 %v3377
          %v4192 = vunpack.c.h.b16 %v3377
          %v4193 = vunpack.c.l.b16 %v3378
          %v4194 = vunpack.c.h.b16 %v3378
          %v4195 = vunpack.c.l.b16 %v3379
          %v4196 = vunpack.c.h.b16 %v3379
          %v4197 = vunpack.c.l.b16 %v3380
          %v4198 = vunpack.c.h.b16 %v3380
          %v4199 = vunpack.c.l.b16 %v3381
          %v4200 = vunpack.c.h.b16 %v3381
          %v4201 = vunpack.c.l.b16 %v3382
          %v4202 = vunpack.c.h.b16 %v3382
          %v4203 = vunpack.c.l.b16 %v3383
          %v4204 = vunpack.c.h.b16 %v3383
          %v4205 = vunpack.c.l.b16 %v3384
          %v4206 = vunpack.c.h.b16 %v3384
          %v4207 = vunpack.c.l.b16 %v3385
          %v4208 = vunpack.c.h.b16 %v3385
          %v4209 = vunpack.c.l.b16 %v3386
          %v4210 = vunpack.c.h.b16 %v3386
          %v4211 = vunpack.c.l.b16 %v3387
          %v4212 = vunpack.c.h.b16 %v3387
          %v4213 = vunpack.c.l.b16 %v3388
          %v4214 = vunpack.c.h.b16 %v3388
          %v4215 = vunpack.c.l.b16 %v3389
          %v4216 = vunpack.c.h.b16 %v3389
          %v4217 = vunpack.c.l.b16 %v3390
          %v4218 = vunpack.c.h.b16 %v3390
          %v4219 = vunpack.c.l.b16 %v3391
          %v4220 = vunpack.c.h.b16 %v3391
          %v4221 = vunpack.c.l.b16 %v3392
          %v4222 = vunpack.c.h.b16 %v3392
          %v4223 = vunpack.c.l.b16 %v3393
          %v4224 = vunpack.c.h.b16 %v3393
          %v4225 = vunpack.c.l.b16 %v3394
          %v4226 = vunpack.c.h.b16 %v3394
          %v4227 = vpack.c.b16 %v3723, %v3715
          %v4228 = vpack.c.b16 %v3724, %v3716
          %v4229 = vpack.c.b16 %v3725, %v3717
          %v4230 = vpack.c.b16 %v3726, %v3718
          %v4231 = vpack.c.b16 %v3727, %v3719
          %v4232 = vpack.c.b16 %v3728, %v3720
          %v4233 = vpack.c.b16 %v3729, %v3721
          %v4234 = vpack.c.b16 %v3730, %v3722
          %v4235 = vpack.c.b16 %v3739, %v3731
          %v4236 = vpack.c.b16 %v3740, %v3732
          %v4237 = vpack.c.b16 %v3741, %v3733
          %v4238 = vpack.c.b16 %v3742, %v3734
          %v4239 = vpack.c.b16 %v3743, %v3735
          %v4240 = vpack.c.b16 %v3744, %v3736
          %v4241 = vpack.c.b16 %v3745, %v3737
          %v4242 = vpack.c.b16 %v3746, %v3738
          %v4243 = vpack.c.b16 %v3755, %v3747
          %v4244 = vpack.c.b16 %v3756, %v3748
          %v4245 = vpack.c.b16 %v3757, %v3749
          %v4246 = vpack.c.b16 %v3758, %v3750
          %v4247 = vpack.c.b16 %v3759, %v3751
          %v4248 = vpack.c.b16 %v3760, %v3752
          %v4249 = vpack.c.b16 %v3761, %v3753
          %v4250 = vpack.c.b16 %v3762, %v3754
          %v4251 = vpack.c.b16 %v3771, %v3763
          %v4252 = vpack.c.b16 %v3772, %v3764
          %v4253 = vpack.c.b16 %v3773, %v3765
          %v4254 = vpack.c.b16 %v3774, %v3766
          %v4255 = vpack.c.b16 %v3775, %v3767
          %v4256 = vpack.c.b16 %v3776, %v3768
          %v4257 = vpack.c.b16 %v3777, %v3769
          %v4258 = vpack.c.b16 %v3778, %v3770
          %v4259 = vpack.c.b16 %v3787, %v3779
          %v4260 = vpack.c.b16 %v3788, %v3780
          %v4261 = vpack.c.b16 %v3789, %v3781
          %v4262 = vpack.c.b16 %v3790, %v3782
          %v4263 = vpack.c.b16 %v3791, %v3783
          %v4264 = vpack.c.b16 %v3792, %v3784
          %v4265 = vpack.c.b16 %v3793, %v3785
          %v4266 = vpack.c.b16 %v3794, %v3786
          %v4267 = vpack.c.b16 %v3803, %v3795
          %v4268 = vpack.c.b16 %v3804, %v3796
          %v4269 = vpack.c.b16 %v3805, %v3797
          %v4270 = vpack.c.b16 %v3806, %v3798
          %v4271 = vpack.c.b16 %v3807, %v3799
          %v4272 = vpack.c.b16 %v3808, %v3800
          %v4273 = vpack.c.b16 %v3809, %v3801
          %v4274 = vpack.c.b16 %v3810, %v3802
          %v4275 = vpack.c.b16 %v3819, %v3811
          %v4276 = vpack.c.b16 %v3820, %v3812
          %v4277 = vpack.c.b16 %v3821, %v3813
          %v4278 = vpack.c.b16 %v3822, %v3814
          %v4279 = vpack.c.b16 %v3823, %v3815
          %v4280 = vpack.c.b16 %v3824, %v3816
          %v4281 = vpack.c.b16 %v3825, %v3817
          %v4282 = vpack.c.b16 %v3826, %v3818
          %v4283 = vpack.c.b16 %v3835, %v3827
          %v4284 = vpack.c.b16 %v3836, %v3828
          %v4285 = vpack.c.b16 %v3837, %v3829
          %v4286 = vpack.c.b16 %v3838, %v3830
          %v4287 = vpack.c.b16 %v3839, %v3831
          %v4288 = vpack.c.b16 %v3840, %v3832
          %v4289 = vpack.c.b16 %v3841, %v3833
          %v4290 = vpack.c.b16 %v3842, %v3834
          %v4291 = vpack.c.b16 %v3851, %v3843
          %v4292 = vpack.c.b16 %v3852, %v3844
          %v4293 = vpack.c.b16 %v3853, %v3845
          %v4294 = vpack.c.b16 %v3854, %v3846
          %v4295 = vpack.c.b16 %v3855, %v3847
          %v4296 = vpack.c.b16 %v3856, %v3848
          %v4297 = vpack.c.b16 %v3857, %v3849
          %v4298 = vpack.c.b16 %v3858, %v3850
          %v4299 = vpack.c.b16 %v3867, %v3859
          %v4300 = vpack.c.b16 %v3868, %v3860
          %v4301 = vpack.c.b16 %v3869, %v3861
          %v4302 = vpack.c.b16 %v3870, %v3862
          %v4303 = vpack.c.b16 %v3871, %v3863
          %v4304 = vpack.c.b16 %v3872, %v3864
          %v4305 = vpack.c.b16 %v3873, %v3865
          %v4306 = vpack.c.b16 %v3874, %v3866
          %v4307 = vpack.c.b16 %v3883, %v3875
          %v4308 = vpack.c.b16 %v3884, %v3876
          %v4309 = vpack.c.b16 %v3885, %v3877
          %v4310 = vpack.c.b16 %v3886, %v3878
          %v4311 = vpack.c.b16 %v3887, %v3879
          %v4312 = vpack.c.b16 %v3888, %v3880
          %v4313 = vpack.c.b16 %v3889, %v3881
          %v4314 = vpack.c.b16 %v3890, %v3882
          %v4315 = vpack.c.b16 %v3899, %v3891
          %v4316 = vpack.c.b16 %v3900, %v3892
          %v4317 = vpack.c.b16 %v3901, %v3893
          %v4318 = vpack.c.b16 %v3902, %v3894
          %v4319 = vpack.c.b16 %v3903, %v3895
          %v4320 = vpack.c.b16 %v3904, %v3896
          %v4321 = vpack.c.b16 %v3905, %v3897
          %v4322 = vpack.c.b16 %v3906, %v3898
          %v4323 = vpack.c.b16 %v3915, %v3907
          %v4324 = vpack.c.b16 %v3916, %v3908
          %v4325 = vpack.c.b16 %v3917, %v3909
          %v4326 = vpack.c.b16 %v3918, %v3910
          %v4327 = vpack.c.b16 %v3919, %v3911
          %v4328 = vpack.c.b16 %v3920, %v3912
          %v4329 = vpack.c.b16 %v3921, %v3913
          %v4330 = vpack.c.b16 %v3922, %v3914
          %v4331 = vpack.c.b16 %v3931, %v3923
          %v4332 = vpack.c.b16 %v3932, %v3924
          %v4333 = vpack.c.b16 %v3933, %v3925
          %v4334 = vpack.c.b16 %v3934, %v3926
          %v4335 = vpack.c.b16 %v3935, %v3927
          %v4336 = vpack.c.b16 %v3936, %v3928
          %v4337 = vpack.c.b16 %v3937, %v3929
          %v4338 = vpack.c.b16 %v3938, %v3930
          %v4339 = vpack.c.b16 %v3947, %v3939
          %v4340 = vpack.c.b16 %v3948, %v3940
          %v4341 = vpack.c.b16 %v3949, %v3941
          %v4342 = vpack.c.b16 %v3950, %v3942
          %v4343 = vpack.c.b16 %v3951, %v3943
          %v4344 = vpack.c.b16 %v3952, %v3944
          %v4345 = vpack.c.b16 %v3953, %v3945
          %v4346 = vpack.c.b16 %v3954, %v3946
          %v4347 = vpack.c.b16 %v3963, %v3955
          %v4348 = vpack.c.b16 %v3964, %v3956
          %v4349 = vpack.c.b16 %v3965, %v3957
          %v4350 = vpack.c.b16 %v3966, %v3958
          %v4351 = vpack.c.b16 %v3967, %v3959
          %v4352 = vpack.c.b16 %v3968, %v3960
          %v4353 = vpack.c.b16 %v3969, %v3961
          %v4354 = vpack.c.b16 %v3970, %v3962
          %v4355 = vpack.c.b16 %v3979, %v3971
          %v4356 = vpack.c.b16 %v3980, %v3972
          %v4357 = vpack.c.b16 %v3981, %v3973
          %v4358 = vpack.c.b16 %v3982, %v3974
          %v4359 = vpack.c.b16 %v3983, %v3975
          %v4360 = vpack.c.b16 %v3984, %v3976
          %v4361 = vpack.c.b16 %v3985, %v3977
          %v4362 = vpack.c.b16 %v3986, %v3978
          %v4363 = vpack.c.b16 %v3995, %v3987
          %v4364 = vpack.c.b16 %v3996, %v3988
          %v4365 = vpack.c.b16 %v3997, %v3989
          %v4366 = vpack.c.b16 %v3998, %v3990
          %v4367 = vpack.c.b16 %v3999, %v3991
          %v4368 = vpack.c.b16 %v4000, %v3992
          %v4369 = vpack.c.b16 %v4001, %v3993
          %v4370 = vpack.c.b16 %v4002, %v3994
          %v4371 = vpack.c.b16 %v4011, %v4003
          %v4372 = vpack.c.b16 %v4012, %v4004
          %v4373 = vpack.c.b16 %v4013, %v4005
          %v4374 = vpack.c.b16 %v4014, %v4006
          %v4375 = vpack.c.b16 %v4015, %v4007
          %v4376 = vpack.c.b16 %v4016, %v4008
          %v4377 = vpack.c.b16 %v4017, %v4009
          %v4378 = vpack.c.b16 %v4018, %v4010
          %v4379 = vpack.c.b16 %v4027, %v4019
          %v4380 = vpack.c.b16 %v4028, %v4020
          %v4381 = vpack.c.b16 %v4029, %v4021
          %v4382 = vpack.c.b16 %v4030, %v4022
          %v4383 = vpack.c.b16 %v4031, %v4023
          %v4384 = vpack.c.b16 %v4032, %v4024
          %v4385 = vpack.c.b16 %v4033, %v4025
          %v4386 = vpack.c.b16 %v4034, %v4026
          %v4387 = vpack.c.b16 %v4043, %v4035
          %v4388 = vpack.c.b16 %v4044, %v4036
          %v4389 = vpack.c.b16 %v4045, %v4037
          %v4390 = vpack.c.b16 %v4046, %v4038
          %v4391 = vpack.c.b16 %v4047, %v4039
          %v4392 = vpack.c.b16 %v4048, %v4040
          %v4393 = vpack.c.b16 %v4049, %v4041
          %v4394 = vpack.c.b16 %v4050, %v4042
          %v4395 = vpack.c.b16 %v4059, %v4051
          %v4396 = vpack.c.b16 %v4060, %v4052
          %v4397 = vpack.c.b16 %v4061, %v4053
          %v4398 = vpack.c.b16 %v4062, %v4054
          %v4399 = vpack.c.b16 %v4063, %v4055
          %v4400 = vpack.c.b16 %v4064, %v4056
          %v4401 = vpack.c.b16 %v4065, %v4057
          %v4402 = vpack.c.b16 %v4066, %v4058
          %v4403 = vpack.c.b16 %v4075, %v4067
          %v4404 = vpack.c.b16 %v4076, %v4068
          %v4405 = vpack.c.b16 %v4077, %v4069
          %v4406 = vpack.c.b16 %v4078, %v4070
          %v4407 = vpack.c.b16 %v4079, %v4071
          %v4408 = vpack.c.b16 %v4080, %v4072
          %v4409 = vpack.c.b16 %v4081, %v4073
          %v4410 = vpack.c.b16 %v4082, %v4074
          %v4411 = vpack.c.b16 %v4091, %v4083
          %v4412 = vpack.c.b16 %v4092, %v4084
          %v4413 = vpack.c.b16 %v4093, %v4085
          %v4414 = vpack.c.b16 %v4094, %v4086
          %v4415 = vpack.c.b16 %v4095, %v4087
          %v4416 = vpack.c.b16 %v4096, %v4088
          %v4417 = vpack.c.b16 %v4097, %v4089
          %v4418 = vpack.c.b16 %v4098, %v4090
          %v4419 = vpack.c.b16 %v4107, %v4099
          %v4420 = vpack.c.b16 %v4108, %v4100
          %v4421 = vpack.c.b16 %v4109, %v4101
          %v4422 = vpack.c.b16 %v4110, %v4102
          %v4423 = vpack.c.b16 %v4111, %v4103
          %v4424 = vpack.c.b16 %v4112, %v4104
          %v4425 = vpack.c.b16 %v4113, %v4105
          %v4426 = vpack.c.b16 %v4114, %v4106
          %v4427 = vpack.c.b16 %v4123, %v4115
          %v4428 = vpack.c.b16 %v4124, %v4116
          %v4429 = vpack.c.b16 %v4125, %v4117
          %v4430 = vpack.c.b16 %v4126, %v4118
          %v4431 = vpack.c.b16 %v4127, %v4119
          %v4432 = vpack.c.b16 %v4128, %v4120
          %v4433 = vpack.c.b16 %v4129, %v4121
          %v4434 = vpack.c.b16 %v4130, %v4122
          %v4435 = vpack.c.b16 %v4139, %v4131
          %v4436 = vpack.c.b16 %v4140, %v4132
          %v4437 = vpack.c.b16 %v4141, %v4133
          %v4438 = vpack.c.b16 %v4142, %v4134
          %v4439 = vpack.c.b16 %v4143, %v4135
          %v4440 = vpack.c.b16 %v4144, %v4136
          %v4441 = vpack.c.b16 %v4145, %v4137
          %v4442 = vpack.c.b16 %v4146, %v4138
          %v4443 = vpack.c.b16 %v4155, %v4147
          %v4444 = vpack.c.b16 %v4156, %v4148
          %v4445 = vpack.c.b16 %v4157, %v4149
          %v4446 = vpack.c.b16 %v4158, %v4150
          %v4447 = vpack.c.b16 %v4159, %v4151
          %v4448 = vpack.c.b16 %v4160, %v4152
          %v4449 = vpack.c.b16 %v4161, %v4153
          %v4450 = vpack.c.b16 %v4162, %v4154
          %v4451 = vpack.c.b16 %v4171, %v4163
          %v4452 = vpack.c.b16 %v4172, %v4164
          %v4453 = vpack.c.b16 %v4173, %v4165
          %v4454 = vpack.c.b16 %v4174, %v4166
          %v4455 = vpack.c.b16 %v4175, %v4167
          %v4456 = vpack.c.b16 %v4176, %v4168
          %v4457 = vpack.c.b16 %v4177, %v4169
          %v4458 = vpack.c.b16 %v4178, %v4170
          %v4459 = vpack.c.b16 %v4187, %v4179
          %v4460 = vpack.c.b16 %v4188, %v4180
          %v4461 = vpack.c.b16 %v4189, %v4181
          %v4462 = vpack.c.b16 %v4190, %v4182
          %v4463 = vpack.c.b16 %v4191, %v4183
          %v4464 = vpack.c.b16 %v4192, %v4184
          %v4465 = vpack.c.b16 %v4193, %v4185
          %v4466 = vpack.c.b16 %v4194, %v4186
          %v4467 = vpack.c.b16 %v4203, %v4195
          %v4468 = vpack.c.b16 %v4204, %v4196
          %v4469 = vpack.c.b16 %v4205, %v4197
          %v4470 = vpack.c.b16 %v4206, %v4198
          %v4471 = vpack.c.b16 %v4207, %v4199
          %v4472 = vpack.c.b16 %v4208, %v4200
          %v4473 = vpack.c.b16 %v4209, %v4201
          %v4474 = vpack.c.b16 %v4210, %v4202
          %v4475 = vpack.c.b16 %v4219, %v4211
          %v4476 = vpack.c.b16 %v4220, %v4212
          %v4477 = vpack.c.b16 %v4221, %v4213
          %v4478 = vpack.c.b16 %v4222, %v4214
          %v4479 = vpack.c.b16 %v4223, %v4215
          %v4480 = vpack.c.b16 %v4224, %v4216
          %v4481 = vpack.c.b16 %v4225, %v4217
          %v4482 = vpack.c.b16 %v4226, %v4218
          %4739 = vmatpush.bf16.msra.mxu0 %v3082
          %4740 = vmatpush.bf16.msra.mxu0 %v3081
          %4741 = vmatpush.bf16.msra.mxu0 %v3080
          %4742 = vmatpush.bf16.msra.mxu0 %v3079
          %4743 = vmatpush.bf16.msra.mxu0 %v3078
          %4744 = vmatpush.bf16.msra.mxu0 %v3077
          %4745 = vmatpush.bf16.msra.mxu0 %v3076
          %4746 = vmatpush.bf16.msra.mxu0 %v3075
          %4747 = vmatmul.bf16.gmra.mxu0 %v4227
          %v4748 = vpop.f32.mrf.mxu0
          %v4749 = vadd.f32 %v3395, %v4748
          %v4750 = vpop.f32.mrf.mxu0
          %v4751 = vadd.f32 %v3396, %v4750
          %4752 = vmatmul.bf16.gmra.mxu0 %v4235
          %v4753 = vpop.f32.mrf.mxu0
          %v4754 = vadd.f32 %v3397, %v4753
          %v4755 = vpop.f32.mrf.mxu0
          %v4756 = vadd.f32 %v3398, %v4755
          %4757 = vmatmul.bf16.gmra.mxu0 %v4243
          %v4758 = vpop.f32.mrf.mxu0
          %v4759 = vadd.f32 %v3399, %v4758
          %v4760 = vpop.f32.mrf.mxu0
          %v4761 = vadd.f32 %v3400, %v4760
          %4762 = vmatmul.bf16.gmra.mxu0 %v4251
          %v4763 = vpop.f32.mrf.mxu0
          %v4764 = vadd.f32 %v3401, %v4763
          %v4765 = vpop.f32.mrf.mxu0
          %v4766 = vadd.f32 %v3402, %v4765
          %4767 = vmatmul.bf16.gmra.mxu0 %v4259
          %v4768 = vpop.f32.mrf.mxu0
          %v4769 = vadd.f32 %v3403, %v4768
          %v4770 = vpop.f32.mrf.mxu0
          %v4771 = vadd.f32 %v3404, %v4770
          %4772 = vmatmul.bf16.gmra.mxu0 %v4267
          %v4773 = vpop.f32.mrf.mxu0
          %v4774 = vadd.f32 %v3405, %v4773
          %v4775 = vpop.f32.mrf.mxu0
          %v4776 = vadd.f32 %v3406, %v4775
          %4777 = vmatmul.bf16.gmra.mxu0 %v4275
          %v4778 = vpop.f32.mrf.mxu0
          %v4779 = vadd.f32 %v3407, %v4778
          %v4780 = vpop.f32.mrf.mxu0
          %v4781 = vadd.f32 %v3408, %v4780
          %4782 = vmatmul.bf16.gmra.mxu0 %v4283
          %v4783 = vpop.f32.mrf.mxu0
          %v4784 = vadd.f32 %v3409, %v4783
          %v4785 = vpop.f32.mrf.mxu0
          %v4786 = vadd.f32 %v3410, %v4785
          %4787 = vmatmul.bf16.gmra.mxu0 %v4291
          %v4788 = vpop.f32.mrf.mxu0
          %v4789 = vadd.f32 %v3411, %v4788
          %v4790 = vpop.f32.mrf.mxu0
          %v4791 = vadd.f32 %v3412, %v4790
          %4792 = vmatmul.bf16.gmra.mxu0 %v4299
          %v4793 = vpop.f32.mrf.mxu0
          %v4794 = vadd.f32 %v3413, %v4793
          %v4795 = vpop.f32.mrf.mxu0
          %v4796 = vadd.f32 %v3414, %v4795
          %4797 = vmatmul.bf16.gmra.mxu0 %v4307
          %v4798 = vpop.f32.mrf.mxu0
          %v4799 = vadd.f32 %v3415, %v4798
          %v4800 = vpop.f32.mrf.mxu0
          %v4801 = vadd.f32 %v3416, %v4800
          %4802 = vmatmul.bf16.gmra.mxu0 %v4315
          %v4803 = vpop.f32.mrf.mxu0
          %v4804 = vadd.f32 %v3417, %v4803
          %v4805 = vpop.f32.mrf.mxu0
          %v4806 = vadd.f32 %v3418, %v4805
          %4807 = vmatmul.bf16.gmra.mxu0 %v4323
          %v4808 = vpop.f32.mrf.mxu0
          %v4809 = vadd.f32 %v3419, %v4808
          %v4810 = vpop.f32.mrf.mxu0
          %v4811 = vadd.f32 %v3420, %v4810
          %4812 = vmatmul.bf16.gmra.mxu0 %v4331
          %v4813 = vpop.f32.mrf.mxu0
          %v4814 = vadd.f32 %v3421, %v4813
          %v4815 = vpop.f32.mrf.mxu0
          %v4816 = vadd.f32 %v3422, %v4815
          %4817 = vmatmul.bf16.gmra.mxu0 %v4339
          %v4818 = vpop.f32.mrf.mxu0
          %v4819 = vadd.f32 %v3423, %v4818
          %v4820 = vpop.f32.mrf.mxu0
          %v4821 = vadd.f32 %v3424, %v4820
          %4822 = vmatmul.bf16.gmra.mxu0 %v4347
          %v4823 = vpop.f32.mrf.mxu0
          %v4824 = vadd.f32 %v3425, %v4823
          %v4825 = vpop.f32.mrf.mxu0
          %v4826 = vadd.f32 %v3426, %v4825
          %4827 = vmatmul.bf16.gmra.mxu0 %v4355
          %v4828 = vpop.f32.mrf.mxu0
          %v4829 = vadd.f32 %v3427, %v4828
          %v4830 = vpop.f32.mrf.mxu0
          %v4831 = vadd.f32 %v3428, %v4830
          %4832 = vmatmul.bf16.gmra.mxu0 %v4363
          %v4833 = vpop.f32.mrf.mxu0
          %v4834 = vadd.f32 %v3429, %v4833
          %v4835 = vpop.f32.mrf.mxu0
          %v4836 = vadd.f32 %v3430, %v4835
          %4837 = vmatmul.bf16.gmra.mxu0 %v4371
          %v4838 = vpop.f32.mrf.mxu0
          %v4839 = vadd.f32 %v3431, %v4838
          %v4840 = vpop.f32.mrf.mxu0
          %v4841 = vadd.f32 %v3432, %v4840
          %4842 = vmatmul.bf16.gmra.mxu0 %v4379
          %v4843 = vpop.f32.mrf.mxu0
          %v4844 = vadd.f32 %v3433, %v4843
          %v4845 = vpop.f32.mrf.mxu0
          %v4846 = vadd.f32 %v3434, %v4845
          %4847 = vmatmul.bf16.gmra.mxu0 %v4387
          %v4848 = vpop.f32.mrf.mxu0
          %v4849 = vadd.f32 %v3435, %v4848
          %v4850 = vpop.f32.mrf.mxu0
          %v4851 = vadd.f32 %v3436, %v4850
          %4852 = vmatmul.bf16.gmra.mxu0 %v4395
          %v4853 = vpop.f32.mrf.mxu0
          %v4854 = vadd.f32 %v3437, %v4853
          %v4855 = vpop.f32.mrf.mxu0
          %v4856 = vadd.f32 %v3438, %v4855
          %4857 = vmatmul.bf16.gmra.mxu0 %v4403
          %v4858 = vpop.f32.mrf.mxu0
          %v4859 = vadd.f32 %v3439, %v4858
          %v4860 = vpop.f32.mrf.mxu0
          %v4861 = vadd.f32 %v3440, %v4860
          %4862 = vmatmul.bf16.gmra.mxu0 %v4411
          %v4863 = vpop.f32.mrf.mxu0
          %v4864 = vadd.f32 %v3441, %v4863
          %v4865 = vpop.f32.mrf.mxu0
          %v4866 = vadd.f32 %v3442, %v4865
          %4867 = vmatmul.bf16.gmra.mxu0 %v4419
          %v4868 = vpop.f32.mrf.mxu0
          %v4869 = vadd.f32 %v3443, %v4868
          %v4870 = vpop.f32.mrf.mxu0
          %v4871 = vadd.f32 %v3444, %v4870
          %4872 = vmatmul.bf16.gmra.mxu0 %v4427
          %v4873 = vpop.f32.mrf.mxu0
          %v4874 = vadd.f32 %v3445, %v4873
          %v4875 = vpop.f32.mrf.mxu0
          %v4876 = vadd.f32 %v3446, %v4875
          %4877 = vmatmul.bf16.gmra.mxu0 %v4435
          %v4878 = vpop.f32.mrf.mxu0
          %v4879 = vadd.f32 %v3447, %v4878
          %v4880 = vpop.f32.mrf.mxu0
          %v4881 = vadd.f32 %v3448, %v4880
          %4882 = vmatmul.bf16.gmra.mxu0 %v4443
          %v4883 = vpop.f32.mrf.mxu0
          %v4884 = vadd.f32 %v3449, %v4883
          %v4885 = vpop.f32.mrf.mxu0
          %v4886 = vadd.f32 %v3450, %v4885
          %4887 = vmatmul.bf16.gmra.mxu0 %v4451
          %v4888 = vpop.f32.mrf.mxu0
          %v4889 = vadd.f32 %v3451, %v4888
          %v4890 = vpop.f32.mrf.mxu0
          %v4891 = vadd.f32 %v3452, %v4890
          %4892 = vmatmul.bf16.gmra.mxu0 %v4459
          %v4893 = vpop.f32.mrf.mxu0
          %v4894 = vadd.f32 %v3453, %v4893
          %v4895 = vpop.f32.mrf.mxu0
          %v4896 = vadd.f32 %v3454, %v4895
          %4897 = vmatmul.bf16.gmra.mxu0 %v4467
          %v4898 = vpop.f32.mrf.mxu0
          %v4899 = vadd.f32 %v3455, %v4898
          %v4900 = vpop.f32.mrf.mxu0
          %v4901 = vadd.f32 %v3456, %v4900
          %4902 = vmatmul.bf16.gmra.mxu0 %v4475
          %v4903 = vpop.f32.mrf.mxu0
          %v4904 = vadd.f32 %v3457, %v4903
          %v4905 = vpop.f32.mrf.mxu0
          %v4906 = vadd.f32 %v3458, %v4905
          %4907 = vdwg.mxu0
          %4908 = vmatpush.bf16.msra.mxu0 %v3090
          %4909 = vmatpush.bf16.msra.mxu0 %v3089
          %4910 = vmatpush.bf16.msra.mxu0 %v3088
          %4911 = vmatpush.bf16.msra.mxu0 %v3087
          %4912 = vmatpush.bf16.msra.mxu0 %v3086
          %4913 = vmatpush.bf16.msra.mxu0 %v3085
          %4914 = vmatpush.bf16.msra.mxu0 %v3084
          %4915 = vmatpush.bf16.msra.mxu0 %v3083
          %4916 = vmatmul.bf16.gmra.mxu0 %v4228
          %v4917 = vpop.f32.mrf.mxu0
          %v4918 = vadd.f32 %v4749, %v4917
          %v4919 = vpop.f32.mrf.mxu0
          %v4920 = vadd.f32 %v4751, %v4919
          %4921 = vmatmul.bf16.gmra.mxu0 %v4236
          %v4922 = vpop.f32.mrf.mxu0
          %v4923 = vadd.f32 %v4754, %v4922
          %v4924 = vpop.f32.mrf.mxu0
          %v4925 = vadd.f32 %v4756, %v4924
          %4926 = vmatmul.bf16.gmra.mxu0 %v4244
          %v4927 = vpop.f32.mrf.mxu0
          %v4928 = vadd.f32 %v4759, %v4927
          %v4929 = vpop.f32.mrf.mxu0
          %v4930 = vadd.f32 %v4761, %v4929
          %4931 = vmatmul.bf16.gmra.mxu0 %v4252
          %v4932 = vpop.f32.mrf.mxu0
          %v4933 = vadd.f32 %v4764, %v4932
          %v4934 = vpop.f32.mrf.mxu0
          %v4935 = vadd.f32 %v4766, %v4934
          %4936 = vmatmul.bf16.gmra.mxu0 %v4260
          %v4937 = vpop.f32.mrf.mxu0
          %v4938 = vadd.f32 %v4769, %v4937
          %v4939 = vpop.f32.mrf.mxu0
          %v4940 = vadd.f32 %v4771, %v4939
          %4941 = vmatmul.bf16.gmra.mxu0 %v4268
          %v4942 = vpop.f32.mrf.mxu0
          %v4943 = vadd.f32 %v4774, %v4942
          %v4944 = vpop.f32.mrf.mxu0
          %v4945 = vadd.f32 %v4776, %v4944
          %4946 = vmatmul.bf16.gmra.mxu0 %v4276
          %v4947 = vpop.f32.mrf.mxu0
          %v4948 = vadd.f32 %v4779, %v4947
          %v4949 = vpop.f32.mrf.mxu0
          %v4950 = vadd.f32 %v4781, %v4949
          %4951 = vmatmul.bf16.gmra.mxu0 %v4284
          %v4952 = vpop.f32.mrf.mxu0
          %v4953 = vadd.f32 %v4784, %v4952
          %v4954 = vpop.f32.mrf.mxu0
          %v4955 = vadd.f32 %v4786, %v4954
          %4956 = vmatmul.bf16.gmra.mxu0 %v4292
          %v4957 = vpop.f32.mrf.mxu0
          %v4958 = vadd.f32 %v4789, %v4957
          %v4959 = vpop.f32.mrf.mxu0
          %v4960 = vadd.f32 %v4791, %v4959
          %4961 = vmatmul.bf16.gmra.mxu0 %v4300
          %v4962 = vpop.f32.mrf.mxu0
          %v4963 = vadd.f32 %v4794, %v4962
          %v4964 = vpop.f32.mrf.mxu0
          %v4965 = vadd.f32 %v4796, %v4964
          %4966 = vmatmul.bf16.gmra.mxu0 %v4308
          %v4967 = vpop.f32.mrf.mxu0
          %v4968 = vadd.f32 %v4799, %v4967
          %v4969 = vpop.f32.mrf.mxu0
          %v4970 = vadd.f32 %v4801, %v4969
          %4971 = vmatmul.bf16.gmra.mxu0 %v4316
          %v4972 = vpop.f32.mrf.mxu0
          %v4973 = vadd.f32 %v4804, %v4972
          %v4974 = vpop.f32.mrf.mxu0
          %v4975 = vadd.f32 %v4806, %v4974
          %4976 = vmatmul.bf16.gmra.mxu0 %v4324
          %v4977 = vpop.f32.mrf.mxu0
          %v4978 = vadd.f32 %v4809, %v4977
          %v4979 = vpop.f32.mrf.mxu0
          %v4980 = vadd.f32 %v4811, %v4979
          %4981 = vmatmul.bf16.gmra.mxu0 %v4332
          %v4982 = vpop.f32.mrf.mxu0
          %v4983 = vadd.f32 %v4814, %v4982
          %v4984 = vpop.f32.mrf.mxu0
          %v4985 = vadd.f32 %v4816, %v4984
          %4986 = vmatmul.bf16.gmra.mxu0 %v4340
          %v4987 = vpop.f32.mrf.mxu0
          %v4988 = vadd.f32 %v4819, %v4987
          %v4989 = vpop.f32.mrf.mxu0
          %v4990 = vadd.f32 %v4821, %v4989
          %4991 = vmatmul.bf16.gmra.mxu0 %v4348
          %v4992 = vpop.f32.mrf.mxu0
          %v4993 = vadd.f32 %v4824, %v4992
          %v4994 = vpop.f32.mrf.mxu0
          %v4995 = vadd.f32 %v4826, %v4994
          %4996 = vmatmul.bf16.gmra.mxu0 %v4356
          %v4997 = vpop.f32.mrf.mxu0
          %v4998 = vadd.f32 %v4829, %v4997
          %v4999 = vpop.f32.mrf.mxu0
          %v5000 = vadd.f32 %v4831, %v4999
          %5001 = vmatmul.bf16.gmra.mxu0 %v4364
          %v5002 = vpop.f32.mrf.mxu0
          %v5003 = vadd.f32 %v4834, %v5002
          %v5004 = vpop.f32.mrf.mxu0
          %v5005 = vadd.f32 %v4836, %v5004
          %5006 = vmatmul.bf16.gmra.mxu0 %v4372
          %v5007 = vpop.f32.mrf.mxu0
          %v5008 = vadd.f32 %v4839, %v5007
          %v5009 = vpop.f32.mrf.mxu0
          %v5010 = vadd.f32 %v4841, %v5009
          %5011 = vmatmul.bf16.gmra.mxu0 %v4380
          %v5012 = vpop.f32.mrf.mxu0
          %v5013 = vadd.f32 %v4844, %v5012
          %v5014 = vpop.f32.mrf.mxu0
          %v5015 = vadd.f32 %v4846, %v5014
          %5016 = vmatmul.bf16.gmra.mxu0 %v4388
          %v5017 = vpop.f32.mrf.mxu0
          %v5018 = vadd.f32 %v4849, %v5017
          %v5019 = vpop.f32.mrf.mxu0
          %v5020 = vadd.f32 %v4851, %v5019
          %5021 = vmatmul.bf16.gmra.mxu0 %v4396
          %v5022 = vpop.f32.mrf.mxu0
          %v5023 = vadd.f32 %v4854, %v5022
          %v5024 = vpop.f32.mrf.mxu0
          %v5025 = vadd.f32 %v4856, %v5024
          %5026 = vmatmul.bf16.gmra.mxu0 %v4404
          %v5027 = vpop.f32.mrf.mxu0
          %v5028 = vadd.f32 %v4859, %v5027
          %v5029 = vpop.f32.mrf.mxu0
          %v5030 = vadd.f32 %v4861, %v5029
          %5031 = vmatmul.bf16.gmra.mxu0 %v4412
          %v5032 = vpop.f32.mrf.mxu0
          %v5033 = vadd.f32 %v4864, %v5032
          %v5034 = vpop.f32.mrf.mxu0
          %v5035 = vadd.f32 %v4866, %v5034
          %5036 = vmatmul.bf16.gmra.mxu0 %v4420
          %v5037 = vpop.f32.mrf.mxu0
          %v5038 = vadd.f32 %v4869, %v5037
          %v5039 = vpop.f32.mrf.mxu0
          %v5040 = vadd.f32 %v4871, %v5039
          %5041 = vmatmul.bf16.gmra.mxu0 %v4428
          %v5042 = vpop.f32.mrf.mxu0
          %v5043 = vadd.f32 %v4874, %v5042
          %v5044 = vpop.f32.mrf.mxu0
          %v5045 = vadd.f32 %v4876, %v5044
          %5046 = vmatmul.bf16.gmra.mxu0 %v4436
          %v5047 = vpop.f32.mrf.mxu0
          %v5048 = vadd.f32 %v4879, %v5047
          %v5049 = vpop.f32.mrf.mxu0
          %v5050 = vadd.f32 %v4881, %v5049
          %5051 = vmatmul.bf16.gmra.mxu0 %v4444
          %v5052 = vpop.f32.mrf.mxu0
          %v5053 = vadd.f32 %v4884, %v5052
          %v5054 = vpop.f32.mrf.mxu0
          %v5055 = vadd.f32 %v4886, %v5054
          %5056 = vmatmul.bf16.gmra.mxu0 %v4452
          %v5057 = vpop.f32.mrf.mxu0
          %v5058 = vadd.f32 %v4889, %v5057
          %v5059 = vpop.f32.mrf.mxu0
          %v5060 = vadd.f32 %v4891, %v5059
          %5061 = vmatmul.bf16.gmra.mxu0 %v4460
          %v5062 = vpop.f32.mrf.mxu0
          %v5063 = vadd.f32 %v4894, %v5062
          %v5064 = vpop.f32.mrf.mxu0
          %v5065 = vadd.f32 %v4896, %v5064
          %5066 = vmatmul.bf16.gmra.mxu0 %v4468
          %v5067 = vpop.f32.mrf.mxu0
          %v5068 = vadd.f32 %v4899, %v5067
          %v5069 = vpop.f32.mrf.mxu0
          %v5070 = vadd.f32 %v4901, %v5069
          %5071 = vmatmul.bf16.gmra.mxu0 %v4476
          %v5072 = vpop.f32.mrf.mxu0
          %v5073 = vadd.f32 %v4904, %v5072
          %v5074 = vpop.f32.mrf.mxu0
          %v5075 = vadd.f32 %v4906, %v5074
          %5076 = vdwg.mxu0
          %5077 = vmatpush.bf16.msra.mxu0 %v3098
          %5078 = vmatpush.bf16.msra.mxu0 %v3097
          %5079 = vmatpush.bf16.msra.mxu0 %v3096
          %5080 = vmatpush.bf16.msra.mxu0 %v3095
          %5081 = vmatpush.bf16.msra.mxu0 %v3094
          %5082 = vmatpush.bf16.msra.mxu0 %v3093
          %5083 = vmatpush.bf16.msra.mxu0 %v3092
          %5084 = vmatpush.bf16.msra.mxu0 %v3091
          %5085 = vmatmul.bf16.gmra.mxu0 %v4229
          %v5086 = vpop.f32.mrf.mxu0
          %v5087 = vadd.f32 %v4918, %v5086
          %v5088 = vpop.f32.mrf.mxu0
          %v5089 = vadd.f32 %v4920, %v5088
          %5090 = vmatmul.bf16.gmra.mxu0 %v4237
          %v5091 = vpop.f32.mrf.mxu0
          %v5092 = vadd.f32 %v4923, %v5091
          %v5093 = vpop.f32.mrf.mxu0
          %v5094 = vadd.f32 %v4925, %v5093
          %5095 = vmatmul.bf16.gmra.mxu0 %v4245
          %v5096 = vpop.f32.mrf.mxu0
          %v5097 = vadd.f32 %v4928, %v5096
          %v5098 = vpop.f32.mrf.mxu0
          %v5099 = vadd.f32 %v4930, %v5098
          %5100 = vmatmul.bf16.gmra.mxu0 %v4253
          %v5101 = vpop.f32.mrf.mxu0
          %v5102 = vadd.f32 %v4933, %v5101
          %v5103 = vpop.f32.mrf.mxu0
          %v5104 = vadd.f32 %v4935, %v5103
          %5105 = vmatmul.bf16.gmra.mxu0 %v4261
          %v5106 = vpop.f32.mrf.mxu0
          %v5107 = vadd.f32 %v4938, %v5106
          %v5108 = vpop.f32.mrf.mxu0
          %v5109 = vadd.f32 %v4940, %v5108
          %5110 = vmatmul.bf16.gmra.mxu0 %v4269
          %v5111 = vpop.f32.mrf.mxu0
          %v5112 = vadd.f32 %v4943, %v5111
          %v5113 = vpop.f32.mrf.mxu0
          %v5114 = vadd.f32 %v4945, %v5113
          %5115 = vmatmul.bf16.gmra.mxu0 %v4277
          %v5116 = vpop.f32.mrf.mxu0
          %v5117 = vadd.f32 %v4948, %v5116
          %v5118 = vpop.f32.mrf.mxu0
          %v5119 = vadd.f32 %v4950, %v5118
          %5120 = vmatmul.bf16.gmra.mxu0 %v4285
          %v5121 = vpop.f32.mrf.mxu0
          %v5122 = vadd.f32 %v4953, %v5121
          %v5123 = vpop.f32.mrf.mxu0
          %v5124 = vadd.f32 %v4955, %v5123
          %5125 = vmatmul.bf16.gmra.mxu0 %v4293
          %v5126 = vpop.f32.mrf.mxu0
          %v5127 = vadd.f32 %v4958, %v5126
          %v5128 = vpop.f32.mrf.mxu0
          %v5129 = vadd.f32 %v4960, %v5128
          %5130 = vmatmul.bf16.gmra.mxu0 %v4301
          %v5131 = vpop.f32.mrf.mxu0
          %v5132 = vadd.f32 %v4963, %v5131
          %v5133 = vpop.f32.mrf.mxu0
          %v5134 = vadd.f32 %v4965, %v5133
          %5135 = vmatmul.bf16.gmra.mxu0 %v4309
          %v5136 = vpop.f32.mrf.mxu0
          %v5137 = vadd.f32 %v4968, %v5136
          %v5138 = vpop.f32.mrf.mxu0
          %v5139 = vadd.f32 %v4970, %v5138
          %5140 = vmatmul.bf16.gmra.mxu0 %v4317
          %v5141 = vpop.f32.mrf.mxu0
          %v5142 = vadd.f32 %v4973, %v5141
          %v5143 = vpop.f32.mrf.mxu0
          %v5144 = vadd.f32 %v4975, %v5143
          %5145 = vmatmul.bf16.gmra.mxu0 %v4325
          %v5146 = vpop.f32.mrf.mxu0
          %v5147 = vadd.f32 %v4978, %v5146
          %v5148 = vpop.f32.mrf.mxu0
          %v5149 = vadd.f32 %v4980, %v5148
          %5150 = vmatmul.bf16.gmra.mxu0 %v4333
          %v5151 = vpop.f32.mrf.mxu0
          %v5152 = vadd.f32 %v4983, %v5151
          %v5153 = vpop.f32.mrf.mxu0
          %v5154 = vadd.f32 %v4985, %v5153
          %5155 = vmatmul.bf16.gmra.mxu0 %v4341
          %v5156 = vpop.f32.mrf.mxu0
          %v5157 = vadd.f32 %v4988, %v5156
          %v5158 = vpop.f32.mrf.mxu0
          %v5159 = vadd.f32 %v4990, %v5158
          %5160 = vmatmul.bf16.gmra.mxu0 %v4349
          %v5161 = vpop.f32.mrf.mxu0
          %v5162 = vadd.f32 %v4993, %v5161
          %v5163 = vpop.f32.mrf.mxu0
          %v5164 = vadd.f32 %v4995, %v5163
          %5165 = vmatmul.bf16.gmra.mxu0 %v4357
          %v5166 = vpop.f32.mrf.mxu0
          %v5167 = vadd.f32 %v4998, %v5166
          %v5168 = vpop.f32.mrf.mxu0
          %v5169 = vadd.f32 %v5000, %v5168
          %5170 = vmatmul.bf16.gmra.mxu0 %v4365
          %v5171 = vpop.f32.mrf.mxu0
          %v5172 = vadd.f32 %v5003, %v5171
          %v5173 = vpop.f32.mrf.mxu0
          %v5174 = vadd.f32 %v5005, %v5173
          %5175 = vmatmul.bf16.gmra.mxu0 %v4373
          %v5176 = vpop.f32.mrf.mxu0
          %v5177 = vadd.f32 %v5008, %v5176
          %v5178 = vpop.f32.mrf.mxu0
          %v5179 = vadd.f32 %v5010, %v5178
          %5180 = vmatmul.bf16.gmra.mxu0 %v4381
          %v5181 = vpop.f32.mrf.mxu0
          %v5182 = vadd.f32 %v5013, %v5181
          %v5183 = vpop.f32.mrf.mxu0
          %v5184 = vadd.f32 %v5015, %v5183
          %5185 = vmatmul.bf16.gmra.mxu0 %v4389
          %v5186 = vpop.f32.mrf.mxu0
          %v5187 = vadd.f32 %v5018, %v5186
          %v5188 = vpop.f32.mrf.mxu0
          %v5189 = vadd.f32 %v5020, %v5188
          %5190 = vmatmul.bf16.gmra.mxu0 %v4397
          %v5191 = vpop.f32.mrf.mxu0
          %v5192 = vadd.f32 %v5023, %v5191
          %v5193 = vpop.f32.mrf.mxu0
          %v5194 = vadd.f32 %v5025, %v5193
          %5195 = vmatmul.bf16.gmra.mxu0 %v4405
          %v5196 = vpop.f32.mrf.mxu0
          %v5197 = vadd.f32 %v5028, %v5196
          %v5198 = vpop.f32.mrf.mxu0
          %v5199 = vadd.f32 %v5030, %v5198
          %5200 = vmatmul.bf16.gmra.mxu0 %v4413
          %v5201 = vpop.f32.mrf.mxu0
          %v5202 = vadd.f32 %v5033, %v5201
          %v5203 = vpop.f32.mrf.mxu0
          %v5204 = vadd.f32 %v5035, %v5203
          %5205 = vmatmul.bf16.gmra.mxu0 %v4421
          %v5206 = vpop.f32.mrf.mxu0
          %v5207 = vadd.f32 %v5038, %v5206
          %v5208 = vpop.f32.mrf.mxu0
          %v5209 = vadd.f32 %v5040, %v5208
          %5210 = vmatmul.bf16.gmra.mxu0 %v4429
          %v5211 = vpop.f32.mrf.mxu0
          %v5212 = vadd.f32 %v5043, %v5211
          %v5213 = vpop.f32.mrf.mxu0
          %v5214 = vadd.f32 %v5045, %v5213
          %5215 = vmatmul.bf16.gmra.mxu0 %v4437
          %v5216 = vpop.f32.mrf.mxu0
          %v5217 = vadd.f32 %v5048, %v5216
          %v5218 = vpop.f32.mrf.mxu0
          %v5219 = vadd.f32 %v5050, %v5218
          %5220 = vmatmul.bf16.gmra.mxu0 %v4445
          %v5221 = vpop.f32.mrf.mxu0
          %v5222 = vadd.f32 %v5053, %v5221
          %v5223 = vpop.f32.mrf.mxu0
          %v5224 = vadd.f32 %v5055, %v5223
          %5225 = vmatmul.bf16.gmra.mxu0 %v4453
          %v5226 = vpop.f32.mrf.mxu0
          %v5227 = vadd.f32 %v5058, %v5226
          %v5228 = vpop.f32.mrf.mxu0
          %v5229 = vadd.f32 %v5060, %v5228
          %5230 = vmatmul.bf16.gmra.mxu0 %v4461
          %v5231 = vpop.f32.mrf.mxu0
          %v5232 = vadd.f32 %v5063, %v5231
          %v5233 = vpop.f32.mrf.mxu0
          %v5234 = vadd.f32 %v5065, %v5233
          %5235 = vmatmul.bf16.gmra.mxu0 %v4469
          %v5236 = vpop.f32.mrf.mxu0
          %v5237 = vadd.f32 %v5068, %v5236
          %v5238 = vpop.f32.mrf.mxu0
          %v5239 = vadd.f32 %v5070, %v5238
          %5240 = vmatmul.bf16.gmra.mxu0 %v4477
          %v5241 = vpop.f32.mrf.mxu0
          %v5242 = vadd.f32 %v5073, %v5241
          %v5243 = vpop.f32.mrf.mxu0
          %v5244 = vadd.f32 %v5075, %v5243
          %5245 = vdwg.mxu0
          %5246 = vmatpush.bf16.msra.mxu0 %v3106
          %5247 = vmatpush.bf16.msra.mxu0 %v3105
          %5248 = vmatpush.bf16.msra.mxu0 %v3104
          %5249 = vmatpush.bf16.msra.mxu0 %v3103
          %5250 = vmatpush.bf16.msra.mxu0 %v3102
          %5251 = vmatpush.bf16.msra.mxu0 %v3101
          %5252 = vmatpush.bf16.msra.mxu0 %v3100
          %5253 = vmatpush.bf16.msra.mxu0 %v3099
          %5254 = vmatmul.bf16.gmra.mxu0 %v4230
          %v5255 = vpop.f32.mrf.mxu0
          %v5256 = vadd.f32 %v5087, %v5255
          %v5257 = vpop.f32.mrf.mxu0
          %v5258 = vadd.f32 %v5089, %v5257
          %5259 = vmatmul.bf16.gmra.mxu0 %v4238
          %v5260 = vpop.f32.mrf.mxu0
          %v5261 = vadd.f32 %v5092, %v5260
          %v5262 = vpop.f32.mrf.mxu0
          %v5263 = vadd.f32 %v5094, %v5262
          %5264 = vmatmul.bf16.gmra.mxu0 %v4246
          %v5265 = vpop.f32.mrf.mxu0
          %v5266 = vadd.f32 %v5097, %v5265
          %v5267 = vpop.f32.mrf.mxu0
          %v5268 = vadd.f32 %v5099, %v5267
          %5269 = vmatmul.bf16.gmra.mxu0 %v4254
          %v5270 = vpop.f32.mrf.mxu0
          %v5271 = vadd.f32 %v5102, %v5270
          %v5272 = vpop.f32.mrf.mxu0
          %v5273 = vadd.f32 %v5104, %v5272
          %5274 = vmatmul.bf16.gmra.mxu0 %v4262
          %v5275 = vpop.f32.mrf.mxu0
          %v5276 = vadd.f32 %v5107, %v5275
          %v5277 = vpop.f32.mrf.mxu0
          %v5278 = vadd.f32 %v5109, %v5277
          %5279 = vmatmul.bf16.gmra.mxu0 %v4270
          %v5280 = vpop.f32.mrf.mxu0
          %v5281 = vadd.f32 %v5112, %v5280
          %v5282 = vpop.f32.mrf.mxu0
          %v5283 = vadd.f32 %v5114, %v5282
          %5284 = vmatmul.bf16.gmra.mxu0 %v4278
          %v5285 = vpop.f32.mrf.mxu0
          %v5286 = vadd.f32 %v5117, %v5285
          %v5287 = vpop.f32.mrf.mxu0
          %v5288 = vadd.f32 %v5119, %v5287
          %5289 = vmatmul.bf16.gmra.mxu0 %v4286
          %v5290 = vpop.f32.mrf.mxu0
          %v5291 = vadd.f32 %v5122, %v5290
          %v5292 = vpop.f32.mrf.mxu0
          %v5293 = vadd.f32 %v5124, %v5292
          %5294 = vmatmul.bf16.gmra.mxu0 %v4294
          %v5295 = vpop.f32.mrf.mxu0
          %v5296 = vadd.f32 %v5127, %v5295
          %v5297 = vpop.f32.mrf.mxu0
          %v5298 = vadd.f32 %v5129, %v5297
          %5299 = vmatmul.bf16.gmra.mxu0 %v4302
          %v5300 = vpop.f32.mrf.mxu0
          %v5301 = vadd.f32 %v5132, %v5300
          %v5302 = vpop.f32.mrf.mxu0
          %v5303 = vadd.f32 %v5134, %v5302
          %5304 = vmatmul.bf16.gmra.mxu0 %v4310
          %v5305 = vpop.f32.mrf.mxu0
          %v5306 = vadd.f32 %v5137, %v5305
          %v5307 = vpop.f32.mrf.mxu0
          %v5308 = vadd.f32 %v5139, %v5307
          %5309 = vmatmul.bf16.gmra.mxu0 %v4318
          %v5310 = vpop.f32.mrf.mxu0
          %v5311 = vadd.f32 %v5142, %v5310
          %v5312 = vpop.f32.mrf.mxu0
          %v5313 = vadd.f32 %v5144, %v5312
          %5314 = vmatmul.bf16.gmra.mxu0 %v4326
          %v5315 = vpop.f32.mrf.mxu0
          %v5316 = vadd.f32 %v5147, %v5315
          %v5317 = vpop.f32.mrf.mxu0
          %v5318 = vadd.f32 %v5149, %v5317
          %5319 = vmatmul.bf16.gmra.mxu0 %v4334
          %v5320 = vpop.f32.mrf.mxu0
          %v5321 = vadd.f32 %v5152, %v5320
          %v5322 = vpop.f32.mrf.mxu0
          %v5323 = vadd.f32 %v5154, %v5322
          %5324 = vmatmul.bf16.gmra.mxu0 %v4342
          %v5325 = vpop.f32.mrf.mxu0
          %v5326 = vadd.f32 %v5157, %v5325
          %v5327 = vpop.f32.mrf.mxu0
          %v5328 = vadd.f32 %v5159, %v5327
          %5329 = vmatmul.bf16.gmra.mxu0 %v4350
          %v5330 = vpop.f32.mrf.mxu0
          %v5331 = vadd.f32 %v5162, %v5330
          %v5332 = vpop.f32.mrf.mxu0
          %v5333 = vadd.f32 %v5164, %v5332
          %5334 = vmatmul.bf16.gmra.mxu0 %v4358
          %v5335 = vpop.f32.mrf.mxu0
          %v5336 = vadd.f32 %v5167, %v5335
          %v5337 = vpop.f32.mrf.mxu0
          %v5338 = vadd.f32 %v5169, %v5337
          %5339 = vmatmul.bf16.gmra.mxu0 %v4366
          %v5340 = vpop.f32.mrf.mxu0
          %v5341 = vadd.f32 %v5172, %v5340
          %v5342 = vpop.f32.mrf.mxu0
          %v5343 = vadd.f32 %v5174, %v5342
          %5344 = vmatmul.bf16.gmra.mxu0 %v4374
          %v5345 = vpop.f32.mrf.mxu0
          %v5346 = vadd.f32 %v5177, %v5345
          %v5347 = vpop.f32.mrf.mxu0
          %v5348 = vadd.f32 %v5179, %v5347
          %5349 = vmatmul.bf16.gmra.mxu0 %v4382
          %v5350 = vpop.f32.mrf.mxu0
          %v5351 = vadd.f32 %v5182, %v5350
          %v5352 = vpop.f32.mrf.mxu0
          %v5353 = vadd.f32 %v5184, %v5352
          %5354 = vmatmul.bf16.gmra.mxu0 %v4390
          %v5355 = vpop.f32.mrf.mxu0
          %v5356 = vadd.f32 %v5187, %v5355
          %v5357 = vpop.f32.mrf.mxu0
          %v5358 = vadd.f32 %v5189, %v5357
          %5359 = vmatmul.bf16.gmra.mxu0 %v4398
          %v5360 = vpop.f32.mrf.mxu0
          %v5361 = vadd.f32 %v5192, %v5360
          %v5362 = vpop.f32.mrf.mxu0
          %v5363 = vadd.f32 %v5194, %v5362
          %5364 = vmatmul.bf16.gmra.mxu0 %v4406
          %v5365 = vpop.f32.mrf.mxu0
          %v5366 = vadd.f32 %v5197, %v5365
          %v5367 = vpop.f32.mrf.mxu0
          %v5368 = vadd.f32 %v5199, %v5367
          %5369 = vmatmul.bf16.gmra.mxu0 %v4414
          %v5370 = vpop.f32.mrf.mxu0
          %v5371 = vadd.f32 %v5202, %v5370
          %v5372 = vpop.f32.mrf.mxu0
          %v5373 = vadd.f32 %v5204, %v5372
          %5374 = vmatmul.bf16.gmra.mxu0 %v4422
          %v5375 = vpop.f32.mrf.mxu0
          %v5376 = vadd.f32 %v5207, %v5375
          %v5377 = vpop.f32.mrf.mxu0
          %v5378 = vadd.f32 %v5209, %v5377
          %5379 = vmatmul.bf16.gmra.mxu0 %v4430
          %v5380 = vpop.f32.mrf.mxu0
          %v5381 = vadd.f32 %v5212, %v5380
          %v5382 = vpop.f32.mrf.mxu0
          %v5383 = vadd.f32 %v5214, %v5382
          %5384 = vmatmul.bf16.gmra.mxu0 %v4438
          %v5385 = vpop.f32.mrf.mxu0
          %v5386 = vadd.f32 %v5217, %v5385
          %v5387 = vpop.f32.mrf.mxu0
          %v5388 = vadd.f32 %v5219, %v5387
          %5389 = vmatmul.bf16.gmra.mxu0 %v4446
          %v5390 = vpop.f32.mrf.mxu0
          %v5391 = vadd.f32 %v5222, %v5390
          %v5392 = vpop.f32.mrf.mxu0
          %v5393 = vadd.f32 %v5224, %v5392
          %5394 = vmatmul.bf16.gmra.mxu0 %v4454
          %v5395 = vpop.f32.mrf.mxu0
          %v5396 = vadd.f32 %v5227, %v5395
          %v5397 = vpop.f32.mrf.mxu0
          %v5398 = vadd.f32 %v5229, %v5397
          %5399 = vmatmul.bf16.gmra.mxu0 %v4462
          %v5400 = vpop.f32.mrf.mxu0
          %v5401 = vadd.f32 %v5232, %v5400
          %v5402 = vpop.f32.mrf.mxu0
          %v5403 = vadd.f32 %v5234, %v5402
          %5404 = vmatmul.bf16.gmra.mxu0 %v4470
          %v5405 = vpop.f32.mrf.mxu0
          %v5406 = vadd.f32 %v5237, %v5405
          %v5407 = vpop.f32.mrf.mxu0
          %v5408 = vadd.f32 %v5239, %v5407
          %5409 = vmatmul.bf16.gmra.mxu0 %v4478
          %v5410 = vpop.f32.mrf.mxu0
          %v5411 = vadd.f32 %v5242, %v5410
          %v5412 = vpop.f32.mrf.mxu0
          %v5413 = vadd.f32 %v5244, %v5412
          %5414 = vdwg.mxu0
          %5415 = vmatpush.bf16.msra.mxu0 %v3114
          %5416 = vmatpush.bf16.msra.mxu0 %v3113
          %5417 = vmatpush.bf16.msra.mxu0 %v3112
          %5418 = vmatpush.bf16.msra.mxu0 %v3111
          %5419 = vmatpush.bf16.msra.mxu0 %v3110
          %5420 = vmatpush.bf16.msra.mxu0 %v3109
          %5421 = vmatpush.bf16.msra.mxu0 %v3108
          %5422 = vmatpush.bf16.msra.mxu0 %v3107
          %5423 = vmatmul.bf16.gmra.mxu0 %v4231
          %v5424 = vpop.f32.mrf.mxu0
          %v5425 = vadd.f32 %v5256, %v5424
          %v5426 = vpop.f32.mrf.mxu0
          %v5427 = vadd.f32 %v5258, %v5426
          %5428 = vmatmul.bf16.gmra.mxu0 %v4239
          %v5429 = vpop.f32.mrf.mxu0
          %v5430 = vadd.f32 %v5261, %v5429
          %v5431 = vpop.f32.mrf.mxu0
          %v5432 = vadd.f32 %v5263, %v5431
          %5433 = vmatmul.bf16.gmra.mxu0 %v4247
          %v5434 = vpop.f32.mrf.mxu0
          %v5435 = vadd.f32 %v5266, %v5434
          %v5436 = vpop.f32.mrf.mxu0
          %v5437 = vadd.f32 %v5268, %v5436
          %5438 = vmatmul.bf16.gmra.mxu0 %v4255
          %v5439 = vpop.f32.mrf.mxu0
          %v5440 = vadd.f32 %v5271, %v5439
          %v5441 = vpop.f32.mrf.mxu0
          %v5442 = vadd.f32 %v5273, %v5441
          %5443 = vmatmul.bf16.gmra.mxu0 %v4263
          %v5444 = vpop.f32.mrf.mxu0
          %v5445 = vadd.f32 %v5276, %v5444
          %v5446 = vpop.f32.mrf.mxu0
          %v5447 = vadd.f32 %v5278, %v5446
          %5448 = vmatmul.bf16.gmra.mxu0 %v4271
          %v5449 = vpop.f32.mrf.mxu0
          %v5450 = vadd.f32 %v5281, %v5449
          %v5451 = vpop.f32.mrf.mxu0
          %v5452 = vadd.f32 %v5283, %v5451
          %5453 = vmatmul.bf16.gmra.mxu0 %v4279
          %v5454 = vpop.f32.mrf.mxu0
          %v5455 = vadd.f32 %v5286, %v5454
          %v5456 = vpop.f32.mrf.mxu0
          %v5457 = vadd.f32 %v5288, %v5456
          %5458 = vmatmul.bf16.gmra.mxu0 %v4287
          %v5459 = vpop.f32.mrf.mxu0
          %v5460 = vadd.f32 %v5291, %v5459
          %v5461 = vpop.f32.mrf.mxu0
          %v5462 = vadd.f32 %v5293, %v5461
          %5463 = vmatmul.bf16.gmra.mxu0 %v4295
          %v5464 = vpop.f32.mrf.mxu0
          %v5465 = vadd.f32 %v5296, %v5464
          %v5466 = vpop.f32.mrf.mxu0
          %v5467 = vadd.f32 %v5298, %v5466
          %5468 = vmatmul.bf16.gmra.mxu0 %v4303
          %v5469 = vpop.f32.mrf.mxu0
          %v5470 = vadd.f32 %v5301, %v5469
          %v5471 = vpop.f32.mrf.mxu0
          %v5472 = vadd.f32 %v5303, %v5471
          %5473 = vmatmul.bf16.gmra.mxu0 %v4311
          %v5474 = vpop.f32.mrf.mxu0
          %v5475 = vadd.f32 %v5306, %v5474
          %v5476 = vpop.f32.mrf.mxu0
          %v5477 = vadd.f32 %v5308, %v5476
          %5478 = vmatmul.bf16.gmra.mxu0 %v4319
          %v5479 = vpop.f32.mrf.mxu0
          %v5480 = vadd.f32 %v5311, %v5479
          %v5481 = vpop.f32.mrf.mxu0
          %v5482 = vadd.f32 %v5313, %v5481
          %5483 = vmatmul.bf16.gmra.mxu0 %v4327
          %v5484 = vpop.f32.mrf.mxu0
          %v5485 = vadd.f32 %v5316, %v5484
          %v5486 = vpop.f32.mrf.mxu0
          %v5487 = vadd.f32 %v5318, %v5486
          %5488 = vmatmul.bf16.gmra.mxu0 %v4335
          %v5489 = vpop.f32.mrf.mxu0
          %v5490 = vadd.f32 %v5321, %v5489
          %v5491 = vpop.f32.mrf.mxu0
          %v5492 = vadd.f32 %v5323, %v5491
          %5493 = vmatmul.bf16.gmra.mxu0 %v4343
          %v5494 = vpop.f32.mrf.mxu0
          %v5495 = vadd.f32 %v5326, %v5494
          %v5496 = vpop.f32.mrf.mxu0
          %v5497 = vadd.f32 %v5328, %v5496
          %5498 = vmatmul.bf16.gmra.mxu0 %v4351
          %v5499 = vpop.f32.mrf.mxu0
          %v5500 = vadd.f32 %v5331, %v5499
          %v5501 = vpop.f32.mrf.mxu0
          %v5502 = vadd.f32 %v5333, %v5501
          %5503 = vmatmul.bf16.gmra.mxu0 %v4359
          %v5504 = vpop.f32.mrf.mxu0
          %v5505 = vadd.f32 %v5336, %v5504
          %v5506 = vpop.f32.mrf.mxu0
          %v5507 = vadd.f32 %v5338, %v5506
          %5508 = vmatmul.bf16.gmra.mxu0 %v4367
          %v5509 = vpop.f32.mrf.mxu0
          %v5510 = vadd.f32 %v5341, %v5509
          %v5511 = vpop.f32.mrf.mxu0
          %v5512 = vadd.f32 %v5343, %v5511
          %5513 = vmatmul.bf16.gmra.mxu0 %v4375
          %v5514 = vpop.f32.mrf.mxu0
          %v5515 = vadd.f32 %v5346, %v5514
          %v5516 = vpop.f32.mrf.mxu0
          %v5517 = vadd.f32 %v5348, %v5516
          %5518 = vmatmul.bf16.gmra.mxu0 %v4383
          %v5519 = vpop.f32.mrf.mxu0
          %v5520 = vadd.f32 %v5351, %v5519
          %v5521 = vpop.f32.mrf.mxu0
          %v5522 = vadd.f32 %v5353, %v5521
          %5523 = vmatmul.bf16.gmra.mxu0 %v4391
          %v5524 = vpop.f32.mrf.mxu0
          %v5525 = vadd.f32 %v5356, %v5524
          %v5526 = vpop.f32.mrf.mxu0
          %v5527 = vadd.f32 %v5358, %v5526
          %5528 = vmatmul.bf16.gmra.mxu0 %v4399
          %v5529 = vpop.f32.mrf.mxu0
          %v5530 = vadd.f32 %v5361, %v5529
          %v5531 = vpop.f32.mrf.mxu0
          %v5532 = vadd.f32 %v5363, %v5531
          %5533 = vmatmul.bf16.gmra.mxu0 %v4407
          %v5534 = vpop.f32.mrf.mxu0
          %v5535 = vadd.f32 %v5366, %v5534
          %v5536 = vpop.f32.mrf.mxu0
          %v5537 = vadd.f32 %v5368, %v5536
          %5538 = vmatmul.bf16.gmra.mxu0 %v4415
          %v5539 = vpop.f32.mrf.mxu0
          %v5540 = vadd.f32 %v5371, %v5539
          %v5541 = vpop.f32.mrf.mxu0
          %v5542 = vadd.f32 %v5373, %v5541
          %5543 = vmatmul.bf16.gmra.mxu0 %v4423
          %v5544 = vpop.f32.mrf.mxu0
          %v5545 = vadd.f32 %v5376, %v5544
          %v5546 = vpop.f32.mrf.mxu0
          %v5547 = vadd.f32 %v5378, %v5546
          %5548 = vmatmul.bf16.gmra.mxu0 %v4431
          %v5549 = vpop.f32.mrf.mxu0
          %v5550 = vadd.f32 %v5381, %v5549
          %v5551 = vpop.f32.mrf.mxu0
          %v5552 = vadd.f32 %v5383, %v5551
          %5553 = vmatmul.bf16.gmra.mxu0 %v4439
          %v5554 = vpop.f32.mrf.mxu0
          %v5555 = vadd.f32 %v5386, %v5554
          %v5556 = vpop.f32.mrf.mxu0
          %v5557 = vadd.f32 %v5388, %v5556
          %5558 = vmatmul.bf16.gmra.mxu0 %v4447
          %v5559 = vpop.f32.mrf.mxu0
          %v5560 = vadd.f32 %v5391, %v5559
          %v5561 = vpop.f32.mrf.mxu0
          %v5562 = vadd.f32 %v5393, %v5561
          %5563 = vmatmul.bf16.gmra.mxu0 %v4455
          %v5564 = vpop.f32.mrf.mxu0
          %v5565 = vadd.f32 %v5396, %v5564
          %v5566 = vpop.f32.mrf.mxu0
          %v5567 = vadd.f32 %v5398, %v5566
          %5568 = vmatmul.bf16.gmra.mxu0 %v4463
          %v5569 = vpop.f32.mrf.mxu0
          %v5570 = vadd.f32 %v5401, %v5569
          %v5571 = vpop.f32.mrf.mxu0
          %v5572 = vadd.f32 %v5403, %v5571
          %5573 = vmatmul.bf16.gmra.mxu0 %v4471
          %v5574 = vpop.f32.mrf.mxu0
          %v5575 = vadd.f32 %v5406, %v5574
          %v5576 = vpop.f32.mrf.mxu0
          %v5577 = vadd.f32 %v5408, %v5576
          %5578 = vmatmul.bf16.gmra.mxu0 %v4479
          %v5579 = vpop.f32.mrf.mxu0
          %v5580 = vadd.f32 %v5411, %v5579
          %v5581 = vpop.f32.mrf.mxu0
          %v5582 = vadd.f32 %v5413, %v5581
          %5583 = vdwg.mxu0
          %5584 = vmatpush.bf16.msra.mxu0 %v3122
          %5585 = vmatpush.bf16.msra.mxu0 %v3121
          %5586 = vmatpush.bf16.msra.mxu0 %v3120
          %5587 = vmatpush.bf16.msra.mxu0 %v3119
          %5588 = vmatpush.bf16.msra.mxu0 %v3118
          %5589 = vmatpush.bf16.msra.mxu0 %v3117
          %5590 = vmatpush.bf16.msra.mxu0 %v3116
          %5591 = vmatpush.bf16.msra.mxu0 %v3115
          %5592 = vmatmul.bf16.gmra.mxu0 %v4232
          %v5593 = vpop.f32.mrf.mxu0
          %v5594 = vadd.f32 %v5425, %v5593
          %v5595 = vpop.f32.mrf.mxu0
          %v5596 = vadd.f32 %v5427, %v5595
          %5597 = vmatmul.bf16.gmra.mxu0 %v4240
          %v5598 = vpop.f32.mrf.mxu0
          %v5599 = vadd.f32 %v5430, %v5598
          %v5600 = vpop.f32.mrf.mxu0
          %v5601 = vadd.f32 %v5432, %v5600
          %5602 = vmatmul.bf16.gmra.mxu0 %v4248
          %v5603 = vpop.f32.mrf.mxu0
          %v5604 = vadd.f32 %v5435, %v5603
          %v5605 = vpop.f32.mrf.mxu0
          %v5606 = vadd.f32 %v5437, %v5605
          %5607 = vmatmul.bf16.gmra.mxu0 %v4256
          %v5608 = vpop.f32.mrf.mxu0
          %v5609 = vadd.f32 %v5440, %v5608
          %v5610 = vpop.f32.mrf.mxu0
          %v5611 = vadd.f32 %v5442, %v5610
          %5612 = vmatmul.bf16.gmra.mxu0 %v4264
          %v5613 = vpop.f32.mrf.mxu0
          %v5614 = vadd.f32 %v5445, %v5613
          %v5615 = vpop.f32.mrf.mxu0
          %v5616 = vadd.f32 %v5447, %v5615
          %5617 = vmatmul.bf16.gmra.mxu0 %v4272
          %v5618 = vpop.f32.mrf.mxu0
          %v5619 = vadd.f32 %v5450, %v5618
          %v5620 = vpop.f32.mrf.mxu0
          %v5621 = vadd.f32 %v5452, %v5620
          %5622 = vmatmul.bf16.gmra.mxu0 %v4280
          %v5623 = vpop.f32.mrf.mxu0
          %v5624 = vadd.f32 %v5455, %v5623
          %v5625 = vpop.f32.mrf.mxu0
          %v5626 = vadd.f32 %v5457, %v5625
          %5627 = vmatmul.bf16.gmra.mxu0 %v4288
          %v5628 = vpop.f32.mrf.mxu0
          %v5629 = vadd.f32 %v5460, %v5628
          %v5630 = vpop.f32.mrf.mxu0
          %v5631 = vadd.f32 %v5462, %v5630
          %5632 = vmatmul.bf16.gmra.mxu0 %v4296
          %v5633 = vpop.f32.mrf.mxu0
          %v5634 = vadd.f32 %v5465, %v5633
          %v5635 = vpop.f32.mrf.mxu0
          %v5636 = vadd.f32 %v5467, %v5635
          %5637 = vmatmul.bf16.gmra.mxu0 %v4304
          %v5638 = vpop.f32.mrf.mxu0
          %v5639 = vadd.f32 %v5470, %v5638
          %v5640 = vpop.f32.mrf.mxu0
          %v5641 = vadd.f32 %v5472, %v5640
          %5642 = vmatmul.bf16.gmra.mxu0 %v4312
          %v5643 = vpop.f32.mrf.mxu0
          %v5644 = vadd.f32 %v5475, %v5643
          %v5645 = vpop.f32.mrf.mxu0
          %v5646 = vadd.f32 %v5477, %v5645
          %5647 = vmatmul.bf16.gmra.mxu0 %v4320
          %v5648 = vpop.f32.mrf.mxu0
          %v5649 = vadd.f32 %v5480, %v5648
          %v5650 = vpop.f32.mrf.mxu0
          %v5651 = vadd.f32 %v5482, %v5650
          %5652 = vmatmul.bf16.gmra.mxu0 %v4328
          %v5653 = vpop.f32.mrf.mxu0
          %v5654 = vadd.f32 %v5485, %v5653
          %v5655 = vpop.f32.mrf.mxu0
          %v5656 = vadd.f32 %v5487, %v5655
          %5657 = vmatmul.bf16.gmra.mxu0 %v4336
          %v5658 = vpop.f32.mrf.mxu0
          %v5659 = vadd.f32 %v5490, %v5658
          %v5660 = vpop.f32.mrf.mxu0
          %v5661 = vadd.f32 %v5492, %v5660
          %5662 = vmatmul.bf16.gmra.mxu0 %v4344
          %v5663 = vpop.f32.mrf.mxu0
          %v5664 = vadd.f32 %v5495, %v5663
          %v5665 = vpop.f32.mrf.mxu0
          %v5666 = vadd.f32 %v5497, %v5665
          %5667 = vmatmul.bf16.gmra.mxu0 %v4352
          %v5668 = vpop.f32.mrf.mxu0
          %v5669 = vadd.f32 %v5500, %v5668
          %v5670 = vpop.f32.mrf.mxu0
          %v5671 = vadd.f32 %v5502, %v5670
          %5672 = vmatmul.bf16.gmra.mxu0 %v4360
          %v5673 = vpop.f32.mrf.mxu0
          %v5674 = vadd.f32 %v5505, %v5673
          %v5675 = vpop.f32.mrf.mxu0
          %v5676 = vadd.f32 %v5507, %v5675
          %5677 = vmatmul.bf16.gmra.mxu0 %v4368
          %v5678 = vpop.f32.mrf.mxu0
          %v5679 = vadd.f32 %v5510, %v5678
          %v5680 = vpop.f32.mrf.mxu0
          %v5681 = vadd.f32 %v5512, %v5680
          %5682 = vmatmul.bf16.gmra.mxu0 %v4376
          %v5683 = vpop.f32.mrf.mxu0
          %v5684 = vadd.f32 %v5515, %v5683
          %v5685 = vpop.f32.mrf.mxu0
          %v5686 = vadd.f32 %v5517, %v5685
          %5687 = vmatmul.bf16.gmra.mxu0 %v4384
          %v5688 = vpop.f32.mrf.mxu0
          %v5689 = vadd.f32 %v5520, %v5688
          %v5690 = vpop.f32.mrf.mxu0
          %v5691 = vadd.f32 %v5522, %v5690
          %5692 = vmatmul.bf16.gmra.mxu0 %v4392
          %v5693 = vpop.f32.mrf.mxu0
          %v5694 = vadd.f32 %v5525, %v5693
          %v5695 = vpop.f32.mrf.mxu0
          %v5696 = vadd.f32 %v5527, %v5695
          %5697 = vmatmul.bf16.gmra.mxu0 %v4400
          %v5698 = vpop.f32.mrf.mxu0
          %v5699 = vadd.f32 %v5530, %v5698
          %v5700 = vpop.f32.mrf.mxu0
          %v5701 = vadd.f32 %v5532, %v5700
          %5702 = vmatmul.bf16.gmra.mxu0 %v4408
          %v5703 = vpop.f32.mrf.mxu0
          %v5704 = vadd.f32 %v5535, %v5703
          %v5705 = vpop.f32.mrf.mxu0
          %v5706 = vadd.f32 %v5537, %v5705
          %5707 = vmatmul.bf16.gmra.mxu0 %v4416
          %v5708 = vpop.f32.mrf.mxu0
          %v5709 = vadd.f32 %v5540, %v5708
          %v5710 = vpop.f32.mrf.mxu0
          %v5711 = vadd.f32 %v5542, %v5710
          %5712 = vmatmul.bf16.gmra.mxu0 %v4424
          %v5713 = vpop.f32.mrf.mxu0
          %v5714 = vadd.f32 %v5545, %v5713
          %v5715 = vpop.f32.mrf.mxu0
          %v5716 = vadd.f32 %v5547, %v5715
          %5717 = vmatmul.bf16.gmra.mxu0 %v4432
          %v5718 = vpop.f32.mrf.mxu0
          %v5719 = vadd.f32 %v5550, %v5718
          %v5720 = vpop.f32.mrf.mxu0
          %v5721 = vadd.f32 %v5552, %v5720
          %5722 = vmatmul.bf16.gmra.mxu0 %v4440
          %v5723 = vpop.f32.mrf.mxu0
          %v5724 = vadd.f32 %v5555, %v5723
          %v5725 = vpop.f32.mrf.mxu0
          %v5726 = vadd.f32 %v5557, %v5725
          %5727 = vmatmul.bf16.gmra.mxu0 %v4448
          %v5728 = vpop.f32.mrf.mxu0
          %v5729 = vadd.f32 %v5560, %v5728
          %v5730 = vpop.f32.mrf.mxu0
          %v5731 = vadd.f32 %v5562, %v5730
          %5732 = vmatmul.bf16.gmra.mxu0 %v4456
          %v5733 = vpop.f32.mrf.mxu0
          %v5734 = vadd.f32 %v5565, %v5733
          %v5735 = vpop.f32.mrf.mxu0
          %v5736 = vadd.f32 %v5567, %v5735
          %5737 = vmatmul.bf16.gmra.mxu0 %v4464
          %v5738 = vpop.f32.mrf.mxu0
          %v5739 = vadd.f32 %v5570, %v5738
          %v5740 = vpop.f32.mrf.mxu0
          %v5741 = vadd.f32 %v5572, %v5740
          %5742 = vmatmul.bf16.gmra.mxu0 %v4472
          %v5743 = vpop.f32.mrf.mxu0
          %v5744 = vadd.f32 %v5575, %v5743
          %v5745 = vpop.f32.mrf.mxu0
          %v5746 = vadd.f32 %v5577, %v5745
          %5747 = vmatmul.bf16.gmra.mxu0 %v4480
          %v5748 = vpop.f32.mrf.mxu0
          %v5749 = vadd.f32 %v5580, %v5748
          %v5750 = vpop.f32.mrf.mxu0
          %v5751 = vadd.f32 %v5582, %v5750
          %5752 = vdwg.mxu0
          %5753 = vmatpush.bf16.msra.mxu0 %v3130
          %5754 = vmatpush.bf16.msra.mxu0 %v3129
          %5755 = vmatpush.bf16.msra.mxu0 %v3128
          %5756 = vmatpush.bf16.msra.mxu0 %v3127
          %5757 = vmatpush.bf16.msra.mxu0 %v3126
          %5758 = vmatpush.bf16.msra.mxu0 %v3125
          %5759 = vmatpush.bf16.msra.mxu0 %v3124
          %5760 = vmatpush.bf16.msra.mxu0 %v3123
          %5761 = vmatmul.bf16.gmra.mxu0 %v4233
          %v5762 = vpop.f32.mrf.mxu0
          %v5763 = vadd.f32 %v5594, %v5762
          %v5764 = vpop.f32.mrf.mxu0
          %v5765 = vadd.f32 %v5596, %v5764
          %5766 = vmatmul.bf16.gmra.mxu0 %v4241
          %v5767 = vpop.f32.mrf.mxu0
          %v5768 = vadd.f32 %v5599, %v5767
          %v5769 = vpop.f32.mrf.mxu0
          %v5770 = vadd.f32 %v5601, %v5769
          %5771 = vmatmul.bf16.gmra.mxu0 %v4249
          %v5772 = vpop.f32.mrf.mxu0
          %v5773 = vadd.f32 %v5604, %v5772
          %v5774 = vpop.f32.mrf.mxu0
          %v5775 = vadd.f32 %v5606, %v5774
          %5776 = vmatmul.bf16.gmra.mxu0 %v4257
          %v5777 = vpop.f32.mrf.mxu0
          %v5778 = vadd.f32 %v5609, %v5777
          %v5779 = vpop.f32.mrf.mxu0
          %v5780 = vadd.f32 %v5611, %v5779
          %5781 = vmatmul.bf16.gmra.mxu0 %v4265
          %v5782 = vpop.f32.mrf.mxu0
          %v5783 = vadd.f32 %v5614, %v5782
          %v5784 = vpop.f32.mrf.mxu0
          %v5785 = vadd.f32 %v5616, %v5784
          %5786 = vmatmul.bf16.gmra.mxu0 %v4273
          %v5787 = vpop.f32.mrf.mxu0
          %v5788 = vadd.f32 %v5619, %v5787
          %v5789 = vpop.f32.mrf.mxu0
          %v5790 = vadd.f32 %v5621, %v5789
          %5791 = vmatmul.bf16.gmra.mxu0 %v4281
          %v5792 = vpop.f32.mrf.mxu0
          %v5793 = vadd.f32 %v5624, %v5792
          %v5794 = vpop.f32.mrf.mxu0
          %v5795 = vadd.f32 %v5626, %v5794
          %5796 = vmatmul.bf16.gmra.mxu0 %v4289
          %v5797 = vpop.f32.mrf.mxu0
          %v5798 = vadd.f32 %v5629, %v5797
          %v5799 = vpop.f32.mrf.mxu0
          %v5800 = vadd.f32 %v5631, %v5799
          %5801 = vmatmul.bf16.gmra.mxu0 %v4297
          %v5802 = vpop.f32.mrf.mxu0
          %v5803 = vadd.f32 %v5634, %v5802
          %v5804 = vpop.f32.mrf.mxu0
          %v5805 = vadd.f32 %v5636, %v5804
          %5806 = vmatmul.bf16.gmra.mxu0 %v4305
          %v5807 = vpop.f32.mrf.mxu0
          %v5808 = vadd.f32 %v5639, %v5807
          %v5809 = vpop.f32.mrf.mxu0
          %v5810 = vadd.f32 %v5641, %v5809
          %5811 = vmatmul.bf16.gmra.mxu0 %v4313
          %v5812 = vpop.f32.mrf.mxu0
          %v5813 = vadd.f32 %v5644, %v5812
          %v5814 = vpop.f32.mrf.mxu0
          %v5815 = vadd.f32 %v5646, %v5814
          %5816 = vmatmul.bf16.gmra.mxu0 %v4321
          %v5817 = vpop.f32.mrf.mxu0
          %v5818 = vadd.f32 %v5649, %v5817
          %v5819 = vpop.f32.mrf.mxu0
          %v5820 = vadd.f32 %v5651, %v5819
          %5821 = vmatmul.bf16.gmra.mxu0 %v4329
          %v5822 = vpop.f32.mrf.mxu0
          %v5823 = vadd.f32 %v5654, %v5822
          %v5824 = vpop.f32.mrf.mxu0
          %v5825 = vadd.f32 %v5656, %v5824
          %5826 = vmatmul.bf16.gmra.mxu0 %v4337
          %v5827 = vpop.f32.mrf.mxu0
          %v5828 = vadd.f32 %v5659, %v5827
          %v5829 = vpop.f32.mrf.mxu0
          %v5830 = vadd.f32 %v5661, %v5829
          %5831 = vmatmul.bf16.gmra.mxu0 %v4345
          %v5832 = vpop.f32.mrf.mxu0
          %v5833 = vadd.f32 %v5664, %v5832
          %v5834 = vpop.f32.mrf.mxu0
          %v5835 = vadd.f32 %v5666, %v5834
          %5836 = vmatmul.bf16.gmra.mxu0 %v4353
          %v5837 = vpop.f32.mrf.mxu0
          %v5838 = vadd.f32 %v5669, %v5837
          %v5839 = vpop.f32.mrf.mxu0
          %v5840 = vadd.f32 %v5671, %v5839
          %5841 = vmatmul.bf16.gmra.mxu0 %v4361
          %v5842 = vpop.f32.mrf.mxu0
          %v5843 = vadd.f32 %v5674, %v5842
          %v5844 = vpop.f32.mrf.mxu0
          %v5845 = vadd.f32 %v5676, %v5844
          %5846 = vmatmul.bf16.gmra.mxu0 %v4369
          %v5847 = vpop.f32.mrf.mxu0
          %v5848 = vadd.f32 %v5679, %v5847
          %v5849 = vpop.f32.mrf.mxu0
          %v5850 = vadd.f32 %v5681, %v5849
          %5851 = vmatmul.bf16.gmra.mxu0 %v4377
          %v5852 = vpop.f32.mrf.mxu0
          %v5853 = vadd.f32 %v5684, %v5852
          %v5854 = vpop.f32.mrf.mxu0
          %v5855 = vadd.f32 %v5686, %v5854
          %5856 = vmatmul.bf16.gmra.mxu0 %v4385
          %v5857 = vpop.f32.mrf.mxu0
          %v5858 = vadd.f32 %v5689, %v5857
          %v5859 = vpop.f32.mrf.mxu0
          %v5860 = vadd.f32 %v5691, %v5859
          %5861 = vmatmul.bf16.gmra.mxu0 %v4393
          %v5862 = vpop.f32.mrf.mxu0
          %v5863 = vadd.f32 %v5694, %v5862
          %v5864 = vpop.f32.mrf.mxu0
          %v5865 = vadd.f32 %v5696, %v5864
          %5866 = vmatmul.bf16.gmra.mxu0 %v4401
          %v5867 = vpop.f32.mrf.mxu0
          %v5868 = vadd.f32 %v5699, %v5867
          %v5869 = vpop.f32.mrf.mxu0
          %v5870 = vadd.f32 %v5701, %v5869
          %5871 = vmatmul.bf16.gmra.mxu0 %v4409
          %v5872 = vpop.f32.mrf.mxu0
          %v5873 = vadd.f32 %v5704, %v5872
          %v5874 = vpop.f32.mrf.mxu0
          %v5875 = vadd.f32 %v5706, %v5874
          %5876 = vmatmul.bf16.gmra.mxu0 %v4417
          %v5877 = vpop.f32.mrf.mxu0
          %v5878 = vadd.f32 %v5709, %v5877
          %v5879 = vpop.f32.mrf.mxu0
          %v5880 = vadd.f32 %v5711, %v5879
          %5881 = vmatmul.bf16.gmra.mxu0 %v4425
          %v5882 = vpop.f32.mrf.mxu0
          %v5883 = vadd.f32 %v5714, %v5882
          %v5884 = vpop.f32.mrf.mxu0
          %v5885 = vadd.f32 %v5716, %v5884
          %5886 = vmatmul.bf16.gmra.mxu0 %v4433
          %v5887 = vpop.f32.mrf.mxu0
          %v5888 = vadd.f32 %v5719, %v5887
          %v5889 = vpop.f32.mrf.mxu0
          %v5890 = vadd.f32 %v5721, %v5889
          %5891 = vmatmul.bf16.gmra.mxu0 %v4441
          %v5892 = vpop.f32.mrf.mxu0
          %v5893 = vadd.f32 %v5724, %v5892
          %v5894 = vpop.f32.mrf.mxu0
          %v5895 = vadd.f32 %v5726, %v5894
          %5896 = vmatmul.bf16.gmra.mxu0 %v4449
          %v5897 = vpop.f32.mrf.mxu0
          %v5898 = vadd.f32 %v5729, %v5897
          %v5899 = vpop.f32.mrf.mxu0
          %v5900 = vadd.f32 %v5731, %v5899
          %5901 = vmatmul.bf16.gmra.mxu0 %v4457
          %v5902 = vpop.f32.mrf.mxu0
          %v5903 = vadd.f32 %v5734, %v5902
          %v5904 = vpop.f32.mrf.mxu0
          %v5905 = vadd.f32 %v5736, %v5904
          %5906 = vmatmul.bf16.gmra.mxu0 %v4465
          %v5907 = vpop.f32.mrf.mxu0
          %v5908 = vadd.f32 %v5739, %v5907
          %v5909 = vpop.f32.mrf.mxu0
          %v5910 = vadd.f32 %v5741, %v5909
          %5911 = vmatmul.bf16.gmra.mxu0 %v4473
          %v5912 = vpop.f32.mrf.mxu0
          %v5913 = vadd.f32 %v5744, %v5912
          %v5914 = vpop.f32.mrf.mxu0
          %v5915 = vadd.f32 %v5746, %v5914
          %5916 = vmatmul.bf16.gmra.mxu0 %v4481
          %v5917 = vpop.f32.mrf.mxu0
          %v5918 = vadd.f32 %v5749, %v5917
          %v5919 = vpop.f32.mrf.mxu0
          %v5920 = vadd.f32 %v5751, %v5919
          %5921 = vdwg.mxu0
          %5922 = vmatpush.bf16.msra.mxu0 %v3138
          %5923 = vmatpush.bf16.msra.mxu0 %v3137
          %5924 = vmatpush.bf16.msra.mxu0 %v3136
          %5925 = vmatpush.bf16.msra.mxu0 %v3135
          %5926 = vmatpush.bf16.msra.mxu0 %v3134
          %5927 = vmatpush.bf16.msra.mxu0 %v3133
          %5928 = vmatpush.bf16.msra.mxu0 %v3132
          %5929 = vmatpush.bf16.msra.mxu0 %v3131
          %5930 = vmatmul.bf16.gmra.mxu0 %v4234
          %v5931 = vpop.f32.mrf.mxu0
          %v5932 = vadd.f32 %v5763, %v5931
          %v5933 = vpop.f32.mrf.mxu0
          %v5934 = vadd.f32 %v5765, %v5933
          %5935 = vmatmul.bf16.gmra.mxu0 %v4242
          %v5936 = vpop.f32.mrf.mxu0
          %v5937 = vadd.f32 %v5768, %v5936
          %v5938 = vpop.f32.mrf.mxu0
          %v5939 = vadd.f32 %v5770, %v5938
          %5940 = vmatmul.bf16.gmra.mxu0 %v4250
          %v5941 = vpop.f32.mrf.mxu0
          %v5942 = vadd.f32 %v5773, %v5941
          %v5943 = vpop.f32.mrf.mxu0
          %v5944 = vadd.f32 %v5775, %v5943
          %5945 = vmatmul.bf16.gmra.mxu0 %v4258
          %v5946 = vpop.f32.mrf.mxu0
          %v5947 = vadd.f32 %v5778, %v5946
          %v5948 = vpop.f32.mrf.mxu0
          %v5949 = vadd.f32 %v5780, %v5948
          %5950 = vmatmul.bf16.gmra.mxu0 %v4266
          %v5951 = vpop.f32.mrf.mxu0
          %v5952 = vadd.f32 %v5783, %v5951
          %v5953 = vpop.f32.mrf.mxu0
          %v5954 = vadd.f32 %v5785, %v5953
          %5955 = vmatmul.bf16.gmra.mxu0 %v4274
          %v5956 = vpop.f32.mrf.mxu0
          %v5957 = vadd.f32 %v5788, %v5956
          %v5958 = vpop.f32.mrf.mxu0
          %v5959 = vadd.f32 %v5790, %v5958
          %5960 = vmatmul.bf16.gmra.mxu0 %v4282
          %v5961 = vpop.f32.mrf.mxu0
          %v5962 = vadd.f32 %v5793, %v5961
          %v5963 = vpop.f32.mrf.mxu0
          %v5964 = vadd.f32 %v5795, %v5963
          %5965 = vmatmul.bf16.gmra.mxu0 %v4290
          %v5966 = vpop.f32.mrf.mxu0
          %v5967 = vadd.f32 %v5798, %v5966
          %v5968 = vpop.f32.mrf.mxu0
          %v5969 = vadd.f32 %v5800, %v5968
          %5970 = vmatmul.bf16.gmra.mxu0 %v4298
          %v5971 = vpop.f32.mrf.mxu0
          %v5972 = vadd.f32 %v5803, %v5971
          %v5973 = vpop.f32.mrf.mxu0
          %v5974 = vadd.f32 %v5805, %v5973
          %5975 = vmatmul.bf16.gmra.mxu0 %v4306
          %v5976 = vpop.f32.mrf.mxu0
          %v5977 = vadd.f32 %v5808, %v5976
          %v5978 = vpop.f32.mrf.mxu0
          %v5979 = vadd.f32 %v5810, %v5978
          %5980 = vmatmul.bf16.gmra.mxu0 %v4314
          %v5981 = vpop.f32.mrf.mxu0
          %v5982 = vadd.f32 %v5813, %v5981
          %v5983 = vpop.f32.mrf.mxu0
          %v5984 = vadd.f32 %v5815, %v5983
          %5985 = vmatmul.bf16.gmra.mxu0 %v4322
          %v5986 = vpop.f32.mrf.mxu0
          %v5987 = vadd.f32 %v5818, %v5986
          %v5988 = vpop.f32.mrf.mxu0
          %v5989 = vadd.f32 %v5820, %v5988
          %5990 = vmatmul.bf16.gmra.mxu0 %v4330
          %v5991 = vpop.f32.mrf.mxu0
          %v5992 = vadd.f32 %v5823, %v5991
          %v5993 = vpop.f32.mrf.mxu0
          %v5994 = vadd.f32 %v5825, %v5993
          %5995 = vmatmul.bf16.gmra.mxu0 %v4338
          %v5996 = vpop.f32.mrf.mxu0
          %v5997 = vadd.f32 %v5828, %v5996
          %v5998 = vpop.f32.mrf.mxu0
          %v5999 = vadd.f32 %v5830, %v5998
          %6000 = vmatmul.bf16.gmra.mxu0 %v4346
          %v6001 = vpop.f32.mrf.mxu0
          %v6002 = vadd.f32 %v5833, %v6001
          %v6003 = vpop.f32.mrf.mxu0
          %v6004 = vadd.f32 %v5835, %v6003
          %6005 = vmatmul.bf16.gmra.mxu0 %v4354
          %v6006 = vpop.f32.mrf.mxu0
          %v6007 = vadd.f32 %v5838, %v6006
          %v6008 = vpop.f32.mrf.mxu0
          %v6009 = vadd.f32 %v5840, %v6008
          %6010 = vmatmul.bf16.gmra.mxu0 %v4362
          %v6011 = vpop.f32.mrf.mxu0
          %v6012 = vadd.f32 %v5843, %v6011
          %v6013 = vpop.f32.mrf.mxu0
          %v6014 = vadd.f32 %v5845, %v6013
          %6015 = vmatmul.bf16.gmra.mxu0 %v4370
          %v6016 = vpop.f32.mrf.mxu0
          %v6017 = vadd.f32 %v5848, %v6016
          %v6018 = vpop.f32.mrf.mxu0
          %v6019 = vadd.f32 %v5850, %v6018
          %6020 = vmatmul.bf16.gmra.mxu0 %v4378
          %v6021 = vpop.f32.mrf.mxu0
          %v6022 = vadd.f32 %v5853, %v6021
          %v6023 = vpop.f32.mrf.mxu0
          %v6024 = vadd.f32 %v5855, %v6023
          %6025 = vmatmul.bf16.gmra.mxu0 %v4386
          %v6026 = vpop.f32.mrf.mxu0
          %v6027 = vadd.f32 %v5858, %v6026
          %v6028 = vpop.f32.mrf.mxu0
          %v6029 = vadd.f32 %v5860, %v6028
          %6030 = vmatmul.bf16.gmra.mxu0 %v4394
          %v6031 = vpop.f32.mrf.mxu0
          %v6032 = vadd.f32 %v5863, %v6031
          %v6033 = vpop.f32.mrf.mxu0
          %v6034 = vadd.f32 %v5865, %v6033
          %6035 = vmatmul.bf16.gmra.mxu0 %v4402
          %v6036 = vpop.f32.mrf.mxu0
          %v6037 = vadd.f32 %v5868, %v6036
          %v6038 = vpop.f32.mrf.mxu0
          %v6039 = vadd.f32 %v5870, %v6038
          %6040 = vmatmul.bf16.gmra.mxu0 %v4410
          %v6041 = vpop.f32.mrf.mxu0
          %v6042 = vadd.f32 %v5873, %v6041
          %v6043 = vpop.f32.mrf.mxu0
          %v6044 = vadd.f32 %v5875, %v6043
          %6045 = vmatmul.bf16.gmra.mxu0 %v4418
          %v6046 = vpop.f32.mrf.mxu0
          %v6047 = vadd.f32 %v5878, %v6046
          %v6048 = vpop.f32.mrf.mxu0
          %v6049 = vadd.f32 %v5880, %v6048
          %6050 = vmatmul.bf16.gmra.mxu0 %v4426
          %v6051 = vpop.f32.mrf.mxu0
          %v6052 = vadd.f32 %v5883, %v6051
          %v6053 = vpop.f32.mrf.mxu0
          %v6054 = vadd.f32 %v5885, %v6053
          %6055 = vmatmul.bf16.gmra.mxu0 %v4434
          %v6056 = vpop.f32.mrf.mxu0
          %v6057 = vadd.f32 %v5888, %v6056
          %v6058 = vpop.f32.mrf.mxu0
          %v6059 = vadd.f32 %v5890, %v6058
          %6060 = vmatmul.bf16.gmra.mxu0 %v4442
          %v6061 = vpop.f32.mrf.mxu0
          %v6062 = vadd.f32 %v5893, %v6061
          %v6063 = vpop.f32.mrf.mxu0
          %v6064 = vadd.f32 %v5895, %v6063
          %6065 = vmatmul.bf16.gmra.mxu0 %v4450
          %v6066 = vpop.f32.mrf.mxu0
          %v6067 = vadd.f32 %v5898, %v6066
          %v6068 = vpop.f32.mrf.mxu0
          %v6069 = vadd.f32 %v5900, %v6068
          %6070 = vmatmul.bf16.gmra.mxu0 %v4458
          %v6071 = vpop.f32.mrf.mxu0
          %v6072 = vadd.f32 %v5903, %v6071
          %v6073 = vpop.f32.mrf.mxu0
          %v6074 = vadd.f32 %v5905, %v6073
          %6075 = vmatmul.bf16.gmra.mxu0 %v4466
          %v6076 = vpop.f32.mrf.mxu0
          %v6077 = vadd.f32 %v5908, %v6076
          %v6078 = vpop.f32.mrf.mxu0
          %v6079 = vadd.f32 %v5910, %v6078
          %6080 = vmatmul.bf16.gmra.mxu0 %v4474
          %v6081 = vpop.f32.mrf.mxu0
          %v6082 = vadd.f32 %v5913, %v6081
          %v6083 = vpop.f32.mrf.mxu0
          %v6084 = vadd.f32 %v5915, %v6083
          %6085 = vmatmul.bf16.gmra.mxu0 %v4482
          %v6086 = vpop.f32.mrf.mxu0
          %v6087 = vadd.f32 %v5918, %v6086
          %v6088 = vpop.f32.mrf.mxu0
          %v6089 = vadd.f32 %v5920, %v6088
          %6090 = vdwg.mxu0
          %v6091 = vmax.f32 %v5932, 0.0
          %v6092 = vmax.f32 %v5934, 0.0
          %v6093 = vmax.f32 %v5937, 0.0
          %v6094 = vmax.f32 %v5939, 0.0
          %v6095 = vmax.f32 %v5942, 0.0
          %v6096 = vmax.f32 %v5944, 0.0
          %v6097 = vmax.f32 %v5947, 0.0
          %v6098 = vmax.f32 %v5949, 0.0
          %v6099 = vmax.f32 %v5952, 0.0
          %v6100 = vmax.f32 %v5954, 0.0
          %v6101 = vmax.f32 %v5957, 0.0
          %v6102 = vmax.f32 %v5959, 0.0
          %v6103 = vmax.f32 %v5962, 0.0
          %v6104 = vmax.f32 %v5964, 0.0
          %v6105 = vmax.f32 %v5967, 0.0
          %v6106 = vmax.f32 %v5969, 0.0
          %v6107 = vmax.f32 %v5972, 0.0
          %v6108 = vmax.f32 %v5974, 0.0
          %v6109 = vmax.f32 %v5977, 0.0
          %v6110 = vmax.f32 %v5979, 0.0
          %v6111 = vmax.f32 %v5982, 0.0
          %v6112 = vmax.f32 %v5984, 0.0
          %v6113 = vmax.f32 %v5987, 0.0
          %v6114 = vmax.f32 %v5989, 0.0
          %v6115 = vmax.f32 %v5992, 0.0
          %v6116 = vmax.f32 %v5994, 0.0
          %v6117 = vmax.f32 %v5997, 0.0
          %v6118 = vmax.f32 %v5999, 0.0
          %v6119 = vmax.f32 %v6002, 0.0
          %v6120 = vmax.f32 %v6004, 0.0
          %v6121 = vmax.f32 %v6007, 0.0
          %v6122 = vmax.f32 %v6009, 0.0
          %v6123 = vmax.f32 %v6012, 0.0
          %v6124 = vmax.f32 %v6014, 0.0
          %v6125 = vmax.f32 %v6017, 0.0
          %v6126 = vmax.f32 %v6019, 0.0
          %v6127 = vmax.f32 %v6022, 0.0
          %v6128 = vmax.f32 %v6024, 0.0
          %v6129 = vmax.f32 %v6027, 0.0
          %v6130 = vmax.f32 %v6029, 0.0
          %v6131 = vmax.f32 %v6032, 0.0
          %v6132 = vmax.f32 %v6034, 0.0
          %v6133 = vmax.f32 %v6037, 0.0
          %v6134 = vmax.f32 %v6039, 0.0
          %v6135 = vmax.f32 %v6042, 0.0
          %v6136 = vmax.f32 %v6044, 0.0
          %v6137 = vmax.f32 %v6047, 0.0
          %v6138 = vmax.f32 %v6049, 0.0
          %v6139 = vmax.f32 %v6052, 0.0
          %v6140 = vmax.f32 %v6054, 0.0
          %v6141 = vmax.f32 %v6057, 0.0
          %v6142 = vmax.f32 %v6059, 0.0
          %v6143 = vmax.f32 %v6062, 0.0
          %v6144 = vmax.f32 %v6064, 0.0
          %v6145 = vmax.f32 %v6067, 0.0
          %v6146 = vmax.f32 %v6069, 0.0
          %v6147 = vmax.f32 %v6072, 0.0
          %v6148 = vmax.f32 %v6074, 0.0
          %v6149 = vmax.f32 %v6077, 0.0
          %v6150 = vmax.f32 %v6079, 0.0
          %v6151 = vmax.f32 %v6082, 0.0
          %v6152 = vmax.f32 %v6084, 0.0
          %v6153 = vmax.f32 %v6087, 0.0
          %v6154 = vmax.f32 %v6089, 0.0
          %v6155 = vpack.c.bf16 %v6092, %v6091
          %v6156 = vpack.c.bf16 %v6094, %v6093
          %v6157 = vpack.c.bf16 %v6096, %v6095
          %v6158 = vpack.c.bf16 %v6098, %v6097
          %v6159 = vpack.c.bf16 %v6100, %v6099
          %v6160 = vpack.c.bf16 %v6102, %v6101
          %v6161 = vpack.c.bf16 %v6104, %v6103
          %v6162 = vpack.c.bf16 %v6106, %v6105
          %v6163 = vpack.c.bf16 %v6108, %v6107
          %v6164 = vpack.c.bf16 %v6110, %v6109
          %v6165 = vpack.c.bf16 %v6112, %v6111
          %v6166 = vpack.c.bf16 %v6114, %v6113
          %v6167 = vpack.c.bf16 %v6116, %v6115
          %v6168 = vpack.c.bf16 %v6118, %v6117
          %v6169 = vpack.c.bf16 %v6120, %v6119
          %v6170 = vpack.c.bf16 %v6122, %v6121
          %v6171 = vpack.c.bf16 %v6124, %v6123
          %v6172 = vpack.c.bf16 %v6126, %v6125
          %v6173 = vpack.c.bf16 %v6128, %v6127
          %v6174 = vpack.c.bf16 %v6130, %v6129
          %v6175 = vpack.c.bf16 %v6132, %v6131
          %v6176 = vpack.c.bf16 %v6134, %v6133
          %v6177 = vpack.c.bf16 %v6136, %v6135
          %v6178 = vpack.c.bf16 %v6138, %v6137
          %v6179 = vpack.c.bf16 %v6140, %v6139
          %v6180 = vpack.c.bf16 %v6142, %v6141
          %v6181 = vpack.c.bf16 %v6144, %v6143
          %v6182 = vpack.c.bf16 %v6146, %v6145
          %v6183 = vpack.c.bf16 %v6148, %v6147
          %v6184 = vpack.c.bf16 %v6150, %v6149
          %v6185 = vpack.c.bf16 %v6152, %v6151
          %v6186 = vpack.c.bf16 %v6154, %v6153
          %v6187 = vld [vmem:[#allocation5] sm:$0xff]
          %v6188 = vld [vmem:[#allocation5 + $0x8] sm:$0xff]
          %v6189 = vld [vmem:[#allocation5 + $0x10] sm:$0xff]
          %v6190 = vld [vmem:[#allocation5 + $0x18] sm:$0xff]
          %v6191 = vld [vmem:[#allocation5 + $0x20] sm:$0xff]
          %v6192 = vld [vmem:[#allocation5 + $0x28] sm:$0xff]
          %v6193 = vld [vmem:[#allocation5 + $0x30] sm:$0xff]
          %v6194 = vld [vmem:[#allocation5 + $0x38] sm:$0xff]
          %v6195 = vld [vmem:[#allocation5 + $0x40] sm:$0xff]
          %v6196 = vld [vmem:[#allocation5 + $0x48] sm:$0xff]
          %v6197 = vld [vmem:[#allocation5 + $0x50] sm:$0xff]
          %v6198 = vld [vmem:[#allocation5 + $0x58] sm:$0xff]
          %v6199 = vld [vmem:[#allocation5 + $0x60] sm:$0xff]
          %v6200 = vld [vmem:[#allocation5 + $0x68] sm:$0xff]
          %v6201 = vld [vmem:[#allocation5 + $0x70] sm:$0xff]
          %v6202 = vld [vmem:[#allocation5 + $0x78] sm:$0xff]
          %v6203 = vld [vmem:[#allocation5 + $0x80] sm:$0xff]
          %v6204 = vld [vmem:[#allocation5 + $0x88] sm:$0xff]
          %v6205 = vld [vmem:[#allocation5 + $0x90] sm:$0xff]
          %v6206 = vld [vmem:[#allocation5 + $0x98] sm:$0xff]
          %v6207 = vld [vmem:[#allocation5 + $0xa0] sm:$0xff]
          %v6208 = vld [vmem:[#allocation5 + $0xa8] sm:$0xff]
          %v6209 = vld [vmem:[#allocation5 + $0xb0] sm:$0xff]
          %v6210 = vld [vmem:[#allocation5 + $0xb8] sm:$0xff]
          %v6211 = vld [vmem:[#allocation5 + $0xc0] sm:$0xff]
          %v6212 = vld [vmem:[#allocation5 + $0xc8] sm:$0xff]
          %v6213 = vld [vmem:[#allocation5 + $0xd0] sm:$0xff]
          %v6214 = vld [vmem:[#allocation5 + $0xd8] sm:$0xff]
          %v6215 = vld [vmem:[#allocation5 + $0xe0] sm:$0xff]
          %v6216 = vld [vmem:[#allocation5 + $0xe8] sm:$0xff]
          %v6217 = vld [vmem:[#allocation5 + $0xf0] sm:$0xff]
          %v6218 = vld [vmem:[#allocation5 + $0xf8] sm:$0xff]
          %v6219 = vld [vmem:[#allocation5 + $0x100] sm:$0xff]
          %v6220 = vld [vmem:[#allocation5 + $0x108] sm:$0xff]
          %v6221 = vld [vmem:[#allocation5 + $0x110] sm:$0xff]
          %v6222 = vld [vmem:[#allocation5 + $0x118] sm:$0xff]
          %v6223 = vld [vmem:[#allocation5 + $0x120] sm:$0xff]
          %v6224 = vld [vmem:[#allocation5 + $0x128] sm:$0xff]
          %v6225 = vld [vmem:[#allocation5 + $0x130] sm:$0xff]
          %v6226 = vld [vmem:[#allocation5 + $0x138] sm:$0xff]
          %v6227 = vld [vmem:[#allocation5 + $0x140] sm:$0xff]
          %v6228 = vld [vmem:[#allocation5 + $0x148] sm:$0xff]
          %v6229 = vld [vmem:[#allocation5 + $0x150] sm:$0xff]
          %v6230 = vld [vmem:[#allocation5 + $0x158] sm:$0xff]
          %v6231 = vld [vmem:[#allocation5 + $0x160] sm:$0xff]
          %v6232 = vld [vmem:[#allocation5 + $0x168] sm:$0xff]
          %v6233 = vld [vmem:[#allocation5 + $0x170] sm:$0xff]
          %v6234 = vld [vmem:[#allocation5 + $0x178] sm:$0xff]
          %v6235 = vld [vmem:[#allocation5 + $0x180] sm:$0xff]
          %v6236 = vld [vmem:[#allocation5 + $0x188] sm:$0xff]
          %v6237 = vld [vmem:[#allocation5 + $0x190] sm:$0xff]
          %v6238 = vld [vmem:[#allocation5 + $0x198] sm:$0xff]
          %v6239 = vld [vmem:[#allocation5 + $0x1a0] sm:$0xff]
          %v6240 = vld [vmem:[#allocation5 + $0x1a8] sm:$0xff]
          %v6241 = vld [vmem:[#allocation5 + $0x1b0] sm:$0xff]
          %v6242 = vld [vmem:[#allocation5 + $0x1b8] sm:$0xff]
          %v6243 = vld [vmem:[#allocation5 + $0x1c0] sm:$0xff]
          %v6244 = vld [vmem:[#allocation5 + $0x1c8] sm:$0xff]
          %v6245 = vld [vmem:[#allocation5 + $0x1d0] sm:$0xff]
          %v6246 = vld [vmem:[#allocation5 + $0x1d8] sm:$0xff]
          %v6247 = vld [vmem:[#allocation5 + $0x1e0] sm:$0xff]
          %v6248 = vld [vmem:[#allocation5 + $0x1e8] sm:$0xff]
          %v6249 = vld [vmem:[#allocation5 + $0x1f0] sm:$0xff]
          %v6250 = vld [vmem:[#allocation5 + $0x1f8] sm:$0xff]
          %v6251 = vld [vmem:[%s10] sm:$0xff]
          %v6252 = vld [vmem:[%s10 + $0x8] sm:$0xff]
          %v6253 = vld [vmem:[%s10 + $0x10] sm:$0xff]
          %v6254 = vld [vmem:[%s10 + $0x18] sm:$0xff]
          %v6255 = vld [vmem:[%s10 + $0x20] sm:$0xff]
          %v6256 = vld [vmem:[%s10 + $0x28] sm:$0xff]
          %v6257 = vld [vmem:[%s10 + $0x30] sm:$0xff]
          %v6258 = vld [vmem:[%s10 + $0x38] sm:$0xff]
          %v6259 = vld [vmem:[%s10 + $0x40] sm:$0xff]
          %v6260 = vld [vmem:[%s10 + $0x48] sm:$0xff]
          %v6261 = vld [vmem:[%s10 + $0x50] sm:$0xff]
          %v6262 = vld [vmem:[%s10 + $0x58] sm:$0xff]
          %v6263 = vld [vmem:[%s10 + $0x60] sm:$0xff]
          %v6264 = vld [vmem:[%s10 + $0x68] sm:$0xff]
          %v6265 = vld [vmem:[%s10 + $0x70] sm:$0xff]
          %v6266 = vld [vmem:[%s10 + $0x78] sm:$0xff]
          %v6267 = vld [vmem:[%s10 + $0x80] sm:$0xff]
          %v6268 = vld [vmem:[%s10 + $0x88] sm:$0xff]
          %v6269 = vld [vmem:[%s10 + $0x90] sm:$0xff]
          %v6270 = vld [vmem:[%s10 + $0x98] sm:$0xff]
          %v6271 = vld [vmem:[%s10 + $0xa0] sm:$0xff]
          %v6272 = vld [vmem:[%s10 + $0xa8] sm:$0xff]
          %v6273 = vld [vmem:[%s10 + $0xb0] sm:$0xff]
          %v6274 = vld [vmem:[%s10 + $0xb8] sm:$0xff]
          %v6275 = vld [vmem:[%s10 + $0xc0] sm:$0xff]
          %v6276 = vld [vmem:[%s10 + $0xc8] sm:$0xff]
          %v6277 = vld [vmem:[%s10 + $0xd0] sm:$0xff]
          %v6278 = vld [vmem:[%s10 + $0xd8] sm:$0xff]
          %v6279 = vld [vmem:[%s10 + $0xe0] sm:$0xff]
          %v6280 = vld [vmem:[%s10 + $0xe8] sm:$0xff]
          %v6281 = vld [vmem:[%s10 + $0xf0] sm:$0xff]
          %v6282 = vld [vmem:[%s10 + $0xf8] sm:$0xff]
          %v6347 = vunpack.c.l.b16 %v6187
          %v6348 = vunpack.c.h.b16 %v6187
          %v6349 = vunpack.c.l.b16 %v6188
          %v6350 = vunpack.c.h.b16 %v6188
          %v6351 = vunpack.c.l.b16 %v6189
          %v6352 = vunpack.c.h.b16 %v6189
          %v6353 = vunpack.c.l.b16 %v6190
          %v6354 = vunpack.c.h.b16 %v6190
          %v6355 = vunpack.c.l.b16 %v6191
          %v6356 = vunpack.c.h.b16 %v6191
          %v6357 = vunpack.c.l.b16 %v6192
          %v6358 = vunpack.c.h.b16 %v6192
          %v6359 = vunpack.c.l.b16 %v6193
          %v6360 = vunpack.c.h.b16 %v6193
          %v6361 = vunpack.c.l.b16 %v6194
          %v6362 = vunpack.c.h.b16 %v6194
          %v6363 = vunpack.c.l.b16 %v6195
          %v6364 = vunpack.c.h.b16 %v6195
          %v6365 = vunpack.c.l.b16 %v6196
          %v6366 = vunpack.c.h.b16 %v6196
          %v6367 = vunpack.c.l.b16 %v6197
          %v6368 = vunpack.c.h.b16 %v6197
          %v6369 = vunpack.c.l.b16 %v6198
          %v6370 = vunpack.c.h.b16 %v6198
          %v6371 = vunpack.c.l.b16 %v6199
          %v6372 = vunpack.c.h.b16 %v6199
          %v6373 = vunpack.c.l.b16 %v6200
          %v6374 = vunpack.c.h.b16 %v6200
          %v6375 = vunpack.c.l.b16 %v6201
          %v6376 = vunpack.c.h.b16 %v6201
          %v6377 = vunpack.c.l.b16 %v6202
          %v6378 = vunpack.c.h.b16 %v6202
          %v6379 = vunpack.c.l.b16 %v6203
          %v6380 = vunpack.c.h.b16 %v6203
          %v6381 = vunpack.c.l.b16 %v6204
          %v6382 = vunpack.c.h.b16 %v6204
          %v6383 = vunpack.c.l.b16 %v6205
          %v6384 = vunpack.c.h.b16 %v6205
          %v6385 = vunpack.c.l.b16 %v6206
          %v6386 = vunpack.c.h.b16 %v6206
          %v6387 = vunpack.c.l.b16 %v6207
          %v6388 = vunpack.c.h.b16 %v6207
          %v6389 = vunpack.c.l.b16 %v6208
          %v6390 = vunpack.c.h.b16 %v6208
          %v6391 = vunpack.c.l.b16 %v6209
          %v6392 = vunpack.c.h.b16 %v6209
          %v6393 = vunpack.c.l.b16 %v6210
          %v6394 = vunpack.c.h.b16 %v6210
          %v6395 = vunpack.c.l.b16 %v6211
          %v6396 = vunpack.c.h.b16 %v6211
          %v6397 = vunpack.c.l.b16 %v6212
          %v6398 = vunpack.c.h.b16 %v6212
          %v6399 = vunpack.c.l.b16 %v6213
          %v6400 = vunpack.c.h.b16 %v6213
          %v6401 = vunpack.c.l.b16 %v6214
          %v6402 = vunpack.c.h.b16 %v6214
          %v6403 = vunpack.c.l.b16 %v6215
          %v6404 = vunpack.c.h.b16 %v6215
          %v6405 = vunpack.c.l.b16 %v6216
          %v6406 = vunpack.c.h.b16 %v6216
          %v6407 = vunpack.c.l.b16 %v6217
          %v6408 = vunpack.c.h.b16 %v6217
          %v6409 = vunpack.c.l.b16 %v6218
          %v6410 = vunpack.c.h.b16 %v6218
          %v6411 = vunpack.c.l.b16 %v6219
          %v6412 = vunpack.c.h.b16 %v6219
          %v6413 = vunpack.c.l.b16 %v6220
          %v6414 = vunpack.c.h.b16 %v6220
          %v6415 = vunpack.c.l.b16 %v6221
          %v6416 = vunpack.c.h.b16 %v6221
          %v6417 = vunpack.c.l.b16 %v6222
          %v6418 = vunpack.c.h.b16 %v6222
          %v6419 = vunpack.c.l.b16 %v6223
          %v6420 = vunpack.c.h.b16 %v6223
          %v6421 = vunpack.c.l.b16 %v6224
          %v6422 = vunpack.c.h.b16 %v6224
          %v6423 = vunpack.c.l.b16 %v6225
          %v6424 = vunpack.c.h.b16 %v6225
          %v6425 = vunpack.c.l.b16 %v6226
          %v6426 = vunpack.c.h.b16 %v6226
          %v6427 = vunpack.c.l.b16 %v6227
          %v6428 = vunpack.c.h.b16 %v6227
          %v6429 = vunpack.c.l.b16 %v6228
          %v6430 = vunpack.c.h.b16 %v6228
          %v6431 = vunpack.c.l.b16 %v6229
          %v6432 = vunpack.c.h.b16 %v6229
          %v6433 = vunpack.c.l.b16 %v6230
          %v6434 = vunpack.c.h.b16 %v6230
          %v6435 = vunpack.c.l.b16 %v6231
          %v6436 = vunpack.c.h.b16 %v6231
          %v6437 = vunpack.c.l.b16 %v6232
          %v6438 = vunpack.c.h.b16 %v6232
          %v6439 = vunpack.c.l.b16 %v6233
          %v6440 = vunpack.c.h.b16 %v6233
          %v6441 = vunpack.c.l.b16 %v6234
          %v6442 = vunpack.c.h.b16 %v6234
          %v6443 = vunpack.c.l.b16 %v6235
          %v6444 = vunpack.c.h.b16 %v6235
          %v6445 = vunpack.c.l.b16 %v6236
          %v6446 = vunpack.c.h.b16 %v6236
          %v6447 = vunpack.c.l.b16 %v6237
          %v6448 = vunpack.c.h.b16 %v6237
          %v6449 = vunpack.c.l.b16 %v6238
          %v6450 = vunpack.c.h.b16 %v6238
          %v6451 = vunpack.c.l.b16 %v6239
          %v6452 = vunpack.c.h.b16 %v6239
          %v6453 = vunpack.c.l.b16 %v6240
          %v6454 = vunpack.c.h.b16 %v6240
          %v6455 = vunpack.c.l.b16 %v6241
          %v6456 = vunpack.c.h.b16 %v6241
          %v6457 = vunpack.c.l.b16 %v6242
          %v6458 = vunpack.c.h.b16 %v6242
          %v6459 = vunpack.c.l.b16 %v6243
          %v6460 = vunpack.c.h.b16 %v6243
          %v6461 = vunpack.c.l.b16 %v6244
          %v6462 = vunpack.c.h.b16 %v6244
          %v6463 = vunpack.c.l.b16 %v6245
          %v6464 = vunpack.c.h.b16 %v6245
          %v6465 = vunpack.c.l.b16 %v6246
          %v6466 = vunpack.c.h.b16 %v6246
          %v6467 = vunpack.c.l.b16 %v6247
          %v6468 = vunpack.c.h.b16 %v6247
          %v6469 = vunpack.c.l.b16 %v6248
          %v6470 = vunpack.c.h.b16 %v6248
          %v6471 = vunpack.c.l.b16 %v6249
          %v6472 = vunpack.c.h.b16 %v6249
          %v6473 = vunpack.c.l.b16 %v6250
          %v6474 = vunpack.c.h.b16 %v6250
          %v6475 = vpack.c.b16 %v6351, %v6347
          %v6476 = vpack.c.b16 %v6352, %v6348
          %v6477 = vpack.c.b16 %v6353, %v6349
          %v6478 = vpack.c.b16 %v6354, %v6350
          %v6479 = vpack.c.b16 %v6359, %v6355
          %v6480 = vpack.c.b16 %v6360, %v6356
          %v6481 = vpack.c.b16 %v6361, %v6357
          %v6482 = vpack.c.b16 %v6362, %v6358
          %v6483 = vpack.c.b16 %v6367, %v6363
          %v6484 = vpack.c.b16 %v6368, %v6364
          %v6485 = vpack.c.b16 %v6369, %v6365
          %v6486 = vpack.c.b16 %v6370, %v6366
          %v6487 = vpack.c.b16 %v6375, %v6371
          %v6488 = vpack.c.b16 %v6376, %v6372
          %v6489 = vpack.c.b16 %v6377, %v6373
          %v6490 = vpack.c.b16 %v6378, %v6374
          %v6491 = vpack.c.b16 %v6383, %v6379
          %v6492 = vpack.c.b16 %v6384, %v6380
          %v6493 = vpack.c.b16 %v6385, %v6381
          %v6494 = vpack.c.b16 %v6386, %v6382
          %v6495 = vpack.c.b16 %v6391, %v6387
          %v6496 = vpack.c.b16 %v6392, %v6388
          %v6497 = vpack.c.b16 %v6393, %v6389
          %v6498 = vpack.c.b16 %v6394, %v6390
          %v6499 = vpack.c.b16 %v6399, %v6395
          %v6500 = vpack.c.b16 %v6400, %v6396
          %v6501 = vpack.c.b16 %v6401, %v6397
          %v6502 = vpack.c.b16 %v6402, %v6398
          %v6503 = vpack.c.b16 %v6407, %v6403
          %v6504 = vpack.c.b16 %v6408, %v6404
          %v6505 = vpack.c.b16 %v6409, %v6405
          %v6506 = vpack.c.b16 %v6410, %v6406
          %v6507 = vpack.c.b16 %v6415, %v6411
          %v6508 = vpack.c.b16 %v6416, %v6412
          %v6509 = vpack.c.b16 %v6417, %v6413
          %v6510 = vpack.c.b16 %v6418, %v6414
          %v6511 = vpack.c.b16 %v6423, %v6419
          %v6512 = vpack.c.b16 %v6424, %v6420
          %v6513 = vpack.c.b16 %v6425, %v6421
          %v6514 = vpack.c.b16 %v6426, %v6422
          %v6515 = vpack.c.b16 %v6431, %v6427
          %v6516 = vpack.c.b16 %v6432, %v6428
          %v6517 = vpack.c.b16 %v6433, %v6429
          %v6518 = vpack.c.b16 %v6434, %v6430
          %v6519 = vpack.c.b16 %v6439, %v6435
          %v6520 = vpack.c.b16 %v6440, %v6436
          %v6521 = vpack.c.b16 %v6441, %v6437
          %v6522 = vpack.c.b16 %v6442, %v6438
          %v6523 = vpack.c.b16 %v6447, %v6443
          %v6524 = vpack.c.b16 %v6448, %v6444
          %v6525 = vpack.c.b16 %v6449, %v6445
          %v6526 = vpack.c.b16 %v6450, %v6446
          %v6527 = vpack.c.b16 %v6455, %v6451
          %v6528 = vpack.c.b16 %v6456, %v6452
          %v6529 = vpack.c.b16 %v6457, %v6453
          %v6530 = vpack.c.b16 %v6458, %v6454
          %v6531 = vpack.c.b16 %v6463, %v6459
          %v6532 = vpack.c.b16 %v6464, %v6460
          %v6533 = vpack.c.b16 %v6465, %v6461
          %v6534 = vpack.c.b16 %v6466, %v6462
          %v6535 = vpack.c.b16 %v6471, %v6467
          %v6536 = vpack.c.b16 %v6472, %v6468
          %v6537 = vpack.c.b16 %v6473, %v6469
          %v6538 = vpack.c.b16 %v6474, %v6470
          %6603 = vmatpush.bf16.msra.mxu0 %v6162
          %6604 = vmatpush.bf16.msra.mxu0 %v6161
          %6605 = vmatpush.bf16.msra.mxu0 %v6160
          %6606 = vmatpush.bf16.msra.mxu0 %v6159
          %6607 = vmatpush.bf16.msra.mxu0 %v6158
          %6608 = vmatpush.bf16.msra.mxu0 %v6157
          %6609 = vmatpush.bf16.msra.mxu0 %v6156
          %6610 = vmatpush.bf16.msra.mxu0 %v6155
          %6611 = vmatmul.bf16.gmra.mxu0 %v6475
          %v6612 = vpop.f32.mrf.mxu0
          %v6613 = vadd.f32 %v6251, %v6612
          %v6614 = vpop.f32.mrf.mxu0
          %v6615 = vadd.f32 %v6252, %v6614
          %6616 = vmatmul.bf16.gmra.mxu0 %v6479
          %v6617 = vpop.f32.mrf.mxu0
          %v6618 = vadd.f32 %v6253, %v6617
          %v6619 = vpop.f32.mrf.mxu0
          %v6620 = vadd.f32 %v6254, %v6619
          %6621 = vmatmul.bf16.gmra.mxu0 %v6483
          %v6622 = vpop.f32.mrf.mxu0
          %v6623 = vadd.f32 %v6255, %v6622
          %v6624 = vpop.f32.mrf.mxu0
          %v6625 = vadd.f32 %v6256, %v6624
          %6626 = vmatmul.bf16.gmra.mxu0 %v6487
          %v6627 = vpop.f32.mrf.mxu0
          %v6628 = vadd.f32 %v6257, %v6627
          %v6629 = vpop.f32.mrf.mxu0
          %v6630 = vadd.f32 %v6258, %v6629
          %6631 = vmatmul.bf16.gmra.mxu0 %v6491
          %v6632 = vpop.f32.mrf.mxu0
          %v6633 = vadd.f32 %v6259, %v6632
          %v6634 = vpop.f32.mrf.mxu0
          %v6635 = vadd.f32 %v6260, %v6634
          %6636 = vmatmul.bf16.gmra.mxu0 %v6495
          %v6637 = vpop.f32.mrf.mxu0
          %v6638 = vadd.f32 %v6261, %v6637
          %v6639 = vpop.f32.mrf.mxu0
          %v6640 = vadd.f32 %v6262, %v6639
          %6641 = vmatmul.bf16.gmra.mxu0 %v6499
          %v6642 = vpop.f32.mrf.mxu0
          %v6643 = vadd.f32 %v6263, %v6642
          %v6644 = vpop.f32.mrf.mxu0
          %v6645 = vadd.f32 %v6264, %v6644
          %6646 = vmatmul.bf16.gmra.mxu0 %v6503
          %v6647 = vpop.f32.mrf.mxu0
          %v6648 = vadd.f32 %v6265, %v6647
          %v6649 = vpop.f32.mrf.mxu0
          %v6650 = vadd.f32 %v6266, %v6649
          %6651 = vmatmul.bf16.gmra.mxu0 %v6507
          %v6652 = vpop.f32.mrf.mxu0
          %v6653 = vadd.f32 %v6267, %v6652
          %v6654 = vpop.f32.mrf.mxu0
          %v6655 = vadd.f32 %v6268, %v6654
          %6656 = vmatmul.bf16.gmra.mxu0 %v6511
          %v6657 = vpop.f32.mrf.mxu0
          %v6658 = vadd.f32 %v6269, %v6657
          %v6659 = vpop.f32.mrf.mxu0
          %v6660 = vadd.f32 %v6270, %v6659
          %6661 = vmatmul.bf16.gmra.mxu0 %v6515
          %v6662 = vpop.f32.mrf.mxu0
          %v6663 = vadd.f32 %v6271, %v6662
          %v6664 = vpop.f32.mrf.mxu0
          %v6665 = vadd.f32 %v6272, %v6664
          %6666 = vmatmul.bf16.gmra.mxu0 %v6519
          %v6667 = vpop.f32.mrf.mxu0
          %v6668 = vadd.f32 %v6273, %v6667
          %v6669 = vpop.f32.mrf.mxu0
          %v6670 = vadd.f32 %v6274, %v6669
          %6671 = vmatmul.bf16.gmra.mxu0 %v6523
          %v6672 = vpop.f32.mrf.mxu0
          %v6673 = vadd.f32 %v6275, %v6672
          %v6674 = vpop.f32.mrf.mxu0
          %v6675 = vadd.f32 %v6276, %v6674
          %6676 = vmatmul.bf16.gmra.mxu0 %v6527
          %v6677 = vpop.f32.mrf.mxu0
          %v6678 = vadd.f32 %v6277, %v6677
          %v6679 = vpop.f32.mrf.mxu0
          %v6680 = vadd.f32 %v6278, %v6679
          %6681 = vmatmul.bf16.gmra.mxu0 %v6531
          %v6682 = vpop.f32.mrf.mxu0
          %v6683 = vadd.f32 %v6279, %v6682
          %v6684 = vpop.f32.mrf.mxu0
          %v6685 = vadd.f32 %v6280, %v6684
          %6686 = vmatmul.bf16.gmra.mxu0 %v6535
          %v6687 = vpop.f32.mrf.mxu0
          %v6688 = vadd.f32 %v6281, %v6687
          %v6689 = vpop.f32.mrf.mxu0
          %v6690 = vadd.f32 %v6282, %v6689
          %6691 = vdwg.mxu0
          %6692 = vmatpush.bf16.msra.mxu0 %v6170
          %6693 = vmatpush.bf16.msra.mxu0 %v6169
          %6694 = vmatpush.bf16.msra.mxu0 %v6168
          %6695 = vmatpush.bf16.msra.mxu0 %v6167
          %6696 = vmatpush.bf16.msra.mxu0 %v6166
          %6697 = vmatpush.bf16.msra.mxu0 %v6165
          %6698 = vmatpush.bf16.msra.mxu0 %v6164
          %6699 = vmatpush.bf16.msra.mxu0 %v6163
          %6700 = vmatmul.bf16.gmra.mxu0 %v6476
          %v6701 = vpop.f32.mrf.mxu0
          %v6702 = vadd.f32 %v6613, %v6701
          %v6703 = vpop.f32.mrf.mxu0
          %v6704 = vadd.f32 %v6615, %v6703
          %6705 = vmatmul.bf16.gmra.mxu0 %v6480
          %v6706 = vpop.f32.mrf.mxu0
          %v6707 = vadd.f32 %v6618, %v6706
          %v6708 = vpop.f32.mrf.mxu0
          %v6709 = vadd.f32 %v6620, %v6708
          %6710 = vmatmul.bf16.gmra.mxu0 %v6484
          %v6711 = vpop.f32.mrf.mxu0
          %v6712 = vadd.f32 %v6623, %v6711
          %v6713 = vpop.f32.mrf.mxu0
          %v6714 = vadd.f32 %v6625, %v6713
          %6715 = vmatmul.bf16.gmra.mxu0 %v6488
          %v6716 = vpop.f32.mrf.mxu0
          %v6717 = vadd.f32 %v6628, %v6716
          %v6718 = vpop.f32.mrf.mxu0
          %v6719 = vadd.f32 %v6630, %v6718
          %6720 = vmatmul.bf16.gmra.mxu0 %v6492
          %v6721 = vpop.f32.mrf.mxu0
          %v6722 = vadd.f32 %v6633, %v6721
          %v6723 = vpop.f32.mrf.mxu0
          %v6724 = vadd.f32 %v6635, %v6723
          %6725 = vmatmul.bf16.gmra.mxu0 %v6496
          %v6726 = vpop.f32.mrf.mxu0
          %v6727 = vadd.f32 %v6638, %v6726
          %v6728 = vpop.f32.mrf.mxu0
          %v6729 = vadd.f32 %v6640, %v6728
          %6730 = vmatmul.bf16.gmra.mxu0 %v6500
          %v6731 = vpop.f32.mrf.mxu0
          %v6732 = vadd.f32 %v6643, %v6731
          %v6733 = vpop.f32.mrf.mxu0
          %v6734 = vadd.f32 %v6645, %v6733
          %6735 = vmatmul.bf16.gmra.mxu0 %v6504
          %v6736 = vpop.f32.mrf.mxu0
          %v6737 = vadd.f32 %v6648, %v6736
          %v6738 = vpop.f32.mrf.mxu0
          %v6739 = vadd.f32 %v6650, %v6738
          %6740 = vmatmul.bf16.gmra.mxu0 %v6508
          %v6741 = vpop.f32.mrf.mxu0
          %v6742 = vadd.f32 %v6653, %v6741
          %v6743 = vpop.f32.mrf.mxu0
          %v6744 = vadd.f32 %v6655, %v6743
          %6745 = vmatmul.bf16.gmra.mxu0 %v6512
          %v6746 = vpop.f32.mrf.mxu0
          %v6747 = vadd.f32 %v6658, %v6746
          %v6748 = vpop.f32.mrf.mxu0
          %v6749 = vadd.f32 %v6660, %v6748
          %6750 = vmatmul.bf16.gmra.mxu0 %v6516
          %v6751 = vpop.f32.mrf.mxu0
          %v6752 = vadd.f32 %v6663, %v6751
          %v6753 = vpop.f32.mrf.mxu0
          %v6754 = vadd.f32 %v6665, %v6753
          %6755 = vmatmul.bf16.gmra.mxu0 %v6520
          %v6756 = vpop.f32.mrf.mxu0
          %v6757 = vadd.f32 %v6668, %v6756
          %v6758 = vpop.f32.mrf.mxu0
          %v6759 = vadd.f32 %v6670, %v6758
          %6760 = vmatmul.bf16.gmra.mxu0 %v6524
          %v6761 = vpop.f32.mrf.mxu0
          %v6762 = vadd.f32 %v6673, %v6761
          %v6763 = vpop.f32.mrf.mxu0
          %v6764 = vadd.f32 %v6675, %v6763
          %6765 = vmatmul.bf16.gmra.mxu0 %v6528
          %v6766 = vpop.f32.mrf.mxu0
          %v6767 = vadd.f32 %v6678, %v6766
          %v6768 = vpop.f32.mrf.mxu0
          %v6769 = vadd.f32 %v6680, %v6768
          %6770 = vmatmul.bf16.gmra.mxu0 %v6532
          %v6771 = vpop.f32.mrf.mxu0
          %v6772 = vadd.f32 %v6683, %v6771
          %v6773 = vpop.f32.mrf.mxu0
          %v6774 = vadd.f32 %v6685, %v6773
          %6775 = vmatmul.bf16.gmra.mxu0 %v6536
          %v6776 = vpop.f32.mrf.mxu0
          %v6777 = vadd.f32 %v6688, %v6776
          %v6778 = vpop.f32.mrf.mxu0
          %v6779 = vadd.f32 %v6690, %v6778
          %6780 = vdwg.mxu0
          %6781 = vmatpush.bf16.msra.mxu0 %v6178
          %6782 = vmatpush.bf16.msra.mxu0 %v6177
          %6783 = vmatpush.bf16.msra.mxu0 %v6176
          %6784 = vmatpush.bf16.msra.mxu0 %v6175
          %6785 = vmatpush.bf16.msra.mxu0 %v6174
          %6786 = vmatpush.bf16.msra.mxu0 %v6173
          %6787 = vmatpush.bf16.msra.mxu0 %v6172
          %6788 = vmatpush.bf16.msra.mxu0 %v6171
          %6789 = vmatmul.bf16.gmra.mxu0 %v6477
          %v6790 = vpop.f32.mrf.mxu0
          %v6791 = vadd.f32 %v6702, %v6790
          %v6792 = vpop.f32.mrf.mxu0
          %v6793 = vadd.f32 %v6704, %v6792
          %6794 = vmatmul.bf16.gmra.mxu0 %v6481
          %v6795 = vpop.f32.mrf.mxu0
          %v6796 = vadd.f32 %v6707, %v6795
          %v6797 = vpop.f32.mrf.mxu0
          %v6798 = vadd.f32 %v6709, %v6797
          %6799 = vmatmul.bf16.gmra.mxu0 %v6485
          %v6800 = vpop.f32.mrf.mxu0
          %v6801 = vadd.f32 %v6712, %v6800
          %v6802 = vpop.f32.mrf.mxu0
          %v6803 = vadd.f32 %v6714, %v6802
          %6804 = vmatmul.bf16.gmra.mxu0 %v6489
          %v6805 = vpop.f32.mrf.mxu0
          %v6806 = vadd.f32 %v6717, %v6805
          %v6807 = vpop.f32.mrf.mxu0
          %v6808 = vadd.f32 %v6719, %v6807
          %6809 = vmatmul.bf16.gmra.mxu0 %v6493
          %v6810 = vpop.f32.mrf.mxu0
          %v6811 = vadd.f32 %v6722, %v6810
          %v6812 = vpop.f32.mrf.mxu0
          %v6813 = vadd.f32 %v6724, %v6812
          %6814 = vmatmul.bf16.gmra.mxu0 %v6497
          %v6815 = vpop.f32.mrf.mxu0
          %v6816 = vadd.f32 %v6727, %v6815
          %v6817 = vpop.f32.mrf.mxu0
          %v6818 = vadd.f32 %v6729, %v6817
          %6819 = vmatmul.bf16.gmra.mxu0 %v6501
          %v6820 = vpop.f32.mrf.mxu0
          %v6821 = vadd.f32 %v6732, %v6820
          %v6822 = vpop.f32.mrf.mxu0
          %v6823 = vadd.f32 %v6734, %v6822
          %6824 = vmatmul.bf16.gmra.mxu0 %v6505
          %v6825 = vpop.f32.mrf.mxu0
          %v6826 = vadd.f32 %v6737, %v6825
          %v6827 = vpop.f32.mrf.mxu0
          %v6828 = vadd.f32 %v6739, %v6827
          %6829 = vmatmul.bf16.gmra.mxu0 %v6509
          %v6830 = vpop.f32.mrf.mxu0
          %v6831 = vadd.f32 %v6742, %v6830
          %v6832 = vpop.f32.mrf.mxu0
          %v6833 = vadd.f32 %v6744, %v6832
          %6834 = vmatmul.bf16.gmra.mxu0 %v6513
          %v6835 = vpop.f32.mrf.mxu0
          %v6836 = vadd.f32 %v6747, %v6835
          %v6837 = vpop.f32.mrf.mxu0
          %v6838 = vadd.f32 %v6749, %v6837
          %6839 = vmatmul.bf16.gmra.mxu0 %v6517
          %v6840 = vpop.f32.mrf.mxu0
          %v6841 = vadd.f32 %v6752, %v6840
          %v6842 = vpop.f32.mrf.mxu0
          %v6843 = vadd.f32 %v6754, %v6842
          %6844 = vmatmul.bf16.gmra.mxu0 %v6521
          %v6845 = vpop.f32.mrf.mxu0
          %v6846 = vadd.f32 %v6757, %v6845
          %v6847 = vpop.f32.mrf.mxu0
          %v6848 = vadd.f32 %v6759, %v6847
          %6849 = vmatmul.bf16.gmra.mxu0 %v6525
          %v6850 = vpop.f32.mrf.mxu0
          %v6851 = vadd.f32 %v6762, %v6850
          %v6852 = vpop.f32.mrf.mxu0
          %v6853 = vadd.f32 %v6764, %v6852
          %6854 = vmatmul.bf16.gmra.mxu0 %v6529
          %v6855 = vpop.f32.mrf.mxu0
          %v6856 = vadd.f32 %v6767, %v6855
          %v6857 = vpop.f32.mrf.mxu0
          %v6858 = vadd.f32 %v6769, %v6857
          %6859 = vmatmul.bf16.gmra.mxu0 %v6533
          %v6860 = vpop.f32.mrf.mxu0
          %v6861 = vadd.f32 %v6772, %v6860
          %v6862 = vpop.f32.mrf.mxu0
          %v6863 = vadd.f32 %v6774, %v6862
          %6864 = vmatmul.bf16.gmra.mxu0 %v6537
          %v6865 = vpop.f32.mrf.mxu0
          %v6866 = vadd.f32 %v6777, %v6865
          %v6867 = vpop.f32.mrf.mxu0
          %v6868 = vadd.f32 %v6779, %v6867
          %6869 = vdwg.mxu0
          %6870 = vmatpush.bf16.msra.mxu0 %v6186
          %6871 = vmatpush.bf16.msra.mxu0 %v6185
          %6872 = vmatpush.bf16.msra.mxu0 %v6184
          %6873 = vmatpush.bf16.msra.mxu0 %v6183
          %6874 = vmatpush.bf16.msra.mxu0 %v6182
          %6875 = vmatpush.bf16.msra.mxu0 %v6181
          %6876 = vmatpush.bf16.msra.mxu0 %v6180
          %6877 = vmatpush.bf16.msra.mxu0 %v6179
          %6878 = vmatmul.bf16.gmra.mxu0 %v6478
          %v6879 = vpop.f32.mrf.mxu0
          %v6880 = vadd.f32 %v6791, %v6879
          %v6881 = vpop.f32.mrf.mxu0
          %v6882 = vadd.f32 %v6793, %v6881
          %6883 = vmatmul.bf16.gmra.mxu0 %v6482
          %v6884 = vpop.f32.mrf.mxu0
          %v6885 = vadd.f32 %v6796, %v6884
          %v6886 = vpop.f32.mrf.mxu0
          %v6887 = vadd.f32 %v6798, %v6886
          %6888 = vmatmul.bf16.gmra.mxu0 %v6486
          %v6889 = vpop.f32.mrf.mxu0
          %v6890 = vadd.f32 %v6801, %v6889
          %v6891 = vpop.f32.mrf.mxu0
          %v6892 = vadd.f32 %v6803, %v6891
          %6893 = vmatmul.bf16.gmra.mxu0 %v6490
          %v6894 = vpop.f32.mrf.mxu0
          %v6895 = vadd.f32 %v6806, %v6894
          %v6896 = vpop.f32.mrf.mxu0
          %v6897 = vadd.f32 %v6808, %v6896
          %6898 = vmatmul.bf16.gmra.mxu0 %v6494
          %v6899 = vpop.f32.mrf.mxu0
          %v6900 = vadd.f32 %v6811, %v6899
          %v6901 = vpop.f32.mrf.mxu0
          %v6902 = vadd.f32 %v6813, %v6901
          %6903 = vmatmul.bf16.gmra.mxu0 %v6498
          %v6904 = vpop.f32.mrf.mxu0
          %v6905 = vadd.f32 %v6816, %v6904
          %v6906 = vpop.f32.mrf.mxu0
          %v6907 = vadd.f32 %v6818, %v6906
          %6908 = vmatmul.bf16.gmra.mxu0 %v6502
          %v6909 = vpop.f32.mrf.mxu0
          %v6910 = vadd.f32 %v6821, %v6909
          %v6911 = vpop.f32.mrf.mxu0
          %v6912 = vadd.f32 %v6823, %v6911
          %6913 = vmatmul.bf16.gmra.mxu0 %v6506
          %v6914 = vpop.f32.mrf.mxu0
          %v6915 = vadd.f32 %v6826, %v6914
          %v6916 = vpop.f32.mrf.mxu0
          %v6917 = vadd.f32 %v6828, %v6916
          %6918 = vmatmul.bf16.gmra.mxu0 %v6510
          %v6919 = vpop.f32.mrf.mxu0
          %v6920 = vadd.f32 %v6831, %v6919
          %v6921 = vpop.f32.mrf.mxu0
          %v6922 = vadd.f32 %v6833, %v6921
          %6923 = vmatmul.bf16.gmra.mxu0 %v6514
          %v6924 = vpop.f32.mrf.mxu0
          %v6925 = vadd.f32 %v6836, %v6924
          %v6926 = vpop.f32.mrf.mxu0
          %v6927 = vadd.f32 %v6838, %v6926
          %6928 = vmatmul.bf16.gmra.mxu0 %v6518
          %v6929 = vpop.f32.mrf.mxu0
          %v6930 = vadd.f32 %v6841, %v6929
          %v6931 = vpop.f32.mrf.mxu0
          %v6932 = vadd.f32 %v6843, %v6931
          %6933 = vmatmul.bf16.gmra.mxu0 %v6522
          %v6934 = vpop.f32.mrf.mxu0
          %v6935 = vadd.f32 %v6846, %v6934
          %v6936 = vpop.f32.mrf.mxu0
          %v6937 = vadd.f32 %v6848, %v6936
          %6938 = vmatmul.bf16.gmra.mxu0 %v6526
          %v6939 = vpop.f32.mrf.mxu0
          %v6940 = vadd.f32 %v6851, %v6939
          %v6941 = vpop.f32.mrf.mxu0
          %v6942 = vadd.f32 %v6853, %v6941
          %6943 = vmatmul.bf16.gmra.mxu0 %v6530
          %v6944 = vpop.f32.mrf.mxu0
          %v6945 = vadd.f32 %v6856, %v6944
          %v6946 = vpop.f32.mrf.mxu0
          %v6947 = vadd.f32 %v6858, %v6946
          %6948 = vmatmul.bf16.gmra.mxu0 %v6534
          %v6949 = vpop.f32.mrf.mxu0
          %v6950 = vadd.f32 %v6861, %v6949
          %v6951 = vpop.f32.mrf.mxu0
          %v6952 = vadd.f32 %v6863, %v6951
          %6953 = vmatmul.bf16.gmra.mxu0 %v6538
          %v6954 = vpop.f32.mrf.mxu0
          %v6955 = vadd.f32 %v6866, %v6954
          %v6956 = vpop.f32.mrf.mxu0
          %v6957 = vadd.f32 %v6868, %v6956
          %6958 = vdwg.mxu0
          %v6959 = vmax.f32 %v6880, 0.0
          %v6960 = vmax.f32 %v6882, 0.0
          %v6961 = vmax.f32 %v6885, 0.0
          %v6962 = vmax.f32 %v6887, 0.0
          %v6963 = vmax.f32 %v6890, 0.0
          %v6964 = vmax.f32 %v6892, 0.0
          %v6965 = vmax.f32 %v6895, 0.0
          %v6966 = vmax.f32 %v6897, 0.0
          %v6967 = vmax.f32 %v6900, 0.0
          %v6968 = vmax.f32 %v6902, 0.0
          %v6969 = vmax.f32 %v6905, 0.0
          %v6970 = vmax.f32 %v6907, 0.0
          %v6971 = vmax.f32 %v6910, 0.0
          %v6972 = vmax.f32 %v6912, 0.0
          %v6973 = vmax.f32 %v6915, 0.0
          %v6974 = vmax.f32 %v6917, 0.0
          %v6975 = vmax.f32 %v6920, 0.0
          %v6976 = vmax.f32 %v6922, 0.0
          %v6977 = vmax.f32 %v6925, 0.0
          %v6978 = vmax.f32 %v6927, 0.0
          %v6979 = vmax.f32 %v6930, 0.0
          %v6980 = vmax.f32 %v6932, 0.0
          %v6981 = vmax.f32 %v6935, 0.0
          %v6982 = vmax.f32 %v6937, 0.0
          %v6983 = vmax.f32 %v6940, 0.0
          %v6984 = vmax.f32 %v6942, 0.0
          %v6985 = vmax.f32 %v6945, 0.0
          %v6986 = vmax.f32 %v6947, 0.0
          %v6987 = vmax.f32 %v6950, 0.0
          %v6988 = vmax.f32 %v6952, 0.0
          %v6989 = vmax.f32 %v6955, 0.0
          %v6990 = vmax.f32 %v6957, 0.0
          %v6991 = vpack.c.bf16 %v6960, %v6959
          %v6992 = vpack.c.bf16 %v6962, %v6961
          %v6993 = vpack.c.bf16 %v6964, %v6963
          %v6994 = vpack.c.bf16 %v6966, %v6965
          %v6995 = vpack.c.bf16 %v6968, %v6967
          %v6996 = vpack.c.bf16 %v6970, %v6969
          %v6997 = vpack.c.bf16 %v6972, %v6971
          %v6998 = vpack.c.bf16 %v6974, %v6973
          %v6999 = vpack.c.bf16 %v6976, %v6975
          %v7000 = vpack.c.bf16 %v6978, %v6977
          %v7001 = vpack.c.bf16 %v6980, %v6979
          %v7002 = vpack.c.bf16 %v6982, %v6981
          %v7003 = vpack.c.bf16 %v6984, %v6983
          %v7004 = vpack.c.bf16 %v6986, %v6985
          %v7005 = vpack.c.bf16 %v6988, %v6987
          %v7006 = vpack.c.bf16 %v6990, %v6989
          %v7007 = vld [vmem:[%s11] sm:$0xff]
          %v7008 = vld [vmem:[%s11 + $0x8] sm:$0x11]
          %v7009 = vld [vmem:[%s12] sm:$0xff]
          %v7010 = vld [vmem:[%s12 + $0x8] sm:$0x1]
          %v7013 = vunpack.c.l.b16 %v7007
          %v7014 = vunpack.c.h.b16 %v7007
          %v7015 = vunpack.c.l.b16 %v7008
          %v7016 = vunpack.c.h.b16 %v7008
          %v7017 = vpack.c.b16 %v7015, %v7013
          %v7018 = vpack.c.b16 %v7016, %v7014
          %7021 = vmatpush.bf16.msra.mxu0 %v6998
          %7022 = vmatpush.bf16.msra.mxu0 %v6997
          %7023 = vmatpush.bf16.msra.mxu0 %v6996
          %7024 = vmatpush.bf16.msra.mxu0 %v6995
          %7025 = vmatpush.bf16.msra.mxu0 %v6994
          %7026 = vmatpush.bf16.msra.mxu0 %v6993
          %7027 = vmatpush.bf16.msra.mxu0 %v6992
          %7028 = vmatpush.bf16.msra.mxu0 %v6991
          %7029 = vmatmul.bf16.gmra.mxu0 %v7017
          %v7030 = vpop.f32.mrf.mxu0
          %v7031 = vadd.f32 %v7009, %v7030
          %v7032 = vpop.f32.mrf.mxu0
          %v7033 = vadd.f32 %v7010, %v7032
          %7034 = vdwg.mxu0
          %7035 = vmatpush.bf16.msra.mxu0 %v7006
          %7036 = vmatpush.bf16.msra.mxu0 %v7005
          %7037 = vmatpush.bf16.msra.mxu0 %v7004
          %7038 = vmatpush.bf16.msra.mxu0 %v7003
          %7039 = vmatpush.bf16.msra.mxu0 %v7002
          %7040 = vmatpush.bf16.msra.mxu0 %v7001
          %7041 = vmatpush.bf16.msra.mxu0 %v7000
          %7042 = vmatpush.bf16.msra.mxu0 %v6999
          %7043 = vmatmul.bf16.gmra.mxu0 %v7018
          %v7044 = vpop.f32.mrf.mxu0
          %v7045 = vadd.f32 %v7031, %v7044
          %v7046 = vpop.f32.mrf.mxu0
          %v7047 = vadd.f32 %v7033, %v7046
          %7048 = vdwg.mxu0
          %vm7049 = vcmask 7168
          %7050 = vst.msk [vmem:[%s494] sm:$0xff] %vm7049, %v7045
          %vm7051 = vcmask 0
          %7052 = vst.msk [vmem:[%s494 + $0x8] sm:$0x1] %vm7051, %v7047
        $region88: #{tpu_custom_call.1} parent=71 // pred_fallthru
          _
        %p7053 = scmp.lt.s32.totalorder %s30, 1
        %s7054 = scalar_select %p7053, %s30, 1
        %s7055 = smul.addr %s7054, 2
        %s7056 = smul.addr %s7055, 8
        %s7057 = scalar_lea.vmem %s13, %s7056
        // Predicated region
        $region89: #{tpu_custom_call.1} parent=71 // pred_check
          %p7058 = pneg %p336
        $region90: #{tpu_custom_call.1} parent=71 // pred_check_branch
          %7060 = sbr.rel (%p7058) target = $region92
        $region91: #{tpu_custom_call.1} parent=71 // pred_region
          _
        $region92: #{tpu_custom_call.1} parent=71 // pred_fallthru
          _
      $region72: #{tpu_custom_call.1} parent=5 // pred_fallthru
        _
      %p7061 = scmp.le.s32.totalorder 2, %s21
      // Predicated region
      $region93: #{tpu_custom_call.1} parent=5 // pred_check
        %p7062 = pneg %p7061
      $region94: #{tpu_custom_call.1} parent=5 // pred_check_branch
        %7064 = sbr.rel (%p7062) target = $region96
      $region95: #{tpu_custom_call.1} parent=5 // pred_region
        %s7065 = ssub.s32 %s21, 2
        // Predicated region
        $region97: #{tpu_custom_call.1} parent=95 // pred_check
          %p7066 = pneg %p342
        $region98: #{tpu_custom_call.1} parent=95 // pred_check_branch
          %7068 = sbr.rel (%p7066) target = $region100
        $region99: #{tpu_custom_call.1} parent=95 // pred_region
          %p7069 = scmp.lt.s32.totalorder %s32, 1
          %s7070 = scalar_select %p7069, %s32, 1
          %s7071 = smul.addr %s7070, 2
          %s7072 = smul.addr %s7071, 8
          %s7073 = scalar_lea.vmem %s13, %s7072
        $region100: #{tpu_custom_call.1} parent=95 // pred_fallthru
          _
      $region96: #{tpu_custom_call.1} parent=5 // pred_fallthru
        _
    $region6: #{tpu_custom_call.1} parent=1 // loop_footer
      %s25 = sadd.s32 1, %s21
    $region7: #{tpu_custom_call.1} parent=1 // loop_footer_branch
      %20 = sbr.rel target = $region3
    $region8: #{tpu_custom_call.1} parent=1 // loop_exit
      _
    %7074 = vsyncpa [#allocation4], 1
    %s7075 = scalar_lea.sflag [#allocation4], 1
    %7076 = vsyncpa %s7075, 1
    %7077 = vsyncpa [#allocation6], 1

</llo_original>
